<compile_context>
chip_gen: v5e
topology: v5e:2x2
jax: 0.10.0
libtpu: 0.0.40
codegen_flags: <defaults>
</compile_context>

<pallas_src>
import numpy as np

import jax
import jax.numpy as jnp
from jax.experimental import pallas as pl
from jax.experimental.pallas import tpu as pltpu


# ----------------------------- model config --------------------------------
BATCH = 2
IN_CH = 3
IMG = 32
PATCH = 4
EMBED = 32
WINDOW = 4
DEPTHS = (2, 2)
HEADS = (2, 4)
MLP_RATIO = 4
NUM_CLASSES = 10

_GRID1 = IMG // PATCH            # 8   stage-1 token grid
_GRID2 = _GRID1 // 2             # 4   stage-2 token grid
_L1 = _GRID1 * _GRID1            # 64  tokens @ dim 32
_L2 = _GRID2 * _GRID2            # 16  tokens @ dim 64
_PATCH_DIM = IN_CH * PATCH * PATCH   # 48
_PAD_CLASSES = 128               # lane-dense padded logits width

# Per-block operands after host-side folding (LN affines + attn scale folded away).
_BLOCK_KEYS = ("qkv_w", "qkv_b", "proj_w", "proj_b", "attn_bias",
               "fc1_w", "fc1_b", "fc2_w", "fc2_b")
_NBLK = len(_BLOCK_KEYS)


# ------------------------ in-kernel math helpers ----------------------------
def _mm(a, b):
    # bf16 operands, f32 accumulation -> full MXU rate (casts are no-ops for pre-cast bf16 weights).
    return jnp.dot(a.astype(jnp.bfloat16), b.astype(jnp.bfloat16),
                   preferred_element_type=jnp.float32)


def _mm_nt(a, b):
    # a @ b.T without materializing a transpose.
    return jax.lax.dot_general(
        a.astype(jnp.bfloat16), b.astype(jnp.bfloat16),
        (((1,), (1,)), ((), ())), preferred_element_type=jnp.float32)


def _ln_plain(x, eps=1e-5):
    # LayerNorm without affine (gamma/beta folded into the following matmul host-side).
    mu = jnp.mean(x, axis=-1, keepdims=True)
    xc = x - mu
    var = jnp.mean(xc * xc, axis=-1, keepdims=True)
    return xc * jax.lax.rsqrt(var + eps)


def _ln_affine(x, g, b, eps=1e-5):
    mu = jnp.mean(x, axis=-1, keepdims=True)
    xc = x - mu
    var = jnp.mean(xc * xc, axis=-1, keepdims=True)
    return xc * jax.lax.rsqrt(var + eps) * g + b


def _gelu(x):
    # TODO(synk): tanh approximation; PyTorch nn.GELU default is exact erf.
    c = jnp.float32(0.7978845608028654)  # sqrt(2/pi)
    return 0.5 * x * (1.0 + jnp.tanh(c * (x + 0.044715 * x * x * x)))


def _swin_block(x, refs, nh):
    """One Swin block on flat tokens [L, C]; windows/shift live in attn_bias.

    LN1 affine + attention scale are folded into qkv_w/qkv_b; LN2 affine into fc1_w/fc1_b.
    Head outputs accumulate straight into the projection (no lane concat).
    """
    qkv_w, qkv_b, proj_w, proj_b, attn_bias, fc1_w, fc1_b, fc2_w, fc2_b = refs
    L, C = x.shape
    dh = C // nh

    shortcut = x
    xn = _ln_plain(x)
    qkv = _mm(xn, qkv_w[...]) + qkv_b[...]            # [L, 3C]

    acc = jnp.zeros((L, C), jnp.float32)
    for h in range(nh):                               # nh in {2, 4}: fully unrolled
        q = qkv[:, h * dh:(h + 1) * dh]
        k = qkv[:, C + h * dh:C + (h + 1) * dh]
        v = qkv[:, 2 * C + h * dh:2 * C + (h + 1) * dh]
        s = _mm_nt(q, k) + attn_bias[h]               # [L, L] dense, block-diag via bias
        s = s - jnp.max(s, axis=-1, keepdims=True)
        e = jnp.exp(s)
        p = e * pl.reciprocal(jnp.sum(e, axis=-1, keepdims=True), approx=True)
        hv = _mm(p, v)                                # [L, dh]
        acc = acc + _mm(hv, proj_w[h * dh:(h + 1) * dh, :])
    x = shortcut + acc + proj_b[...]

    xn2 = _ln_plain(x)
    h1 = _gelu(_mm(xn2, fc1_w[...]) + fc1_b[...])
    return x + _mm(h1, fc2_w[...]) + fc2_b[...]


# ------------------------------ fused kernel --------------------------------
def _fused_kernel(*refs):
    patches_ref = refs[0]
    pe_w, pe_b, pe_g, pe_bb = refs[1:5]
    i = 5
    blk11 = refs[i:i + _NBLK]; i += _NBLK
    blk12 = refs[i:i + _NBLK]; i += _NBLK
    red_w, red_b = refs[i], refs[i + 1]; i += 2
    blk21 = refs[i:i + _NBLK]; i += _NBLK
    blk22 = refs[i:i + _NBLK]; i += _NBLK
    cfc1_w, cfc1_b, cfc2_w, cfc2_b = refs[i:i + 4]
    out_ref = refs[-1]

    # ---- stage 1: patch embed (4x4 conv == matmul) + LN + W-MSA + SW-MSA ----
    x = patches_ref[0]                                 # [64, 48] f32, tokens in merge order
    x = _mm(x, pe_w[...]) + pe_b[...]
    x = _ln_affine(x, pe_g[...], pe_bb[...])
    x = _swin_block(x, blk11, HEADS[0])                # W-MSA
    x = _swin_block(x, blk12, HEADS[0])                # SW-MSA (shift folded into bias)

    # ---- patch merging: tokens are group-major, so groups are contiguous row blocks.
    # Merge-LN affine is folded into red_w / red_b host-side; only mean/rsqrt runs here.
    C2 = 2 * EMBED
    groups = [x[g * _L2:(g + 1) * _L2, :] for g in range(4)]   # 4 x [16, 32]
    ssum = groups[0] + groups[1] + groups[2] + groups[3]
    ssq = (groups[0] * groups[0] + groups[1] * groups[1]
           + groups[2] * groups[2] + groups[3] * groups[3])
    inv = jnp.float32(1.0 / (4 * EMBED))
    mu = jnp.sum(ssum, axis=-1, keepdims=True) * inv           # [16, 1]
    var = jnp.sum(ssq, axis=-1, keepdims=True) * inv - mu * mu
    rstd = jax.lax.rsqrt(var + 1e-5)
    acc = jnp.zeros((_L2, C2), jnp.float32)
    for g in range(4):
        xn = (groups[g] - mu) * rstd
        acc = acc + _mm(xn, red_w[g * EMBED:(g + 1) * EMBED, :])
    x2 = acc + red_b[...]                              # [16, 64]

    # ---- stage 2 + final norm + global average pool + classifier head ----
    x2 = _swin_block(x2, blk21, HEADS[1])
    x2 = _swin_block(x2, blk22, HEADS[1])
    x2 = _ln_plain(x2)                                 # final-norm affine folded into cls_fc1
    feat = jnp.mean(x2, axis=0, keepdims=True)         # [1, 64]
    featb = jnp.broadcast_to(feat, (8, C2))            # sublane pad for the MXU matmul
    h = jnp.maximum(_mm(featb, cfc1_w[...]) + cfc1_b[...], 0.0)
    # TODO(synk): Dropout(0.3) is identity in eval mode; training-mode dropout not implemented.
    logits = _mm(h, cfc2_w[...]) + cfc2_b[...]         # [8, 128], classes zero-padded -> lane-dense store
    out_ref[0] = logits.astype(out_ref.dtype)


# ------------------------------ pallas wrapper -------------------------------
def _rep_spec(a):
    nd = a.ndim
    return pl.BlockSpec(a.shape, lambda b, _n=nd: (0,) * _n)


def swin_classifier_forward(flat_params, x):
    # x: [B, 3, 32, 32] NCHW (PyTorch convention)
    B = x.shape[0]
    # TODO(synk): 4x4 patch extraction stays as one tiny XLA transpose (im2col of the conv);
    # tokens come out directly in "merge order": t = (dw*2+dh)*16 + mh*4 + mw.
    p = x.reshape(B, IN_CH, _GRID2, 2, PATCH, _GRID2, 2, PATCH)
    p = p.transpose(0, 6, 3, 2, 5, 1, 4, 7).reshape(B, _L1, _PATCH_DIM)

    out = pl.pallas_call(
        _fused_kernel,
        out_shape=jax.ShapeDtypeStruct((B, 8, _PAD_CLASSES), jnp.float32),
        grid=(B,),
        in_specs=[pl.BlockSpec((1, _L1, _PATCH_DIM), lambda b: (b, 0, 0))]
                + [_rep_spec(a) for a in flat_params],
        out_specs=pl.BlockSpec((1, 8, _PAD_CLASSES), lambda b: (b, 0, 0)),
        compiler_params=pltpu.CompilerParams(dimension_semantics=("parallel",)),
    )(p, *flat_params)
    return out[:, 0, :NUM_CLASSES]


# -------------------- static attention-bias precompute ----------------------
def _build_attn_bias(rel_table, H, W, ws, shift, nh):
    """Dense per-head attention bias [nh, H*W, H*W] over raster-ordered tokens.

    Folds window partition, cyclic shift, relative-position bias and the
    shifted-window mask into one static matrix; pairs not sharing a (shifted)
    window get -1e9 (exp -> 0), which makes dense softmax over all HW keys
    numerically equivalent to per-window softmax.
    """
    rel_table = np.asarray(rel_table, dtype=np.float32)          # [(2ws-1)^2, nh]
    hh, ww = np.meshgrid(np.arange(H), np.arange(W), indexing="ij")
    hr = (hh - shift) % H                                        # rolled coordinates
    wr = (ww - shift) % W
    win = ((hr // ws) * (W // ws) + (wr // ws)).reshape(-1)      # window id per token
    ph = (hr % ws).reshape(-1)                                   # in-window coords
    pw = (wr % ws).reshape(-1)

    if shift > 0:
        region = np.zeros((H, W), np.int64)
        cnt = 0
        for hs in (slice(0, -ws), slice(-ws, -shift), slice(-shift, None)):
            for wsl in (slice(0, -ws), slice(-ws, -shift), slice(-shift, None)):
                region[hs, wsl] = cnt
                cnt += 1
        lab = region[hr.reshape(-1), wr.reshape(-1)]
    else:
        lab = np.zeros(H * W, np.int64)

    same_win = win[:, None] == win[None, :]
    mask = np.where(lab[:, None] == lab[None, :], 0.0, -100.0).astype(np.float32)
    ridx = ((ph[:, None] - ph[None, :] + ws - 1) * (2 * ws - 1)
            + (pw[:, None] - pw[None, :] + ws - 1))
    rel = np.transpose(rel_table[ridx], (2, 0, 1))               # [nh, HW, HW]
    bias = np.where(same_win[None], rel + mask[None], np.float32(-1e9))
    return jnp.asarray(bias.astype(np.float32))


def _merge_order_perm():
    """new-order token index -> raster token index for the stage-1 token permutation."""
    perm = np.zeros(_L1, np.int64)
    for dw in range(2):
        for dh in range(2):
            for mh in range(_GRID2):
                for mw in range(_GRID2):
                    t = (dw * 2 + dh) * _L2 + mh * _GRID2 + mw
                    perm[t] = (2 * mh + dh) * _GRID1 + (2 * mw + dw)
    return perm


# ----------------------------- parameter init -------------------------------
def init_params(key, num_classes):
    keys = iter(jax.random.split(key, 64))

    def nrm(shape, std=0.02):
        return std * jax.random.normal(next(keys), shape, jnp.float32)

    zeros = lambda s: jnp.zeros(s, jnp.float32)
    ones = lambda s: jnp.ones(s, jnp.float32)

    def block_params(C, nh, ws, H, W, shift):
        rel_table = nrm(((2 * ws - 1) ** 2, nh))
        return dict(
            ln1_g=ones((1, C)), ln1_b=zeros((1, C)),
            qkv_w=nrm((C, 3 * C)), qkv_b=zeros((1, 3 * C)),
            proj_w=nrm((C, C)), proj_b=zeros((1, C)),
            attn_bias=_build_attn_bias(rel_table, H, W, ws, shift, nh),
            ln2_g=ones((1, C)), ln2_b=zeros((1, C)),
            fc1_w=nrm((C, MLP_RATIO * C)), fc1_b=zeros((1, MLP_RATIO * C)),
            fc2_w=nrm((MLP_RATIO * C, C)), fc2_b=zeros((1, C)),
        )

    return dict(
        pe_proj_w=nrm((_PATCH_DIM, EMBED)), pe_proj_b=zeros((1, EMBED)),
        pe_ln_g=ones((1, EMBED)), pe_ln_b=zeros((1, EMBED)),
        stage1=[block_params(EMBED, HEADS[0], WINDOW, _GRID1, _GRID1, shift)
                for shift in (0, WINDOW // 2)],
        merge_ln_g=ones((1, 4 * EMBED)), merge_ln_b=zeros((1, 4 * EMBED)),
        merge_red_w=nrm((4 * EMBED, 2 * EMBED)),
        stage2=[block_params(2 * EMBED, HEADS[1], WINDOW, _GRID2, _GRID2, 0)
                for _ in range(DEPTHS[1])],
        norm_g=ones((1, 2 * EMBED)), norm_b=zeros((1, 2 * EMBED)),
        cls_fc1_w=nrm((2 * EMBED, 256)), cls_fc1_b=zeros((1, 256)),
        cls_fc2_w=nrm((256, num_classes)), cls_fc2_b=zeros((1, num_classes)),
    )


# -------------------- host-side folding / bf16 pre-cast ----------------------
def prepare_params(params):
    """Fold LN affines / attn scale into adjacent matmuls, permute stage-1 attn bias to
    merge-order tokens, pre-cast matmul weights to bf16, pad classifier logits to 128 lanes.
    Returns the flat operand list in kernel-argument order.  Exact (init-time) rewrites."""
    bf = jnp.bfloat16
    perm = jnp.asarray(_merge_order_perm())

    def fold_block(blk, C, nh, permute_bias):
        dh = C // nh
        scale = jnp.float32(dh ** -0.5)
        col_scale = jnp.concatenate(
            [jnp.full((1, C), scale, jnp.float32),
             jnp.ones((1, 2 * C), jnp.float32)], axis=1)           # scale Q columns only
        qkv_w = (blk["qkv_w"] * blk["ln1_g"].reshape(-1, 1)) * col_scale
        qkv_b = (blk["qkv_b"] + blk["ln1_b"] @ blk["qkv_w"]) * col_scale
        fc1_w = blk["fc1_w"] * blk["ln2_g"].reshape(-1, 1)
        fc1_b = blk["fc1_b"] + blk["ln2_b"] @ blk["fc1_w"]
        ab = blk["attn_bias"]
        if permute_bias:
            ab = ab[:, perm][:, :, perm]
        return [qkv_w.astype(bf), qkv_b,
                blk["proj_w"].astype(bf), blk["proj_b"],
                ab,
                fc1_w.astype(bf), fc1_b,
                blk["fc2_w"].astype(bf), blk["fc2_b"]]

    flat = [params["pe_proj_w"].astype(bf), params["pe_proj_b"],
            params["pe_ln_g"], params["pe_ln_b"]]
    for blk in params["stage1"]:
        flat += fold_block(blk, EMBED, HEADS[0], True)

    red_w = (params["merge_red_w"] * params["merge_ln_g"].reshape(-1, 1)).astype(bf)
    red_b = params["merge_ln_b"] @ params["merge_red_w"]
    flat += [red_w, red_b]

    for blk in params["stage2"]:
        flat += fold_block(blk, 2 * EMBED, HEADS[1], False)

    cls1_w = (params["cls_fc1_w"] * params["norm_g"].reshape(-1, 1)).astype(bf)
    cls1_b = params["cls_fc1_b"] + params["norm_b"] @ params["cls_fc1_w"]
    cls2_w = jnp.zeros((256, _PAD_CLASSES), jnp.float32)
    cls2_w = cls2_w.at[:, :NUM_CLASSES].set(params["cls_fc2_w"]).astype(bf)
    cls2_b = jnp.zeros((1, _PAD_CLASSES), jnp.float32)
    cls2_b = cls2_b.at[:, :NUM_CLASSES].set(params["cls_fc2_b"])
    flat += [cls1_w, cls1_b, cls2_w, cls2_b]
    return flat


# --------------------------------- main --------------------------------------
if __name__ == "__main__":
    key = jax.random.PRNGKey(0)
    xkey, pkey = jax.random.split(key)
    x = jax.random.normal(xkey, (BATCH, IN_CH, IMG, IMG), jnp.float32)  # NCHW
    params = init_params(pkey, NUM_CLASSES)
    flat_params = prepare_params(params)        # one-time host-side folding / bf16 cast

    fwd = jax.jit(swin_classifier_forward)
    logits = jax.block_until_ready(fwd(flat_params, x))
    assert logits.shape == (BATCH, NUM_CLASSES)
    assert bool(jnp.all(jnp.isfinite(logits)))
    print("KERNEL_OK")
</pallas_src>

<mosaic_0001>
module attributes {stable_mosaic.version = 11 : i64} {
  func.func @_fused_kernel(%arg0: i32, %arg1: memref<1x64x48xf32, #tpu.memory_space<vmem>>, %arg2: memref<48x32xbf16, #tpu.memory_space<vmem>>, %arg3: memref<1x32xf32, #tpu.memory_space<vmem>>, %arg4: memref<1x32xf32, #tpu.memory_space<vmem>>, %arg5: memref<1x32xf32, #tpu.memory_space<vmem>>, %arg6: memref<32x96xbf16, #tpu.memory_space<vmem>>, %arg7: memref<1x96xf32, #tpu.memory_space<vmem>>, %arg8: memref<32x32xbf16, #tpu.memory_space<vmem>>, %arg9: memref<1x32xf32, #tpu.memory_space<vmem>>, %arg10: memref<2x64x64xf32, #tpu.memory_space<vmem>>, %arg11: memref<32x128xbf16, #tpu.memory_space<vmem>>, %arg12: memref<1x128xf32, #tpu.memory_space<vmem>>, %arg13: memref<128x32xbf16, #tpu.memory_space<vmem>>, %arg14: memref<1x32xf32, #tpu.memory_space<vmem>>, %arg15: memref<32x96xbf16, #tpu.memory_space<vmem>>, %arg16: memref<1x96xf32, #tpu.memory_space<vmem>>, %arg17: memref<32x32xbf16, #tpu.memory_space<vmem>>, %arg18: memref<1x32xf32, #tpu.memory_space<vmem>>, %arg19: memref<2x64x64xf32, #tpu.memory_space<vmem>>, %arg20: memref<32x128xbf16, #tpu.memory_space<vmem>>, %arg21: memref<1x128xf32, #tpu.memory_space<vmem>>, %arg22: memref<128x32xbf16, #tpu.memory_space<vmem>>, %arg23: memref<1x32xf32, #tpu.memory_space<vmem>>, %arg24: memref<128x64xbf16, #tpu.memory_space<vmem>>, %arg25: memref<1x64xf32, #tpu.memory_space<vmem>>, %arg26: memref<64x192xbf16, #tpu.memory_space<vmem>>, %arg27: memref<1x192xf32, #tpu.memory_space<vmem>>, %arg28: memref<64x64xbf16, #tpu.memory_space<vmem>>, %arg29: memref<1x64xf32, #tpu.memory_space<vmem>>, %arg30: memref<4x16x16xf32, #tpu.memory_space<vmem>>, %arg31: memref<64x256xbf16, #tpu.memory_space<vmem>>, %arg32: memref<1x256xf32, #tpu.memory_space<vmem>>, %arg33: memref<256x64xbf16, #tpu.memory_space<vmem>>, %arg34: memref<1x64xf32, #tpu.memory_space<vmem>>, %arg35: memref<64x192xbf16, #tpu.memory_space<vmem>>, %arg36: memref<1x192xf32, #tpu.memory_space<vmem>>, %arg37: memref<64x64xbf16, #tpu.memory_space<vmem>>, %arg38: memref<1x64xf32, #tpu.memory_space<vmem>>, %arg39: memref<4x16x16xf32, #tpu.memory_space<vmem>>, %arg40: memref<64x256xbf16, #tpu.memory_space<vmem>>, %arg41: memref<1x256xf32, #tpu.memory_space<vmem>>, %arg42: memref<256x64xbf16, #tpu.memory_space<vmem>>, %arg43: memref<1x64xf32, #tpu.memory_space<vmem>>, %arg44: memref<64x256xbf16, #tpu.memory_space<vmem>>, %arg45: memref<1x256xf32, #tpu.memory_space<vmem>>, %arg46: memref<256x128xbf16, #tpu.memory_space<vmem>>, %arg47: memref<1x128xf32, #tpu.memory_space<vmem>>, %arg48: memref<1x8x128xf32, #tpu.memory_space<vmem>>) attributes {dimension_semantics = [#tpu.dimension_semantics<parallel>], iteration_bounds = array<i64: 2>, scalar_prefetch = 0 : i64, scratch_operands = 0 : i64, tpu.core_type = #tpu.core_type<tc>, window_params = [{transform_indices = @transform_0, window_bounds = array<i64: 1, 64, 48>}, {pipeline_mode = #tpu.pipeline_mode<synchronous>, transform_indices = @transform_1, window_bounds = array<i64: 48, 32>}, {pipeline_mode = #tpu.pipeline_mode<synchronous>, transform_indices = @transform_2, window_bounds = array<i64: 1, 32>}, {pipeline_mode = #tpu.pipeline_mode<synchronous>, transform_indices = @transform_3, window_bounds = array<i64: 1, 32>}, {pipeline_mode = #tpu.pipeline_mode<synchronous>, transform_indices = @transform_4, window_bounds = array<i64: 1, 32>}, {pipeline_mode = #tpu.pipeline_mode<synchronous>, transform_indices = @transform_5, window_bounds = array<i64: 32, 96>}, {pipeline_mode = #tpu.pipeline_mode<synchronous>, transform_indices = @transform_6, window_bounds = array<i64: 1, 96>}, {pipeline_mode = #tpu.pipeline_mode<synchronous>, transform_indices = @transform_7, window_bounds = array<i64: 32, 32>}, {pipeline_mode = #tpu.pipeline_mode<synchronous>, transform_indices = @transform_8, window_bounds = array<i64: 1, 32>}, {pipeline_mode = #tpu.pipeline_mode<synchronous>, transform_indices = @transform_9, window_bounds = array<i64: 2, 64, 64>}, {pipeline_mode = #tpu.pipeline_mode<synchronous>, transform_indices = @transform_10, window_bounds = array<i64: 32, 128>}, {pipeline_mode = #tpu.pipeline_mode<synchronous>, transform_indices = @transform_11, window_bounds = array<i64: 1, 128>}, {pipeline_mode = #tpu.pipeline_mode<synchronous>, transform_indices = @transform_12, window_bounds = array<i64: 128, 32>}, {pipeline_mode = #tpu.pipeline_mode<synchronous>, transform_indices = @transform_13, window_bounds = array<i64: 1, 32>}, {pipeline_mode = #tpu.pipeline_mode<synchronous>, transform_indices = @transform_14, window_bounds = array<i64: 32, 96>}, {pipeline_mode = #tpu.pipeline_mode<synchronous>, transform_indices = @transform_15, window_bounds = array<i64: 1, 96>}, {pipeline_mode = #tpu.pipeline_mode<synchronous>, transform_indices = @transform_16, window_bounds = array<i64: 32, 32>}, {pipeline_mode = #tpu.pipeline_mode<synchronous>, transform_indices = @transform_17, window_bounds = array<i64: 1, 32>}, {pipeline_mode = #tpu.pipeline_mode<synchronous>, transform_indices = @transform_18, window_bounds = array<i64: 2, 64, 64>}, {pipeline_mode = #tpu.pipeline_mode<synchronous>, transform_indices = @transform_19, window_bounds = array<i64: 32, 128>}, {pipeline_mode = #tpu.pipeline_mode<synchronous>, transform_indices = @transform_20, window_bounds = array<i64: 1, 128>}, {pipeline_mode = #tpu.pipeline_mode<synchronous>, transform_indices = @transform_21, window_bounds = array<i64: 128, 32>}, {pipeline_mode = #tpu.pipeline_mode<synchronous>, transform_indices = @transform_22, window_bounds = array<i64: 1, 32>}, {pipeline_mode = #tpu.pipeline_mode<synchronous>, transform_indices = @transform_23, window_bounds = array<i64: 128, 64>}, {pipeline_mode = #tpu.pipeline_mode<synchronous>, transform_indices = @transform_24, window_bounds = array<i64: 1, 64>}, {pipeline_mode = #tpu.pipeline_mode<synchronous>, transform_indices = @transform_25, window_bounds = array<i64: 64, 192>}, {pipeline_mode = #tpu.pipeline_mode<synchronous>, transform_indices = @transform_26, window_bounds = array<i64: 1, 192>}, {pipeline_mode = #tpu.pipeline_mode<synchronous>, transform_indices = @transform_27, window_bounds = array<i64: 64, 64>}, {pipeline_mode = #tpu.pipeline_mode<synchronous>, transform_indices = @transform_28, window_bounds = array<i64: 1, 64>}, {pipeline_mode = #tpu.pipeline_mode<synchronous>, transform_indices = @transform_29, window_bounds = array<i64: 4, 16, 16>}, {pipeline_mode = #tpu.pipeline_mode<synchronous>, transform_indices = @transform_30, window_bounds = array<i64: 64, 256>}, {pipeline_mode = #tpu.pipeline_mode<synchronous>, transform_indices = @transform_31, window_bounds = array<i64: 1, 256>}, {pipeline_mode = #tpu.pipeline_mode<synchronous>, transform_indices = @transform_32, window_bounds = array<i64: 256, 64>}, {pipeline_mode = #tpu.pipeline_mode<synchronous>, transform_indices = @transform_33, window_bounds = array<i64: 1, 64>}, {pipeline_mode = #tpu.pipeline_mode<synchronous>, transform_indices = @transform_34, window_bounds = array<i64: 64, 192>}, {pipeline_mode = #tpu.pipeline_mode<synchronous>, transform_indices = @transform_35, window_bounds = array<i64: 1, 192>}, {pipeline_mode = #tpu.pipeline_mode<synchronous>, transform_indices = @transform_36, window_bounds = array<i64: 64, 64>}, {pipeline_mode = #tpu.pipeline_mode<synchronous>, transform_indices = @transform_37, window_bounds = array<i64: 1, 64>}, {pipeline_mode = #tpu.pipeline_mode<synchronous>, transform_indices = @transform_38, window_bounds = array<i64: 4, 16, 16>}, {pipeline_mode = #tpu.pipeline_mode<synchronous>, transform_indices = @transform_39, window_bounds = array<i64: 64, 256>}, {pipeline_mode = #tpu.pipeline_mode<synchronous>, transform_indices = @transform_40, window_bounds = array<i64: 1, 256>}, {pipeline_mode = #tpu.pipeline_mode<synchronous>, transform_indices = @transform_41, window_bounds = array<i64: 256, 64>}, {pipeline_mode = #tpu.pipeline_mode<synchronous>, transform_indices = @transform_42, window_bounds = array<i64: 1, 64>}, {pipeline_mode = #tpu.pipeline_mode<synchronous>, transform_indices = @transform_43, window_bounds = array<i64: 64, 256>}, {pipeline_mode = #tpu.pipeline_mode<synchronous>, transform_indices = @transform_44, window_bounds = array<i64: 1, 256>}, {pipeline_mode = #tpu.pipeline_mode<synchronous>, transform_indices = @transform_45, window_bounds = array<i64: 256, 128>}, {pipeline_mode = #tpu.pipeline_mode<synchronous>, transform_indices = @transform_46, window_bounds = array<i64: 1, 128>}, {transform_indices = @transform_47, window_bounds = array<i64: 1, 8, 128>}]} {
    %c0 = arith.constant 0 : index
    %c0_0 = arith.constant 0 : index
    %c0_1 = arith.constant 0 : index
    %0 = vector.load %arg1[%c0, %c0_0, %c0_1] : memref<1x64x48xf32, #tpu.memory_space<vmem>>, vector<1x64x48xf32>
    %1 = vector.shape_cast %0 : vector<1x64x48xf32> to vector<64x48xf32>
    %c0_2 = arith.constant 0 : index
    %c0_3 = arith.constant 0 : index
    %2 = vector.load %arg2[%c0_2, %c0_3] : memref<48x32xbf16, #tpu.memory_space<vmem>>, vector<48x32xbf16>
    %3 = arith.truncf %1 : vector<64x48xf32> to vector<64x48xbf16>
    %cst = arith.constant dense<0.000000e+00> : vector<64x32xf32>
    %4 = tpu.matmul %3, %2, %cst {dimension_numbers = #tpu.dot_dimension_numbers<[1], [0], [0], [1], [0, 0, 1, 1], [], []>} : vector<64x48xbf16>, vector<48x32xbf16>, vector<64x32xf32> -> vector<64x32xf32>
    %c0_4 = arith.constant 0 : index
    %c0_5 = arith.constant 0 : index
    %5 = vector.load %arg3[%c0_4, %c0_5] : memref<1x32xf32, #tpu.memory_space<vmem>>, vector<1x32xf32>
    %6 = vector.broadcast %5 : vector<1x32xf32> to vector<64x32xf32>
    %7 = arith.addf %4, %6 : vector<64x32xf32>
    %c0_6 = arith.constant 0 : index
    %c0_7 = arith.constant 0 : index
    %8 = vector.load %arg4[%c0_6, %c0_7] : memref<1x32xf32, #tpu.memory_space<vmem>>, vector<1x32xf32>
    %c0_8 = arith.constant 0 : index
    %c0_9 = arith.constant 0 : index
    %9 = vector.load %arg5[%c0_8, %c0_9] : memref<1x32xf32, #tpu.memory_space<vmem>>, vector<1x32xf32>
    %cst_10 = arith.constant dense<0.000000e+00> : vector<64xf32>
    %10 = vector.multi_reduction <add>, %7, %cst_10 [1] : vector<64x32xf32> to vector<64xf32>
    %11 = vector.shape_cast %10 : vector<64xf32> to vector<64x1xf32>
    %cst_11 = arith.constant 3.200000e+01 : f32
    %12 = vector.broadcast %cst_11 : f32 to vector<64x1xf32>
    %13 = arith.divf %11, %12 : vector<64x1xf32>
    %14 = vector.broadcast %13 : vector<64x1xf32> to vector<64x32xf32>
    %15 = arith.subf %7, %14 : vector<64x32xf32>
    %16 = arith.mulf %15, %15 : vector<64x32xf32>
    %cst_12 = arith.constant dense<0.000000e+00> : vector<64xf32>
    %17 = vector.multi_reduction <add>, %16, %cst_12 [1] : vector<64x32xf32> to vector<64xf32>
    %18 = vector.shape_cast %17 : vector<64xf32> to vector<64x1xf32>
    %cst_13 = arith.constant 3.200000e+01 : f32
    %19 = vector.broadcast %cst_13 : f32 to vector<64x1xf32>
    %20 = arith.divf %18, %19 : vector<64x1xf32>
    %cst_14 = arith.constant 9.99999974E-6 : f32
    %21 = vector.broadcast %cst_14 : f32 to vector<64x1xf32>
    %22 = arith.addf %20, %21 : vector<64x1xf32>
    %23 = math.rsqrt %22 : vector<64x1xf32>
    %24 = vector.broadcast %23 : vector<64x1xf32> to vector<64x32xf32>
    %25 = arith.mulf %15, %24 : vector<64x32xf32>
    %26 = vector.broadcast %8 : vector<1x32xf32> to vector<64x32xf32>
    %27 = arith.mulf %25, %26 : vector<64x32xf32>
    %28 = vector.broadcast %9 : vector<1x32xf32> to vector<64x32xf32>
    %29 = arith.addf %27, %28 : vector<64x32xf32>
    %cst_15 = arith.constant dense<0.000000e+00> : vector<64xf32>
    %30 = vector.multi_reduction <add>, %29, %cst_15 [1] : vector<64x32xf32> to vector<64xf32>
    %31 = vector.shape_cast %30 : vector<64xf32> to vector<64x1xf32>
    %cst_16 = arith.constant 3.200000e+01 : f32
    %32 = vector.broadcast %cst_16 : f32 to vector<64x1xf32>
    %33 = arith.divf %31, %32 : vector<64x1xf32>
    %34 = vector.broadcast %33 : vector<64x1xf32> to vector<64x32xf32>
    %35 = arith.subf %29, %34 : vector<64x32xf32>
    %36 = arith.mulf %35, %35 : vector<64x32xf32>
    %cst_17 = arith.constant dense<0.000000e+00> : vector<64xf32>
    %37 = vector.multi_reduction <add>, %36, %cst_17 [1] : vector<64x32xf32> to vector<64xf32>
    %38 = vector.shape_cast %37 : vector<64xf32> to vector<64x1xf32>
    %cst_18 = arith.constant 3.200000e+01 : f32
    %39 = vector.broadcast %cst_18 : f32 to vector<64x1xf32>
    %40 = arith.divf %38, %39 : vector<64x1xf32>
    %cst_19 = arith.constant 9.99999974E-6 : f32
    %41 = vector.broadcast %cst_19 : f32 to vector<64x1xf32>
    %42 = arith.addf %40, %41 : vector<64x1xf32>
    %43 = math.rsqrt %42 : vector<64x1xf32>
    %44 = vector.broadcast %43 : vector<64x1xf32> to vector<64x32xf32>
    %45 = arith.mulf %35, %44 : vector<64x32xf32>
    %c0_20 = arith.constant 0 : index
    %c0_21 = arith.constant 0 : index
    %46 = vector.load %arg6[%c0_20, %c0_21] : memref<32x96xbf16, #tpu.memory_space<vmem>>, vector<32x96xbf16>
    %47 = arith.truncf %45 : vector<64x32xf32> to vector<64x32xbf16>
    %cst_22 = arith.constant dense<0.000000e+00> : vector<64x96xf32>
    %48 = tpu.matmul %47, %46, %cst_22 {dimension_numbers = #tpu.dot_dimension_numbers<[1], [0], [0], [1], [0, 0, 1, 1], [], []>} : vector<64x32xbf16>, vector<32x96xbf16>, vector<64x96xf32> -> vector<64x96xf32>
    %c0_23 = arith.constant 0 : index
    %c0_24 = arith.constant 0 : index
    %49 = vector.load %arg7[%c0_23, %c0_24] : memref<1x96xf32, #tpu.memory_space<vmem>>, vector<1x96xf32>
    %50 = vector.broadcast %49 : vector<1x96xf32> to vector<64x96xf32>
    %51 = arith.addf %48, %50 : vector<64x96xf32>
    %cst_25 = arith.constant 0.000000e+00 : f32
    %52 = vector.broadcast %cst_25 : f32 to vector<64x32xf32>
    %53 = vector.extract_strided_slice %51 {offsets = [0, 0], sizes = [64, 16], strides = [1, 1]} : vector<64x96xf32> to vector<64x16xf32>
    %54 = vector.extract_strided_slice %51 {offsets = [0, 32], sizes = [64, 16], strides = [1, 1]} : vector<64x96xf32> to vector<64x16xf32>
    %55 = vector.extract_strided_slice %51 {offsets = [0, 64], sizes = [64, 16], strides = [1, 1]} : vector<64x96xf32> to vector<64x16xf32>
    %56 = arith.truncf %53 : vector<64x16xf32> to vector<64x16xbf16>
    %57 = arith.truncf %54 : vector<64x16xf32> to vector<64x16xbf16>
    %cst_26 = arith.constant dense<0.000000e+00> : vector<64x64xf32>
    %58 = tpu.matmul %56, %57, %cst_26 {dimension_numbers = #tpu.dot_dimension_numbers<[1], [1], [0], [0], [0, 0, 1, 0], [], []>} : vector<64x16xbf16>, vector<64x16xbf16>, vector<64x64xf32> -> vector<64x64xf32>
    %c0_27 = arith.constant 0 : index
    %c0_28 = arith.constant 0 : index
    %c0_29 = arith.constant 0 : index
    %59 = vector.load %arg10[%c0_27, %c0_28, %c0_29] : memref<2x64x64xf32, #tpu.memory_space<vmem>>, vector<1x64x64xf32>
    %60 = vector.shape_cast %59 : vector<1x64x64xf32> to vector<64x64xf32>
    %61 = arith.addf %58, %60 : vector<64x64xf32>
    %cst_30 = arith.constant dense<0xFF800000> : vector<64xf32>
    %62 = vector.multi_reduction <maximumf>, %61, %cst_30 [1] : vector<64x64xf32> to vector<64xf32>
    %63 = vector.shape_cast %62 : vector<64xf32> to vector<64x1xf32>
    %64 = vector.broadcast %63 : vector<64x1xf32> to vector<64x64xf32>
    %65 = arith.subf %61, %64 : vector<64x64xf32>
    %66 = math.exp %65 : vector<64x64xf32>
    %cst_31 = arith.constant dense<0.000000e+00> : vector<64xf32>
    %67 = vector.multi_reduction <add>, %66, %cst_31 [1] : vector<64x64xf32> to vector<64xf32>
    %68 = vector.shape_cast %67 : vector<64xf32> to vector<64x1xf32>
    %69 = tpu.reciprocal %68 {approx = true} : vector<64x1xf32> -> vector<64x1xf32>
    %70 = vector.broadcast %69 : vector<64x1xf32> to vector<64x64xf32>
    %71 = arith.mulf %66, %70 : vector<64x64xf32>
    %72 = arith.truncf %71 : vector<64x64xf32> to vector<64x64xbf16>
    %73 = arith.truncf %55 : vector<64x16xf32> to vector<64x16xbf16>
    %cst_32 = arith.constant dense<0.000000e+00> : vector<64x16xf32>
    %74 = tpu.matmul %72, %73, %cst_32 {dimension_numbers = #tpu.dot_dimension_numbers<[1], [0], [0], [1], [0, 0, 1, 1], [], []>} : vector<64x64xbf16>, vector<64x16xbf16>, vector<64x16xf32> -> vector<64x16xf32>
    %c0_33 = arith.constant 0 : index
    %c0_34 = arith.constant 0 : index
    %75 = vector.load %arg8[%c0_33, %c0_34] : memref<32x32xbf16, #tpu.memory_space<vmem>>, vector<16x32xbf16>
    %76 = arith.truncf %74 : vector<64x16xf32> to vector<64x16xbf16>
    %cst_35 = arith.constant dense<0.000000e+00> : vector<64x32xf32>
    %77 = tpu.matmul %76, %75, %cst_35 {dimension_numbers = #tpu.dot_dimension_numbers<[1], [0], [0], [1], [0, 0, 1, 1], [], []>} : vector<64x16xbf16>, vector<16x32xbf16>, vector<64x32xf32> -> vector<64x32xf32>
    %78 = arith.addf %52, %77 : vector<64x32xf32>
    %79 = vector.extract_strided_slice %51 {offsets = [0, 16], sizes = [64, 16], strides = [1, 1]} : vector<64x96xf32> to vector<64x16xf32>
    %80 = vector.extract_strided_slice %51 {offsets = [0, 48], sizes = [64, 16], strides = [1, 1]} : vector<64x96xf32> to vector<64x16xf32>
    %81 = vector.extract_strided_slice %51 {offsets = [0, 80], sizes = [64, 16], strides = [1, 1]} : vector<64x96xf32> to vector<64x16xf32>
    %82 = arith.truncf %79 : vector<64x16xf32> to vector<64x16xbf16>
    %83 = arith.truncf %80 : vector<64x16xf32> to vector<64x16xbf16>
    %cst_36 = arith.constant dense<0.000000e+00> : vector<64x64xf32>
    %84 = tpu.matmul %82, %83, %cst_36 {dimension_numbers = #tpu.dot_dimension_numbers<[1], [1], [0], [0], [0, 0, 1, 0], [], []>} : vector<64x16xbf16>, vector<64x16xbf16>, vector<64x64xf32> -> vector<64x64xf32>
    %c1 = arith.constant 1 : index
    %c0_37 = arith.constant 0 : index
    %c0_38 = arith.constant 0 : index
    %85 = vector.load %arg10[%c1, %c0_37, %c0_38] : memref<2x64x64xf32, #tpu.memory_space<vmem>>, vector<1x64x64xf32>
    %86 = vector.shape_cast %85 : vector<1x64x64xf32> to vector<64x64xf32>
    %87 = arith.addf %84, %86 : vector<64x64xf32>
    %cst_39 = arith.constant dense<0xFF800000> : vector<64xf32>
    %88 = vector.multi_reduction <maximumf>, %87, %cst_39 [1] : vector<64x64xf32> to vector<64xf32>
    %89 = vector.shape_cast %88 : vector<64xf32> to vector<64x1xf32>
    %90 = vector.broadcast %89 : vector<64x1xf32> to vector<64x64xf32>
    %91 = arith.subf %87, %90 : vector<64x64xf32>
    %92 = math.exp %91 : vector<64x64xf32>
    %cst_40 = arith.constant dense<0.000000e+00> : vector<64xf32>
    %93 = vector.multi_reduction <add>, %92, %cst_40 [1] : vector<64x64xf32> to vector<64xf32>
    %94 = vector.shape_cast %93 : vector<64xf32> to vector<64x1xf32>
    %95 = tpu.reciprocal %94 {approx = true} : vector<64x1xf32> -> vector<64x1xf32>
    %96 = vector.broadcast %95 : vector<64x1xf32> to vector<64x64xf32>
    %97 = arith.mulf %92, %96 : vector<64x64xf32>
    %98 = arith.truncf %97 : vector<64x64xf32> to vector<64x64xbf16>
    %99 = arith.truncf %81 : vector<64x16xf32> to vector<64x16xbf16>
    %cst_41 = arith.constant dense<0.000000e+00> : vector<64x16xf32>
    %100 = tpu.matmul %98, %99, %cst_41 {dimension_numbers = #tpu.dot_dimension_numbers<[1], [0], [0], [1], [0, 0, 1, 1], [], []>} : vector<64x64xbf16>, vector<64x16xbf16>, vector<64x16xf32> -> vector<64x16xf32>
    %c16 = arith.constant 16 : index
    %c0_42 = arith.constant 0 : index
    %101 = vector.load %arg8[%c16, %c0_42] : memref<32x32xbf16, #tpu.memory_space<vmem>>, vector<16x32xbf16>
    %102 = arith.truncf %100 : vector<64x16xf32> to vector<64x16xbf16>
    %cst_43 = arith.constant dense<0.000000e+00> : vector<64x32xf32>
    %103 = tpu.matmul %102, %101, %cst_43 {dimension_numbers = #tpu.dot_dimension_numbers<[1], [0], [0], [1], [0, 0, 1, 1], [], []>} : vector<64x16xbf16>, vector<16x32xbf16>, vector<64x32xf32> -> vector<64x32xf32>
    %104 = arith.addf %78, %103 : vector<64x32xf32>
    %105 = arith.addf %29, %104 : vector<64x32xf32>
    %c0_44 = arith.constant 0 : index
    %c0_45 = arith.constant 0 : index
    %106 = vector.load %arg9[%c0_44, %c0_45] : memref<1x32xf32, #tpu.memory_space<vmem>>, vector<1x32xf32>
    %107 = vector.broadcast %106 : vector<1x32xf32> to vector<64x32xf32>
    %108 = arith.addf %105, %107 : vector<64x32xf32>
    %cst_46 = arith.constant dense<0.000000e+00> : vector<64xf32>
    %109 = vector.multi_reduction <add>, %108, %cst_46 [1] : vector<64x32xf32> to vector<64xf32>
    %110 = vector.shape_cast %109 : vector<64xf32> to vector<64x1xf32>
    %cst_47 = arith.constant 3.200000e+01 : f32
    %111 = vector.broadcast %cst_47 : f32 to vector<64x1xf32>
    %112 = arith.divf %110, %111 : vector<64x1xf32>
    %113 = vector.broadcast %112 : vector<64x1xf32> to vector<64x32xf32>
    %114 = arith.subf %108, %113 : vector<64x32xf32>
    %115 = arith.mulf %114, %114 : vector<64x32xf32>
    %cst_48 = arith.constant dense<0.000000e+00> : vector<64xf32>
    %116 = vector.multi_reduction <add>, %115, %cst_48 [1] : vector<64x32xf32> to vector<64xf32>
    %117 = vector.shape_cast %116 : vector<64xf32> to vector<64x1xf32>
    %cst_49 = arith.constant 3.200000e+01 : f32
    %118 = vector.broadcast %cst_49 : f32 to vector<64x1xf32>
    %119 = arith.divf %117, %118 : vector<64x1xf32>
    %cst_50 = arith.constant 9.99999974E-6 : f32
    %120 = vector.broadcast %cst_50 : f32 to vector<64x1xf32>
    %121 = arith.addf %119, %120 : vector<64x1xf32>
    %122 = math.rsqrt %121 : vector<64x1xf32>
    %123 = vector.broadcast %122 : vector<64x1xf32> to vector<64x32xf32>
    %124 = arith.mulf %114, %123 : vector<64x32xf32>
    %c0_51 = arith.constant 0 : index
    %c0_52 = arith.constant 0 : index
    %125 = vector.load %arg11[%c0_51, %c0_52] : memref<32x128xbf16, #tpu.memory_space<vmem>>, vector<32x128xbf16>
    %126 = arith.truncf %124 : vector<64x32xf32> to vector<64x32xbf16>
    %cst_53 = arith.constant dense<0.000000e+00> : vector<64x128xf32>
    %127 = tpu.matmul %126, %125, %cst_53 {dimension_numbers = #tpu.dot_dimension_numbers<[1], [0], [0], [1], [0, 0, 1, 1], [], []>} : vector<64x32xbf16>, vector<32x128xbf16>, vector<64x128xf32> -> vector<64x128xf32>
    %c0_54 = arith.constant 0 : index
    %c0_55 = arith.constant 0 : index
    %128 = vector.load %arg12[%c0_54, %c0_55] : memref<1x128xf32, #tpu.memory_space<vmem>>, vector<1x128xf32>
    %129 = vector.broadcast %128 : vector<1x128xf32> to vector<64x128xf32>
    %130 = arith.addf %127, %129 : vector<64x128xf32>
    %cst_56 = arith.constant 5.000000e-01 : f32
    %131 = vector.broadcast %cst_56 : f32 to vector<64x128xf32>
    %132 = arith.mulf %131, %130 : vector<64x128xf32>
    %cst_57 = arith.constant 4.471500e-02 : f32
    %133 = vector.broadcast %cst_57 : f32 to vector<64x128xf32>
    %134 = arith.mulf %133, %130 : vector<64x128xf32>
    %135 = arith.mulf %134, %130 : vector<64x128xf32>
    %136 = arith.mulf %135, %130 : vector<64x128xf32>
    %137 = arith.addf %130, %136 : vector<64x128xf32>
    %cst_58 = arith.constant 0.797884583 : f32
    %138 = vector.broadcast %cst_58 : f32 to vector<64x128xf32>
    %139 = arith.mulf %138, %137 : vector<64x128xf32>
    %140 = math.tanh %139 : vector<64x128xf32>
    %cst_59 = arith.constant 1.000000e+00 : f32
    %141 = vector.broadcast %cst_59 : f32 to vector<64x128xf32>
    %142 = arith.addf %141, %140 : vector<64x128xf32>
    %143 = arith.mulf %132, %142 : vector<64x128xf32>
    %c0_60 = arith.constant 0 : index
    %c0_61 = arith.constant 0 : index
    %144 = vector.load %arg13[%c0_60, %c0_61] : memref<128x32xbf16, #tpu.memory_space<vmem>>, vector<128x32xbf16>
    %145 = arith.truncf %143 : vector<64x128xf32> to vector<64x128xbf16>
    %cst_62 = arith.constant dense<0.000000e+00> : vector<64x32xf32>
    %146 = tpu.matmul %145, %144, %cst_62 {dimension_numbers = #tpu.dot_dimension_numbers<[1], [0], [0], [1], [0, 0, 1, 1], [], []>} : vector<64x128xbf16>, vector<128x32xbf16>, vector<64x32xf32> -> vector<64x32xf32>
    %147 = arith.addf %108, %146 : vector<64x32xf32>
    %c0_63 = arith.constant 0 : index
    %c0_64 = arith.constant 0 : index
    %148 = vector.load %arg14[%c0_63, %c0_64] : memref<1x32xf32, #tpu.memory_space<vmem>>, vector<1x32xf32>
    %149 = vector.broadcast %148 : vector<1x32xf32> to vector<64x32xf32>
    %150 = arith.addf %147, %149 : vector<64x32xf32>
    %cst_65 = arith.constant dense<0.000000e+00> : vector<64xf32>
    %151 = vector.multi_reduction <add>, %150, %cst_65 [1] : vector<64x32xf32> to vector<64xf32>
    %152 = vector.shape_cast %151 : vector<64xf32> to vector<64x1xf32>
    %cst_66 = arith.constant 3.200000e+01 : f32
    %153 = vector.broadcast %cst_66 : f32 to vector<64x1xf32>
    %154 = arith.divf %152, %153 : vector<64x1xf32>
    %155 = vector.broadcast %154 : vector<64x1xf32> to vector<64x32xf32>
    %156 = arith.subf %150, %155 : vector<64x32xf32>
    %157 = arith.mulf %156, %156 : vector<64x32xf32>
    %cst_67 = arith.constant dense<0.000000e+00> : vector<64xf32>
    %158 = vector.multi_reduction <add>, %157, %cst_67 [1] : vector<64x32xf32> to vector<64xf32>
    %159 = vector.shape_cast %158 : vector<64xf32> to vector<64x1xf32>
    %cst_68 = arith.constant 3.200000e+01 : f32
    %160 = vector.broadcast %cst_68 : f32 to vector<64x1xf32>
    %161 = arith.divf %159, %160 : vector<64x1xf32>
    %cst_69 = arith.constant 9.99999974E-6 : f32
    %162 = vector.broadcast %cst_69 : f32 to vector<64x1xf32>
    %163 = arith.addf %161, %162 : vector<64x1xf32>
    %164 = math.rsqrt %163 : vector<64x1xf32>
    %165 = vector.broadcast %164 : vector<64x1xf32> to vector<64x32xf32>
    %166 = arith.mulf %156, %165 : vector<64x32xf32>
    %c0_70 = arith.constant 0 : index
    %c0_71 = arith.constant 0 : index
    %167 = vector.load %arg15[%c0_70, %c0_71] : memref<32x96xbf16, #tpu.memory_space<vmem>>, vector<32x96xbf16>
    %168 = arith.truncf %166 : vector<64x32xf32> to vector<64x32xbf16>
    %cst_72 = arith.constant dense<0.000000e+00> : vector<64x96xf32>
    %169 = tpu.matmul %168, %167, %cst_72 {dimension_numbers = #tpu.dot_dimension_numbers<[1], [0], [0], [1], [0, 0, 1, 1], [], []>} : vector<64x32xbf16>, vector<32x96xbf16>, vector<64x96xf32> -> vector<64x96xf32>
    %c0_73 = arith.constant 0 : index
    %c0_74 = arith.constant 0 : index
    %170 = vector.load %arg16[%c0_73, %c0_74] : memref<1x96xf32, #tpu.memory_space<vmem>>, vector<1x96xf32>
    %171 = vector.broadcast %170 : vector<1x96xf32> to vector<64x96xf32>
    %172 = arith.addf %169, %171 : vector<64x96xf32>
    %cst_75 = arith.constant 0.000000e+00 : f32
    %173 = vector.broadcast %cst_75 : f32 to vector<64x32xf32>
    %174 = vector.extract_strided_slice %172 {offsets = [0, 0], sizes = [64, 16], strides = [1, 1]} : vector<64x96xf32> to vector<64x16xf32>
    %175 = vector.extract_strided_slice %172 {offsets = [0, 32], sizes = [64, 16], strides = [1, 1]} : vector<64x96xf32> to vector<64x16xf32>
    %176 = vector.extract_strided_slice %172 {offsets = [0, 64], sizes = [64, 16], strides = [1, 1]} : vector<64x96xf32> to vector<64x16xf32>
    %177 = arith.truncf %174 : vector<64x16xf32> to vector<64x16xbf16>
    %178 = arith.truncf %175 : vector<64x16xf32> to vector<64x16xbf16>
    %cst_76 = arith.constant dense<0.000000e+00> : vector<64x64xf32>
    %179 = tpu.matmul %177, %178, %cst_76 {dimension_numbers = #tpu.dot_dimension_numbers<[1], [1], [0], [0], [0, 0, 1, 0], [], []>} : vector<64x16xbf16>, vector<64x16xbf16>, vector<64x64xf32> -> vector<64x64xf32>
    %c0_77 = arith.constant 0 : index
    %c0_78 = arith.constant 0 : index
    %c0_79 = arith.constant 0 : index
    %180 = vector.load %arg19[%c0_77, %c0_78, %c0_79] : memref<2x64x64xf32, #tpu.memory_space<vmem>>, vector<1x64x64xf32>
    %181 = vector.shape_cast %180 : vector<1x64x64xf32> to vector<64x64xf32>
    %182 = arith.addf %179, %181 : vector<64x64xf32>
    %cst_80 = arith.constant dense<0xFF800000> : vector<64xf32>
    %183 = vector.multi_reduction <maximumf>, %182, %cst_80 [1] : vector<64x64xf32> to vector<64xf32>
    %184 = vector.shape_cast %183 : vector<64xf32> to vector<64x1xf32>
    %185 = vector.broadcast %184 : vector<64x1xf32> to vector<64x64xf32>
    %186 = arith.subf %182, %185 : vector<64x64xf32>
    %187 = math.exp %186 : vector<64x64xf32>
    %cst_81 = arith.constant dense<0.000000e+00> : vector<64xf32>
    %188 = vector.multi_reduction <add>, %187, %cst_81 [1] : vector<64x64xf32> to vector<64xf32>
    %189 = vector.shape_cast %188 : vector<64xf32> to vector<64x1xf32>
    %190 = tpu.reciprocal %189 {approx = true} : vector<64x1xf32> -> vector<64x1xf32>
    %191 = vector.broadcast %190 : vector<64x1xf32> to vector<64x64xf32>
    %192 = arith.mulf %187, %191 : vector<64x64xf32>
    %193 = arith.truncf %192 : vector<64x64xf32> to vector<64x64xbf16>
    %194 = arith.truncf %176 : vector<64x16xf32> to vector<64x16xbf16>
    %cst_82 = arith.constant dense<0.000000e+00> : vector<64x16xf32>
    %195 = tpu.matmul %193, %194, %cst_82 {dimension_numbers = #tpu.dot_dimension_numbers<[1], [0], [0], [1], [0, 0, 1, 1], [], []>} : vector<64x64xbf16>, vector<64x16xbf16>, vector<64x16xf32> -> vector<64x16xf32>
    %c0_83 = arith.constant 0 : index
    %c0_84 = arith.constant 0 : index
    %196 = vector.load %arg17[%c0_83, %c0_84] : memref<32x32xbf16, #tpu.memory_space<vmem>>, vector<16x32xbf16>
    %197 = arith.truncf %195 : vector<64x16xf32> to vector<64x16xbf16>
    %cst_85 = arith.constant dense<0.000000e+00> : vector<64x32xf32>
    %198 = tpu.matmul %197, %196, %cst_85 {dimension_numbers = #tpu.dot_dimension_numbers<[1], [0], [0], [1], [0, 0, 1, 1], [], []>} : vector<64x16xbf16>, vector<16x32xbf16>, vector<64x32xf32> -> vector<64x32xf32>
    %199 = arith.addf %173, %198 : vector<64x32xf32>
    %200 = vector.extract_strided_slice %172 {offsets = [0, 16], sizes = [64, 16], strides = [1, 1]} : vector<64x96xf32> to vector<64x16xf32>
    %201 = vector.extract_strided_slice %172 {offsets = [0, 48], sizes = [64, 16], strides = [1, 1]} : vector<64x96xf32> to vector<64x16xf32>
    %202 = vector.extract_strided_slice %172 {offsets = [0, 80], sizes = [64, 16], strides = [1, 1]} : vector<64x96xf32> to vector<64x16xf32>
    %203 = arith.truncf %200 : vector<64x16xf32> to vector<64x16xbf16>
    %204 = arith.truncf %201 : vector<64x16xf32> to vector<64x16xbf16>
    %cst_86 = arith.constant dense<0.000000e+00> : vector<64x64xf32>
    %205 = tpu.matmul %203, %204, %cst_86 {dimension_numbers = #tpu.dot_dimension_numbers<[1], [1], [0], [0], [0, 0, 1, 0], [], []>} : vector<64x16xbf16>, vector<64x16xbf16>, vector<64x64xf32> -> vector<64x64xf32>
    %c1_87 = arith.constant 1 : index
    %c0_88 = arith.constant 0 : index
    %c0_89 = arith.constant 0 : index
    %206 = vector.load %arg19[%c1_87, %c0_88, %c0_89] : memref<2x64x64xf32, #tpu.memory_space<vmem>>, vector<1x64x64xf32>
    %207 = vector.shape_cast %206 : vector<1x64x64xf32> to vector<64x64xf32>
    %208 = arith.addf %205, %207 : vector<64x64xf32>
    %cst_90 = arith.constant dense<0xFF800000> : vector<64xf32>
    %209 = vector.multi_reduction <maximumf>, %208, %cst_90 [1] : vector<64x64xf32> to vector<64xf32>
    %210 = vector.shape_cast %209 : vector<64xf32> to vector<64x1xf32>
    %211 = vector.broadcast %210 : vector<64x1xf32> to vector<64x64xf32>
    %212 = arith.subf %208, %211 : vector<64x64xf32>
    %213 = math.exp %212 : vector<64x64xf32>
    %cst_91 = arith.constant dense<0.000000e+00> : vector<64xf32>
    %214 = vector.multi_reduction <add>, %213, %cst_91 [1] : vector<64x64xf32> to vector<64xf32>
    %215 = vector.shape_cast %214 : vector<64xf32> to vector<64x1xf32>
    %216 = tpu.reciprocal %215 {approx = true} : vector<64x1xf32> -> vector<64x1xf32>
    %217 = vector.broadcast %216 : vector<64x1xf32> to vector<64x64xf32>
    %218 = arith.mulf %213, %217 : vector<64x64xf32>
    %219 = arith.truncf %218 : vector<64x64xf32> to vector<64x64xbf16>
    %220 = arith.truncf %202 : vector<64x16xf32> to vector<64x16xbf16>
    %cst_92 = arith.constant dense<0.000000e+00> : vector<64x16xf32>
    %221 = tpu.matmul %219, %220, %cst_92 {dimension_numbers = #tpu.dot_dimension_numbers<[1], [0], [0], [1], [0, 0, 1, 1], [], []>} : vector<64x64xbf16>, vector<64x16xbf16>, vector<64x16xf32> -> vector<64x16xf32>
    %c16_93 = arith.constant 16 : index
    %c0_94 = arith.constant 0 : index
    %222 = vector.load %arg17[%c16_93, %c0_94] : memref<32x32xbf16, #tpu.memory_space<vmem>>, vector<16x32xbf16>
    %223 = arith.truncf %221 : vector<64x16xf32> to vector<64x16xbf16>
    %cst_95 = arith.constant dense<0.000000e+00> : vector<64x32xf32>
    %224 = tpu.matmul %223, %222, %cst_95 {dimension_numbers = #tpu.dot_dimension_numbers<[1], [0], [0], [1], [0, 0, 1, 1], [], []>} : vector<64x16xbf16>, vector<16x32xbf16>, vector<64x32xf32> -> vector<64x32xf32>
    %225 = arith.addf %199, %224 : vector<64x32xf32>
    %226 = arith.addf %150, %225 : vector<64x32xf32>
    %c0_96 = arith.constant 0 : index
    %c0_97 = arith.constant 0 : index
    %227 = vector.load %arg18[%c0_96, %c0_97] : memref<1x32xf32, #tpu.memory_space<vmem>>, vector<1x32xf32>
    %228 = vector.broadcast %227 : vector<1x32xf32> to vector<64x32xf32>
    %229 = arith.addf %226, %228 : vector<64x32xf32>
    %cst_98 = arith.constant dense<0.000000e+00> : vector<64xf32>
    %230 = vector.multi_reduction <add>, %229, %cst_98 [1] : vector<64x32xf32> to vector<64xf32>
    %231 = vector.shape_cast %230 : vector<64xf32> to vector<64x1xf32>
    %cst_99 = arith.constant 3.200000e+01 : f32
    %232 = vector.broadcast %cst_99 : f32 to vector<64x1xf32>
    %233 = arith.divf %231, %232 : vector<64x1xf32>
    %234 = vector.broadcast %233 : vector<64x1xf32> to vector<64x32xf32>
    %235 = arith.subf %229, %234 : vector<64x32xf32>
    %236 = arith.mulf %235, %235 : vector<64x32xf32>
    %cst_100 = arith.constant dense<0.000000e+00> : vector<64xf32>
    %237 = vector.multi_reduction <add>, %236, %cst_100 [1] : vector<64x32xf32> to vector<64xf32>
    %238 = vector.shape_cast %237 : vector<64xf32> to vector<64x1xf32>
    %cst_101 = arith.constant 3.200000e+01 : f32
    %239 = vector.broadcast %cst_101 : f32 to vector<64x1xf32>
    %240 = arith.divf %238, %239 : vector<64x1xf32>
    %cst_102 = arith.constant 9.99999974E-6 : f32
    %241 = vector.broadcast %cst_102 : f32 to vector<64x1xf32>
    %242 = arith.addf %240, %241 : vector<64x1xf32>
    %243 = math.rsqrt %242 : vector<64x1xf32>
    %244 = vector.broadcast %243 : vector<64x1xf32> to vector<64x32xf32>
    %245 = arith.mulf %235, %244 : vector<64x32xf32>
    %c0_103 = arith.constant 0 : index
    %c0_104 = arith.constant 0 : index
    %246 = vector.load %arg20[%c0_103, %c0_104] : memref<32x128xbf16, #tpu.memory_space<vmem>>, vector<32x128xbf16>
    %247 = arith.truncf %245 : vector<64x32xf32> to vector<64x32xbf16>
    %cst_105 = arith.constant dense<0.000000e+00> : vector<64x128xf32>
    %248 = tpu.matmul %247, %246, %cst_105 {dimension_numbers = #tpu.dot_dimension_numbers<[1], [0], [0], [1], [0, 0, 1, 1], [], []>} : vector<64x32xbf16>, vector<32x128xbf16>, vector<64x128xf32> -> vector<64x128xf32>
    %c0_106 = arith.constant 0 : index
    %c0_107 = arith.constant 0 : index
    %249 = vector.load %arg21[%c0_106, %c0_107] : memref<1x128xf32, #tpu.memory_space<vmem>>, vector<1x128xf32>
    %250 = vector.broadcast %249 : vector<1x128xf32> to vector<64x128xf32>
    %251 = arith.addf %248, %250 : vector<64x128xf32>
    %cst_108 = arith.constant 5.000000e-01 : f32
    %252 = vector.broadcast %cst_108 : f32 to vector<64x128xf32>
    %253 = arith.mulf %252, %251 : vector<64x128xf32>
    %cst_109 = arith.constant 4.471500e-02 : f32
    %254 = vector.broadcast %cst_109 : f32 to vector<64x128xf32>
    %255 = arith.mulf %254, %251 : vector<64x128xf32>
    %256 = arith.mulf %255, %251 : vector<64x128xf32>
    %257 = arith.mulf %256, %251 : vector<64x128xf32>
    %258 = arith.addf %251, %257 : vector<64x128xf32>
    %cst_110 = arith.constant 0.797884583 : f32
    %259 = vector.broadcast %cst_110 : f32 to vector<64x128xf32>
    %260 = arith.mulf %259, %258 : vector<64x128xf32>
    %261 = math.tanh %260 : vector<64x128xf32>
    %cst_111 = arith.constant 1.000000e+00 : f32
    %262 = vector.broadcast %cst_111 : f32 to vector<64x128xf32>
    %263 = arith.addf %262, %261 : vector<64x128xf32>
    %264 = arith.mulf %253, %263 : vector<64x128xf32>
    %c0_112 = arith.constant 0 : index
    %c0_113 = arith.constant 0 : index
    %265 = vector.load %arg22[%c0_112, %c0_113] : memref<128x32xbf16, #tpu.memory_space<vmem>>, vector<128x32xbf16>
    %266 = arith.truncf %264 : vector<64x128xf32> to vector<64x128xbf16>
    %cst_114 = arith.constant dense<0.000000e+00> : vector<64x32xf32>
    %267 = tpu.matmul %266, %265, %cst_114 {dimension_numbers = #tpu.dot_dimension_numbers<[1], [0], [0], [1], [0, 0, 1, 1], [], []>} : vector<64x128xbf16>, vector<128x32xbf16>, vector<64x32xf32> -> vector<64x32xf32>
    %268 = arith.addf %229, %267 : vector<64x32xf32>
    %c0_115 = arith.constant 0 : index
    %c0_116 = arith.constant 0 : index
    %269 = vector.load %arg23[%c0_115, %c0_116] : memref<1x32xf32, #tpu.memory_space<vmem>>, vector<1x32xf32>
    %270 = vector.broadcast %269 : vector<1x32xf32> to vector<64x32xf32>
    %271 = arith.addf %268, %270 : vector<64x32xf32>
    %272 = vector.extract_strided_slice %271 {offsets = [0, 0], sizes = [16, 32], strides = [1, 1]} : vector<64x32xf32> to vector<16x32xf32>
    %273 = vector.extract_strided_slice %271 {offsets = [16, 0], sizes = [16, 32], strides = [1, 1]} : vector<64x32xf32> to vector<16x32xf32>
    %274 = vector.extract_strided_slice %271 {offsets = [32, 0], sizes = [16, 32], strides = [1, 1]} : vector<64x32xf32> to vector<16x32xf32>
    %275 = vector.extract_strided_slice %271 {offsets = [48, 0], sizes = [16, 32], strides = [1, 1]} : vector<64x32xf32> to vector<16x32xf32>
    %276 = arith.addf %272, %273 : vector<16x32xf32>
    %277 = arith.addf %276, %274 : vector<16x32xf32>
    %278 = arith.addf %277, %275 : vector<16x32xf32>
    %279 = arith.mulf %272, %272 : vector<16x32xf32>
    %280 = arith.mulf %273, %273 : vector<16x32xf32>
    %281 = arith.addf %279, %280 : vector<16x32xf32>
    %282 = arith.mulf %274, %274 : vector<16x32xf32>
    %283 = arith.addf %281, %282 : vector<16x32xf32>
    %284 = arith.mulf %275, %275 : vector<16x32xf32>
    %285 = arith.addf %283, %284 : vector<16x32xf32>
    %cst_117 = arith.constant dense<0.000000e+00> : vector<16xf32>
    %286 = vector.multi_reduction <add>, %278, %cst_117 [1] : vector<16x32xf32> to vector<16xf32>
    %287 = vector.shape_cast %286 : vector<16xf32> to vector<16x1xf32>
    %cst_118 = arith.constant 7.812500e-03 : f32
    %288 = vector.broadcast %cst_118 : f32 to vector<16x1xf32>
    %289 = arith.mulf %287, %288 : vector<16x1xf32>
    %cst_119 = arith.constant dense<0.000000e+00> : vector<16xf32>
    %290 = vector.multi_reduction <add>, %285, %cst_119 [1] : vector<16x32xf32> to vector<16xf32>
    %291 = vector.shape_cast %290 : vector<16xf32> to vector<16x1xf32>
    %cst_120 = arith.constant 7.812500e-03 : f32
    %292 = vector.broadcast %cst_120 : f32 to vector<16x1xf32>
    %293 = arith.mulf %291, %292 : vector<16x1xf32>
    %294 = arith.mulf %289, %289 : vector<16x1xf32>
    %295 = arith.subf %293, %294 : vector<16x1xf32>
    %cst_121 = arith.constant 9.99999974E-6 : f32
    %296 = vector.broadcast %cst_121 : f32 to vector<16x1xf32>
    %297 = arith.addf %295, %296 : vector<16x1xf32>
    %298 = math.rsqrt %297 : vector<16x1xf32>
    %cst_122 = arith.constant 0.000000e+00 : f32
    %299 = vector.broadcast %cst_122 : f32 to vector<16x64xf32>
    %300 = vector.broadcast %289 : vector<16x1xf32> to vector<16x32xf32>
    %301 = arith.subf %272, %300 : vector<16x32xf32>
    %302 = vector.broadcast %298 : vector<16x1xf32> to vector<16x32xf32>
    %303 = arith.mulf %301, %302 : vector<16x32xf32>
    %c0_123 = arith.constant 0 : index
    %c0_124 = arith.constant 0 : index
    %304 = vector.load %arg24[%c0_123, %c0_124] : memref<128x64xbf16, #tpu.memory_space<vmem>>, vector<32x64xbf16>
    %305 = arith.truncf %303 : vector<16x32xf32> to vector<16x32xbf16>
    %cst_125 = arith.constant dense<0.000000e+00> : vector<16x64xf32>
    %306 = tpu.matmul %305, %304, %cst_125 {dimension_numbers = #tpu.dot_dimension_numbers<[1], [0], [0], [1], [0, 0, 1, 1], [], []>} : vector<16x32xbf16>, vector<32x64xbf16>, vector<16x64xf32> -> vector<16x64xf32>
    %307 = arith.addf %299, %306 : vector<16x64xf32>
    %308 = vector.broadcast %289 : vector<16x1xf32> to vector<16x32xf32>
    %309 = arith.subf %273, %308 : vector<16x32xf32>
    %310 = vector.broadcast %298 : vector<16x1xf32> to vector<16x32xf32>
    %311 = arith.mulf %309, %310 : vector<16x32xf32>
    %c32 = arith.constant 32 : index
    %c0_126 = arith.constant 0 : index
    %312 = vector.load %arg24[%c32, %c0_126] : memref<128x64xbf16, #tpu.memory_space<vmem>>, vector<32x64xbf16>
    %313 = arith.truncf %311 : vector<16x32xf32> to vector<16x32xbf16>
    %cst_127 = arith.constant dense<0.000000e+00> : vector<16x64xf32>
    %314 = tpu.matmul %313, %312, %cst_127 {dimension_numbers = #tpu.dot_dimension_numbers<[1], [0], [0], [1], [0, 0, 1, 1], [], []>} : vector<16x32xbf16>, vector<32x64xbf16>, vector<16x64xf32> -> vector<16x64xf32>
    %315 = arith.addf %307, %314 : vector<16x64xf32>
    %316 = vector.broadcast %289 : vector<16x1xf32> to vector<16x32xf32>
    %317 = arith.subf %274, %316 : vector<16x32xf32>
    %318 = vector.broadcast %298 : vector<16x1xf32> to vector<16x32xf32>
    %319 = arith.mulf %317, %318 : vector<16x32xf32>
    %c64 = arith.constant 64 : index
    %c0_128 = arith.constant 0 : index
    %320 = vector.load %arg24[%c64, %c0_128] : memref<128x64xbf16, #tpu.memory_space<vmem>>, vector<32x64xbf16>
    %321 = arith.truncf %319 : vector<16x32xf32> to vector<16x32xbf16>
    %cst_129 = arith.constant dense<0.000000e+00> : vector<16x64xf32>
    %322 = tpu.matmul %321, %320, %cst_129 {dimension_numbers = #tpu.dot_dimension_numbers<[1], [0], [0], [1], [0, 0, 1, 1], [], []>} : vector<16x32xbf16>, vector<32x64xbf16>, vector<16x64xf32> -> vector<16x64xf32>
    %323 = arith.addf %315, %322 : vector<16x64xf32>
    %324 = vector.broadcast %289 : vector<16x1xf32> to vector<16x32xf32>
    %325 = arith.subf %275, %324 : vector<16x32xf32>
    %326 = vector.broadcast %298 : vector<16x1xf32> to vector<16x32xf32>
    %327 = arith.mulf %325, %326 : vector<16x32xf32>
    %c96 = arith.constant 96 : index
    %c0_130 = arith.constant 0 : index
    %328 = vector.load %arg24[%c96, %c0_130] : memref<128x64xbf16, #tpu.memory_space<vmem>>, vector<32x64xbf16>
    %329 = arith.truncf %327 : vector<16x32xf32> to vector<16x32xbf16>
    %cst_131 = arith.constant dense<0.000000e+00> : vector<16x64xf32>
    %330 = tpu.matmul %329, %328, %cst_131 {dimension_numbers = #tpu.dot_dimension_numbers<[1], [0], [0], [1], [0, 0, 1, 1], [], []>} : vector<16x32xbf16>, vector<32x64xbf16>, vector<16x64xf32> -> vector<16x64xf32>
    %331 = arith.addf %323, %330 : vector<16x64xf32>
    %c0_132 = arith.constant 0 : index
    %c0_133 = arith.constant 0 : index
    %332 = vector.load %arg25[%c0_132, %c0_133] : memref<1x64xf32, #tpu.memory_space<vmem>>, vector<1x64xf32>
    %333 = vector.broadcast %332 : vector<1x64xf32> to vector<16x64xf32>
    %334 = arith.addf %331, %333 : vector<16x64xf32>
    %cst_134 = arith.constant dense<0.000000e+00> : vector<16xf32>
    %335 = vector.multi_reduction <add>, %334, %cst_134 [1] : vector<16x64xf32> to vector<16xf32>
    %336 = vector.shape_cast %335 : vector<16xf32> to vector<16x1xf32>
    %cst_135 = arith.constant 6.400000e+01 : f32
    %337 = vector.broadcast %cst_135 : f32 to vector<16x1xf32>
    %338 = arith.divf %336, %337 : vector<16x1xf32>
    %339 = vector.broadcast %338 : vector<16x1xf32> to vector<16x64xf32>
    %340 = arith.subf %334, %339 : vector<16x64xf32>
    %341 = arith.mulf %340, %340 : vector<16x64xf32>
    %cst_136 = arith.constant dense<0.000000e+00> : vector<16xf32>
    %342 = vector.multi_reduction <add>, %341, %cst_136 [1] : vector<16x64xf32> to vector<16xf32>
    %343 = vector.shape_cast %342 : vector<16xf32> to vector<16x1xf32>
    %cst_137 = arith.constant 6.400000e+01 : f32
    %344 = vector.broadcast %cst_137 : f32 to vector<16x1xf32>
    %345 = arith.divf %343, %344 : vector<16x1xf32>
    %cst_138 = arith.constant 9.99999974E-6 : f32
    %346 = vector.broadcast %cst_138 : f32 to vector<16x1xf32>
    %347 = arith.addf %345, %346 : vector<16x1xf32>
    %348 = math.rsqrt %347 : vector<16x1xf32>
    %349 = vector.broadcast %348 : vector<16x1xf32> to vector<16x64xf32>
    %350 = arith.mulf %340, %349 : vector<16x64xf32>
    %c0_139 = arith.constant 0 : index
    %c0_140 = arith.constant 0 : index
    %351 = vector.load %arg26[%c0_139, %c0_140] : memref<64x192xbf16, #tpu.memory_space<vmem>>, vector<64x192xbf16>
    %352 = arith.truncf %350 : vector<16x64xf32> to vector<16x64xbf16>
    %cst_141 = arith.constant dense<0.000000e+00> : vector<16x192xf32>
    %353 = tpu.matmul %352, %351, %cst_141 {dimension_numbers = #tpu.dot_dimension_numbers<[1], [0], [0], [1], [0, 0, 1, 1], [], []>} : vector<16x64xbf16>, vector<64x192xbf16>, vector<16x192xf32> -> vector<16x192xf32>
    %c0_142 = arith.constant 0 : index
    %c0_143 = arith.constant 0 : index
    %354 = vector.load %arg27[%c0_142, %c0_143] : memref<1x192xf32, #tpu.memory_space<vmem>>, vector<1x192xf32>
    %355 = vector.broadcast %354 : vector<1x192xf32> to vector<16x192xf32>
    %356 = arith.addf %353, %355 : vector<16x192xf32>
    %cst_144 = arith.constant 0.000000e+00 : f32
    %357 = vector.broadcast %cst_144 : f32 to vector<16x64xf32>
    %358 = vector.extract_strided_slice %356 {offsets = [0, 0], sizes = [16, 16], strides = [1, 1]} : vector<16x192xf32> to vector<16x16xf32>
    %359 = vector.extract_strided_slice %356 {offsets = [0, 64], sizes = [16, 16], strides = [1, 1]} : vector<16x192xf32> to vector<16x16xf32>
    %360 = vector.extract_strided_slice %356 {offsets = [0, 128], sizes = [16, 16], strides = [1, 1]} : vector<16x192xf32> to vector<16x16xf32>
    %361 = arith.truncf %358 : vector<16x16xf32> to vector<16x16xbf16>
    %362 = arith.truncf %359 : vector<16x16xf32> to vector<16x16xbf16>
    %cst_145 = arith.constant dense<0.000000e+00> : vector<16x16xf32>
    %363 = tpu.matmul %361, %362, %cst_145 {dimension_numbers = #tpu.dot_dimension_numbers<[1], [1], [0], [0], [0, 0, 1, 0], [], []>} : vector<16x16xbf16>, vector<16x16xbf16>, vector<16x16xf32> -> vector<16x16xf32>
    %c0_146 = arith.constant 0 : index
    %c0_147 = arith.constant 0 : index
    %c0_148 = arith.constant 0 : index
    %364 = vector.load %arg30[%c0_146, %c0_147, %c0_148] : memref<4x16x16xf32, #tpu.memory_space<vmem>>, vector<1x16x16xf32>
    %365 = vector.shape_cast %364 : vector<1x16x16xf32> to vector<16x16xf32>
    %366 = arith.addf %363, %365 : vector<16x16xf32>
    %cst_149 = arith.constant dense<0xFF800000> : vector<16xf32>
    %367 = vector.multi_reduction <maximumf>, %366, %cst_149 [1] : vector<16x16xf32> to vector<16xf32>
    %368 = vector.shape_cast %367 : vector<16xf32> to vector<16x1xf32>
    %369 = vector.broadcast %368 : vector<16x1xf32> to vector<16x16xf32>
    %370 = arith.subf %366, %369 : vector<16x16xf32>
    %371 = math.exp %370 : vector<16x16xf32>
    %cst_150 = arith.constant dense<0.000000e+00> : vector<16xf32>
    %372 = vector.multi_reduction <add>, %371, %cst_150 [1] : vector<16x16xf32> to vector<16xf32>
    %373 = vector.shape_cast %372 : vector<16xf32> to vector<16x1xf32>
    %374 = tpu.reciprocal %373 {approx = true} : vector<16x1xf32> -> vector<16x1xf32>
    %375 = vector.broadcast %374 : vector<16x1xf32> to vector<16x16xf32>
    %376 = arith.mulf %371, %375 : vector<16x16xf32>
    %377 = arith.truncf %376 : vector<16x16xf32> to vector<16x16xbf16>
    %378 = arith.truncf %360 : vector<16x16xf32> to vector<16x16xbf16>
    %cst_151 = arith.constant dense<0.000000e+00> : vector<16x16xf32>
    %379 = tpu.matmul %377, %378, %cst_151 {dimension_numbers = #tpu.dot_dimension_numbers<[1], [0], [0], [1], [0, 0, 1, 1], [], []>} : vector<16x16xbf16>, vector<16x16xbf16>, vector<16x16xf32> -> vector<16x16xf32>
    %c0_152 = arith.constant 0 : index
    %c0_153 = arith.constant 0 : index
    %380 = vector.load %arg28[%c0_152, %c0_153] : memref<64x64xbf16, #tpu.memory_space<vmem>>, vector<16x64xbf16>
    %381 = arith.truncf %379 : vector<16x16xf32> to vector<16x16xbf16>
    %cst_154 = arith.constant dense<0.000000e+00> : vector<16x64xf32>
    %382 = tpu.matmul %381, %380, %cst_154 {dimension_numbers = #tpu.dot_dimension_numbers<[1], [0], [0], [1], [0, 0, 1, 1], [], []>} : vector<16x16xbf16>, vector<16x64xbf16>, vector<16x64xf32> -> vector<16x64xf32>
    %383 = arith.addf %357, %382 : vector<16x64xf32>
    %384 = vector.extract_strided_slice %356 {offsets = [0, 16], sizes = [16, 16], strides = [1, 1]} : vector<16x192xf32> to vector<16x16xf32>
    %385 = vector.extract_strided_slice %356 {offsets = [0, 80], sizes = [16, 16], strides = [1, 1]} : vector<16x192xf32> to vector<16x16xf32>
    %386 = vector.extract_strided_slice %356 {offsets = [0, 144], sizes = [16, 16], strides = [1, 1]} : vector<16x192xf32> to vector<16x16xf32>
    %387 = arith.truncf %384 : vector<16x16xf32> to vector<16x16xbf16>
    %388 = arith.truncf %385 : vector<16x16xf32> to vector<16x16xbf16>
    %cst_155 = arith.constant dense<0.000000e+00> : vector<16x16xf32>
    %389 = tpu.matmul %387, %388, %cst_155 {dimension_numbers = #tpu.dot_dimension_numbers<[1], [1], [0], [0], [0, 0, 1, 0], [], []>} : vector<16x16xbf16>, vector<16x16xbf16>, vector<16x16xf32> -> vector<16x16xf32>
    %c1_156 = arith.constant 1 : index
    %c0_157 = arith.constant 0 : index
    %c0_158 = arith.constant 0 : index
    %390 = vector.load %arg30[%c1_156, %c0_157, %c0_158] : memref<4x16x16xf32, #tpu.memory_space<vmem>>, vector<1x16x16xf32>
    %391 = vector.shape_cast %390 : vector<1x16x16xf32> to vector<16x16xf32>
    %392 = arith.addf %389, %391 : vector<16x16xf32>
    %cst_159 = arith.constant dense<0xFF800000> : vector<16xf32>
    %393 = vector.multi_reduction <maximumf>, %392, %cst_159 [1] : vector<16x16xf32> to vector<16xf32>
    %394 = vector.shape_cast %393 : vector<16xf32> to vector<16x1xf32>
    %395 = vector.broadcast %394 : vector<16x1xf32> to vector<16x16xf32>
    %396 = arith.subf %392, %395 : vector<16x16xf32>
    %397 = math.exp %396 : vector<16x16xf32>
    %cst_160 = arith.constant dense<0.000000e+00> : vector<16xf32>
    %398 = vector.multi_reduction <add>, %397, %cst_160 [1] : vector<16x16xf32> to vector<16xf32>
    %399 = vector.shape_cast %398 : vector<16xf32> to vector<16x1xf32>
    %400 = tpu.reciprocal %399 {approx = true} : vector<16x1xf32> -> vector<16x1xf32>
    %401 = vector.broadcast %400 : vector<16x1xf32> to vector<16x16xf32>
    %402 = arith.mulf %397, %401 : vector<16x16xf32>
    %403 = arith.truncf %402 : vector<16x16xf32> to vector<16x16xbf16>
    %404 = arith.truncf %386 : vector<16x16xf32> to vector<16x16xbf16>
    %cst_161 = arith.constant dense<0.000000e+00> : vector<16x16xf32>
    %405 = tpu.matmul %403, %404, %cst_161 {dimension_numbers = #tpu.dot_dimension_numbers<[1], [0], [0], [1], [0, 0, 1, 1], [], []>} : vector<16x16xbf16>, vector<16x16xbf16>, vector<16x16xf32> -> vector<16x16xf32>
    %c16_162 = arith.constant 16 : index
    %c0_163 = arith.constant 0 : index
    %406 = vector.load %arg28[%c16_162, %c0_163] : memref<64x64xbf16, #tpu.memory_space<vmem>>, vector<16x64xbf16>
    %407 = arith.truncf %405 : vector<16x16xf32> to vector<16x16xbf16>
    %cst_164 = arith.constant dense<0.000000e+00> : vector<16x64xf32>
    %408 = tpu.matmul %407, %406, %cst_164 {dimension_numbers = #tpu.dot_dimension_numbers<[1], [0], [0], [1], [0, 0, 1, 1], [], []>} : vector<16x16xbf16>, vector<16x64xbf16>, vector<16x64xf32> -> vector<16x64xf32>
    %409 = arith.addf %383, %408 : vector<16x64xf32>
    %410 = vector.extract_strided_slice %356 {offsets = [0, 32], sizes = [16, 16], strides = [1, 1]} : vector<16x192xf32> to vector<16x16xf32>
    %411 = vector.extract_strided_slice %356 {offsets = [0, 96], sizes = [16, 16], strides = [1, 1]} : vector<16x192xf32> to vector<16x16xf32>
    %412 = vector.extract_strided_slice %356 {offsets = [0, 160], sizes = [16, 16], strides = [1, 1]} : vector<16x192xf32> to vector<16x16xf32>
    %413 = arith.truncf %410 : vector<16x16xf32> to vector<16x16xbf16>
    %414 = arith.truncf %411 : vector<16x16xf32> to vector<16x16xbf16>
    %cst_165 = arith.constant dense<0.000000e+00> : vector<16x16xf32>
    %415 = tpu.matmul %413, %414, %cst_165 {dimension_numbers = #tpu.dot_dimension_numbers<[1], [1], [0], [0], [0, 0, 1, 0], [], []>} : vector<16x16xbf16>, vector<16x16xbf16>, vector<16x16xf32> -> vector<16x16xf32>
    %c2 = arith.constant 2 : index
    %c0_166 = arith.constant 0 : index
    %c0_167 = arith.constant 0 : index
    %416 = vector.load %arg30[%c2, %c0_166, %c0_167] : memref<4x16x16xf32, #tpu.memory_space<vmem>>, vector<1x16x16xf32>
    %417 = vector.shape_cast %416 : vector<1x16x16xf32> to vector<16x16xf32>
    %418 = arith.addf %415, %417 : vector<16x16xf32>
    %cst_168 = arith.constant dense<0xFF800000> : vector<16xf32>
    %419 = vector.multi_reduction <maximumf>, %418, %cst_168 [1] : vector<16x16xf32> to vector<16xf32>
    %420 = vector.shape_cast %419 : vector<16xf32> to vector<16x1xf32>
    %421 = vector.broadcast %420 : vector<16x1xf32> to vector<16x16xf32>
    %422 = arith.subf %418, %421 : vector<16x16xf32>
    %423 = math.exp %422 : vector<16x16xf32>
    %cst_169 = arith.constant dense<0.000000e+00> : vector<16xf32>
    %424 = vector.multi_reduction <add>, %423, %cst_169 [1] : vector<16x16xf32> to vector<16xf32>
    %425 = vector.shape_cast %424 : vector<16xf32> to vector<16x1xf32>
    %426 = tpu.reciprocal %425 {approx = true} : vector<16x1xf32> -> vector<16x1xf32>
    %427 = vector.broadcast %426 : vector<16x1xf32> to vector<16x16xf32>
    %428 = arith.mulf %423, %427 : vector<16x16xf32>
    %429 = arith.truncf %428 : vector<16x16xf32> to vector<16x16xbf16>
    %430 = arith.truncf %412 : vector<16x16xf32> to vector<16x16xbf16>
    %cst_170 = arith.constant dense<0.000000e+00> : vector<16x16xf32>
    %431 = tpu.matmul %429, %430, %cst_170 {dimension_numbers = #tpu.dot_dimension_numbers<[1], [0], [0], [1], [0, 0, 1, 1], [], []>} : vector<16x16xbf16>, vector<16x16xbf16>, vector<16x16xf32> -> vector<16x16xf32>
    %c32_171 = arith.constant 32 : index
    %c0_172 = arith.constant 0 : index
    %432 = vector.load %arg28[%c32_171, %c0_172] : memref<64x64xbf16, #tpu.memory_space<vmem>>, vector<16x64xbf16>
    %433 = arith.truncf %431 : vector<16x16xf32> to vector<16x16xbf16>
    %cst_173 = arith.constant dense<0.000000e+00> : vector<16x64xf32>
    %434 = tpu.matmul %433, %432, %cst_173 {dimension_numbers = #tpu.dot_dimension_numbers<[1], [0], [0], [1], [0, 0, 1, 1], [], []>} : vector<16x16xbf16>, vector<16x64xbf16>, vector<16x64xf32> -> vector<16x64xf32>
    %435 = arith.addf %409, %434 : vector<16x64xf32>
    %436 = vector.extract_strided_slice %356 {offsets = [0, 48], sizes = [16, 16], strides = [1, 1]} : vector<16x192xf32> to vector<16x16xf32>
    %437 = vector.extract_strided_slice %356 {offsets = [0, 112], sizes = [16, 16], strides = [1, 1]} : vector<16x192xf32> to vector<16x16xf32>
    %438 = vector.extract_strided_slice %356 {offsets = [0, 176], sizes = [16, 16], strides = [1, 1]} : vector<16x192xf32> to vector<16x16xf32>
    %439 = arith.truncf %436 : vector<16x16xf32> to vector<16x16xbf16>
    %440 = arith.truncf %437 : vector<16x16xf32> to vector<16x16xbf16>
    %cst_174 = arith.constant dense<0.000000e+00> : vector<16x16xf32>
    %441 = tpu.matmul %439, %440, %cst_174 {dimension_numbers = #tpu.dot_dimension_numbers<[1], [1], [0], [0], [0, 0, 1, 0], [], []>} : vector<16x16xbf16>, vector<16x16xbf16>, vector<16x16xf32> -> vector<16x16xf32>
    %c3 = arith.constant 3 : index
    %c0_175 = arith.constant 0 : index
    %c0_176 = arith.constant 0 : index
    %442 = vector.load %arg30[%c3, %c0_175, %c0_176] : memref<4x16x16xf32, #tpu.memory_space<vmem>>, vector<1x16x16xf32>
    %443 = vector.shape_cast %442 : vector<1x16x16xf32> to vector<16x16xf32>
    %444 = arith.addf %441, %443 : vector<16x16xf32>
    %cst_177 = arith.constant dense<0xFF800000> : vector<16xf32>
    %445 = vector.multi_reduction <maximumf>, %444, %cst_177 [1] : vector<16x16xf32> to vector<16xf32>
    %446 = vector.shape_cast %445 : vector<16xf32> to vector<16x1xf32>
    %447 = vector.broadcast %446 : vector<16x1xf32> to vector<16x16xf32>
    %448 = arith.subf %444, %447 : vector<16x16xf32>
    %449 = math.exp %448 : vector<16x16xf32>
    %cst_178 = arith.constant dense<0.000000e+00> : vector<16xf32>
    %450 = vector.multi_reduction <add>, %449, %cst_178 [1] : vector<16x16xf32> to vector<16xf32>
    %451 = vector.shape_cast %450 : vector<16xf32> to vector<16x1xf32>
    %452 = tpu.reciprocal %451 {approx = true} : vector<16x1xf32> -> vector<16x1xf32>
    %453 = vector.broadcast %452 : vector<16x1xf32> to vector<16x16xf32>
    %454 = arith.mulf %449, %453 : vector<16x16xf32>
    %455 = arith.truncf %454 : vector<16x16xf32> to vector<16x16xbf16>
    %456 = arith.truncf %438 : vector<16x16xf32> to vector<16x16xbf16>
    %cst_179 = arith.constant dense<0.000000e+00> : vector<16x16xf32>
    %457 = tpu.matmul %455, %456, %cst_179 {dimension_numbers = #tpu.dot_dimension_numbers<[1], [0], [0], [1], [0, 0, 1, 1], [], []>} : vector<16x16xbf16>, vector<16x16xbf16>, vector<16x16xf32> -> vector<16x16xf32>
    %c48 = arith.constant 48 : index
    %c0_180 = arith.constant 0 : index
    %458 = vector.load %arg28[%c48, %c0_180] : memref<64x64xbf16, #tpu.memory_space<vmem>>, vector<16x64xbf16>
    %459 = arith.truncf %457 : vector<16x16xf32> to vector<16x16xbf16>
    %cst_181 = arith.constant dense<0.000000e+00> : vector<16x64xf32>
    %460 = tpu.matmul %459, %458, %cst_181 {dimension_numbers = #tpu.dot_dimension_numbers<[1], [0], [0], [1], [0, 0, 1, 1], [], []>} : vector<16x16xbf16>, vector<16x64xbf16>, vector<16x64xf32> -> vector<16x64xf32>
    %461 = arith.addf %435, %460 : vector<16x64xf32>
    %462 = arith.addf %334, %461 : vector<16x64xf32>
    %c0_182 = arith.constant 0 : index
    %c0_183 = arith.constant 0 : index
    %463 = vector.load %arg29[%c0_182, %c0_183] : memref<1x64xf32, #tpu.memory_space<vmem>>, vector<1x64xf32>
    %464 = vector.broadcast %463 : vector<1x64xf32> to vector<16x64xf32>
    %465 = arith.addf %462, %464 : vector<16x64xf32>
    %cst_184 = arith.constant dense<0.000000e+00> : vector<16xf32>
    %466 = vector.multi_reduction <add>, %465, %cst_184 [1] : vector<16x64xf32> to vector<16xf32>
    %467 = vector.shape_cast %466 : vector<16xf32> to vector<16x1xf32>
    %cst_185 = arith.constant 6.400000e+01 : f32
    %468 = vector.broadcast %cst_185 : f32 to vector<16x1xf32>
    %469 = arith.divf %467, %468 : vector<16x1xf32>
    %470 = vector.broadcast %469 : vector<16x1xf32> to vector<16x64xf32>
    %471 = arith.subf %465, %470 : vector<16x64xf32>
    %472 = arith.mulf %471, %471 : vector<16x64xf32>
    %cst_186 = arith.constant dense<0.000000e+00> : vector<16xf32>
    %473 = vector.multi_reduction <add>, %472, %cst_186 [1] : vector<16x64xf32> to vector<16xf32>
    %474 = vector.shape_cast %473 : vector<16xf32> to vector<16x1xf32>
    %cst_187 = arith.constant 6.400000e+01 : f32
    %475 = vector.broadcast %cst_187 : f32 to vector<16x1xf32>
    %476 = arith.divf %474, %475 : vector<16x1xf32>
    %cst_188 = arith.constant 9.99999974E-6 : f32
    %477 = vector.broadcast %cst_188 : f32 to vector<16x1xf32>
    %478 = arith.addf %476, %477 : vector<16x1xf32>
    %479 = math.rsqrt %478 : vector<16x1xf32>
    %480 = vector.broadcast %479 : vector<16x1xf32> to vector<16x64xf32>
    %481 = arith.mulf %471, %480 : vector<16x64xf32>
    %c0_189 = arith.constant 0 : index
    %c0_190 = arith.constant 0 : index
    %482 = vector.load %arg31[%c0_189, %c0_190] : memref<64x256xbf16, #tpu.memory_space<vmem>>, vector<64x256xbf16>
    %483 = arith.truncf %481 : vector<16x64xf32> to vector<16x64xbf16>
    %cst_191 = arith.constant dense<0.000000e+00> : vector<16x256xf32>
    %484 = tpu.matmul %483, %482, %cst_191 {dimension_numbers = #tpu.dot_dimension_numbers<[1], [0], [0], [1], [0, 0, 1, 1], [], []>} : vector<16x64xbf16>, vector<64x256xbf16>, vector<16x256xf32> -> vector<16x256xf32>
    %c0_192 = arith.constant 0 : index
    %c0_193 = arith.constant 0 : index
    %485 = vector.load %arg32[%c0_192, %c0_193] : memref<1x256xf32, #tpu.memory_space<vmem>>, vector<1x256xf32>
    %486 = vector.broadcast %485 : vector<1x256xf32> to vector<16x256xf32>
    %487 = arith.addf %484, %486 : vector<16x256xf32>
    %cst_194 = arith.constant 5.000000e-01 : f32
    %488 = vector.broadcast %cst_194 : f32 to vector<16x256xf32>
    %489 = arith.mulf %488, %487 : vector<16x256xf32>
    %cst_195 = arith.constant 4.471500e-02 : f32
    %490 = vector.broadcast %cst_195 : f32 to vector<16x256xf32>
    %491 = arith.mulf %490, %487 : vector<16x256xf32>
    %492 = arith.mulf %491, %487 : vector<16x256xf32>
    %493 = arith.mulf %492, %487 : vector<16x256xf32>
    %494 = arith.addf %487, %493 : vector<16x256xf32>
    %cst_196 = arith.constant 0.797884583 : f32
    %495 = vector.broadcast %cst_196 : f32 to vector<16x256xf32>
    %496 = arith.mulf %495, %494 : vector<16x256xf32>
    %497 = math.tanh %496 : vector<16x256xf32>
    %cst_197 = arith.constant 1.000000e+00 : f32
    %498 = vector.broadcast %cst_197 : f32 to vector<16x256xf32>
    %499 = arith.addf %498, %497 : vector<16x256xf32>
    %500 = arith.mulf %489, %499 : vector<16x256xf32>
    %c0_198 = arith.constant 0 : index
    %c0_199 = arith.constant 0 : index
    %501 = vector.load %arg33[%c0_198, %c0_199] : memref<256x64xbf16, #tpu.memory_space<vmem>>, vector<256x64xbf16>
    %502 = arith.truncf %500 : vector<16x256xf32> to vector<16x256xbf16>
    %cst_200 = arith.constant dense<0.000000e+00> : vector<16x64xf32>
    %503 = tpu.matmul %502, %501, %cst_200 {dimension_numbers = #tpu.dot_dimension_numbers<[1], [0], [0], [1], [0, 0, 1, 1], [], []>} : vector<16x256xbf16>, vector<256x64xbf16>, vector<16x64xf32> -> vector<16x64xf32>
    %504 = arith.addf %465, %503 : vector<16x64xf32>
    %c0_201 = arith.constant 0 : index
    %c0_202 = arith.constant 0 : index
    %505 = vector.load %arg34[%c0_201, %c0_202] : memref<1x64xf32, #tpu.memory_space<vmem>>, vector<1x64xf32>
    %506 = vector.broadcast %505 : vector<1x64xf32> to vector<16x64xf32>
    %507 = arith.addf %504, %506 : vector<16x64xf32>
    %cst_203 = arith.constant dense<0.000000e+00> : vector<16xf32>
    %508 = vector.multi_reduction <add>, %507, %cst_203 [1] : vector<16x64xf32> to vector<16xf32>
    %509 = vector.shape_cast %508 : vector<16xf32> to vector<16x1xf32>
    %cst_204 = arith.constant 6.400000e+01 : f32
    %510 = vector.broadcast %cst_204 : f32 to vector<16x1xf32>
    %511 = arith.divf %509, %510 : vector<16x1xf32>
    %512 = vector.broadcast %511 : vector<16x1xf32> to vector<16x64xf32>
    %513 = arith.subf %507, %512 : vector<16x64xf32>
    %514 = arith.mulf %513, %513 : vector<16x64xf32>
    %cst_205 = arith.constant dense<0.000000e+00> : vector<16xf32>
    %515 = vector.multi_reduction <add>, %514, %cst_205 [1] : vector<16x64xf32> to vector<16xf32>
    %516 = vector.shape_cast %515 : vector<16xf32> to vector<16x1xf32>
    %cst_206 = arith.constant 6.400000e+01 : f32
    %517 = vector.broadcast %cst_206 : f32 to vector<16x1xf32>
    %518 = arith.divf %516, %517 : vector<16x1xf32>
    %cst_207 = arith.constant 9.99999974E-6 : f32
    %519 = vector.broadcast %cst_207 : f32 to vector<16x1xf32>
    %520 = arith.addf %518, %519 : vector<16x1xf32>
    %521 = math.rsqrt %520 : vector<16x1xf32>
    %522 = vector.broadcast %521 : vector<16x1xf32> to vector<16x64xf32>
    %523 = arith.mulf %513, %522 : vector<16x64xf32>
    %c0_208 = arith.constant 0 : index
    %c0_209 = arith.constant 0 : index
    %524 = vector.load %arg35[%c0_208, %c0_209] : memref<64x192xbf16, #tpu.memory_space<vmem>>, vector<64x192xbf16>
    %525 = arith.truncf %523 : vector<16x64xf32> to vector<16x64xbf16>
    %cst_210 = arith.constant dense<0.000000e+00> : vector<16x192xf32>
    %526 = tpu.matmul %525, %524, %cst_210 {dimension_numbers = #tpu.dot_dimension_numbers<[1], [0], [0], [1], [0, 0, 1, 1], [], []>} : vector<16x64xbf16>, vector<64x192xbf16>, vector<16x192xf32> -> vector<16x192xf32>
    %c0_211 = arith.constant 0 : index
    %c0_212 = arith.constant 0 : index
    %527 = vector.load %arg36[%c0_211, %c0_212] : memref<1x192xf32, #tpu.memory_space<vmem>>, vector<1x192xf32>
    %528 = vector.broadcast %527 : vector<1x192xf32> to vector<16x192xf32>
    %529 = arith.addf %526, %528 : vector<16x192xf32>
    %cst_213 = arith.constant 0.000000e+00 : f32
    %530 = vector.broadcast %cst_213 : f32 to vector<16x64xf32>
    %531 = vector.extract_strided_slice %529 {offsets = [0, 0], sizes = [16, 16], strides = [1, 1]} : vector<16x192xf32> to vector<16x16xf32>
    %532 = vector.extract_strided_slice %529 {offsets = [0, 64], sizes = [16, 16], strides = [1, 1]} : vector<16x192xf32> to vector<16x16xf32>
    %533 = vector.extract_strided_slice %529 {offsets = [0, 128], sizes = [16, 16], strides = [1, 1]} : vector<16x192xf32> to vector<16x16xf32>
    %534 = arith.truncf %531 : vector<16x16xf32> to vector<16x16xbf16>
    %535 = arith.truncf %532 : vector<16x16xf32> to vector<16x16xbf16>
    %cst_214 = arith.constant dense<0.000000e+00> : vector<16x16xf32>
    %536 = tpu.matmul %534, %535, %cst_214 {dimension_numbers = #tpu.dot_dimension_numbers<[1], [1], [0], [0], [0, 0, 1, 0], [], []>} : vector<16x16xbf16>, vector<16x16xbf16>, vector<16x16xf32> -> vector<16x16xf32>
    %c0_215 = arith.constant 0 : index
    %c0_216 = arith.constant 0 : index
    %c0_217 = arith.constant 0 : index
    %537 = vector.load %arg39[%c0_215, %c0_216, %c0_217] : memref<4x16x16xf32, #tpu.memory_space<vmem>>, vector<1x16x16xf32>
    %538 = vector.shape_cast %537 : vector<1x16x16xf32> to vector<16x16xf32>
    %539 = arith.addf %536, %538 : vector<16x16xf32>
    %cst_218 = arith.constant dense<0xFF800000> : vector<16xf32>
    %540 = vector.multi_reduction <maximumf>, %539, %cst_218 [1] : vector<16x16xf32> to vector<16xf32>
    %541 = vector.shape_cast %540 : vector<16xf32> to vector<16x1xf32>
    %542 = vector.broadcast %541 : vector<16x1xf32> to vector<16x16xf32>
    %543 = arith.subf %539, %542 : vector<16x16xf32>
    %544 = math.exp %543 : vector<16x16xf32>
    %cst_219 = arith.constant dense<0.000000e+00> : vector<16xf32>
    %545 = vector.multi_reduction <add>, %544, %cst_219 [1] : vector<16x16xf32> to vector<16xf32>
    %546 = vector.shape_cast %545 : vector<16xf32> to vector<16x1xf32>
    %547 = tpu.reciprocal %546 {approx = true} : vector<16x1xf32> -> vector<16x1xf32>
    %548 = vector.broadcast %547 : vector<16x1xf32> to vector<16x16xf32>
    %549 = arith.mulf %544, %548 : vector<16x16xf32>
    %550 = arith.truncf %549 : vector<16x16xf32> to vector<16x16xbf16>
    %551 = arith.truncf %533 : vector<16x16xf32> to vector<16x16xbf16>
    %cst_220 = arith.constant dense<0.000000e+00> : vector<16x16xf32>
    %552 = tpu.matmul %550, %551, %cst_220 {dimension_numbers = #tpu.dot_dimension_numbers<[1], [0], [0], [1], [0, 0, 1, 1], [], []>} : vector<16x16xbf16>, vector<16x16xbf16>, vector<16x16xf32> -> vector<16x16xf32>
    %c0_221 = arith.constant 0 : index
    %c0_222 = arith.constant 0 : index
    %553 = vector.load %arg37[%c0_221, %c0_222] : memref<64x64xbf16, #tpu.memory_space<vmem>>, vector<16x64xbf16>
    %554 = arith.truncf %552 : vector<16x16xf32> to vector<16x16xbf16>
    %cst_223 = arith.constant dense<0.000000e+00> : vector<16x64xf32>
    %555 = tpu.matmul %554, %553, %cst_223 {dimension_numbers = #tpu.dot_dimension_numbers<[1], [0], [0], [1], [0, 0, 1, 1], [], []>} : vector<16x16xbf16>, vector<16x64xbf16>, vector<16x64xf32> -> vector<16x64xf32>
    %556 = arith.addf %530, %555 : vector<16x64xf32>
    %557 = vector.extract_strided_slice %529 {offsets = [0, 16], sizes = [16, 16], strides = [1, 1]} : vector<16x192xf32> to vector<16x16xf32>
    %558 = vector.extract_strided_slice %529 {offsets = [0, 80], sizes = [16, 16], strides = [1, 1]} : vector<16x192xf32> to vector<16x16xf32>
    %559 = vector.extract_strided_slice %529 {offsets = [0, 144], sizes = [16, 16], strides = [1, 1]} : vector<16x192xf32> to vector<16x16xf32>
    %560 = arith.truncf %557 : vector<16x16xf32> to vector<16x16xbf16>
    %561 = arith.truncf %558 : vector<16x16xf32> to vector<16x16xbf16>
    %cst_224 = arith.constant dense<0.000000e+00> : vector<16x16xf32>
    %562 = tpu.matmul %560, %561, %cst_224 {dimension_numbers = #tpu.dot_dimension_numbers<[1], [1], [0], [0], [0, 0, 1, 0], [], []>} : vector<16x16xbf16>, vector<16x16xbf16>, vector<16x16xf32> -> vector<16x16xf32>
    %c1_225 = arith.constant 1 : index
    %c0_226 = arith.constant 0 : index
    %c0_227 = arith.constant 0 : index
    %563 = vector.load %arg39[%c1_225, %c0_226, %c0_227] : memref<4x16x16xf32, #tpu.memory_space<vmem>>, vector<1x16x16xf32>
    %564 = vector.shape_cast %563 : vector<1x16x16xf32> to vector<16x16xf32>
    %565 = arith.addf %562, %564 : vector<16x16xf32>
    %cst_228 = arith.constant dense<0xFF800000> : vector<16xf32>
    %566 = vector.multi_reduction <maximumf>, %565, %cst_228 [1] : vector<16x16xf32> to vector<16xf32>
    %567 = vector.shape_cast %566 : vector<16xf32> to vector<16x1xf32>
    %568 = vector.broadcast %567 : vector<16x1xf32> to vector<16x16xf32>
    %569 = arith.subf %565, %568 : vector<16x16xf32>
    %570 = math.exp %569 : vector<16x16xf32>
    %cst_229 = arith.constant dense<0.000000e+00> : vector<16xf32>
    %571 = vector.multi_reduction <add>, %570, %cst_229 [1] : vector<16x16xf32> to vector<16xf32>
    %572 = vector.shape_cast %571 : vector<16xf32> to vector<16x1xf32>
    %573 = tpu.reciprocal %572 {approx = true} : vector<16x1xf32> -> vector<16x1xf32>
    %574 = vector.broadcast %573 : vector<16x1xf32> to vector<16x16xf32>
    %575 = arith.mulf %570, %574 : vector<16x16xf32>
    %576 = arith.truncf %575 : vector<16x16xf32> to vector<16x16xbf16>
    %577 = arith.truncf %559 : vector<16x16xf32> to vector<16x16xbf16>
    %cst_230 = arith.constant dense<0.000000e+00> : vector<16x16xf32>
    %578 = tpu.matmul %576, %577, %cst_230 {dimension_numbers = #tpu.dot_dimension_numbers<[1], [0], [0], [1], [0, 0, 1, 1], [], []>} : vector<16x16xbf16>, vector<16x16xbf16>, vector<16x16xf32> -> vector<16x16xf32>
    %c16_231 = arith.constant 16 : index
    %c0_232 = arith.constant 0 : index
    %579 = vector.load %arg37[%c16_231, %c0_232] : memref<64x64xbf16, #tpu.memory_space<vmem>>, vector<16x64xbf16>
    %580 = arith.truncf %578 : vector<16x16xf32> to vector<16x16xbf16>
    %cst_233 = arith.constant dense<0.000000e+00> : vector<16x64xf32>
    %581 = tpu.matmul %580, %579, %cst_233 {dimension_numbers = #tpu.dot_dimension_numbers<[1], [0], [0], [1], [0, 0, 1, 1], [], []>} : vector<16x16xbf16>, vector<16x64xbf16>, vector<16x64xf32> -> vector<16x64xf32>
    %582 = arith.addf %556, %581 : vector<16x64xf32>
    %583 = vector.extract_strided_slice %529 {offsets = [0, 32], sizes = [16, 16], strides = [1, 1]} : vector<16x192xf32> to vector<16x16xf32>
    %584 = vector.extract_strided_slice %529 {offsets = [0, 96], sizes = [16, 16], strides = [1, 1]} : vector<16x192xf32> to vector<16x16xf32>
    %585 = vector.extract_strided_slice %529 {offsets = [0, 160], sizes = [16, 16], strides = [1, 1]} : vector<16x192xf32> to vector<16x16xf32>
    %586 = arith.truncf %583 : vector<16x16xf32> to vector<16x16xbf16>
    %587 = arith.truncf %584 : vector<16x16xf32> to vector<16x16xbf16>
    %cst_234 = arith.constant dense<0.000000e+00> : vector<16x16xf32>
    %588 = tpu.matmul %586, %587, %cst_234 {dimension_numbers = #tpu.dot_dimension_numbers<[1], [1], [0], [0], [0, 0, 1, 0], [], []>} : vector<16x16xbf16>, vector<16x16xbf16>, vector<16x16xf32> -> vector<16x16xf32>
    %c2_235 = arith.constant 2 : index
    %c0_236 = arith.constant 0 : index
    %c0_237 = arith.constant 0 : index
    %589 = vector.load %arg39[%c2_235, %c0_236, %c0_237] : memref<4x16x16xf32, #tpu.memory_space<vmem>>, vector<1x16x16xf32>
    %590 = vector.shape_cast %589 : vector<1x16x16xf32> to vector<16x16xf32>
    %591 = arith.addf %588, %590 : vector<16x16xf32>
    %cst_238 = arith.constant dense<0xFF800000> : vector<16xf32>
    %592 = vector.multi_reduction <maximumf>, %591, %cst_238 [1] : vector<16x16xf32> to vector<16xf32>
    %593 = vector.shape_cast %592 : vector<16xf32> to vector<16x1xf32>
    %594 = vector.broadcast %593 : vector<16x1xf32> to vector<16x16xf32>
    %595 = arith.subf %591, %594 : vector<16x16xf32>
    %596 = math.exp %595 : vector<16x16xf32>
    %cst_239 = arith.constant dense<0.000000e+00> : vector<16xf32>
    %597 = vector.multi_reduction <add>, %596, %cst_239 [1] : vector<16x16xf32> to vector<16xf32>
    %598 = vector.shape_cast %597 : vector<16xf32> to vector<16x1xf32>
    %599 = tpu.reciprocal %598 {approx = true} : vector<16x1xf32> -> vector<16x1xf32>
    %600 = vector.broadcast %599 : vector<16x1xf32> to vector<16x16xf32>
    %601 = arith.mulf %596, %600 : vector<16x16xf32>
    %602 = arith.truncf %601 : vector<16x16xf32> to vector<16x16xbf16>
    %603 = arith.truncf %585 : vector<16x16xf32> to vector<16x16xbf16>
    %cst_240 = arith.constant dense<0.000000e+00> : vector<16x16xf32>
    %604 = tpu.matmul %602, %603, %cst_240 {dimension_numbers = #tpu.dot_dimension_numbers<[1], [0], [0], [1], [0, 0, 1, 1], [], []>} : vector<16x16xbf16>, vector<16x16xbf16>, vector<16x16xf32> -> vector<16x16xf32>
    %c32_241 = arith.constant 32 : index
    %c0_242 = arith.constant 0 : index
    %605 = vector.load %arg37[%c32_241, %c0_242] : memref<64x64xbf16, #tpu.memory_space<vmem>>, vector<16x64xbf16>
    %606 = arith.truncf %604 : vector<16x16xf32> to vector<16x16xbf16>
    %cst_243 = arith.constant dense<0.000000e+00> : vector<16x64xf32>
    %607 = tpu.matmul %606, %605, %cst_243 {dimension_numbers = #tpu.dot_dimension_numbers<[1], [0], [0], [1], [0, 0, 1, 1], [], []>} : vector<16x16xbf16>, vector<16x64xbf16>, vector<16x64xf32> -> vector<16x64xf32>
    %608 = arith.addf %582, %607 : vector<16x64xf32>
    %609 = vector.extract_strided_slice %529 {offsets = [0, 48], sizes = [16, 16], strides = [1, 1]} : vector<16x192xf32> to vector<16x16xf32>
    %610 = vector.extract_strided_slice %529 {offsets = [0, 112], sizes = [16, 16], strides = [1, 1]} : vector<16x192xf32> to vector<16x16xf32>
    %611 = vector.extract_strided_slice %529 {offsets = [0, 176], sizes = [16, 16], strides = [1, 1]} : vector<16x192xf32> to vector<16x16xf32>
    %612 = arith.truncf %609 : vector<16x16xf32> to vector<16x16xbf16>
    %613 = arith.truncf %610 : vector<16x16xf32> to vector<16x16xbf16>
    %cst_244 = arith.constant dense<0.000000e+00> : vector<16x16xf32>
    %614 = tpu.matmul %612, %613, %cst_244 {dimension_numbers = #tpu.dot_dimension_numbers<[1], [1], [0], [0], [0, 0, 1, 0], [], []>} : vector<16x16xbf16>, vector<16x16xbf16>, vector<16x16xf32> -> vector<16x16xf32>
    %c3_245 = arith.constant 3 : index
    %c0_246 = arith.constant 0 : index
    %c0_247 = arith.constant 0 : index
    %615 = vector.load %arg39[%c3_245, %c0_246, %c0_247] : memref<4x16x16xf32, #tpu.memory_space<vmem>>, vector<1x16x16xf32>
    %616 = vector.shape_cast %615 : vector<1x16x16xf32> to vector<16x16xf32>
    %617 = arith.addf %614, %616 : vector<16x16xf32>
    %cst_248 = arith.constant dense<0xFF800000> : vector<16xf32>
    %618 = vector.multi_reduction <maximumf>, %617, %cst_248 [1] : vector<16x16xf32> to vector<16xf32>
    %619 = vector.shape_cast %618 : vector<16xf32> to vector<16x1xf32>
    %620 = vector.broadcast %619 : vector<16x1xf32> to vector<16x16xf32>
    %621 = arith.subf %617, %620 : vector<16x16xf32>
    %622 = math.exp %621 : vector<16x16xf32>
    %cst_249 = arith.constant dense<0.000000e+00> : vector<16xf32>
    %623 = vector.multi_reduction <add>, %622, %cst_249 [1] : vector<16x16xf32> to vector<16xf32>
    %624 = vector.shape_cast %623 : vector<16xf32> to vector<16x1xf32>
    %625 = tpu.reciprocal %624 {approx = true} : vector<16x1xf32> -> vector<16x1xf32>
    %626 = vector.broadcast %625 : vector<16x1xf32> to vector<16x16xf32>
    %627 = arith.mulf %622, %626 : vector<16x16xf32>
    %628 = arith.truncf %627 : vector<16x16xf32> to vector<16x16xbf16>
    %629 = arith.truncf %611 : vector<16x16xf32> to vector<16x16xbf16>
    %cst_250 = arith.constant dense<0.000000e+00> : vector<16x16xf32>
    %630 = tpu.matmul %628, %629, %cst_250 {dimension_numbers = #tpu.dot_dimension_numbers<[1], [0], [0], [1], [0, 0, 1, 1], [], []>} : vector<16x16xbf16>, vector<16x16xbf16>, vector<16x16xf32> -> vector<16x16xf32>
    %c48_251 = arith.constant 48 : index
    %c0_252 = arith.constant 0 : index
    %631 = vector.load %arg37[%c48_251, %c0_252] : memref<64x64xbf16, #tpu.memory_space<vmem>>, vector<16x64xbf16>
    %632 = arith.truncf %630 : vector<16x16xf32> to vector<16x16xbf16>
    %cst_253 = arith.constant dense<0.000000e+00> : vector<16x64xf32>
    %633 = tpu.matmul %632, %631, %cst_253 {dimension_numbers = #tpu.dot_dimension_numbers<[1], [0], [0], [1], [0, 0, 1, 1], [], []>} : vector<16x16xbf16>, vector<16x64xbf16>, vector<16x64xf32> -> vector<16x64xf32>
    %634 = arith.addf %608, %633 : vector<16x64xf32>
    %635 = arith.addf %507, %634 : vector<16x64xf32>
    %c0_254 = arith.constant 0 : index
    %c0_255 = arith.constant 0 : index
    %636 = vector.load %arg38[%c0_254, %c0_255] : memref<1x64xf32, #tpu.memory_space<vmem>>, vector<1x64xf32>
    %637 = vector.broadcast %636 : vector<1x64xf32> to vector<16x64xf32>
    %638 = arith.addf %635, %637 : vector<16x64xf32>
    %cst_256 = arith.constant dense<0.000000e+00> : vector<16xf32>
    %639 = vector.multi_reduction <add>, %638, %cst_256 [1] : vector<16x64xf32> to vector<16xf32>
    %640 = vector.shape_cast %639 : vector<16xf32> to vector<16x1xf32>
    %cst_257 = arith.constant 6.400000e+01 : f32
    %641 = vector.broadcast %cst_257 : f32 to vector<16x1xf32>
    %642 = arith.divf %640, %641 : vector<16x1xf32>
    %643 = vector.broadcast %642 : vector<16x1xf32> to vector<16x64xf32>
    %644 = arith.subf %638, %643 : vector<16x64xf32>
    %645 = arith.mulf %644, %644 : vector<16x64xf32>
    %cst_258 = arith.constant dense<0.000000e+00> : vector<16xf32>
    %646 = vector.multi_reduction <add>, %645, %cst_258 [1] : vector<16x64xf32> to vector<16xf32>
    %647 = vector.shape_cast %646 : vector<16xf32> to vector<16x1xf32>
    %cst_259 = arith.constant 6.400000e+01 : f32
    %648 = vector.broadcast %cst_259 : f32 to vector<16x1xf32>
    %649 = arith.divf %647, %648 : vector<16x1xf32>
    %cst_260 = arith.constant 9.99999974E-6 : f32
    %650 = vector.broadcast %cst_260 : f32 to vector<16x1xf32>
    %651 = arith.addf %649, %650 : vector<16x1xf32>
    %652 = math.rsqrt %651 : vector<16x1xf32>
    %653 = vector.broadcast %652 : vector<16x1xf32> to vector<16x64xf32>
    %654 = arith.mulf %644, %653 : vector<16x64xf32>
    %c0_261 = arith.constant 0 : index
    %c0_262 = arith.constant 0 : index
    %655 = vector.load %arg40[%c0_261, %c0_262] : memref<64x256xbf16, #tpu.memory_space<vmem>>, vector<64x256xbf16>
    %656 = arith.truncf %654 : vector<16x64xf32> to vector<16x64xbf16>
    %cst_263 = arith.constant dense<0.000000e+00> : vector<16x256xf32>
    %657 = tpu.matmul %656, %655, %cst_263 {dimension_numbers = #tpu.dot_dimension_numbers<[1], [0], [0], [1], [0, 0, 1, 1], [], []>} : vector<16x64xbf16>, vector<64x256xbf16>, vector<16x256xf32> -> vector<16x256xf32>
    %c0_264 = arith.constant 0 : index
    %c0_265 = arith.constant 0 : index
    %658 = vector.load %arg41[%c0_264, %c0_265] : memref<1x256xf32, #tpu.memory_space<vmem>>, vector<1x256xf32>
    %659 = vector.broadcast %658 : vector<1x256xf32> to vector<16x256xf32>
    %660 = arith.addf %657, %659 : vector<16x256xf32>
    %cst_266 = arith.constant 5.000000e-01 : f32
    %661 = vector.broadcast %cst_266 : f32 to vector<16x256xf32>
    %662 = arith.mulf %661, %660 : vector<16x256xf32>
    %cst_267 = arith.constant 4.471500e-02 : f32
    %663 = vector.broadcast %cst_267 : f32 to vector<16x256xf32>
    %664 = arith.mulf %663, %660 : vector<16x256xf32>
    %665 = arith.mulf %664, %660 : vector<16x256xf32>
    %666 = arith.mulf %665, %660 : vector<16x256xf32>
    %667 = arith.addf %660, %666 : vector<16x256xf32>
    %cst_268 = arith.constant 0.797884583 : f32
    %668 = vector.broadcast %cst_268 : f32 to vector<16x256xf32>
    %669 = arith.mulf %668, %667 : vector<16x256xf32>
    %670 = math.tanh %669 : vector<16x256xf32>
    %cst_269 = arith.constant 1.000000e+00 : f32
    %671 = vector.broadcast %cst_269 : f32 to vector<16x256xf32>
    %672 = arith.addf %671, %670 : vector<16x256xf32>
    %673 = arith.mulf %662, %672 : vector<16x256xf32>
    %c0_270 = arith.constant 0 : index
    %c0_271 = arith.constant 0 : index
    %674 = vector.load %arg42[%c0_270, %c0_271] : memref<256x64xbf16, #tpu.memory_space<vmem>>, vector<256x64xbf16>
    %675 = arith.truncf %673 : vector<16x256xf32> to vector<16x256xbf16>
    %cst_272 = arith.constant dense<0.000000e+00> : vector<16x64xf32>
    %676 = tpu.matmul %675, %674, %cst_272 {dimension_numbers = #tpu.dot_dimension_numbers<[1], [0], [0], [1], [0, 0, 1, 1], [], []>} : vector<16x256xbf16>, vector<256x64xbf16>, vector<16x64xf32> -> vector<16x64xf32>
    %677 = arith.addf %638, %676 : vector<16x64xf32>
    %c0_273 = arith.constant 0 : index
    %c0_274 = arith.constant 0 : index
    %678 = vector.load %arg43[%c0_273, %c0_274] : memref<1x64xf32, #tpu.memory_space<vmem>>, vector<1x64xf32>
    %679 = vector.broadcast %678 : vector<1x64xf32> to vector<16x64xf32>
    %680 = arith.addf %677, %679 : vector<16x64xf32>
    %cst_275 = arith.constant dense<0.000000e+00> : vector<16xf32>
    %681 = vector.multi_reduction <add>, %680, %cst_275 [1] : vector<16x64xf32> to vector<16xf32>
    %682 = vector.shape_cast %681 : vector<16xf32> to vector<16x1xf32>
    %cst_276 = arith.constant 6.400000e+01 : f32
    %683 = vector.broadcast %cst_276 : f32 to vector<16x1xf32>
    %684 = arith.divf %682, %683 : vector<16x1xf32>
    %685 = vector.broadcast %684 : vector<16x1xf32> to vector<16x64xf32>
    %686 = arith.subf %680, %685 : vector<16x64xf32>
    %687 = arith.mulf %686, %686 : vector<16x64xf32>
    %cst_277 = arith.constant dense<0.000000e+00> : vector<16xf32>
    %688 = vector.multi_reduction <add>, %687, %cst_277 [1] : vector<16x64xf32> to vector<16xf32>
    %689 = vector.shape_cast %688 : vector<16xf32> to vector<16x1xf32>
    %cst_278 = arith.constant 6.400000e+01 : f32
    %690 = vector.broadcast %cst_278 : f32 to vector<16x1xf32>
    %691 = arith.divf %689, %690 : vector<16x1xf32>
    %cst_279 = arith.constant 9.99999974E-6 : f32
    %692 = vector.broadcast %cst_279 : f32 to vector<16x1xf32>
    %693 = arith.addf %691, %692 : vector<16x1xf32>
    %694 = math.rsqrt %693 : vector<16x1xf32>
    %695 = vector.broadcast %694 : vector<16x1xf32> to vector<16x64xf32>
    %696 = arith.mulf %686, %695 : vector<16x64xf32>
    %cst_280 = arith.constant dense<0.000000e+00> : vector<64xf32>
    %697 = vector.multi_reduction <add>, %696, %cst_280 [0] : vector<16x64xf32> to vector<64xf32>
    %698 = vector.shape_cast %697 : vector<64xf32> to vector<1x64xf32>
    %cst_281 = arith.constant 1.600000e+01 : f32
    %699 = vector.broadcast %cst_281 : f32 to vector<1x64xf32>
    %700 = arith.divf %698, %699 : vector<1x64xf32>
    %701 = vector.shape_cast %700 : vector<1x64xf32> to vector<1x64xf32>
    %702 = vector.broadcast %701 : vector<1x64xf32> to vector<8x64xf32>
    %c0_282 = arith.constant 0 : index
    %c0_283 = arith.constant 0 : index
    %703 = vector.load %arg44[%c0_282, %c0_283] : memref<64x256xbf16, #tpu.memory_space<vmem>>, vector<64x256xbf16>
    %704 = arith.truncf %702 : vector<8x64xf32> to vector<8x64xbf16>
    %cst_284 = arith.constant dense<0.000000e+00> : vector<8x256xf32>
    %705 = tpu.matmul %704, %703, %cst_284 {dimension_numbers = #tpu.dot_dimension_numbers<[1], [0], [0], [1], [0, 0, 1, 1], [], []>} : vector<8x64xbf16>, vector<64x256xbf16>, vector<8x256xf32> -> vector<8x256xf32>
    %c0_285 = arith.constant 0 : index
    %c0_286 = arith.constant 0 : index
    %706 = vector.load %arg45[%c0_285, %c0_286] : memref<1x256xf32, #tpu.memory_space<vmem>>, vector<1x256xf32>
    %707 = vector.broadcast %706 : vector<1x256xf32> to vector<8x256xf32>
    %708 = arith.addf %705, %707 : vector<8x256xf32>
    %cst_287 = arith.constant 0.000000e+00 : f32
    %709 = vector.broadcast %cst_287 : f32 to vector<8x256xf32>
    %710 = arith.maximumf %708, %709 : vector<8x256xf32>
    %c0_288 = arith.constant 0 : index
    %c0_289 = arith.constant 0 : index
    %711 = vector.load %arg46[%c0_288, %c0_289] : memref<256x128xbf16, #tpu.memory_space<vmem>>, vector<256x128xbf16>
    %712 = arith.truncf %710 : vector<8x256xf32> to vector<8x256xbf16>
    %cst_290 = arith.constant dense<0.000000e+00> : vector<8x128xf32>
    %713 = tpu.matmul %712, %711, %cst_290 {dimension_numbers = #tpu.dot_dimension_numbers<[1], [0], [0], [1], [0, 0, 1, 1], [], []>} : vector<8x256xbf16>, vector<256x128xbf16>, vector<8x128xf32> -> vector<8x128xf32>
    %c0_291 = arith.constant 0 : index
    %c0_292 = arith.constant 0 : index
    %714 = vector.load %arg47[%c0_291, %c0_292] : memref<1x128xf32, #tpu.memory_space<vmem>>, vector<1x128xf32>
    %715 = vector.broadcast %714 : vector<1x128xf32> to vector<8x128xf32>
    %716 = arith.addf %713, %715 : vector<8x128xf32>
    %c0_293 = arith.constant 0 : index
    %c0_294 = arith.constant 0 : index
    %c0_295 = arith.constant 0 : index
    %717 = vector.load %arg48[%c0_293, %c0_294, %c0_295] : memref<1x8x128xf32, #tpu.memory_space<vmem>>, vector<1x8x128xf32>
    %718 = vector.shape_cast %717 : vector<1x8x128xf32> to vector<8x128xf32>
    %719 = vector.shape_cast %716 : vector<8x128xf32> to vector<1x8x128xf32>
    tpu.vector_store %arg48[%c0_293, %c0_294, %c0_295], %719 {strides = array<i32>} : memref<1x8x128xf32, #tpu.memory_space<vmem>>, vector<1x8x128xf32>,
    return
  }
  func.func @transform_0(%arg0: i32) -> (i32, i32, i32) {
    %c0_i32 = arith.constant 0 : i32
    %c0_i32_0 = arith.constant 0 : i32
    %c0_i32_1 = arith.constant 0 : i32
    return %arg0, %c0_i32, %c0_i32_0 : i32, i32, i32
  }
  func.func @transform_1(%arg0: i32) -> (i32, i32) {
    %c0_i32 = arith.constant 0 : i32
    %c0_i32_0 = arith.constant 0 : i32
    %c0_i32_1 = arith.constant 0 : i32
    return %c0_i32, %c0_i32_0 : i32, i32
  }
  func.func @transform_2(%arg0: i32) -> (i32, i32) {
    %c0_i32 = arith.constant 0 : i32
    %c0_i32_0 = arith.constant 0 : i32
    %c0_i32_1 = arith.constant 0 : i32
    return %c0_i32, %c0_i32_0 : i32, i32
  }
  func.func @transform_3(%arg0: i32) -> (i32, i32) {
    %c0_i32 = arith.constant 0 : i32
    %c0_i32_0 = arith.constant 0 : i32
    %c0_i32_1 = arith.constant 0 : i32
    return %c0_i32, %c0_i32_0 : i32, i32
  }
  func.func @transform_4(%arg0: i32) -> (i32, i32) {
    %c0_i32 = arith.constant 0 : i32
    %c0_i32_0 = arith.constant 0 : i32
    %c0_i32_1 = arith.constant 0 : i32
    return %c0_i32, %c0_i32_0 : i32, i32
  }
  func.func @transform_5(%arg0: i32) -> (i32, i32) {
    %c0_i32 = arith.constant 0 : i32
    %c0_i32_0 = arith.constant 0 : i32
    %c0_i32_1 = arith.constant 0 : i32
    return %c0_i32, %c0_i32_0 : i32, i32
  }
  func.func @transform_6(%arg0: i32) -> (i32, i32) {
    %c0_i32 = arith.constant 0 : i32
    %c0_i32_0 = arith.constant 0 : i32
    %c0_i32_1 = arith.constant 0 : i32
    return %c0_i32, %c0_i32_0 : i32, i32
  }
  func.func @transform_7(%arg0: i32) -> (i32, i32) {
    %c0_i32 = arith.constant 0 : i32
    %c0_i32_0 = arith.constant 0 : i32
    %c0_i32_1 = arith.constant 0 : i32
    return %c0_i32, %c0_i32_0 : i32, i32
  }
  func.func @transform_8(%arg0: i32) -> (i32, i32) {
    %c0_i32 = arith.constant 0 : i32
    %c0_i32_0 = arith.constant 0 : i32
    %c0_i32_1 = arith.constant 0 : i32
    return %c0_i32, %c0_i32_0 : i32, i32
  }
  func.func @transform_9(%arg0: i32) -> (i32, i32, i32) {
    %c0_i32 = arith.constant 0 : i32
    %c0_i32_0 = arith.constant 0 : i32
    %c0_i32_1 = arith.constant 0 : i32
    %c0_i32_2 = arith.constant 0 : i32
    return %c0_i32, %c0_i32_0, %c0_i32_1 : i32, i32, i32
  }
  func.func @transform_10(%arg0: i32) -> (i32, i32) {
    %c0_i32 = arith.constant 0 : i32
    %c0_i32_0 = arith.constant 0 : i32
    %c0_i32_1 = arith.constant 0 : i32
    return %c0_i32, %c0_i32_0 : i32, i32
  }
  func.func @transform_11(%arg0: i32) -> (i32, i32) {
    %c0_i32 = arith.constant 0 : i32
    %c0_i32_0 = arith.constant 0 : i32
    %c0_i32_1 = arith.constant 0 : i32
    return %c0_i32, %c0_i32_0 : i32, i32
  }
  func.func @transform_12(%arg0: i32) -> (i32, i32) {
    %c0_i32 = arith.constant 0 : i32
    %c0_i32_0 = arith.constant 0 : i32
    %c0_i32_1 = arith.constant 0 : i32
    return %c0_i32, %c0_i32_0 : i32, i32
  }
  func.func @transform_13(%arg0: i32) -> (i32, i32) {
    %c0_i32 = arith.constant 0 : i32
    %c0_i32_0 = arith.constant 0 : i32
    %c0_i32_1 = arith.constant 0 : i32
    return %c0_i32, %c0_i32_0 : i32, i32
  }
  func.func @transform_14(%arg0: i32) -> (i32, i32) {
    %c0_i32 = arith.constant 0 : i32
    %c0_i32_0 = arith.constant 0 : i32
    %c0_i32_1 = arith.constant 0 : i32
    return %c0_i32, %c0_i32_0 : i32, i32
  }
  func.func @transform_15(%arg0: i32) -> (i32, i32) {
    %c0_i32 = arith.constant 0 : i32
    %c0_i32_0 = arith.constant 0 : i32
    %c0_i32_1 = arith.constant 0 : i32
    return %c0_i32, %c0_i32_0 : i32, i32
  }
  func.func @transform_16(%arg0: i32) -> (i32, i32) {
    %c0_i32 = arith.constant 0 : i32
    %c0_i32_0 = arith.constant 0 : i32
    %c0_i32_1 = arith.constant 0 : i32
    return %c0_i32, %c0_i32_0 : i32, i32
  }
  func.func @transform_17(%arg0: i32) -> (i32, i32) {
    %c0_i32 = arith.constant 0 : i32
    %c0_i32_0 = arith.constant 0 : i32
    %c0_i32_1 = arith.constant 0 : i32
    return %c0_i32, %c0_i32_0 : i32, i32
  }
  func.func @transform_18(%arg0: i32) -> (i32, i32, i32) {
    %c0_i32 = arith.constant 0 : i32
    %c0_i32_0 = arith.constant 0 : i32
    %c0_i32_1 = arith.constant 0 : i32
    %c0_i32_2 = arith.constant 0 : i32
    return %c0_i32, %c0_i32_0, %c0_i32_1 : i32, i32, i32
  }
  func.func @transform_19(%arg0: i32) -> (i32, i32) {
    %c0_i32 = arith.constant 0 : i32
    %c0_i32_0 = arith.constant 0 : i32
    %c0_i32_1 = arith.constant 0 : i32
    return %c0_i32, %c0_i32_0 : i32, i32
  }
  func.func @transform_20(%arg0: i32) -> (i32, i32) {
    %c0_i32 = arith.constant 0 : i32
    %c0_i32_0 = arith.constant 0 : i32
    %c0_i32_1 = arith.constant 0 : i32
    return %c0_i32, %c0_i32_0 : i32, i32
  }
  func.func @transform_21(%arg0: i32) -> (i32, i32) {
    %c0_i32 = arith.constant 0 : i32
    %c0_i32_0 = arith.constant 0 : i32
    %c0_i32_1 = arith.constant 0 : i32
    return %c0_i32, %c0_i32_0 : i32, i32
  }
  func.func @transform_22(%arg0: i32) -> (i32, i32) {
    %c0_i32 = arith.constant 0 : i32
    %c0_i32_0 = arith.constant 0 : i32
    %c0_i32_1 = arith.constant 0 : i32
    return %c0_i32, %c0_i32_0 : i32, i32
  }
  func.func @transform_23(%arg0: i32) -> (i32, i32) {
    %c0_i32 = arith.constant 0 : i32
    %c0_i32_0 = arith.constant 0 : i32
    %c0_i32_1 = arith.constant 0 : i32
    return %c0_i32, %c0_i32_0 : i32, i32
  }
  func.func @transform_24(%arg0: i32) -> (i32, i32) {
    %c0_i32 = arith.constant 0 : i32
    %c0_i32_0 = arith.constant 0 : i32
    %c0_i32_1 = arith.constant 0 : i32
    return %c0_i32, %c0_i32_0 : i32, i32
  }
  func.func @transform_25(%arg0: i32) -> (i32, i32) {
    %c0_i32 = arith.constant 0 : i32
    %c0_i32_0 = arith.constant 0 : i32
    %c0_i32_1 = arith.constant 0 : i32
    return %c0_i32, %c0_i32_0 : i32, i32
  }
  func.func @transform_26(%arg0: i32) -> (i32, i32) {
    %c0_i32 = arith.constant 0 : i32
    %c0_i32_0 = arith.constant 0 : i32
    %c0_i32_1 = arith.constant 0 : i32
    return %c0_i32, %c0_i32_0 : i32, i32
  }
  func.func @transform_27(%arg0: i32) -> (i32, i32) {
    %c0_i32 = arith.constant 0 : i32
    %c0_i32_0 = arith.constant 0 : i32
    %c0_i32_1 = arith.constant 0 : i32
    return %c0_i32, %c0_i32_0 : i32, i32
  }
  func.func @transform_28(%arg0: i32) -> (i32, i32) {
    %c0_i32 = arith.constant 0 : i32
    %c0_i32_0 = arith.constant 0 : i32
    %c0_i32_1 = arith.constant 0 : i32
    return %c0_i32, %c0_i32_0 : i32, i32
  }
  func.func @transform_29(%arg0: i32) -> (i32, i32, i32) {
    %c0_i32 = arith.constant 0 : i32
    %c0_i32_0 = arith.constant 0 : i32
    %c0_i32_1 = arith.constant 0 : i32
    %c0_i32_2 = arith.constant 0 : i32
    return %c0_i32, %c0_i32_0, %c0_i32_1 : i32, i32, i32
  }
  func.func @transform_30(%arg0: i32) -> (i32, i32) {
    %c0_i32 = arith.constant 0 : i32
    %c0_i32_0 = arith.constant 0 : i32
    %c0_i32_1 = arith.constant 0 : i32
    return %c0_i32, %c0_i32_0 : i32, i32
  }
  func.func @transform_31(%arg0: i32) -> (i32, i32) {
    %c0_i32 = arith.constant 0 : i32
    %c0_i32_0 = arith.constant 0 : i32
    %c0_i32_1 = arith.constant 0 : i32
    return %c0_i32, %c0_i32_0 : i32, i32
  }
  func.func @transform_32(%arg0: i32) -> (i32, i32) {
    %c0_i32 = arith.constant 0 : i32
    %c0_i32_0 = arith.constant 0 : i32
    %c0_i32_1 = arith.constant 0 : i32
    return %c0_i32, %c0_i32_0 : i32, i32
  }
  func.func @transform_33(%arg0: i32) -> (i32, i32) {
    %c0_i32 = arith.constant 0 : i32
    %c0_i32_0 = arith.constant 0 : i32
    %c0_i32_1 = arith.constant 0 : i32
    return %c0_i32, %c0_i32_0 : i32, i32
  }
  func.func @transform_34(%arg0: i32) -> (i32, i32) {
    %c0_i32 = arith.constant 0 : i32
    %c0_i32_0 = arith.constant 0 : i32
    %c0_i32_1 = arith.constant 0 : i32
    return %c0_i32, %c0_i32_0 : i32, i32
  }
  func.func @transform_35(%arg0: i32) -> (i32, i32) {
    %c0_i32 = arith.constant 0 : i32
    %c0_i32_0 = arith.constant 0 : i32
    %c0_i32_1 = arith.constant 0 : i32
    return %c0_i32, %c0_i32_0 : i32, i32
  }
  func.func @transform_36(%arg0: i32) -> (i32, i32) {
    %c0_i32 = arith.constant 0 : i32
    %c0_i32_0 = arith.constant 0 : i32
    %c0_i32_1 = arith.constant 0 : i32
    return %c0_i32, %c0_i32_0 : i32, i32
  }
  func.func @transform_37(%arg0: i32) -> (i32, i32) {
    %c0_i32 = arith.constant 0 : i32
    %c0_i32_0 = arith.constant 0 : i32
    %c0_i32_1 = arith.constant 0 : i32
    return %c0_i32, %c0_i32_0 : i32, i32
  }
  func.func @transform_38(%arg0: i32) -> (i32, i32, i32) {
    %c0_i32 = arith.constant 0 : i32
    %c0_i32_0 = arith.constant 0 : i32
    %c0_i32_1 = arith.constant 0 : i32
    %c0_i32_2 = arith.constant 0 : i32
    return %c0_i32, %c0_i32_0, %c0_i32_1 : i32, i32, i32
  }
  func.func @transform_39(%arg0: i32) -> (i32, i32) {
    %c0_i32 = arith.constant 0 : i32
    %c0_i32_0 = arith.constant 0 : i32
    %c0_i32_1 = arith.constant 0 : i32
    return %c0_i32, %c0_i32_0 : i32, i32
  }
  func.func @transform_40(%arg0: i32) -> (i32, i32) {
    %c0_i32 = arith.constant 0 : i32
    %c0_i32_0 = arith.constant 0 : i32
    %c0_i32_1 = arith.constant 0 : i32
    return %c0_i32, %c0_i32_0 : i32, i32
  }
  func.func @transform_41(%arg0: i32) -> (i32, i32) {
    %c0_i32 = arith.constant 0 : i32
    %c0_i32_0 = arith.constant 0 : i32
    %c0_i32_1 = arith.constant 0 : i32
    return %c0_i32, %c0_i32_0 : i32, i32
  }
  func.func @transform_42(%arg0: i32) -> (i32, i32) {
    %c0_i32 = arith.constant 0 : i32
    %c0_i32_0 = arith.constant 0 : i32
    %c0_i32_1 = arith.constant 0 : i32
    return %c0_i32, %c0_i32_0 : i32, i32
  }
  func.func @transform_43(%arg0: i32) -> (i32, i32) {
    %c0_i32 = arith.constant 0 : i32
    %c0_i32_0 = arith.constant 0 : i32
    %c0_i32_1 = arith.constant 0 : i32
    return %c0_i32, %c0_i32_0 : i32, i32
  }
  func.func @transform_44(%arg0: i32) -> (i32, i32) {
    %c0_i32 = arith.constant 0 : i32
    %c0_i32_0 = arith.constant 0 : i32
    %c0_i32_1 = arith.constant 0 : i32
    return %c0_i32, %c0_i32_0 : i32, i32
  }
  func.func @transform_45(%arg0: i32) -> (i32, i32) {
    %c0_i32 = arith.constant 0 : i32
    %c0_i32_0 = arith.constant 0 : i32
    %c0_i32_1 = arith.constant 0 : i32
    return %c0_i32, %c0_i32_0 : i32, i32
  }
  func.func @transform_46(%arg0: i32) -> (i32, i32) {
    %c0_i32 = arith.constant 0 : i32
    %c0_i32_0 = arith.constant 0 : i32
    %c0_i32_1 = arith.constant 0 : i32
    return %c0_i32, %c0_i32_0 : i32, i32
  }
  func.func @transform_47(%arg0: i32) -> (i32, i32, i32) {
    %c0_i32 = arith.constant 0 : i32
    %c0_i32_0 = arith.constant 0 : i32
    %c0_i32_1 = arith.constant 0 : i32
    return %arg0, %c0_i32, %c0_i32_0 : i32, i32, i32
  }
}

</mosaic_0001>

<llo_original>
// kernel: swin_classifier_forward.1
$region0: #{swin_classifier_forward.1}
  #allocation0 [shape = 'u32[]', space=smem, size = 0x4, offset = 0x4, fixed_abs, tag = 'smem constant byte address 0x4 - core index']
  #allocation1 [shape = 'u32[72,128]{1,0:T(1,128)}', space=vmem, size = 0x9000, scoped, tag = 'internal scratch']
  %s0 = inlined_call_operand.smem [shape: u32[48], index: -1, kind: input, shape index: {}]
  %s1 = sld [smem:[%s0]]
  %s2 = scalar_lea.smem %s0, 1
  %s3 = sld [smem:[%s2]]
  %s4 = scalar_lea.smem %s0, 2
  %s5 = sld [smem:[%s4]]
  %s6 = scalar_lea.smem %s0, 3
  %s7 = sld [smem:[%s6]]
  %s8 = scalar_lea.smem %s0, 4
  %s9 = sld [smem:[%s8]]
  %s10 = scalar_lea.smem %s0, 5
  %s11 = sld [smem:[%s10]]
  %s12 = scalar_lea.smem %s0, 6
  %s13 = sld [smem:[%s12]]
  %s14 = scalar_lea.smem %s0, 7
  %s15 = sld [smem:[%s14]]
  %s16 = scalar_lea.smem %s0, 8
  %s17 = sld [smem:[%s16]]
  %s18 = scalar_lea.smem %s0, 9
  %s19 = sld [smem:[%s18]]
  %s20 = scalar_lea.smem %s0, 10
  %s21 = sld [smem:[%s20]]
  %s22 = scalar_lea.smem %s0, 11
  %s23 = sld [smem:[%s22]]
  %s24 = scalar_lea.smem %s0, 12
  %s25 = sld [smem:[%s24]]
  %s26 = scalar_lea.smem %s0, 13
  %s27 = sld [smem:[%s26]]
  %s28 = scalar_lea.smem %s0, 14
  %s29 = sld [smem:[%s28]]
  %s30 = scalar_lea.smem %s0, 15
  %s31 = sld [smem:[%s30]]
  %s32 = scalar_lea.smem %s0, 16
  %s33 = sld [smem:[%s32]]
  %s34 = scalar_lea.smem %s0, 17
  %s35 = sld [smem:[%s34]]
  %s36 = scalar_lea.smem %s0, 18
  %s37 = sld [smem:[%s36]]
  %s38 = scalar_lea.smem %s0, 19
  %s39 = sld [smem:[%s38]]
  %s40 = scalar_lea.smem %s0, 20
  %s41 = sld [smem:[%s40]]
  %s42 = scalar_lea.smem %s0, 21
  %s43 = sld [smem:[%s42]]
  %s44 = scalar_lea.smem %s0, 22
  %s45 = sld [smem:[%s44]]
  %s46 = scalar_lea.smem %s0, 23
  %s47 = sld [smem:[%s46]]
  %s48 = scalar_lea.smem %s0, 24
  %s49 = sld [smem:[%s48]]
  %s50 = scalar_lea.smem %s0, 25
  %s51 = sld [smem:[%s50]]
  %s52 = scalar_lea.smem %s0, 26
  %s53 = sld [smem:[%s52]]
  %s54 = scalar_lea.smem %s0, 27
  %s55 = sld [smem:[%s54]]
  %s56 = scalar_lea.smem %s0, 28
  %s57 = sld [smem:[%s56]]
  %s58 = scalar_lea.smem %s0, 29
  %s59 = sld [smem:[%s58]]
  %s60 = scalar_lea.smem %s0, 30
  %s61 = sld [smem:[%s60]]
  %s62 = scalar_lea.smem %s0, 31
  %s63 = sld [smem:[%s62]]
  %s64 = scalar_lea.smem %s0, 32
  %s65 = sld [smem:[%s64]]
  %s66 = scalar_lea.smem %s0, 33
  %s67 = sld [smem:[%s66]]
  %s68 = scalar_lea.smem %s0, 34
  %s69 = sld [smem:[%s68]]
  %s70 = scalar_lea.smem %s0, 35
  %s71 = sld [smem:[%s70]]
  %s72 = scalar_lea.smem %s0, 36
  %s73 = sld [smem:[%s72]]
  %s74 = scalar_lea.smem %s0, 37
  %s75 = sld [smem:[%s74]]
  %s76 = scalar_lea.smem %s0, 38
  %s77 = sld [smem:[%s76]]
  %s78 = scalar_lea.smem %s0, 39
  %s79 = sld [smem:[%s78]]
  %s80 = scalar_lea.smem %s0, 40
  %s81 = sld [smem:[%s80]]
  %s82 = scalar_lea.smem %s0, 41
  %s83 = sld [smem:[%s82]]
  %s84 = scalar_lea.smem %s0, 42
  %s85 = sld [smem:[%s84]]
  %s86 = scalar_lea.smem %s0, 43
  %s87 = sld [smem:[%s86]]
  %s88 = scalar_lea.smem %s0, 44
  %s89 = sld [smem:[%s88]]
  %s90 = scalar_lea.smem %s0, 45
  %s91 = sld [smem:[%s90]]
  %s92 = scalar_lea.smem %s0, 46
  %s93 = sld [smem:[%s92]]
  %s94 = scalar_lea.smem %s0, 47
  %s95 = sld [smem:[%s94]]
  %s96 = sld [smem:[#allocation0]]
  $region245: #{swin_classifier_forward.1} parent=0
    _
  %s98 = ssub.s32 1, %s96
  %s99 = scalar_select 0, %s98, %s96
  $region1: #{swin_classifier_forward.1} parent=0
    #allocation2 [shape = 'u8[512]{0}', space=vmem, size = 0x400, scoped, tag = 'input window, operand 24, single buffered']
    #allocation3 [shape = 's32[2]{0}', space=sflag, size = 0x8, scoped, tag = 'scoped memory for swin_classifier_forward.1']
    #allocation4 [shape = 'u8[512]{0}', space=vmem, size = 0x400, scoped, tag = 'input window, operand 28, single buffered']
    #allocation5 [shape = 's32[1]{0}', space=sflag, size = 0x4, scoped, tag = 'scoped memory for swin_classifier_forward.1']
    #allocation6 [shape = 'u8[512]{0}', space=vmem, size = 0x400, scoped, tag = 'input window, operand 33, single buffered']
    #allocation7 [shape = 'u8[512]{0}', space=vmem, size = 0x400, scoped, tag = 'input window, operand 37, single buffered']
    #allocation8 [shape = 's32[1]{0}', space=sflag, size = 0x4, scoped, tag = 'scoped memory for swin_classifier_forward.1']
    #allocation9 [shape = 'u8[512]{0}', space=vmem, size = 0x400, scoped, tag = 'input window, operand 42, single buffered']
    #allocation10 [shape = 'u8[512]{0}', space=vmem, size = 0x400, scoped, tag = 'input window, operand 46, single buffered']
    #allocation11 [shape = 's32[1]{0}', space=sflag, size = 0x4, scoped, tag = 'scoped memory for swin_classifier_forward.1']
    %100 = vsyncpa [#allocation3], 0
    %101 = vsyncpa [#allocation5], 0
    %102 = vsyncpa [#allocation8], 0
    %103 = vsyncpa [#allocation11], 0
    loop: start=0, step=1, limit=4
    $region2: #{swin_classifier_forward.1} parent=1 // loop_pre_header
      _
    $region3: #{swin_classifier_forward.1} parent=1 // loop_header
      %s105 = sphi 0, %s109
      %p106 = scmp.ge.s32.totalorder %s105, 4
      %s115 = sphi 0, %s117
      %s118 = sphi 0, %s115
      %s119 = sphi 0, %s118
      %s135 = sphi 0, %s119
      %s139 = sphi 0, %s139
      %s141 = sphi 0, %s139
      %s142 = sphi 0, %s141
      %s156 = sphi 0, %s142
      %s160 = sphi 0, %s160
      %s162 = sphi 0, %s160
      %s163 = sphi 0, %s162
      %s177 = sphi 0, %s163
      %s181 = sphi 0, %s181
      %s183 = sphi 0, %s181
      %s184 = sphi 0, %s183
      %s198 = sphi 0, %s184
      %s202 = sphi 0, %s202
      %s204 = sphi 0, %s202
      %s205 = sphi 0, %s204
      %s219 = sphi 0, %s205
      %s223 = sphi 0, %s223
      %s225 = sphi 0, %s223
      %s226 = sphi 0, %s225
      %s240 = sphi 0, %s226
      %s244 = sphi 0, %s244
      %s246 = sphi 0, %s244
      %s247 = sphi 0, %s246
      %s261 = sphi 0, %s247
      %s265 = sphi 0, %s265
      %s267 = sphi 0, %s265
      %s268 = sphi 0, %s267
      %s282 = sphi 0, %s268
      %s286 = sphi 0, %s286
      %s288 = sphi 0, %s286
      %s289 = sphi 0, %s288
      %s303 = sphi 0, %s289
      %s307 = sphi 0, %s307
      %s309 = sphi 0, %s307
      %s310 = sphi 0, %s309
      %s324 = sphi 0, %s310
      %s328 = sphi 0, %s328
      %s330 = sphi 0, %s328
      %s331 = sphi 0, %s330
      %s345 = sphi 0, %s331
      %s349 = sphi 0, %s349
      %s351 = sphi 0, %s349
      %s352 = sphi 0, %s351
      %s366 = sphi 0, %s352
      %s370 = sphi 0, %s370
      %s372 = sphi 0, %s370
      %s373 = sphi 0, %s372
      %s387 = sphi 0, %s373
      %s391 = sphi 0, %s391
      %s393 = sphi 0, %s391
      %s394 = sphi 0, %s393
      %s408 = sphi 0, %s394
      %s412 = sphi 0, %s412
      %s414 = sphi 0, %s412
      %s415 = sphi 0, %s414
      %s429 = sphi 0, %s415
      %s433 = sphi 0, %s433
      %s435 = sphi 0, %s433
      %s436 = sphi 0, %s435
      %s450 = sphi 0, %s436
      %s454 = sphi 0, %s454
      %s456 = sphi 0, %s454
      %s457 = sphi 0, %s456
      %s471 = sphi 0, %s457
      %s475 = sphi 0, %s475
      %s477 = sphi 0, %s475
      %s478 = sphi 0, %s477
      %s492 = sphi 0, %s478
      %s496 = sphi 0, %s496
      %s498 = sphi 0, %s496
      %s499 = sphi 0, %s498
      %s513 = sphi 0, %s499
      %s517 = sphi 0, %s517
      %s519 = sphi 0, %s517
      %s520 = sphi 0, %s519
      %s534 = sphi 0, %s520
      %s538 = sphi 0, %s538
      %s540 = sphi 0, %s538
      %s541 = sphi 0, %s540
      %s555 = sphi 0, %s541
      %s559 = sphi 0, %s559
      %s561 = sphi 0, %s559
      %s562 = sphi 0, %s561
      %s576 = sphi 0, %s562
      %s580 = sphi 0, %s580
      %s582 = sphi 0, %s580
      %s583 = sphi 0, %s582
      %s597 = sphi 0, %s583
      %s601 = sphi 0, %s601
      %s603 = sphi 0, %s601
      %s604 = sphi 0, %s603
      %s618 = sphi 0, %s604
      %s622 = sphi 0, %s622
      %s624 = sphi 0, %s622
      %s625 = sphi 0, %s624
      %s639 = sphi 0, %s625
      %s643 = sphi 0, %s643
      %s645 = sphi 0, %s643
      %s646 = sphi 0, %s645
      %s660 = sphi 0, %s646
      %s664 = sphi 0, %s664
      %s666 = sphi 0, %s664
      %s667 = sphi 0, %s666
      %s681 = sphi 0, %s667
      %s685 = sphi 0, %s685
      %s687 = sphi 0, %s685
      %s688 = sphi 0, %s687
      %s702 = sphi 0, %s688
      %s706 = sphi 0, %s706
      %s708 = sphi 0, %s706
      %s709 = sphi 0, %s708
      %s723 = sphi 0, %s709
      %s727 = sphi 0, %s727
      %s729 = sphi 0, %s727
      %s730 = sphi 0, %s729
      %s744 = sphi 0, %s730
      %s748 = sphi 0, %s748
      %s750 = sphi 0, %s748
      %s751 = sphi 0, %s750
      %s765 = sphi 0, %s751
      %s769 = sphi 0, %s769
      %s771 = sphi 0, %s769
      %s772 = sphi 0, %s771
      %s786 = sphi 0, %s772
      %s790 = sphi 0, %s790
      %s792 = sphi 0, %s790
      %s793 = sphi 0, %s792
      %s807 = sphi 0, %s793
      %s811 = sphi 0, %s811
      %s813 = sphi 0, %s811
      %s814 = sphi 0, %s813
      %s828 = sphi 0, %s814
      %s832 = sphi 0, %s832
      %s834 = sphi 0, %s832
      %s835 = sphi 0, %s834
      %s849 = sphi 0, %s835
      %s853 = sphi 0, %s853
      %s855 = sphi 0, %s853
      %s856 = sphi 0, %s855
      %s870 = sphi 0, %s856
      %s874 = sphi 0, %s874
      %s876 = sphi 0, %s874
      %s877 = sphi 0, %s876
      %s891 = sphi 0, %s877
      %s895 = sphi 0, %s895
      %s897 = sphi 0, %s895
      %s898 = sphi 0, %s897
      %s912 = sphi 0, %s898
      %s916 = sphi 0, %s916
      %s918 = sphi 0, %s916
      %s919 = sphi 0, %s918
      %s933 = sphi 0, %s919
      %s937 = sphi 0, %s937
      %s939 = sphi 0, %s937
      %s940 = sphi 0, %s939
      %s954 = sphi 0, %s940
      %s958 = sphi 0, %s958
      %s960 = sphi 0, %s958
      %s961 = sphi 0, %s960
      %s975 = sphi 0, %s961
      %s979 = sphi 0, %s979
      %s981 = sphi 0, %s979
      %s982 = sphi 0, %s981
      %s996 = sphi 0, %s982
      %s1000 = sphi 0, %s1000
      %s1002 = sphi 0, %s1000
      %s1003 = sphi 0, %s1002
      %s1017 = sphi 0, %s1003
      %s1021 = sphi 0, %s1021
      %s1023 = sphi 0, %s1021
      %s1024 = sphi 0, %s1023
      %s1038 = sphi 0, %s1024
      %s1042 = sphi 0, %s1042
      %s1044 = sphi 0, %s1042
      %s1045 = sphi 0, %s1044
      %s1059 = sphi 0, %s1045
      %s1063 = sphi 0, %s1063
      %s1065 = sphi 0, %s1063
      %s1066 = sphi 0, %s1065
      %s1080 = sphi 0, %s1066
      %s1084 = sphi 0, %s1084
      %s1086 = sphi 0, %s1084
      %s1087 = sphi 0, %s1086
      %s1101 = sphi 0, %s1087
      %s1107 = sphi 0, %s1109
      %s1110 = sphi 0, %s1107
      %s1111 = sphi 0, %s1110
      %s1127 = sphi 0, %s1111
    $region4: #{swin_classifier_forward.1} parent=1 // loop_header_branch
      %108 = sbr.rel (%p106) target = $region8
    $region5: #{swin_classifier_forward.1} parent=1 // loop_body
      %s110 = ssub.s32 %s105, 1
      %s111 = ssub.s32 %s105, 2
      %s112 = sadd.s32 %s105, 1
      %s113 = ssub.s32 %s105, %s112
      %p114 = scmp.eq.s32.totalorder %s113, 0
      %s116 = sadd.s32 %s115, 1
      %s117 = scalar_select %p114, %s115, %s116
      %p120 = pneg %p114
      %p121 = scmp.eq.s32.totalorder %s105, 1
      %p122 = por %p120, %p121
      %p123 = scmp.ne.s32.totalorder %s115, %s118
      %p124 = scmp.eq.s32.totalorder %s105, 0
      %p125 = por %p123, %p124
      %p126 = scmp.ne.s32.totalorder %s115, %s118
      %p127 = scmp.eq.s32.totalorder %s110, 1
      %p128 = por %p126, %p127
      %p129 = scmp.ne.s32.totalorder %s118, %s119
      %p130 = scmp.eq.s32.totalorder %s110, 0
      %p131 = por %p129, %p130
      %p132 = scmp.ne.s32.totalorder %s118, %s119
      %p133 = scmp.eq.s32.totalorder %s111, 1
      %p134 = por %p132, %p133
      %p136 = scmp.ne.s32.totalorder %s119, %s135
      %p137 = scmp.eq.s32.totalorder %s111, 0
      %p138 = por %p136, %p137
      %s140 = sadd.s32 %s139, 1
      %p143 = scmp.eq.s32.totalorder %s105, 1
      %p144 = scmp.ne.s32.totalorder %s139, %s141
      %p145 = scmp.eq.s32.totalorder %s105, 0
      %p146 = por %p144, %p145
      %p147 = scmp.ne.s32.totalorder %s139, %s141
      %p148 = scmp.eq.s32.totalorder %s110, 1
      %p149 = por %p147, %p148
      %p150 = scmp.ne.s32.totalorder %s141, %s142
      %p151 = scmp.eq.s32.totalorder %s110, 0
      %p152 = por %p150, %p151
      %p153 = scmp.ne.s32.totalorder %s141, %s142
      %p154 = scmp.eq.s32.totalorder %s111, 1
      %p155 = por %p153, %p154
      %p157 = scmp.ne.s32.totalorder %s142, %s156
      %p158 = scmp.eq.s32.totalorder %s111, 0
      %p159 = por %p157, %p158
      %s161 = sadd.s32 %s160, 1
      %p164 = scmp.eq.s32.totalorder %s105, 1
      %p165 = scmp.ne.s32.totalorder %s160, %s162
      %p166 = scmp.eq.s32.totalorder %s105, 0
      %p167 = por %p165, %p166
      %p168 = scmp.ne.s32.totalorder %s160, %s162
      %p169 = scmp.eq.s32.totalorder %s110, 1
      %p170 = por %p168, %p169
      %p171 = scmp.ne.s32.totalorder %s162, %s163
      %p172 = scmp.eq.s32.totalorder %s110, 0
      %p173 = por %p171, %p172
      %p174 = scmp.ne.s32.totalorder %s162, %s163
      %p175 = scmp.eq.s32.totalorder %s111, 1
      %p176 = por %p174, %p175
      %p178 = scmp.ne.s32.totalorder %s163, %s177
      %p179 = scmp.eq.s32.totalorder %s111, 0
      %p180 = por %p178, %p179
      %s182 = sadd.s32 %s181, 1
      %p185 = scmp.eq.s32.totalorder %s105, 1
      %p186 = scmp.ne.s32.totalorder %s181, %s183
      %p187 = scmp.eq.s32.totalorder %s105, 0
      %p188 = por %p186, %p187
      %p189 = scmp.ne.s32.totalorder %s181, %s183
      %p190 = scmp.eq.s32.totalorder %s110, 1
      %p191 = por %p189, %p190
      %p192 = scmp.ne.s32.totalorder %s183, %s184
      %p193 = scmp.eq.s32.totalorder %s110, 0
      %p194 = por %p192, %p193
      %p195 = scmp.ne.s32.totalorder %s183, %s184
      %p196 = scmp.eq.s32.totalorder %s111, 1
      %p197 = por %p195, %p196
      %p199 = scmp.ne.s32.totalorder %s184, %s198
      %p200 = scmp.eq.s32.totalorder %s111, 0
      %p201 = por %p199, %p200
      %s203 = sadd.s32 %s202, 1
      %p206 = scmp.eq.s32.totalorder %s105, 1
      %p207 = scmp.ne.s32.totalorder %s202, %s204
      %p208 = scmp.eq.s32.totalorder %s105, 0
      %p209 = por %p207, %p208
      %p210 = scmp.ne.s32.totalorder %s202, %s204
      %p211 = scmp.eq.s32.totalorder %s110, 1
      %p212 = por %p210, %p211
      %p213 = scmp.ne.s32.totalorder %s204, %s205
      %p214 = scmp.eq.s32.totalorder %s110, 0
      %p215 = por %p213, %p214
      %p216 = scmp.ne.s32.totalorder %s204, %s205
      %p217 = scmp.eq.s32.totalorder %s111, 1
      %p218 = por %p216, %p217
      %p220 = scmp.ne.s32.totalorder %s205, %s219
      %p221 = scmp.eq.s32.totalorder %s111, 0
      %p222 = por %p220, %p221
      %s224 = sadd.s32 %s223, 1
      %p227 = scmp.eq.s32.totalorder %s105, 1
      %p228 = scmp.ne.s32.totalorder %s223, %s225
      %p229 = scmp.eq.s32.totalorder %s105, 0
      %p230 = por %p228, %p229
      %p231 = scmp.ne.s32.totalorder %s223, %s225
      %p232 = scmp.eq.s32.totalorder %s110, 1
      %p233 = por %p231, %p232
      %p234 = scmp.ne.s32.totalorder %s225, %s226
      %p235 = scmp.eq.s32.totalorder %s110, 0
      %p236 = por %p234, %p235
      %p237 = scmp.ne.s32.totalorder %s225, %s226
      %p238 = scmp.eq.s32.totalorder %s111, 1
      %p239 = por %p237, %p238
      %p241 = scmp.ne.s32.totalorder %s226, %s240
      %p242 = scmp.eq.s32.totalorder %s111, 0
      %p243 = por %p241, %p242
      %s245 = sadd.s32 %s244, 1
      %p248 = scmp.eq.s32.totalorder %s105, 1
      %p249 = scmp.ne.s32.totalorder %s244, %s246
      %p250 = scmp.eq.s32.totalorder %s105, 0
      %p251 = por %p249, %p250
      %p252 = scmp.ne.s32.totalorder %s244, %s246
      %p253 = scmp.eq.s32.totalorder %s110, 1
      %p254 = por %p252, %p253
      %p255 = scmp.ne.s32.totalorder %s246, %s247
      %p256 = scmp.eq.s32.totalorder %s110, 0
      %p257 = por %p255, %p256
      %p258 = scmp.ne.s32.totalorder %s246, %s247
      %p259 = scmp.eq.s32.totalorder %s111, 1
      %p260 = por %p258, %p259
      %p262 = scmp.ne.s32.totalorder %s247, %s261
      %p263 = scmp.eq.s32.totalorder %s111, 0
      %p264 = por %p262, %p263
      %s266 = sadd.s32 %s265, 1
      %p269 = scmp.eq.s32.totalorder %s105, 1
      %p270 = scmp.ne.s32.totalorder %s265, %s267
      %p271 = scmp.eq.s32.totalorder %s105, 0
      %p272 = por %p270, %p271
      %p273 = scmp.ne.s32.totalorder %s265, %s267
      %p274 = scmp.eq.s32.totalorder %s110, 1
      %p275 = por %p273, %p274
      %p276 = scmp.ne.s32.totalorder %s267, %s268
      %p277 = scmp.eq.s32.totalorder %s110, 0
      %p278 = por %p276, %p277
      %p279 = scmp.ne.s32.totalorder %s267, %s268
      %p280 = scmp.eq.s32.totalorder %s111, 1
      %p281 = por %p279, %p280
      %p283 = scmp.ne.s32.totalorder %s268, %s282
      %p284 = scmp.eq.s32.totalorder %s111, 0
      %p285 = por %p283, %p284
      %s287 = sadd.s32 %s286, 1
      %p290 = scmp.eq.s32.totalorder %s105, 1
      %p291 = scmp.ne.s32.totalorder %s286, %s288
      %p292 = scmp.eq.s32.totalorder %s105, 0
      %p293 = por %p291, %p292
      %p294 = scmp.ne.s32.totalorder %s286, %s288
      %p295 = scmp.eq.s32.totalorder %s110, 1
      %p296 = por %p294, %p295
      %p297 = scmp.ne.s32.totalorder %s288, %s289
      %p298 = scmp.eq.s32.totalorder %s110, 0
      %p299 = por %p297, %p298
      %p300 = scmp.ne.s32.totalorder %s288, %s289
      %p301 = scmp.eq.s32.totalorder %s111, 1
      %p302 = por %p300, %p301
      %p304 = scmp.ne.s32.totalorder %s289, %s303
      %p305 = scmp.eq.s32.totalorder %s111, 0
      %p306 = por %p304, %p305
      %s308 = sadd.s32 %s307, 1
      %p311 = scmp.eq.s32.totalorder %s105, 1
      %p312 = scmp.ne.s32.totalorder %s307, %s309
      %p313 = scmp.eq.s32.totalorder %s105, 0
      %p314 = por %p312, %p313
      %p315 = scmp.ne.s32.totalorder %s307, %s309
      %p316 = scmp.eq.s32.totalorder %s110, 1
      %p317 = por %p315, %p316
      %p318 = scmp.ne.s32.totalorder %s309, %s310
      %p319 = scmp.eq.s32.totalorder %s110, 0
      %p320 = por %p318, %p319
      %p321 = scmp.ne.s32.totalorder %s309, %s310
      %p322 = scmp.eq.s32.totalorder %s111, 1
      %p323 = por %p321, %p322
      %p325 = scmp.ne.s32.totalorder %s310, %s324
      %p326 = scmp.eq.s32.totalorder %s111, 0
      %p327 = por %p325, %p326
      %s329 = sadd.s32 %s328, 1
      %p332 = scmp.eq.s32.totalorder %s105, 1
      %p333 = scmp.ne.s32.totalorder %s328, %s330
      %p334 = scmp.eq.s32.totalorder %s105, 0
      %p335 = por %p333, %p334
      %p336 = scmp.ne.s32.totalorder %s328, %s330
      %p337 = scmp.eq.s32.totalorder %s110, 1
      %p338 = por %p336, %p337
      %p339 = scmp.ne.s32.totalorder %s330, %s331
      %p340 = scmp.eq.s32.totalorder %s110, 0
      %p341 = por %p339, %p340
      %p342 = scmp.ne.s32.totalorder %s330, %s331
      %p343 = scmp.eq.s32.totalorder %s111, 1
      %p344 = por %p342, %p343
      %p346 = scmp.ne.s32.totalorder %s331, %s345
      %p347 = scmp.eq.s32.totalorder %s111, 0
      %p348 = por %p346, %p347
      %s350 = sadd.s32 %s349, 1
      %p353 = scmp.eq.s32.totalorder %s105, 1
      %p354 = scmp.ne.s32.totalorder %s349, %s351
      %p355 = scmp.eq.s32.totalorder %s105, 0
      %p356 = por %p354, %p355
      %p357 = scmp.ne.s32.totalorder %s349, %s351
      %p358 = scmp.eq.s32.totalorder %s110, 1
      %p359 = por %p357, %p358
      %p360 = scmp.ne.s32.totalorder %s351, %s352
      %p361 = scmp.eq.s32.totalorder %s110, 0
      %p362 = por %p360, %p361
      %p363 = scmp.ne.s32.totalorder %s351, %s352
      %p364 = scmp.eq.s32.totalorder %s111, 1
      %p365 = por %p363, %p364
      %p367 = scmp.ne.s32.totalorder %s352, %s366
      %p368 = scmp.eq.s32.totalorder %s111, 0
      %p369 = por %p367, %p368
      %s371 = sadd.s32 %s370, 1
      %p374 = scmp.eq.s32.totalorder %s105, 1
      %p375 = scmp.ne.s32.totalorder %s370, %s372
      %p376 = scmp.eq.s32.totalorder %s105, 0
      %p377 = por %p375, %p376
      %p378 = scmp.ne.s32.totalorder %s370, %s372
      %p379 = scmp.eq.s32.totalorder %s110, 1
      %p380 = por %p378, %p379
      %p381 = scmp.ne.s32.totalorder %s372, %s373
      %p382 = scmp.eq.s32.totalorder %s110, 0
      %p383 = por %p381, %p382
      %p384 = scmp.ne.s32.totalorder %s372, %s373
      %p385 = scmp.eq.s32.totalorder %s111, 1
      %p386 = por %p384, %p385
      %p388 = scmp.ne.s32.totalorder %s373, %s387
      %p389 = scmp.eq.s32.totalorder %s111, 0
      %p390 = por %p388, %p389
      %s392 = sadd.s32 %s391, 1
      %p395 = scmp.eq.s32.totalorder %s105, 1
      %p396 = scmp.ne.s32.totalorder %s391, %s393
      %p397 = scmp.eq.s32.totalorder %s105, 0
      %p398 = por %p396, %p397
      %p399 = scmp.ne.s32.totalorder %s391, %s393
      %p400 = scmp.eq.s32.totalorder %s110, 1
      %p401 = por %p399, %p400
      %p402 = scmp.ne.s32.totalorder %s393, %s394
      %p403 = scmp.eq.s32.totalorder %s110, 0
      %p404 = por %p402, %p403
      %p405 = scmp.ne.s32.totalorder %s393, %s394
      %p406 = scmp.eq.s32.totalorder %s111, 1
      %p407 = por %p405, %p406
      %p409 = scmp.ne.s32.totalorder %s394, %s408
      %p410 = scmp.eq.s32.totalorder %s111, 0
      %p411 = por %p409, %p410
      %s413 = sadd.s32 %s412, 1
      %p416 = scmp.eq.s32.totalorder %s105, 1
      %p417 = scmp.ne.s32.totalorder %s412, %s414
      %p418 = scmp.eq.s32.totalorder %s105, 0
      %p419 = por %p417, %p418
      %p420 = scmp.ne.s32.totalorder %s412, %s414
      %p421 = scmp.eq.s32.totalorder %s110, 1
      %p422 = por %p420, %p421
      %p423 = scmp.ne.s32.totalorder %s414, %s415
      %p424 = scmp.eq.s32.totalorder %s110, 0
      %p425 = por %p423, %p424
      %p426 = scmp.ne.s32.totalorder %s414, %s415
      %p427 = scmp.eq.s32.totalorder %s111, 1
      %p428 = por %p426, %p427
      %p430 = scmp.ne.s32.totalorder %s415, %s429
      %p431 = scmp.eq.s32.totalorder %s111, 0
      %p432 = por %p430, %p431
      %s434 = sadd.s32 %s433, 1
      %p437 = scmp.eq.s32.totalorder %s105, 1
      %p438 = scmp.ne.s32.totalorder %s433, %s435
      %p439 = scmp.eq.s32.totalorder %s105, 0
      %p440 = por %p438, %p439
      %p441 = scmp.ne.s32.totalorder %s433, %s435
      %p442 = scmp.eq.s32.totalorder %s110, 1
      %p443 = por %p441, %p442
      %p444 = scmp.ne.s32.totalorder %s435, %s436
      %p445 = scmp.eq.s32.totalorder %s110, 0
      %p446 = por %p444, %p445
      %p447 = scmp.ne.s32.totalorder %s435, %s436
      %p448 = scmp.eq.s32.totalorder %s111, 1
      %p449 = por %p447, %p448
      %p451 = scmp.ne.s32.totalorder %s436, %s450
      %p452 = scmp.eq.s32.totalorder %s111, 0
      %p453 = por %p451, %p452
      %s455 = sadd.s32 %s454, 1
      %p458 = scmp.eq.s32.totalorder %s105, 1
      %p459 = scmp.ne.s32.totalorder %s454, %s456
      %p460 = scmp.eq.s32.totalorder %s105, 0
      %p461 = por %p459, %p460
      %p462 = scmp.ne.s32.totalorder %s454, %s456
      %p463 = scmp.eq.s32.totalorder %s110, 1
      %p464 = por %p462, %p463
      %p465 = scmp.ne.s32.totalorder %s456, %s457
      %p466 = scmp.eq.s32.totalorder %s110, 0
      %p467 = por %p465, %p466
      %p468 = scmp.ne.s32.totalorder %s456, %s457
      %p469 = scmp.eq.s32.totalorder %s111, 1
      %p470 = por %p468, %p469
      %p472 = scmp.ne.s32.totalorder %s457, %s471
      %p473 = scmp.eq.s32.totalorder %s111, 0
      %p474 = por %p472, %p473
      %s476 = sadd.s32 %s475, 1
      %p479 = scmp.eq.s32.totalorder %s105, 1
      %p480 = scmp.ne.s32.totalorder %s475, %s477
      %p481 = scmp.eq.s32.totalorder %s105, 0
      %p482 = por %p480, %p481
      %p483 = scmp.ne.s32.totalorder %s475, %s477
      %p484 = scmp.eq.s32.totalorder %s110, 1
      %p485 = por %p483, %p484
      %p486 = scmp.ne.s32.totalorder %s477, %s478
      %p487 = scmp.eq.s32.totalorder %s110, 0
      %p488 = por %p486, %p487
      %p489 = scmp.ne.s32.totalorder %s477, %s478
      %p490 = scmp.eq.s32.totalorder %s111, 1
      %p491 = por %p489, %p490
      %p493 = scmp.ne.s32.totalorder %s478, %s492
      %p494 = scmp.eq.s32.totalorder %s111, 0
      %p495 = por %p493, %p494
      %s497 = sadd.s32 %s496, 1
      %p500 = scmp.eq.s32.totalorder %s105, 1
      %p501 = scmp.ne.s32.totalorder %s496, %s498
      %p502 = scmp.eq.s32.totalorder %s105, 0
      %p503 = por %p501, %p502
      %p504 = scmp.ne.s32.totalorder %s496, %s498
      %p505 = scmp.eq.s32.totalorder %s110, 1
      %p506 = por %p504, %p505
      %p507 = scmp.ne.s32.totalorder %s498, %s499
      %p508 = scmp.eq.s32.totalorder %s110, 0
      %p509 = por %p507, %p508
      %p510 = scmp.ne.s32.totalorder %s498, %s499
      %p511 = scmp.eq.s32.totalorder %s111, 1
      %p512 = por %p510, %p511
      %p514 = scmp.ne.s32.totalorder %s499, %s513
      %p515 = scmp.eq.s32.totalorder %s111, 0
      %p516 = por %p514, %p515
      %s518 = sadd.s32 %s517, 1
      %p521 = scmp.eq.s32.totalorder %s105, 1
      %p522 = scmp.ne.s32.totalorder %s517, %s519
      %p523 = scmp.eq.s32.totalorder %s105, 0
      %p524 = por %p522, %p523
      %p525 = scmp.ne.s32.totalorder %s517, %s519
      %p526 = scmp.eq.s32.totalorder %s110, 1
      %p527 = por %p525, %p526
      %p528 = scmp.ne.s32.totalorder %s519, %s520
      %p529 = scmp.eq.s32.totalorder %s110, 0
      %p530 = por %p528, %p529
      %p531 = scmp.ne.s32.totalorder %s519, %s520
      %p532 = scmp.eq.s32.totalorder %s111, 1
      %p533 = por %p531, %p532
      %p535 = scmp.ne.s32.totalorder %s520, %s534
      %p536 = scmp.eq.s32.totalorder %s111, 0
      %p537 = por %p535, %p536
      %s539 = sadd.s32 %s538, 1
      %p542 = scmp.eq.s32.totalorder %s105, 1
      %p543 = scmp.ne.s32.totalorder %s538, %s540
      %p544 = scmp.eq.s32.totalorder %s105, 0
      %p545 = por %p543, %p544
      %p546 = scmp.ne.s32.totalorder %s538, %s540
      %p547 = scmp.eq.s32.totalorder %s110, 1
      %p548 = por %p546, %p547
      %p549 = scmp.ne.s32.totalorder %s540, %s541
      %p550 = scmp.eq.s32.totalorder %s110, 0
      %p551 = por %p549, %p550
      %p552 = scmp.ne.s32.totalorder %s540, %s541
      %p553 = scmp.eq.s32.totalorder %s111, 1
      %p554 = por %p552, %p553
      %p556 = scmp.ne.s32.totalorder %s541, %s555
      %p557 = scmp.eq.s32.totalorder %s111, 0
      %p558 = por %p556, %p557
      %s560 = sadd.s32 %s559, 1
      %p563 = scmp.eq.s32.totalorder %s105, 1
      %p564 = scmp.ne.s32.totalorder %s559, %s561
      %p565 = scmp.eq.s32.totalorder %s105, 0
      %p566 = por %p564, %p565
      %p567 = scmp.ne.s32.totalorder %s559, %s561
      %p568 = scmp.eq.s32.totalorder %s110, 1
      %p569 = por %p567, %p568
      %p570 = scmp.ne.s32.totalorder %s561, %s562
      %p571 = scmp.eq.s32.totalorder %s110, 0
      %p572 = por %p570, %p571
      %p573 = scmp.ne.s32.totalorder %s561, %s562
      %p574 = scmp.eq.s32.totalorder %s111, 1
      %p575 = por %p573, %p574
      %p577 = scmp.ne.s32.totalorder %s562, %s576
      %p578 = scmp.eq.s32.totalorder %s111, 0
      %p579 = por %p577, %p578
      %s581 = sadd.s32 %s580, 1
      %p584 = scmp.eq.s32.totalorder %s105, 1
      %p585 = scmp.ne.s32.totalorder %s580, %s582
      %p586 = scmp.eq.s32.totalorder %s105, 0
      %p587 = por %p585, %p586
      %p588 = scmp.ne.s32.totalorder %s580, %s582
      %p589 = scmp.eq.s32.totalorder %s110, 1
      %p590 = por %p588, %p589
      %p591 = scmp.ne.s32.totalorder %s582, %s583
      %p592 = scmp.eq.s32.totalorder %s110, 0
      %p593 = por %p591, %p592
      %p594 = scmp.ne.s32.totalorder %s582, %s583
      %p595 = scmp.eq.s32.totalorder %s111, 1
      %p596 = por %p594, %p595
      %p598 = scmp.ne.s32.totalorder %s583, %s597
      %p599 = scmp.eq.s32.totalorder %s111, 0
      %p600 = por %p598, %p599
      %s602 = sadd.s32 %s601, 1
      %p605 = scmp.eq.s32.totalorder %s105, 1
      %p606 = scmp.ne.s32.totalorder %s601, %s603
      %p607 = scmp.eq.s32.totalorder %s105, 0
      %p608 = por %p606, %p607
      %p609 = scmp.ne.s32.totalorder %s601, %s603
      %p610 = scmp.eq.s32.totalorder %s110, 1
      %p611 = por %p609, %p610
      %p612 = scmp.ne.s32.totalorder %s603, %s604
      %p613 = scmp.eq.s32.totalorder %s110, 0
      %p614 = por %p612, %p613
      %p615 = scmp.ne.s32.totalorder %s603, %s604
      %p616 = scmp.eq.s32.totalorder %s111, 1
      %p617 = por %p615, %p616
      %p619 = scmp.ne.s32.totalorder %s604, %s618
      %p620 = scmp.eq.s32.totalorder %s111, 0
      %p621 = por %p619, %p620
      %s623 = sadd.s32 %s622, 1
      %p626 = scmp.eq.s32.totalorder %s105, 1
      %p627 = scmp.ne.s32.totalorder %s622, %s624
      %p628 = scmp.eq.s32.totalorder %s105, 0
      %p629 = por %p627, %p628
      %p630 = scmp.ne.s32.totalorder %s622, %s624
      %p631 = scmp.eq.s32.totalorder %s110, 1
      %p632 = por %p630, %p631
      %p633 = scmp.ne.s32.totalorder %s624, %s625
      %p634 = scmp.eq.s32.totalorder %s110, 0
      %p635 = por %p633, %p634
      %p636 = scmp.ne.s32.totalorder %s624, %s625
      %p637 = scmp.eq.s32.totalorder %s111, 1
      %p638 = por %p636, %p637
      %p640 = scmp.ne.s32.totalorder %s625, %s639
      %p641 = scmp.eq.s32.totalorder %s111, 0
      %p642 = por %p640, %p641
      %s644 = sadd.s32 %s643, 1
      %p647 = scmp.eq.s32.totalorder %s105, 1
      %p648 = scmp.ne.s32.totalorder %s643, %s645
      %p649 = scmp.eq.s32.totalorder %s105, 0
      %p650 = por %p648, %p649
      %p651 = scmp.ne.s32.totalorder %s643, %s645
      %p652 = scmp.eq.s32.totalorder %s110, 1
      %p653 = por %p651, %p652
      %p654 = scmp.ne.s32.totalorder %s645, %s646
      %p655 = scmp.eq.s32.totalorder %s110, 0
      %p656 = por %p654, %p655
      %p657 = scmp.ne.s32.totalorder %s645, %s646
      %p658 = scmp.eq.s32.totalorder %s111, 1
      %p659 = por %p657, %p658
      %p661 = scmp.ne.s32.totalorder %s646, %s660
      %p662 = scmp.eq.s32.totalorder %s111, 0
      %p663 = por %p661, %p662
      %s665 = sadd.s32 %s664, 1
      %p668 = scmp.eq.s32.totalorder %s105, 1
      %p669 = scmp.ne.s32.totalorder %s664, %s666
      %p670 = scmp.eq.s32.totalorder %s105, 0
      %p671 = por %p669, %p670
      %p672 = scmp.ne.s32.totalorder %s664, %s666
      %p673 = scmp.eq.s32.totalorder %s110, 1
      %p674 = por %p672, %p673
      %p675 = scmp.ne.s32.totalorder %s666, %s667
      %p676 = scmp.eq.s32.totalorder %s110, 0
      %p677 = por %p675, %p676
      %p678 = scmp.ne.s32.totalorder %s666, %s667
      %p679 = scmp.eq.s32.totalorder %s111, 1
      %p680 = por %p678, %p679
      %p682 = scmp.ne.s32.totalorder %s667, %s681
      %p683 = scmp.eq.s32.totalorder %s111, 0
      %p684 = por %p682, %p683
      %s686 = sadd.s32 %s685, 1
      %p689 = scmp.eq.s32.totalorder %s105, 1
      %p690 = scmp.ne.s32.totalorder %s685, %s687
      %p691 = scmp.eq.s32.totalorder %s105, 0
      %p692 = por %p690, %p691
      %p693 = scmp.ne.s32.totalorder %s685, %s687
      %p694 = scmp.eq.s32.totalorder %s110, 1
      %p695 = por %p693, %p694
      %p696 = scmp.ne.s32.totalorder %s687, %s688
      %p697 = scmp.eq.s32.totalorder %s110, 0
      %p698 = por %p696, %p697
      %p699 = scmp.ne.s32.totalorder %s687, %s688
      %p700 = scmp.eq.s32.totalorder %s111, 1
      %p701 = por %p699, %p700
      %p703 = scmp.ne.s32.totalorder %s688, %s702
      %p704 = scmp.eq.s32.totalorder %s111, 0
      %p705 = por %p703, %p704
      %s707 = sadd.s32 %s706, 1
      %p710 = scmp.eq.s32.totalorder %s105, 1
      %p711 = scmp.ne.s32.totalorder %s706, %s708
      %p712 = scmp.eq.s32.totalorder %s105, 0
      %p713 = por %p711, %p712
      %p714 = scmp.ne.s32.totalorder %s706, %s708
      %p715 = scmp.eq.s32.totalorder %s110, 1
      %p716 = por %p714, %p715
      %p717 = scmp.ne.s32.totalorder %s708, %s709
      %p718 = scmp.eq.s32.totalorder %s110, 0
      %p719 = por %p717, %p718
      %p720 = scmp.ne.s32.totalorder %s708, %s709
      %p721 = scmp.eq.s32.totalorder %s111, 1
      %p722 = por %p720, %p721
      %p724 = scmp.ne.s32.totalorder %s709, %s723
      %p725 = scmp.eq.s32.totalorder %s111, 0
      %p726 = por %p724, %p725
      %s728 = sadd.s32 %s727, 1
      %p731 = scmp.eq.s32.totalorder %s105, 1
      %p732 = scmp.ne.s32.totalorder %s727, %s729
      %p733 = scmp.eq.s32.totalorder %s105, 0
      %p734 = por %p732, %p733
      %p735 = scmp.ne.s32.totalorder %s727, %s729
      %p736 = scmp.eq.s32.totalorder %s110, 1
      %p737 = por %p735, %p736
      %p738 = scmp.ne.s32.totalorder %s729, %s730
      %p739 = scmp.eq.s32.totalorder %s110, 0
      %p740 = por %p738, %p739
      %p741 = scmp.ne.s32.totalorder %s729, %s730
      %p742 = scmp.eq.s32.totalorder %s111, 1
      %p743 = por %p741, %p742
      %p745 = scmp.ne.s32.totalorder %s730, %s744
      %p746 = scmp.eq.s32.totalorder %s111, 0
      %p747 = por %p745, %p746
      %s749 = sadd.s32 %s748, 1
      %p752 = scmp.eq.s32.totalorder %s105, 1
      %p753 = scmp.ne.s32.totalorder %s748, %s750
      %p754 = scmp.eq.s32.totalorder %s105, 0
      %p755 = por %p753, %p754
      %p756 = scmp.ne.s32.totalorder %s748, %s750
      %p757 = scmp.eq.s32.totalorder %s110, 1
      %p758 = por %p756, %p757
      %p759 = scmp.ne.s32.totalorder %s750, %s751
      %p760 = scmp.eq.s32.totalorder %s110, 0
      %p761 = por %p759, %p760
      %p762 = scmp.ne.s32.totalorder %s750, %s751
      %p763 = scmp.eq.s32.totalorder %s111, 1
      %p764 = por %p762, %p763
      %p766 = scmp.ne.s32.totalorder %s751, %s765
      %p767 = scmp.eq.s32.totalorder %s111, 0
      %p768 = por %p766, %p767
      %s770 = sadd.s32 %s769, 1
      %p773 = scmp.eq.s32.totalorder %s105, 1
      %p774 = scmp.ne.s32.totalorder %s769, %s771
      %p775 = scmp.eq.s32.totalorder %s105, 0
      %p776 = por %p774, %p775
      %p777 = scmp.ne.s32.totalorder %s769, %s771
      %p778 = scmp.eq.s32.totalorder %s110, 1
      %p779 = por %p777, %p778
      %p780 = scmp.ne.s32.totalorder %s771, %s772
      %p781 = scmp.eq.s32.totalorder %s110, 0
      %p782 = por %p780, %p781
      %p783 = scmp.ne.s32.totalorder %s771, %s772
      %p784 = scmp.eq.s32.totalorder %s111, 1
      %p785 = por %p783, %p784
      %p787 = scmp.ne.s32.totalorder %s772, %s786
      %p788 = scmp.eq.s32.totalorder %s111, 0
      %p789 = por %p787, %p788
      %s791 = sadd.s32 %s790, 1
      %p794 = scmp.eq.s32.totalorder %s105, 1
      %p795 = scmp.ne.s32.totalorder %s790, %s792
      %p796 = scmp.eq.s32.totalorder %s105, 0
      %p797 = por %p795, %p796
      %p798 = scmp.ne.s32.totalorder %s790, %s792
      %p799 = scmp.eq.s32.totalorder %s110, 1
      %p800 = por %p798, %p799
      %p801 = scmp.ne.s32.totalorder %s792, %s793
      %p802 = scmp.eq.s32.totalorder %s110, 0
      %p803 = por %p801, %p802
      %p804 = scmp.ne.s32.totalorder %s792, %s793
      %p805 = scmp.eq.s32.totalorder %s111, 1
      %p806 = por %p804, %p805
      %p808 = scmp.ne.s32.totalorder %s793, %s807
      %p809 = scmp.eq.s32.totalorder %s111, 0
      %p810 = por %p808, %p809
      %s812 = sadd.s32 %s811, 1
      %p815 = scmp.eq.s32.totalorder %s105, 1
      %p816 = scmp.ne.s32.totalorder %s811, %s813
      %p817 = scmp.eq.s32.totalorder %s105, 0
      %p818 = por %p816, %p817
      %p819 = scmp.ne.s32.totalorder %s811, %s813
      %p820 = scmp.eq.s32.totalorder %s110, 1
      %p821 = por %p819, %p820
      %p822 = scmp.ne.s32.totalorder %s813, %s814
      %p823 = scmp.eq.s32.totalorder %s110, 0
      %p824 = por %p822, %p823
      %p825 = scmp.ne.s32.totalorder %s813, %s814
      %p826 = scmp.eq.s32.totalorder %s111, 1
      %p827 = por %p825, %p826
      %p829 = scmp.ne.s32.totalorder %s814, %s828
      %p830 = scmp.eq.s32.totalorder %s111, 0
      %p831 = por %p829, %p830
      %s833 = sadd.s32 %s832, 1
      %p836 = scmp.eq.s32.totalorder %s105, 1
      %p837 = scmp.ne.s32.totalorder %s832, %s834
      %p838 = scmp.eq.s32.totalorder %s105, 0
      %p839 = por %p837, %p838
      %p840 = scmp.ne.s32.totalorder %s832, %s834
      %p841 = scmp.eq.s32.totalorder %s110, 1
      %p842 = por %p840, %p841
      %p843 = scmp.ne.s32.totalorder %s834, %s835
      %p844 = scmp.eq.s32.totalorder %s110, 0
      %p845 = por %p843, %p844
      %p846 = scmp.ne.s32.totalorder %s834, %s835
      %p847 = scmp.eq.s32.totalorder %s111, 1
      %p848 = por %p846, %p847
      %p850 = scmp.ne.s32.totalorder %s835, %s849
      %p851 = scmp.eq.s32.totalorder %s111, 0
      %p852 = por %p850, %p851
      %s854 = sadd.s32 %s853, 1
      %p857 = scmp.eq.s32.totalorder %s105, 1
      %p858 = scmp.ne.s32.totalorder %s853, %s855
      %p859 = scmp.eq.s32.totalorder %s105, 0
      %p860 = por %p858, %p859
      %p861 = scmp.ne.s32.totalorder %s853, %s855
      %p862 = scmp.eq.s32.totalorder %s110, 1
      %p863 = por %p861, %p862
      %p864 = scmp.ne.s32.totalorder %s855, %s856
      %p865 = scmp.eq.s32.totalorder %s110, 0
      %p866 = por %p864, %p865
      %p867 = scmp.ne.s32.totalorder %s855, %s856
      %p868 = scmp.eq.s32.totalorder %s111, 1
      %p869 = por %p867, %p868
      %p871 = scmp.ne.s32.totalorder %s856, %s870
      %p872 = scmp.eq.s32.totalorder %s111, 0
      %p873 = por %p871, %p872
      %s875 = sadd.s32 %s874, 1
      %p878 = scmp.eq.s32.totalorder %s105, 1
      %p879 = scmp.ne.s32.totalorder %s874, %s876
      %p880 = scmp.eq.s32.totalorder %s105, 0
      %p881 = por %p879, %p880
      %p882 = scmp.ne.s32.totalorder %s874, %s876
      %p883 = scmp.eq.s32.totalorder %s110, 1
      %p884 = por %p882, %p883
      %p885 = scmp.ne.s32.totalorder %s876, %s877
      %p886 = scmp.eq.s32.totalorder %s110, 0
      %p887 = por %p885, %p886
      %p888 = scmp.ne.s32.totalorder %s876, %s877
      %p889 = scmp.eq.s32.totalorder %s111, 1
      %p890 = por %p888, %p889
      %p892 = scmp.ne.s32.totalorder %s877, %s891
      %p893 = scmp.eq.s32.totalorder %s111, 0
      %p894 = por %p892, %p893
      %s896 = sadd.s32 %s895, 1
      %p899 = scmp.eq.s32.totalorder %s105, 1
      %p900 = scmp.ne.s32.totalorder %s895, %s897
      %p901 = scmp.eq.s32.totalorder %s105, 0
      %p902 = por %p900, %p901
      %p903 = scmp.ne.s32.totalorder %s895, %s897
      %p904 = scmp.eq.s32.totalorder %s110, 1
      %p905 = por %p903, %p904
      %p906 = scmp.ne.s32.totalorder %s897, %s898
      %p907 = scmp.eq.s32.totalorder %s110, 0
      %p908 = por %p906, %p907
      %p909 = scmp.ne.s32.totalorder %s897, %s898
      %p910 = scmp.eq.s32.totalorder %s111, 1
      %p911 = por %p909, %p910
      %p913 = scmp.ne.s32.totalorder %s898, %s912
      %p914 = scmp.eq.s32.totalorder %s111, 0
      %p915 = por %p913, %p914
      %s917 = sadd.s32 %s916, 1
      %p920 = scmp.eq.s32.totalorder %s105, 1
      %p921 = scmp.ne.s32.totalorder %s916, %s918
      %p922 = scmp.eq.s32.totalorder %s105, 0
      %p923 = por %p921, %p922
      %p924 = scmp.ne.s32.totalorder %s916, %s918
      %p925 = scmp.eq.s32.totalorder %s110, 1
      %p926 = por %p924, %p925
      %p927 = scmp.ne.s32.totalorder %s918, %s919
      %p928 = scmp.eq.s32.totalorder %s110, 0
      %p929 = por %p927, %p928
      %p930 = scmp.ne.s32.totalorder %s918, %s919
      %p931 = scmp.eq.s32.totalorder %s111, 1
      %p932 = por %p930, %p931
      %p934 = scmp.ne.s32.totalorder %s919, %s933
      %p935 = scmp.eq.s32.totalorder %s111, 0
      %p936 = por %p934, %p935
      %s938 = sadd.s32 %s937, 1
      %p941 = scmp.eq.s32.totalorder %s105, 1
      %p942 = scmp.ne.s32.totalorder %s937, %s939
      %p943 = scmp.eq.s32.totalorder %s105, 0
      %p944 = por %p942, %p943
      %p945 = scmp.ne.s32.totalorder %s937, %s939
      %p946 = scmp.eq.s32.totalorder %s110, 1
      %p947 = por %p945, %p946
      %p948 = scmp.ne.s32.totalorder %s939, %s940
      %p949 = scmp.eq.s32.totalorder %s110, 0
      %p950 = por %p948, %p949
      %p951 = scmp.ne.s32.totalorder %s939, %s940
      %p952 = scmp.eq.s32.totalorder %s111, 1
      %p953 = por %p951, %p952
      %p955 = scmp.ne.s32.totalorder %s940, %s954
      %p956 = scmp.eq.s32.totalorder %s111, 0
      %p957 = por %p955, %p956
      %s959 = sadd.s32 %s958, 1
      %p962 = scmp.eq.s32.totalorder %s105, 1
      %p963 = scmp.ne.s32.totalorder %s958, %s960
      %p964 = scmp.eq.s32.totalorder %s105, 0
      %p965 = por %p963, %p964
      %p966 = scmp.ne.s32.totalorder %s958, %s960
      %p967 = scmp.eq.s32.totalorder %s110, 1
      %p968 = por %p966, %p967
      %p969 = scmp.ne.s32.totalorder %s960, %s961
      %p970 = scmp.eq.s32.totalorder %s110, 0
      %p971 = por %p969, %p970
      %p972 = scmp.ne.s32.totalorder %s960, %s961
      %p973 = scmp.eq.s32.totalorder %s111, 1
      %p974 = por %p972, %p973
      %p976 = scmp.ne.s32.totalorder %s961, %s975
      %p977 = scmp.eq.s32.totalorder %s111, 0
      %p978 = por %p976, %p977
      %s980 = sadd.s32 %s979, 1
      %p983 = scmp.eq.s32.totalorder %s105, 1
      %p984 = scmp.ne.s32.totalorder %s979, %s981
      %p985 = scmp.eq.s32.totalorder %s105, 0
      %p986 = por %p984, %p985
      %p987 = scmp.ne.s32.totalorder %s979, %s981
      %p988 = scmp.eq.s32.totalorder %s110, 1
      %p989 = por %p987, %p988
      %p990 = scmp.ne.s32.totalorder %s981, %s982
      %p991 = scmp.eq.s32.totalorder %s110, 0
      %p992 = por %p990, %p991
      %p993 = scmp.ne.s32.totalorder %s981, %s982
      %p994 = scmp.eq.s32.totalorder %s111, 1
      %p995 = por %p993, %p994
      %p997 = scmp.ne.s32.totalorder %s982, %s996
      %p998 = scmp.eq.s32.totalorder %s111, 0
      %p999 = por %p997, %p998
      %s1001 = sadd.s32 %s1000, 1
      %p1004 = scmp.eq.s32.totalorder %s105, 1
      %p1005 = scmp.ne.s32.totalorder %s1000, %s1002
      %p1006 = scmp.eq.s32.totalorder %s105, 0
      %p1007 = por %p1005, %p1006
      %p1008 = scmp.ne.s32.totalorder %s1000, %s1002
      %p1009 = scmp.eq.s32.totalorder %s110, 1
      %p1010 = por %p1008, %p1009
      %p1011 = scmp.ne.s32.totalorder %s1002, %s1003
      %p1012 = scmp.eq.s32.totalorder %s110, 0
      %p1013 = por %p1011, %p1012
      %p1014 = scmp.ne.s32.totalorder %s1002, %s1003
      %p1015 = scmp.eq.s32.totalorder %s111, 1
      %p1016 = por %p1014, %p1015
      %p1018 = scmp.ne.s32.totalorder %s1003, %s1017
      %p1019 = scmp.eq.s32.totalorder %s111, 0
      %p1020 = por %p1018, %p1019
      %s1022 = sadd.s32 %s1021, 1
      %p1025 = scmp.eq.s32.totalorder %s105, 1
      %p1026 = scmp.ne.s32.totalorder %s1021, %s1023
      %p1027 = scmp.eq.s32.totalorder %s105, 0
      %p1028 = por %p1026, %p1027
      %p1029 = scmp.ne.s32.totalorder %s1021, %s1023
      %p1030 = scmp.eq.s32.totalorder %s110, 1
      %p1031 = por %p1029, %p1030
      %p1032 = scmp.ne.s32.totalorder %s1023, %s1024
      %p1033 = scmp.eq.s32.totalorder %s110, 0
      %p1034 = por %p1032, %p1033
      %p1035 = scmp.ne.s32.totalorder %s1023, %s1024
      %p1036 = scmp.eq.s32.totalorder %s111, 1
      %p1037 = por %p1035, %p1036
      %p1039 = scmp.ne.s32.totalorder %s1024, %s1038
      %p1040 = scmp.eq.s32.totalorder %s111, 0
      %p1041 = por %p1039, %p1040
      %s1043 = sadd.s32 %s1042, 1
      %p1046 = scmp.eq.s32.totalorder %s105, 1
      %p1047 = scmp.ne.s32.totalorder %s1042, %s1044
      %p1048 = scmp.eq.s32.totalorder %s105, 0
      %p1049 = por %p1047, %p1048
      %p1050 = scmp.ne.s32.totalorder %s1042, %s1044
      %p1051 = scmp.eq.s32.totalorder %s110, 1
      %p1052 = por %p1050, %p1051
      %p1053 = scmp.ne.s32.totalorder %s1044, %s1045
      %p1054 = scmp.eq.s32.totalorder %s110, 0
      %p1055 = por %p1053, %p1054
      %p1056 = scmp.ne.s32.totalorder %s1044, %s1045
      %p1057 = scmp.eq.s32.totalorder %s111, 1
      %p1058 = por %p1056, %p1057
      %p1060 = scmp.ne.s32.totalorder %s1045, %s1059
      %p1061 = scmp.eq.s32.totalorder %s111, 0
      %p1062 = por %p1060, %p1061
      %s1064 = sadd.s32 %s1063, 1
      %p1067 = scmp.eq.s32.totalorder %s105, 1
      %p1068 = scmp.ne.s32.totalorder %s1063, %s1065
      %p1069 = scmp.eq.s32.totalorder %s105, 0
      %p1070 = por %p1068, %p1069
      %p1071 = scmp.ne.s32.totalorder %s1063, %s1065
      %p1072 = scmp.eq.s32.totalorder %s110, 1
      %p1073 = por %p1071, %p1072
      %p1074 = scmp.ne.s32.totalorder %s1065, %s1066
      %p1075 = scmp.eq.s32.totalorder %s110, 0
      %p1076 = por %p1074, %p1075
      %p1077 = scmp.ne.s32.totalorder %s1065, %s1066
      %p1078 = scmp.eq.s32.totalorder %s111, 1
      %p1079 = por %p1077, %p1078
      %p1081 = scmp.ne.s32.totalorder %s1066, %s1080
      %p1082 = scmp.eq.s32.totalorder %s111, 0
      %p1083 = por %p1081, %p1082
      %s1085 = sadd.s32 %s1084, 1
      %p1088 = scmp.eq.s32.totalorder %s105, 1
      %p1089 = scmp.ne.s32.totalorder %s1084, %s1086
      %p1090 = scmp.eq.s32.totalorder %s105, 0
      %p1091 = por %p1089, %p1090
      %p1092 = scmp.ne.s32.totalorder %s1084, %s1086
      %p1093 = scmp.eq.s32.totalorder %s110, 1
      %p1094 = por %p1092, %p1093
      %p1095 = scmp.ne.s32.totalorder %s1086, %s1087
      %p1096 = scmp.eq.s32.totalorder %s110, 0
      %p1097 = por %p1095, %p1096
      %p1098 = scmp.ne.s32.totalorder %s1086, %s1087
      %p1099 = scmp.eq.s32.totalorder %s111, 1
      %p1100 = por %p1098, %p1099
      %p1102 = scmp.ne.s32.totalorder %s1087, %s1101
      %p1103 = scmp.eq.s32.totalorder %s111, 0
      %p1104 = por %p1102, %p1103
      %s1105 = ssub.s32 %s105, %s112
      %p1106 = scmp.eq.s32.totalorder %s1105, 0
      %s1108 = sadd.s32 %s1107, 1
      %s1109 = scalar_select %p1106, %s1107, %s1108
      %p1112 = pneg %p1106
      %p1113 = scmp.eq.s32.totalorder %s105, 1
      %p1114 = por %p1112, %p1113
      %p1115 = scmp.ne.s32.totalorder %s1107, %s1110
      %p1116 = scmp.eq.s32.totalorder %s105, 0
      %p1117 = por %p1115, %p1116
      %p1118 = scmp.ne.s32.totalorder %s1107, %s1110
      %p1119 = scmp.eq.s32.totalorder %s110, 1
      %p1120 = por %p1118, %p1119
      %p1121 = scmp.ne.s32.totalorder %s1110, %s1111
      %p1122 = scmp.eq.s32.totalorder %s110, 0
      %p1123 = por %p1121, %p1122
      %p1124 = scmp.ne.s32.totalorder %s1110, %s1111
      %p1125 = scmp.eq.s32.totalorder %s111, 1
      %p1126 = por %p1124, %p1125
      %p1128 = scmp.ne.s32.totalorder %s1111, %s1127
      %p1129 = scmp.eq.s32.totalorder %s111, 0
      %p1130 = por %p1128, %p1129
      %p1131 = scmp.le.s32.totalorder 1, %s105
      %p1132 = scmp.lt.s32.totalorder %s105, 3
      %p1133 = pnand %p1131, %p1132
      %p1134 = pneg %p1133
      // Predicated region
      $region9: #{swin_classifier_forward.1} parent=5 // pred_check
        _
      $region10: #{swin_classifier_forward.1} parent=5 // pred_check_branch
        %1136 = sbr.rel (%p1133) target = $region12
      $region11: #{swin_classifier_forward.1} parent=5 // pred_region
        %s1137 = ssub.s32 %s105, 1
        // Predicated region
        $region13: #{swin_classifier_forward.1} parent=11 // pred_check
          %p1138 = pneg %p152
        $region14: #{swin_classifier_forward.1} parent=11 // pred_check_branch
          %1140 = sbr.rel (%p1138) target = $region16
        $region15: #{swin_classifier_forward.1} parent=11 // pred_region
          _
        $region16: #{swin_classifier_forward.1} parent=11 // pred_fallthru
          _
        // Predicated region
        $region17: #{swin_classifier_forward.1} parent=11 // pred_check
          %p1141 = pneg %p173
        $region18: #{swin_classifier_forward.1} parent=11 // pred_check_branch
          %1143 = sbr.rel (%p1141) target = $region20
        $region19: #{swin_classifier_forward.1} parent=11 // pred_region
          _
        $region20: #{swin_classifier_forward.1} parent=11 // pred_fallthru
          _
        // Predicated region
        $region21: #{swin_classifier_forward.1} parent=11 // pred_check
          %p1144 = pneg %p194
        $region22: #{swin_classifier_forward.1} parent=11 // pred_check_branch
          %1146 = sbr.rel (%p1144) target = $region24
        $region23: #{swin_classifier_forward.1} parent=11 // pred_region
          _
        $region24: #{swin_classifier_forward.1} parent=11 // pred_fallthru
          _
        // Predicated region
        $region25: #{swin_classifier_forward.1} parent=11 // pred_check
          %p1147 = pneg %p215
        $region26: #{swin_classifier_forward.1} parent=11 // pred_check_branch
          %1149 = sbr.rel (%p1147) target = $region28
        $region27: #{swin_classifier_forward.1} parent=11 // pred_region
          _
        $region28: #{swin_classifier_forward.1} parent=11 // pred_fallthru
          _
        // Predicated region
        $region29: #{swin_classifier_forward.1} parent=11 // pred_check
          %p1150 = pneg %p236
        $region30: #{swin_classifier_forward.1} parent=11 // pred_check_branch
          %1152 = sbr.rel (%p1150) target = $region32
        $region31: #{swin_classifier_forward.1} parent=11 // pred_region
          _
        $region32: #{swin_classifier_forward.1} parent=11 // pred_fallthru
          _
        // Predicated region
        $region33: #{swin_classifier_forward.1} parent=11 // pred_check
          %p1153 = pneg %p257
        $region34: #{swin_classifier_forward.1} parent=11 // pred_check_branch
          %1155 = sbr.rel (%p1153) target = $region36
        $region35: #{swin_classifier_forward.1} parent=11 // pred_region
          _
        $region36: #{swin_classifier_forward.1} parent=11 // pred_fallthru
          _
        // Predicated region
        $region37: #{swin_classifier_forward.1} parent=11 // pred_check
          %p1156 = pneg %p278
        $region38: #{swin_classifier_forward.1} parent=11 // pred_check_branch
          %1158 = sbr.rel (%p1156) target = $region40
        $region39: #{swin_classifier_forward.1} parent=11 // pred_region
          _
        $region40: #{swin_classifier_forward.1} parent=11 // pred_fallthru
          _
        // Predicated region
        $region41: #{swin_classifier_forward.1} parent=11 // pred_check
          %p1159 = pneg %p299
        $region42: #{swin_classifier_forward.1} parent=11 // pred_check_branch
          %1161 = sbr.rel (%p1159) target = $region44
        $region43: #{swin_classifier_forward.1} parent=11 // pred_region
          _
        $region44: #{swin_classifier_forward.1} parent=11 // pred_fallthru
          _
        // Predicated region
        $region45: #{swin_classifier_forward.1} parent=11 // pred_check
          %p1162 = pneg %p320
        $region46: #{swin_classifier_forward.1} parent=11 // pred_check_branch
          %1164 = sbr.rel (%p1162) target = $region48
        $region47: #{swin_classifier_forward.1} parent=11 // pred_region
          _
        $region48: #{swin_classifier_forward.1} parent=11 // pred_fallthru
          _
        // Predicated region
        $region49: #{swin_classifier_forward.1} parent=11 // pred_check
          %p1165 = pneg %p341
        $region50: #{swin_classifier_forward.1} parent=11 // pred_check_branch
          %1167 = sbr.rel (%p1165) target = $region52
        $region51: #{swin_classifier_forward.1} parent=11 // pred_region
          _
        $region52: #{swin_classifier_forward.1} parent=11 // pred_fallthru
          _
        // Predicated region
        $region53: #{swin_classifier_forward.1} parent=11 // pred_check
          %p1168 = pneg %p362
        $region54: #{swin_classifier_forward.1} parent=11 // pred_check_branch
          %1170 = sbr.rel (%p1168) target = $region56
        $region55: #{swin_classifier_forward.1} parent=11 // pred_region
          _
        $region56: #{swin_classifier_forward.1} parent=11 // pred_fallthru
          _
        // Predicated region
        $region57: #{swin_classifier_forward.1} parent=11 // pred_check
          %p1171 = pneg %p383
        $region58: #{swin_classifier_forward.1} parent=11 // pred_check_branch
          %1173 = sbr.rel (%p1171) target = $region60
        $region59: #{swin_classifier_forward.1} parent=11 // pred_region
          _
        $region60: #{swin_classifier_forward.1} parent=11 // pred_fallthru
          _
        // Predicated region
        $region61: #{swin_classifier_forward.1} parent=11 // pred_check
          %p1174 = pneg %p404
        $region62: #{swin_classifier_forward.1} parent=11 // pred_check_branch
          %1176 = sbr.rel (%p1174) target = $region64
        $region63: #{swin_classifier_forward.1} parent=11 // pred_region
          _
        $region64: #{swin_classifier_forward.1} parent=11 // pred_fallthru
          _
        // Predicated region
        $region65: #{swin_classifier_forward.1} parent=11 // pred_check
          %p1177 = pneg %p425
        $region66: #{swin_classifier_forward.1} parent=11 // pred_check_branch
          %1179 = sbr.rel (%p1177) target = $region68
        $region67: #{swin_classifier_forward.1} parent=11 // pred_region
          _
        $region68: #{swin_classifier_forward.1} parent=11 // pred_fallthru
          _
        // Predicated region
        $region69: #{swin_classifier_forward.1} parent=11 // pred_check
          %p1180 = pneg %p446
        $region70: #{swin_classifier_forward.1} parent=11 // pred_check_branch
          %1182 = sbr.rel (%p1180) target = $region72
        $region71: #{swin_classifier_forward.1} parent=11 // pred_region
          _
        $region72: #{swin_classifier_forward.1} parent=11 // pred_fallthru
          _
        // Predicated region
        $region73: #{swin_classifier_forward.1} parent=11 // pred_check
          %p1183 = pneg %p467
        $region74: #{swin_classifier_forward.1} parent=11 // pred_check_branch
          %1185 = sbr.rel (%p1183) target = $region76
        $region75: #{swin_classifier_forward.1} parent=11 // pred_region
          _
        $region76: #{swin_classifier_forward.1} parent=11 // pred_fallthru
          _
        // Predicated region
        $region77: #{swin_classifier_forward.1} parent=11 // pred_check
          %p1186 = pneg %p488
        $region78: #{swin_classifier_forward.1} parent=11 // pred_check_branch
          %1188 = sbr.rel (%p1186) target = $region80
        $region79: #{swin_classifier_forward.1} parent=11 // pred_region
          _
        $region80: #{swin_classifier_forward.1} parent=11 // pred_fallthru
          _
        // Predicated region
        $region81: #{swin_classifier_forward.1} parent=11 // pred_check
          %p1189 = pneg %p509
        $region82: #{swin_classifier_forward.1} parent=11 // pred_check_branch
          %1191 = sbr.rel (%p1189) target = $region84
        $region83: #{swin_classifier_forward.1} parent=11 // pred_region
          _
        $region84: #{swin_classifier_forward.1} parent=11 // pred_fallthru
          _
        // Predicated region
        $region85: #{swin_classifier_forward.1} parent=11 // pred_check
          %p1192 = pneg %p530
        $region86: #{swin_classifier_forward.1} parent=11 // pred_check_branch
          %1194 = sbr.rel (%p1192) target = $region88
        $region87: #{swin_classifier_forward.1} parent=11 // pred_region
          _
        $region88: #{swin_classifier_forward.1} parent=11 // pred_fallthru
          _
        // Predicated region
        $region89: #{swin_classifier_forward.1} parent=11 // pred_check
          %p1195 = pneg %p551
        $region90: #{swin_classifier_forward.1} parent=11 // pred_check_branch
          %1197 = sbr.rel (%p1195) target = $region92
        $region91: #{swin_classifier_forward.1} parent=11 // pred_region
          _
        $region92: #{swin_classifier_forward.1} parent=11 // pred_fallthru
          _
        // Predicated region
        $region93: #{swin_classifier_forward.1} parent=11 // pred_check
          %p1198 = pneg %p572
        $region94: #{swin_classifier_forward.1} parent=11 // pred_check_branch
          %1200 = sbr.rel (%p1198) target = $region96
        $region95: #{swin_classifier_forward.1} parent=11 // pred_region
          _
        $region96: #{swin_classifier_forward.1} parent=11 // pred_fallthru
          _
        // Predicated region
        $region97: #{swin_classifier_forward.1} parent=11 // pred_check
          %p1201 = pneg %p593
        $region98: #{swin_classifier_forward.1} parent=11 // pred_check_branch
          %1203 = sbr.rel (%p1201) target = $region100
        $region99: #{swin_classifier_forward.1} parent=11 // pred_region
          _
        $region100: #{swin_classifier_forward.1} parent=11 // pred_fallthru
          _
        // Predicated region
        $region101: #{swin_classifier_forward.1} parent=11 // pred_check
          %p1204 = pneg %p614
        $region102: #{swin_classifier_forward.1} parent=11 // pred_check_branch
          %1206 = sbr.rel (%p1204) target = $region104
        $region103: #{swin_classifier_forward.1} parent=11 // pred_region
          _
        $region104: #{swin_classifier_forward.1} parent=11 // pred_fallthru
          _
        // Predicated region
        $region105: #{swin_classifier_forward.1} parent=11 // pred_check
          %p1207 = pneg %p635
        $region106: #{swin_classifier_forward.1} parent=11 // pred_check_branch
          %1209 = sbr.rel (%p1207) target = $region108
        $region107: #{swin_classifier_forward.1} parent=11 // pred_region
          %1211 = vsyncadd [#allocation3], 0
          %s1213 = sshll.u32 %s49, 4
          %s1214 = int_to_ptr.hbm [resolvable:$true] %s1213
          %s1215 = sshll.u32 [#allocation2], 4
          %s1216 = int_to_ptr.vmem [resolvable:$true] %s1215
          %1218 = dma.hbm_to_vmem [thread:$0]  %s1214, 16, %s1216, [#allocation3]
        $region108: #{swin_classifier_forward.1} parent=11 // pred_fallthru
          _
        // Predicated region
        $region109: #{swin_classifier_forward.1} parent=11 // pred_check
          %p1219 = pneg %p656
        $region110: #{swin_classifier_forward.1} parent=11 // pred_check_branch
          %1221 = sbr.rel (%p1219) target = $region112
        $region111: #{swin_classifier_forward.1} parent=11 // pred_region
          _
        $region112: #{swin_classifier_forward.1} parent=11 // pred_fallthru
          _
        // Predicated region
        $region113: #{swin_classifier_forward.1} parent=11 // pred_check
          %p1222 = pneg %p677
        $region114: #{swin_classifier_forward.1} parent=11 // pred_check_branch
          %1224 = sbr.rel (%p1222) target = $region116
        $region115: #{swin_classifier_forward.1} parent=11 // pred_region
          _
        $region116: #{swin_classifier_forward.1} parent=11 // pred_fallthru
          _
        // Predicated region
        $region117: #{swin_classifier_forward.1} parent=11 // pred_check
          %p1225 = pneg %p698
        $region118: #{swin_classifier_forward.1} parent=11 // pred_check_branch
          %1227 = sbr.rel (%p1225) target = $region120
        $region119: #{swin_classifier_forward.1} parent=11 // pred_region
          _
        $region120: #{swin_classifier_forward.1} parent=11 // pred_fallthru
          _
        // Predicated region
        $region121: #{swin_classifier_forward.1} parent=11 // pred_check
          %p1228 = pneg %p719
        $region122: #{swin_classifier_forward.1} parent=11 // pred_check_branch
          %1230 = sbr.rel (%p1228) target = $region124
        $region123: #{swin_classifier_forward.1} parent=11 // pred_region
          %1232 = vsyncadd [#allocation5], 0
          %s1234 = sshll.u32 %s57, 4
          %s1235 = int_to_ptr.hbm [resolvable:$true] %s1234
          %s1236 = sshll.u32 [#allocation4], 4
          %s1237 = int_to_ptr.vmem [resolvable:$true] %s1236
          %1239 = dma.hbm_to_vmem [thread:$0]  %s1235, 16, %s1237, [#allocation5]
        $region124: #{swin_classifier_forward.1} parent=11 // pred_fallthru
          _
        // Predicated region
        $region125: #{swin_classifier_forward.1} parent=11 // pred_check
          %p1240 = pneg %p740
        $region126: #{swin_classifier_forward.1} parent=11 // pred_check_branch
          %1242 = sbr.rel (%p1240) target = $region128
        $region127: #{swin_classifier_forward.1} parent=11 // pred_region
          _
        $region128: #{swin_classifier_forward.1} parent=11 // pred_fallthru
          _
        // Predicated region
        $region129: #{swin_classifier_forward.1} parent=11 // pred_check
          %p1243 = pneg %p761
        $region130: #{swin_classifier_forward.1} parent=11 // pred_check_branch
          %1245 = sbr.rel (%p1243) target = $region132
        $region131: #{swin_classifier_forward.1} parent=11 // pred_region
          _
        $region132: #{swin_classifier_forward.1} parent=11 // pred_fallthru
          _
        // Predicated region
        $region133: #{swin_classifier_forward.1} parent=11 // pred_check
          %p1246 = pneg %p782
        $region134: #{swin_classifier_forward.1} parent=11 // pred_check_branch
          %1248 = sbr.rel (%p1246) target = $region136
        $region135: #{swin_classifier_forward.1} parent=11 // pred_region
          _
        $region136: #{swin_classifier_forward.1} parent=11 // pred_fallthru
          _
        // Predicated region
        $region137: #{swin_classifier_forward.1} parent=11 // pred_check
          %p1249 = pneg %p803
        $region138: #{swin_classifier_forward.1} parent=11 // pred_check_branch
          %1251 = sbr.rel (%p1249) target = $region140
        $region139: #{swin_classifier_forward.1} parent=11 // pred_region
          _
        $region140: #{swin_classifier_forward.1} parent=11 // pred_fallthru
          _
        // Predicated region
        $region141: #{swin_classifier_forward.1} parent=11 // pred_check
          %p1252 = pneg %p824
        $region142: #{swin_classifier_forward.1} parent=11 // pred_check_branch
          %1254 = sbr.rel (%p1252) target = $region144
        $region143: #{swin_classifier_forward.1} parent=11 // pred_region
          %1256 = vsyncadd [#allocation5], 0
          %s1258 = sshll.u32 %s67, 4
          %s1259 = int_to_ptr.hbm [resolvable:$true] %s1258
          %s1260 = sshll.u32 [#allocation6], 4
          %s1261 = int_to_ptr.vmem [resolvable:$true] %s1260
          %1263 = dma.hbm_to_vmem [thread:$0]  %s1259, 16, %s1261, [#allocation5]
        $region144: #{swin_classifier_forward.1} parent=11 // pred_fallthru
          _
        // Predicated region
        $region145: #{swin_classifier_forward.1} parent=11 // pred_check
          %p1264 = pneg %p845
        $region146: #{swin_classifier_forward.1} parent=11 // pred_check_branch
          %1266 = sbr.rel (%p1264) target = $region148
        $region147: #{swin_classifier_forward.1} parent=11 // pred_region
          _
        $region148: #{swin_classifier_forward.1} parent=11 // pred_fallthru
          _
        // Predicated region
        $region149: #{swin_classifier_forward.1} parent=11 // pred_check
          %p1267 = pneg %p866
        $region150: #{swin_classifier_forward.1} parent=11 // pred_check_branch
          %1269 = sbr.rel (%p1267) target = $region152
        $region151: #{swin_classifier_forward.1} parent=11 // pred_region
          _
        $region152: #{swin_classifier_forward.1} parent=11 // pred_fallthru
          _
        // Predicated region
        $region153: #{swin_classifier_forward.1} parent=11 // pred_check
          %p1270 = pneg %p887
        $region154: #{swin_classifier_forward.1} parent=11 // pred_check_branch
          %1272 = sbr.rel (%p1270) target = $region156
        $region155: #{swin_classifier_forward.1} parent=11 // pred_region
          _
        $region156: #{swin_classifier_forward.1} parent=11 // pred_fallthru
          _
        // Predicated region
        $region157: #{swin_classifier_forward.1} parent=11 // pred_check
          %p1273 = pneg %p908
        $region158: #{swin_classifier_forward.1} parent=11 // pred_check_branch
          %1275 = sbr.rel (%p1273) target = $region160
        $region159: #{swin_classifier_forward.1} parent=11 // pred_region
          %1277 = vsyncadd [#allocation8], 0
          %s1279 = sshll.u32 %s75, 4
          %s1280 = int_to_ptr.hbm [resolvable:$true] %s1279
          %s1281 = sshll.u32 [#allocation7], 4
          %s1282 = int_to_ptr.vmem [resolvable:$true] %s1281
          %1284 = dma.hbm_to_vmem [thread:$0]  %s1280, 16, %s1282, [#allocation8]
        $region160: #{swin_classifier_forward.1} parent=11 // pred_fallthru
          _
        // Predicated region
        $region161: #{swin_classifier_forward.1} parent=11 // pred_check
          %p1285 = pneg %p929
        $region162: #{swin_classifier_forward.1} parent=11 // pred_check_branch
          %1287 = sbr.rel (%p1285) target = $region164
        $region163: #{swin_classifier_forward.1} parent=11 // pred_region
          _
        $region164: #{swin_classifier_forward.1} parent=11 // pred_fallthru
          _
        // Predicated region
        $region165: #{swin_classifier_forward.1} parent=11 // pred_check
          %p1288 = pneg %p950
        $region166: #{swin_classifier_forward.1} parent=11 // pred_check_branch
          %1290 = sbr.rel (%p1288) target = $region168
        $region167: #{swin_classifier_forward.1} parent=11 // pred_region
          _
        $region168: #{swin_classifier_forward.1} parent=11 // pred_fallthru
          _
        // Predicated region
        $region169: #{swin_classifier_forward.1} parent=11 // pred_check
          %p1291 = pneg %p971
        $region170: #{swin_classifier_forward.1} parent=11 // pred_check_branch
          %1293 = sbr.rel (%p1291) target = $region172
        $region171: #{swin_classifier_forward.1} parent=11 // pred_region
          _
        $region172: #{swin_classifier_forward.1} parent=11 // pred_fallthru
          _
        // Predicated region
        $region173: #{swin_classifier_forward.1} parent=11 // pred_check
          %p1294 = pneg %p992
        $region174: #{swin_classifier_forward.1} parent=11 // pred_check_branch
          %1296 = sbr.rel (%p1294) target = $region176
        $region175: #{swin_classifier_forward.1} parent=11 // pred_region
          _
        $region176: #{swin_classifier_forward.1} parent=11 // pred_fallthru
          _
        // Predicated region
        $region177: #{swin_classifier_forward.1} parent=11 // pred_check
          %p1297 = pneg %p1013
        $region178: #{swin_classifier_forward.1} parent=11 // pred_check_branch
          %1299 = sbr.rel (%p1297) target = $region180
        $region179: #{swin_classifier_forward.1} parent=11 // pred_region
          %1301 = vsyncadd [#allocation8], 0
          %s1303 = sshll.u32 %s85, 4
          %s1304 = int_to_ptr.hbm [resolvable:$true] %s1303
          %s1305 = sshll.u32 [#allocation9], 4
          %s1306 = int_to_ptr.vmem [resolvable:$true] %s1305
          %1308 = dma.hbm_to_vmem [thread:$0]  %s1304, 16, %s1306, [#allocation8]
        $region180: #{swin_classifier_forward.1} parent=11 // pred_fallthru
          _
        // Predicated region
        $region181: #{swin_classifier_forward.1} parent=11 // pred_check
          %p1309 = pneg %p1034
        $region182: #{swin_classifier_forward.1} parent=11 // pred_check_branch
          %1311 = sbr.rel (%p1309) target = $region184
        $region183: #{swin_classifier_forward.1} parent=11 // pred_region
          _
        $region184: #{swin_classifier_forward.1} parent=11 // pred_fallthru
          _
        // Predicated region
        $region185: #{swin_classifier_forward.1} parent=11 // pred_check
          %p1312 = pneg %p1055
        $region186: #{swin_classifier_forward.1} parent=11 // pred_check_branch
          %1314 = sbr.rel (%p1312) target = $region188
        $region187: #{swin_classifier_forward.1} parent=11 // pred_region
          _
        $region188: #{swin_classifier_forward.1} parent=11 // pred_fallthru
          _
        // Predicated region
        $region189: #{swin_classifier_forward.1} parent=11 // pred_check
          %p1315 = pneg %p1076
        $region190: #{swin_classifier_forward.1} parent=11 // pred_check_branch
          %1317 = sbr.rel (%p1315) target = $region192
        $region191: #{swin_classifier_forward.1} parent=11 // pred_region
          _
        $region192: #{swin_classifier_forward.1} parent=11 // pred_fallthru
          _
        // Predicated region
        $region193: #{swin_classifier_forward.1} parent=11 // pred_check
          %p1318 = pneg %p1097
        $region194: #{swin_classifier_forward.1} parent=11 // pred_check_branch
          %1320 = sbr.rel (%p1318) target = $region196
        $region195: #{swin_classifier_forward.1} parent=11 // pred_region
          %1322 = vsyncadd [#allocation11], 0
          %s1324 = sshll.u32 %s93, 4
          %s1325 = int_to_ptr.hbm [resolvable:$true] %s1324
          %s1326 = sshll.u32 [#allocation10], 4
          %s1327 = int_to_ptr.vmem [resolvable:$true] %s1326
          %1329 = dma.hbm_to_vmem [thread:$0]  %s1325, 16, %s1327, [#allocation11]
        $region196: #{swin_classifier_forward.1} parent=11 // pred_fallthru
          _
      $region12: #{swin_classifier_forward.1} parent=5 // pred_fallthru
        _
      %p1330 = scmp.lt.s32.totalorder %s105, 2
      // Predicated region
      $region197: #{swin_classifier_forward.1} parent=5 // pred_check
        %p1331 = pneg %p1330
      $region198: #{swin_classifier_forward.1} parent=5 // pred_check_branch
        %1333 = sbr.rel (%p1331) target = $region200
      $region199: #{swin_classifier_forward.1} parent=5 // pred_region
        // Predicated region
        $region201: #{swin_classifier_forward.1} parent=199 // pred_check
          %p1334 = pneg %p125
        $region202: #{swin_classifier_forward.1} parent=199 // pred_check_branch
          %1336 = sbr.rel (%p1334) target = $region204
        $region203: #{swin_classifier_forward.1} parent=199 // pred_region
          %p1337 = scmp.lt.s32.totalorder %s105, 1
          %s1338 = scalar_select %p1337, %s105, 1
          %s1339 = smul.addr %s1338, 8
          %s1340 = smul.addr %s1339, 8
          %s1341 = scalar_lea.vmem %s1, %s1340
        $region204: #{swin_classifier_forward.1} parent=199 // pred_fallthru
          _
      $region200: #{swin_classifier_forward.1} parent=5 // pred_fallthru
        _
      %p1342 = scmp.le.s32.totalorder 1, %s105
      %p1343 = scmp.lt.s32.totalorder %s105, 3
      %p1344 = pnand %p1342, %p1343
      %p1345 = pneg %p1344
      // Predicated region
      $region205: #{swin_classifier_forward.1} parent=5 // pred_check
        _
      $region206: #{swin_classifier_forward.1} parent=5 // pred_check_branch
        %1347 = sbr.rel (%p1344) target = $region208
      $region207: #{swin_classifier_forward.1} parent=5 // pred_region
        %s1348 = ssub.s32 %s105, 1
        // Predicated region
        $region209: #{swin_classifier_forward.1} parent=207 // pred_check
          %p1349 = pneg %p635
        $region210: #{swin_classifier_forward.1} parent=207 // pred_check_branch
          %1351 = sbr.rel (%p1349) target = $region212
        $region211: #{swin_classifier_forward.1} parent=207 // pred_region
          %1353 = dma.done [#allocation3], 16
        $region212: #{swin_classifier_forward.1} parent=207 // pred_fallthru
          _
        // Predicated region
        $region213: #{swin_classifier_forward.1} parent=207 // pred_check
          %p1354 = pneg %p719
        $region214: #{swin_classifier_forward.1} parent=207 // pred_check_branch
          %1356 = sbr.rel (%p1354) target = $region216
        $region215: #{swin_classifier_forward.1} parent=207 // pred_region
          %1358 = dma.done [#allocation5], 16
        $region216: #{swin_classifier_forward.1} parent=207 // pred_fallthru
          _
        // Predicated region
        $region217: #{swin_classifier_forward.1} parent=207 // pred_check
          %p1359 = pneg %p824
        $region218: #{swin_classifier_forward.1} parent=207 // pred_check_branch
          %1361 = sbr.rel (%p1359) target = $region220
        $region219: #{swin_classifier_forward.1} parent=207 // pred_region
          %1363 = dma.done [#allocation5], 16
        $region220: #{swin_classifier_forward.1} parent=207 // pred_fallthru
          _
        // Predicated region
        $region221: #{swin_classifier_forward.1} parent=207 // pred_check
          %p1364 = pneg %p908
        $region222: #{swin_classifier_forward.1} parent=207 // pred_check_branch
          %1366 = sbr.rel (%p1364) target = $region224
        $region223: #{swin_classifier_forward.1} parent=207 // pred_region
          %1368 = dma.done [#allocation8], 16
        $region224: #{swin_classifier_forward.1} parent=207 // pred_fallthru
          _
        // Predicated region
        $region225: #{swin_classifier_forward.1} parent=207 // pred_check
          %p1369 = pneg %p1013
        $region226: #{swin_classifier_forward.1} parent=207 // pred_check_branch
          %1371 = sbr.rel (%p1369) target = $region228
        $region227: #{swin_classifier_forward.1} parent=207 // pred_region
          %1373 = dma.done [#allocation8], 16
        $region228: #{swin_classifier_forward.1} parent=207 // pred_fallthru
          _
        // Predicated region
        $region229: #{swin_classifier_forward.1} parent=207 // pred_check
          %p1374 = pneg %p1097
        $region230: #{swin_classifier_forward.1} parent=207 // pred_check_branch
          %1376 = sbr.rel (%p1374) target = $region232
        $region231: #{swin_classifier_forward.1} parent=207 // pred_region
          %1378 = dma.done [#allocation11], 16
        $region232: #{swin_classifier_forward.1} parent=207 // pred_fallthru
          _
        %p1379 = scmp.lt.s32.totalorder %s110, 1
        %s1380 = scalar_select %p1379, %s110, 1
        %s1381 = smul.addr %s1380, 8
        %s1382 = smul.addr %s1381, 8
        %s1383 = scalar_lea.vmem %s1, %s1382
        %p1384 = pneg %p131
        %p1385 = pneg %p128
        %p1386 = pneg %p152
        %p1387 = pneg %p149
        %p1388 = pneg %p173
        %p1389 = pneg %p170
        %p1390 = pneg %p194
        %p1391 = pneg %p191
        %p1392 = pneg %p215
        %p1393 = pneg %p212
        %p1394 = pneg %p236
        %p1395 = pneg %p233
        %p1396 = pneg %p257
        %p1397 = pneg %p254
        %p1398 = pneg %p278
        %p1399 = pneg %p275
        %p1400 = pneg %p299
        %p1401 = pneg %p296
        %p1402 = pneg %p320
        %p1403 = pneg %p317
        %p1404 = pneg %p341
        %p1405 = pneg %p338
        %p1406 = pneg %p362
        %p1407 = pneg %p359
        %p1408 = pneg %p383
        %p1409 = pneg %p380
        %p1410 = pneg %p404
        %p1411 = pneg %p401
        %p1412 = pneg %p425
        %p1413 = pneg %p422
        %p1414 = pneg %p446
        %p1415 = pneg %p443
        %p1416 = pneg %p467
        %p1417 = pneg %p464
        %p1418 = pneg %p488
        %p1419 = pneg %p485
        %p1420 = pneg %p509
        %p1421 = pneg %p506
        %p1422 = pneg %p530
        %p1423 = pneg %p527
        %p1424 = pneg %p551
        %p1425 = pneg %p548
        %p1426 = pneg %p572
        %p1427 = pneg %p569
        %p1428 = pneg %p593
        %p1429 = pneg %p590
        %p1430 = pneg %p614
        %p1431 = pneg %p611
        %p1432 = pneg %p635
        %p1433 = pneg %p632
        %p1434 = pneg %p656
        %p1435 = pneg %p653
        %p1436 = pneg %p677
        %p1437 = pneg %p674
        %p1438 = pneg %p698
        %p1439 = pneg %p695
        %p1440 = pneg %p719
        %p1441 = pneg %p716
        %p1442 = pneg %p740
        %p1443 = pneg %p737
        %p1444 = pneg %p761
        %p1445 = pneg %p758
        %p1446 = pneg %p782
        %p1447 = pneg %p779
        %p1448 = pneg %p803
        %p1449 = pneg %p800
        %p1450 = pneg %p824
        %p1451 = pneg %p821
        %p1452 = pneg %p845
        %p1453 = pneg %p842
        %p1454 = pneg %p866
        %p1455 = pneg %p863
        %p1456 = pneg %p887
        %p1457 = pneg %p884
        %p1458 = pneg %p908
        %p1459 = pneg %p905
        %p1460 = pneg %p929
        %p1461 = pneg %p926
        %p1462 = pneg %p950
        %p1463 = pneg %p947
        %p1464 = pneg %p971
        %p1465 = pneg %p968
        %p1466 = pneg %p992
        %p1467 = pneg %p989
        %p1468 = pneg %p1013
        %p1469 = pneg %p1010
        %p1470 = pneg %p1034
        %p1471 = pneg %p1031
        %p1472 = pneg %p1055
        %p1473 = pneg %p1052
        %p1474 = pneg %p1076
        %p1475 = pneg %p1073
        %p1476 = pneg %p1097
        %p1477 = pneg %p1094
        %p1478 = pneg %p1123
        %p1479 = pneg %p1120
        %p1480 = scmp.lt.s32.totalorder %s110, 1
        %s1481 = scalar_select %p1480, %s110, 1
        %s1482 = smul.addr %s1481, 8
        %s1483 = scalar_lea.vmem %s95, %s1482
        %p1484 = scmp.lt.s32.totalorder %s110, 1
        %s1485 = scalar_select %p1484, %s110, 1
        %s1486 = smul.addr %s1485, 8
        %s1487 = smul.addr %s1486, 8
        %s1488 = scalar_lea.vmem %s1, %s1487
        %p1489 = scmp.lt.s32.totalorder %s110, 1
        %s1490 = scalar_select %p1489, %s110, 1
        %s1491 = smul.addr %s1490, 8
        %s1492 = scalar_lea.vmem %s95, %s1491
        %v1494 = vld [vmem:[%s1488] sm:$0xff]
        %v1495 = vld [vmem:[%s1488 + $0x8] sm:$0xff]
        %v1496 = vld [vmem:[%s1488 + $0x10] sm:$0xff]
        %v1497 = vld [vmem:[%s1488 + $0x18] sm:$0xff]
        %v1498 = vld [vmem:[%s1488 + $0x20] sm:$0xff]
        %v1499 = vld [vmem:[%s1488 + $0x28] sm:$0xff]
        %v1500 = vld [vmem:[%s1488 + $0x30] sm:$0xff]
        %v1501 = vld [vmem:[%s1488 + $0x38] sm:$0xff]
        %v1502 = vld [vmem:[%s3] sm:$0xf]
        %v1503 = vld [vmem:[%s3 + $0x4] sm:$0xf]
        %v1504 = vld [vmem:[%s3 + $0x8] sm:$0xf]
        %v1505 = vld [vmem:[%s3 + $0xc] sm:$0xf]
        %v1506 = vld [vmem:[%s3 + $0x10] sm:$0xf]
        %v1507 = vld [vmem:[%s3 + $0x14] sm:$0xf]
        %v1508 = vpack.c.bf16 %v1495, %v1494
        %v1509 = vpack.c.bf16 %v1497, %v1496
        %v1510 = vpack.c.bf16 %v1499, %v1498
        %v1511 = vpack.c.bf16 %v1501, %v1500
        %v1512 = vld [vmem:[%s5] sm:$0x1]
        %v1514 = vperm.slane %v1512, 0
        %v1522 = vunpack.c.l.b16 %v1502
        %v1523 = vunpack.c.l.b16 %v1503
        %v1524 = vunpack.c.l.b16 %v1504
        %v1525 = vunpack.c.l.b16 %v1505
        %v1526 = vunpack.c.l.b16 %v1506
        %v1527 = vunpack.c.l.b16 %v1507
        %v1528 = vpack.c.b16 %v1523, %v1522
        %v1529 = vpack.c.b16 %v1525, %v1524
        %v1530 = vpack.c.b16 %v1527, %v1526
        %vm1534 = vcmask 392192
        %v1536 = vsel %vm1534, %v1508, 0
        %v1539 = vsel %vm1534, %v1509, 0
        %v1542 = vsel %vm1534, %v1510, 0
        %v1545 = vsel %vm1534, %v1511, 0
        %1547 = vmatpush.bf16.msra.mxu0 0
        %1548 = vmatpush.bf16.msra.mxu0 0
        %1549 = vmatpush.bf16.msra.mxu0 0
        %1550 = vmatpush.bf16.msra.mxu0 0
        %1551 = vmatpush.bf16.msra.mxu0 0
        %1552 = vmatpush.bf16.msra.mxu0 %v1530
        %1553 = vmatpush.bf16.msra.mxu0 %v1529
        %1554 = vmatpush.bf16.msra.mxu0 %v1528
        %1555 = vmatmul.bf16.gmra.mxu0 %v1536
        %v1556 = vpop.f32.mrf.mxu0
        %v1557 = vadd.f32 %v1514, %v1556
        %v1558 = vpop.f32.mrf.mxu0
        %v1559 = vadd.f32 %v1514, %v1558
        %1560 = vmatmul.bf16.gmra.mxu0 %v1539
        %v1561 = vpop.f32.mrf.mxu0
        %v1562 = vadd.f32 %v1514, %v1561
        %v1563 = vpop.f32.mrf.mxu0
        %v1564 = vadd.f32 %v1514, %v1563
        %1565 = vmatmul.bf16.gmra.mxu0 %v1542
        %v1566 = vpop.f32.mrf.mxu0
        %v1567 = vadd.f32 %v1514, %v1566
        %v1568 = vpop.f32.mrf.mxu0
        %v1569 = vadd.f32 %v1514, %v1568
        %1570 = vmatmul.bf16.gmra.mxu0 %v1545
        %v1571 = vpop.f32.mrf.mxu0
        %v1572 = vadd.f32 %v1514, %v1571
        %v1573 = vpop.f32.mrf.mxu0
        %v1574 = vadd.f32 %v1514, %v1573
        %1575 = vdwg.mxu0
        %v1576 = vld [vmem:[%s7] sm:$0x1]
        %v1577 = vld [vmem:[%s9] sm:$0x1]
        %vm1578 = vcmask 261120
        %v1579 = vsel %vm1578, %v1557, 0.0
        %1580 = vadd.xlane.f32.xlu0 %v1579
        %v1581 = vpop.xlane.xlu0 %1580
        %v1582 = vsel %vm1578, %v1559, 0.0
        %1583 = vadd.xlane.f32.xlu0 %v1582
        %v1584 = vpop.xlane.xlu0 %1583
        %v1585 = vsel %vm1578, %v1562, 0.0
        %1586 = vadd.xlane.f32.xlu0 %v1585
        %v1587 = vpop.xlane.xlu0 %1586
        %v1588 = vsel %vm1578, %v1564, 0.0
        %1589 = vadd.xlane.f32.xlu0 %v1588
        %v1590 = vpop.xlane.xlu0 %1589
        %v1591 = vsel %vm1578, %v1567, 0.0
        %1592 = vadd.xlane.f32.xlu0 %v1591
        %v1593 = vpop.xlane.xlu0 %1592
        %v1594 = vsel %vm1578, %v1569, 0.0
        %1595 = vadd.xlane.f32.xlu0 %v1594
        %v1596 = vpop.xlane.xlu0 %1595
        %v1597 = vsel %vm1578, %v1572, 0.0
        %1598 = vadd.xlane.f32.xlu0 %v1597
        %v1599 = vpop.xlane.xlu0 %1598
        %v1600 = vsel %vm1578, %v1574, 0.0
        %1601 = vadd.xlane.f32.xlu0 %v1600
        %v1602 = vpop.xlane.xlu0 %1601
        %v1603 = vrcp.pop 32.0
        %v1604 = vmul.f32 32.0, %v1603
        %v1605 = vsub.f32 1.0, %v1604
        %v1606 = vmul.f32 %v1603, %v1605
        %v1607 = vadd.f32 %v1603, %v1606
        %vm1608 = vweird.f32 %v1603
        %v1609 = vsel %vm1608, %v1603, %v1607
        %v1610 = vmul.f32 %v1581, %v1609
        %v1611 = vmul.f32 %v1584, %v1609
        %v1612 = vmul.f32 %v1587, %v1609
        %v1613 = vmul.f32 %v1590, %v1609
        %v1614 = vmul.f32 %v1593, %v1609
        %v1615 = vmul.f32 %v1596, %v1609
        %v1616 = vmul.f32 %v1599, %v1609
        %v1617 = vmul.f32 %v1602, %v1609
        %v1618 = vsub.f32 %v1557, %v1610
        %v1619 = vsub.f32 %v1559, %v1611
        %v1620 = vsub.f32 %v1562, %v1612
        %v1621 = vsub.f32 %v1564, %v1613
        %v1622 = vsub.f32 %v1567, %v1614
        %v1623 = vsub.f32 %v1569, %v1615
        %v1624 = vsub.f32 %v1572, %v1616
        %v1625 = vsub.f32 %v1574, %v1617
        %v1626 = vmul.f32 %v1618, %v1618
        %v1627 = vmul.f32 %v1619, %v1619
        %v1628 = vmul.f32 %v1620, %v1620
        %v1629 = vmul.f32 %v1621, %v1621
        %v1630 = vmul.f32 %v1622, %v1622
        %v1631 = vmul.f32 %v1623, %v1623
        %v1632 = vmul.f32 %v1624, %v1624
        %v1633 = vmul.f32 %v1625, %v1625
        %v1634 = vsel %vm1578, %v1626, 0.0
        %1635 = vadd.xlane.f32.xlu0 %v1634
        %v1636 = vpop.xlane.xlu0 %1635
        %v1637 = vsel %vm1578, %v1627, 0.0
        %1638 = vadd.xlane.f32.xlu0 %v1637
        %v1639 = vpop.xlane.xlu0 %1638
        %v1640 = vsel %vm1578, %v1628, 0.0
        %1641 = vadd.xlane.f32.xlu0 %v1640
        %v1642 = vpop.xlane.xlu0 %1641
        %v1643 = vsel %vm1578, %v1629, 0.0
        %1644 = vadd.xlane.f32.xlu0 %v1643
        %v1645 = vpop.xlane.xlu0 %1644
        %v1646 = vsel %vm1578, %v1630, 0.0
        %1647 = vadd.xlane.f32.xlu0 %v1646
        %v1648 = vpop.xlane.xlu0 %1647
        %v1649 = vsel %vm1578, %v1631, 0.0
        %1650 = vadd.xlane.f32.xlu0 %v1649
        %v1651 = vpop.xlane.xlu0 %1650
        %v1652 = vsel %vm1578, %v1632, 0.0
        %1653 = vadd.xlane.f32.xlu0 %v1652
        %v1654 = vpop.xlane.xlu0 %1653
        %v1655 = vsel %vm1578, %v1633, 0.0
        %1656 = vadd.xlane.f32.xlu0 %v1655
        %v1657 = vpop.xlane.xlu0 %1656
        %v1658 = vmul.f32 %v1636, %v1609
        %v1659 = vmul.f32 %v1639, %v1609
        %v1660 = vmul.f32 %v1642, %v1609
        %v1661 = vmul.f32 %v1645, %v1609
        %v1662 = vmul.f32 %v1648, %v1609
        %v1663 = vmul.f32 %v1651, %v1609
        %v1664 = vmul.f32 %v1654, %v1609
        %v1665 = vmul.f32 %v1657, %v1609
        %v1666 = vadd.f32 %v1658, 1e-05
        %v1667 = vadd.f32 %v1659, 1e-05
        %v1668 = vadd.f32 %v1660, 1e-05
        %v1669 = vadd.f32 %v1661, 1e-05
        %v1670 = vadd.f32 %v1662, 1e-05
        %v1671 = vadd.f32 %v1663, 1e-05
        %v1672 = vadd.f32 %v1664, 1e-05
        %v1673 = vadd.f32 %v1665, 1e-05
        %v1674 = vrsqrt.pop %v1666
        %v1675 = vmul.f32 %v1674, %v1666
        %v1676 = vmul.f32 %v1675, %v1674
        %v1677 = vmul.f32 0.5, %v1676
        %v1678 = vsub.f32 1.5, %v1677
        %v1679 = vmul.f32 %v1674, %v1678
        %vm1680 = vweird.f32 %v1666
        %vm1681 = vweird.f32 %v1674
        %vm1682 = vmor %vm1680, %vm1681
        %v1683 = vsel %vm1682, %v1674, %v1679
        %v1684 = vrsqrt.pop %v1667
        %v1685 = vmul.f32 %v1684, %v1667
        %v1686 = vmul.f32 %v1685, %v1684
        %v1687 = vmul.f32 0.5, %v1686
        %v1688 = vsub.f32 1.5, %v1687
        %v1689 = vmul.f32 %v1684, %v1688
        %vm1690 = vweird.f32 %v1667
        %vm1691 = vweird.f32 %v1684
        %vm1692 = vmor %vm1690, %vm1691
        %v1693 = vsel %vm1692, %v1684, %v1689
        %v1694 = vrsqrt.pop %v1668
        %v1695 = vmul.f32 %v1694, %v1668
        %v1696 = vmul.f32 %v1695, %v1694
        %v1697 = vmul.f32 0.5, %v1696
        %v1698 = vsub.f32 1.5, %v1697
        %v1699 = vmul.f32 %v1694, %v1698
        %vm1700 = vweird.f32 %v1668
        %vm1701 = vweird.f32 %v1694
        %vm1702 = vmor %vm1700, %vm1701
        %v1703 = vsel %vm1702, %v1694, %v1699
        %v1704 = vrsqrt.pop %v1669
        %v1705 = vmul.f32 %v1704, %v1669
        %v1706 = vmul.f32 %v1705, %v1704
        %v1707 = vmul.f32 0.5, %v1706
        %v1708 = vsub.f32 1.5, %v1707
        %v1709 = vmul.f32 %v1704, %v1708
        %vm1710 = vweird.f32 %v1669
        %vm1711 = vweird.f32 %v1704
        %vm1712 = vmor %vm1710, %vm1711
        %v1713 = vsel %vm1712, %v1704, %v1709
        %v1714 = vrsqrt.pop %v1670
        %v1715 = vmul.f32 %v1714, %v1670
        %v1716 = vmul.f32 %v1715, %v1714
        %v1717 = vmul.f32 0.5, %v1716
        %v1718 = vsub.f32 1.5, %v1717
        %v1719 = vmul.f32 %v1714, %v1718
        %vm1720 = vweird.f32 %v1670
        %vm1721 = vweird.f32 %v1714
        %vm1722 = vmor %vm1720, %vm1721
        %v1723 = vsel %vm1722, %v1714, %v1719
        %v1724 = vrsqrt.pop %v1671
        %v1725 = vmul.f32 %v1724, %v1671
        %v1726 = vmul.f32 %v1725, %v1724
        %v1727 = vmul.f32 0.5, %v1726
        %v1728 = vsub.f32 1.5, %v1727
        %v1729 = vmul.f32 %v1724, %v1728
        %vm1730 = vweird.f32 %v1671
        %vm1731 = vweird.f32 %v1724
        %vm1732 = vmor %vm1730, %vm1731
        %v1733 = vsel %vm1732, %v1724, %v1729
        %v1734 = vrsqrt.pop %v1672
        %v1735 = vmul.f32 %v1734, %v1672
        %v1736 = vmul.f32 %v1735, %v1734
        %v1737 = vmul.f32 0.5, %v1736
        %v1738 = vsub.f32 1.5, %v1737
        %v1739 = vmul.f32 %v1734, %v1738
        %vm1740 = vweird.f32 %v1672
        %vm1741 = vweird.f32 %v1734
        %vm1742 = vmor %vm1740, %vm1741
        %v1743 = vsel %vm1742, %v1734, %v1739
        %v1744 = vrsqrt.pop %v1673
        %v1745 = vmul.f32 %v1744, %v1673
        %v1746 = vmul.f32 %v1745, %v1744
        %v1747 = vmul.f32 0.5, %v1746
        %v1748 = vsub.f32 1.5, %v1747
        %v1749 = vmul.f32 %v1744, %v1748
        %vm1750 = vweird.f32 %v1673
        %vm1751 = vweird.f32 %v1744
        %vm1752 = vmor %vm1750, %vm1751
        %v1753 = vsel %vm1752, %v1744, %v1749
        %v1754 = vmul.f32 %v1618, %v1683
        %v1755 = vmul.f32 %v1619, %v1693
        %v1756 = vmul.f32 %v1620, %v1703
        %v1757 = vmul.f32 %v1621, %v1713
        %v1758 = vmul.f32 %v1622, %v1723
        %v1759 = vmul.f32 %v1623, %v1733
        %v1760 = vmul.f32 %v1624, %v1743
        %v1761 = vmul.f32 %v1625, %v1753
        %v1763 = vperm.slane %v1576, 0
        %v1765 = vmul.f32 %v1754, %v1763
        %v1766 = vmul.f32 %v1755, %v1763
        %v1767 = vmul.f32 %v1756, %v1763
        %v1768 = vmul.f32 %v1757, %v1763
        %v1769 = vmul.f32 %v1758, %v1763
        %v1770 = vmul.f32 %v1759, %v1763
        %v1771 = vmul.f32 %v1760, %v1763
        %v1772 = vmul.f32 %v1761, %v1763
        %v1774 = vperm.slane %v1577, 0
        %v1776 = vadd.f32 %v1765, %v1774
        %v1777 = vadd.f32 %v1766, %v1774
        %v1778 = vadd.f32 %v1767, %v1774
        %v1779 = vadd.f32 %v1768, %v1774
        %v1780 = vadd.f32 %v1769, %v1774
        %v1781 = vadd.f32 %v1770, %v1774
        %v1782 = vadd.f32 %v1771, %v1774
        %v1783 = vadd.f32 %v1772, %v1774
        %v1784 = vsel %vm1578, %v1776, 0.0
        %1785 = vadd.xlane.f32.xlu0 %v1784
        %v1786 = vpop.xlane.xlu0 %1785
        %v1787 = vsel %vm1578, %v1777, 0.0
        %1788 = vadd.xlane.f32.xlu0 %v1787
        %v1789 = vpop.xlane.xlu0 %1788
        %v1790 = vsel %vm1578, %v1778, 0.0
        %1791 = vadd.xlane.f32.xlu0 %v1790
        %v1792 = vpop.xlane.xlu0 %1791
        %v1793 = vsel %vm1578, %v1779, 0.0
        %1794 = vadd.xlane.f32.xlu0 %v1793
        %v1795 = vpop.xlane.xlu0 %1794
        %v1796 = vsel %vm1578, %v1780, 0.0
        %1797 = vadd.xlane.f32.xlu0 %v1796
        %v1798 = vpop.xlane.xlu0 %1797
        %v1799 = vsel %vm1578, %v1781, 0.0
        %1800 = vadd.xlane.f32.xlu0 %v1799
        %v1801 = vpop.xlane.xlu0 %1800
        %v1802 = vsel %vm1578, %v1782, 0.0
        %1803 = vadd.xlane.f32.xlu0 %v1802
        %v1804 = vpop.xlane.xlu0 %1803
        %v1805 = vsel %vm1578, %v1783, 0.0
        %1806 = vadd.xlane.f32.xlu0 %v1805
        %v1807 = vpop.xlane.xlu0 %1806
        %v1808 = vmul.f32 %v1786, %v1609
        %v1809 = vmul.f32 %v1789, %v1609
        %v1810 = vmul.f32 %v1792, %v1609
        %v1811 = vmul.f32 %v1795, %v1609
        %v1812 = vmul.f32 %v1798, %v1609
        %v1813 = vmul.f32 %v1801, %v1609
        %v1814 = vmul.f32 %v1804, %v1609
        %v1815 = vmul.f32 %v1807, %v1609
        %v1816 = vsub.f32 %v1776, %v1808
        %v1817 = vsub.f32 %v1777, %v1809
        %v1818 = vsub.f32 %v1778, %v1810
        %v1819 = vsub.f32 %v1779, %v1811
        %v1820 = vsub.f32 %v1780, %v1812
        %v1821 = vsub.f32 %v1781, %v1813
        %v1822 = vsub.f32 %v1782, %v1814
        %v1823 = vsub.f32 %v1783, %v1815
        %v1824 = vmul.f32 %v1816, %v1816
        %v1825 = vmul.f32 %v1817, %v1817
        %v1826 = vmul.f32 %v1818, %v1818
        %v1827 = vmul.f32 %v1819, %v1819
        %v1828 = vmul.f32 %v1820, %v1820
        %v1829 = vmul.f32 %v1821, %v1821
        %v1830 = vmul.f32 %v1822, %v1822
        %v1831 = vmul.f32 %v1823, %v1823
        %v1832 = vsel %vm1578, %v1824, 0.0
        %1833 = vadd.xlane.f32.xlu0 %v1832
        %v1834 = vpop.xlane.xlu0 %1833
        %v1835 = vsel %vm1578, %v1825, 0.0
        %1836 = vadd.xlane.f32.xlu0 %v1835
        %v1837 = vpop.xlane.xlu0 %1836
        %v1838 = vsel %vm1578, %v1826, 0.0
        %1839 = vadd.xlane.f32.xlu0 %v1838
        %v1840 = vpop.xlane.xlu0 %1839
        %v1841 = vsel %vm1578, %v1827, 0.0
        %1842 = vadd.xlane.f32.xlu0 %v1841
        %v1843 = vpop.xlane.xlu0 %1842
        %v1844 = vsel %vm1578, %v1828, 0.0
        %1845 = vadd.xlane.f32.xlu0 %v1844
        %v1846 = vpop.xlane.xlu0 %1845
        %v1847 = vsel %vm1578, %v1829, 0.0
        %1848 = vadd.xlane.f32.xlu0 %v1847
        %v1849 = vpop.xlane.xlu0 %1848
        %v1850 = vsel %vm1578, %v1830, 0.0
        %1851 = vadd.xlane.f32.xlu0 %v1850
        %v1852 = vpop.xlane.xlu0 %1851
        %v1853 = vsel %vm1578, %v1831, 0.0
        %1854 = vadd.xlane.f32.xlu0 %v1853
        %v1855 = vpop.xlane.xlu0 %1854
        %v1856 = vmul.f32 %v1834, %v1609
        %v1857 = vmul.f32 %v1837, %v1609
        %v1858 = vmul.f32 %v1840, %v1609
        %v1859 = vmul.f32 %v1843, %v1609
        %v1860 = vmul.f32 %v1846, %v1609
        %v1861 = vmul.f32 %v1849, %v1609
        %v1862 = vmul.f32 %v1852, %v1609
        %v1863 = vmul.f32 %v1855, %v1609
        %v1864 = vadd.f32 %v1856, 1e-05
        %v1865 = vadd.f32 %v1857, 1e-05
        %v1866 = vadd.f32 %v1858, 1e-05
        %v1867 = vadd.f32 %v1859, 1e-05
        %v1868 = vadd.f32 %v1860, 1e-05
        %v1869 = vadd.f32 %v1861, 1e-05
        %v1870 = vadd.f32 %v1862, 1e-05
        %v1871 = vadd.f32 %v1863, 1e-05
        %v1872 = vrsqrt.pop %v1864
        %v1873 = vmul.f32 %v1872, %v1864
        %v1874 = vmul.f32 %v1873, %v1872
        %v1875 = vmul.f32 0.5, %v1874
        %v1876 = vsub.f32 1.5, %v1875
        %v1877 = vmul.f32 %v1872, %v1876
        %vm1878 = vweird.f32 %v1864
        %vm1879 = vweird.f32 %v1872
        %vm1880 = vmor %vm1878, %vm1879
        %v1881 = vsel %vm1880, %v1872, %v1877
        %v1882 = vrsqrt.pop %v1865
        %v1883 = vmul.f32 %v1882, %v1865
        %v1884 = vmul.f32 %v1883, %v1882
        %v1885 = vmul.f32 0.5, %v1884
        %v1886 = vsub.f32 1.5, %v1885
        %v1887 = vmul.f32 %v1882, %v1886
        %vm1888 = vweird.f32 %v1865
        %vm1889 = vweird.f32 %v1882
        %vm1890 = vmor %vm1888, %vm1889
        %v1891 = vsel %vm1890, %v1882, %v1887
        %v1892 = vrsqrt.pop %v1866
        %v1893 = vmul.f32 %v1892, %v1866
        %v1894 = vmul.f32 %v1893, %v1892
        %v1895 = vmul.f32 0.5, %v1894
        %v1896 = vsub.f32 1.5, %v1895
        %v1897 = vmul.f32 %v1892, %v1896
        %vm1898 = vweird.f32 %v1866
        %vm1899 = vweird.f32 %v1892
        %vm1900 = vmor %vm1898, %vm1899
        %v1901 = vsel %vm1900, %v1892, %v1897
        %v1902 = vrsqrt.pop %v1867
        %v1903 = vmul.f32 %v1902, %v1867
        %v1904 = vmul.f32 %v1903, %v1902
        %v1905 = vmul.f32 0.5, %v1904
        %v1906 = vsub.f32 1.5, %v1905
        %v1907 = vmul.f32 %v1902, %v1906
        %vm1908 = vweird.f32 %v1867
        %vm1909 = vweird.f32 %v1902
        %vm1910 = vmor %vm1908, %vm1909
        %v1911 = vsel %vm1910, %v1902, %v1907
        %v1912 = vrsqrt.pop %v1868
        %v1913 = vmul.f32 %v1912, %v1868
        %v1914 = vmul.f32 %v1913, %v1912
        %v1915 = vmul.f32 0.5, %v1914
        %v1916 = vsub.f32 1.5, %v1915
        %v1917 = vmul.f32 %v1912, %v1916
        %vm1918 = vweird.f32 %v1868
        %vm1919 = vweird.f32 %v1912
        %vm1920 = vmor %vm1918, %vm1919
        %v1921 = vsel %vm1920, %v1912, %v1917
        %v1922 = vrsqrt.pop %v1869
        %v1923 = vmul.f32 %v1922, %v1869
        %v1924 = vmul.f32 %v1923, %v1922
        %v1925 = vmul.f32 0.5, %v1924
        %v1926 = vsub.f32 1.5, %v1925
        %v1927 = vmul.f32 %v1922, %v1926
        %vm1928 = vweird.f32 %v1869
        %vm1929 = vweird.f32 %v1922
        %vm1930 = vmor %vm1928, %vm1929
        %v1931 = vsel %vm1930, %v1922, %v1927
        %v1932 = vrsqrt.pop %v1870
        %v1933 = vmul.f32 %v1932, %v1870
        %v1934 = vmul.f32 %v1933, %v1932
        %v1935 = vmul.f32 0.5, %v1934
        %v1936 = vsub.f32 1.5, %v1935
        %v1937 = vmul.f32 %v1932, %v1936
        %vm1938 = vweird.f32 %v1870
        %vm1939 = vweird.f32 %v1932
        %vm1940 = vmor %vm1938, %vm1939
        %v1941 = vsel %vm1940, %v1932, %v1937
        %v1942 = vrsqrt.pop %v1871
        %v1943 = vmul.f32 %v1942, %v1871
        %v1944 = vmul.f32 %v1943, %v1942
        %v1945 = vmul.f32 0.5, %v1944
        %v1946 = vsub.f32 1.5, %v1945
        %v1947 = vmul.f32 %v1942, %v1946
        %vm1948 = vweird.f32 %v1871
        %vm1949 = vweird.f32 %v1942
        %vm1950 = vmor %vm1948, %vm1949
        %v1951 = vsel %vm1950, %v1942, %v1947
        %v1952 = vmul.f32 %v1816, %v1881
        %v1953 = vmul.f32 %v1817, %v1891
        %v1954 = vmul.f32 %v1818, %v1901
        %v1955 = vmul.f32 %v1819, %v1911
        %v1956 = vmul.f32 %v1820, %v1921
        %v1957 = vmul.f32 %v1821, %v1931
        %v1958 = vmul.f32 %v1822, %v1941
        %v1959 = vmul.f32 %v1823, %v1951
        %v1960 = vld [vmem:[%s11] sm:$0xf]
        %v1961 = vld [vmem:[%s11 + $0x4] sm:$0xf]
        %v1962 = vld [vmem:[%s11 + $0x8] sm:$0xf]
        %v1963 = vld [vmem:[%s11 + $0xc] sm:$0xf]
        %v1964 = vpack.c.bf16 %v1953, %v1952
        %v1965 = vpack.c.bf16 %v1955, %v1954
        %v1966 = vpack.c.bf16 %v1957, %v1956
        %v1967 = vpack.c.bf16 %v1959, %v1958
        %v1968 = vld [vmem:[%s13] sm:$0x1]
        %v1970 = vperm.slane %v1968, 0
        %v1976 = vunpack.c.l.b16 %v1960
        %v1977 = vunpack.c.l.b16 %v1961
        %v1978 = vunpack.c.l.b16 %v1962
        %v1979 = vunpack.c.l.b16 %v1963
        %v1980 = vpack.c.b16 %v1977, %v1976
        %v1981 = vpack.c.b16 %v1979, %v1978
        %v1985 = vsel %vm1578, %v1964, 0
        %v1988 = vsel %vm1578, %v1965, 0
        %v1991 = vsel %vm1578, %v1966, 0
        %v1994 = vsel %vm1578, %v1967, 0
        %1996 = vmatpush.bf16.msra.mxu0 0
        %1997 = vmatpush.bf16.msra.mxu0 0
        %1998 = vmatpush.bf16.msra.mxu0 0
        %1999 = vmatpush.bf16.msra.mxu0 0
        %2000 = vmatpush.bf16.msra.mxu0 0
        %2001 = vmatpush.bf16.msra.mxu0 0
        %2002 = vmatpush.bf16.msra.mxu0 %v1981
        %2003 = vmatpush.bf16.msra.mxu0 %v1980
        %2004 = vmatmul.bf16.gmra.mxu0 %v1985
        %v2005 = vpop.f32.mrf.mxu0
        %v2006 = vadd.f32 %v1970, %v2005
        %v2007 = vpop.f32.mrf.mxu0
        %v2008 = vadd.f32 %v1970, %v2007
        %2009 = vmatmul.bf16.gmra.mxu0 %v1988
        %v2010 = vpop.f32.mrf.mxu0
        %v2011 = vadd.f32 %v1970, %v2010
        %v2012 = vpop.f32.mrf.mxu0
        %v2013 = vadd.f32 %v1970, %v2012
        %2014 = vmatmul.bf16.gmra.mxu0 %v1991
        %v2015 = vpop.f32.mrf.mxu0
        %v2016 = vadd.f32 %v1970, %v2015
        %v2017 = vpop.f32.mrf.mxu0
        %v2018 = vadd.f32 %v1970, %v2017
        %2019 = vmatmul.bf16.gmra.mxu0 %v1994
        %v2020 = vpop.f32.mrf.mxu0
        %v2021 = vadd.f32 %v1970, %v2020
        %v2022 = vpop.f32.mrf.mxu0
        %v2023 = vadd.f32 %v1970, %v2022
        %2024 = vdwg.mxu0
        %v2025 = vpack.c.bf16 %v2008, %v2006
        %v2026 = vpack.c.bf16 %v2013, %v2011
        %v2027 = vpack.c.bf16 %v2018, %v2016
        %v2028 = vpack.c.bf16 %v2023, %v2021
        %v2029 = vld [vmem:[%s19] sm:$0xff]
        %v2030 = vld [vmem:[%s19 + $0x8] sm:$0xff]
        %v2031 = vld [vmem:[%s19 + $0x10] sm:$0xff]
        %v2032 = vld [vmem:[%s19 + $0x18] sm:$0xff]
        %v2033 = vld [vmem:[%s19 + $0x20] sm:$0xff]
        %v2034 = vld [vmem:[%s19 + $0x28] sm:$0xff]
        %v2035 = vld [vmem:[%s19 + $0x30] sm:$0xff]
        %v2036 = vld [vmem:[%s19 + $0x38] sm:$0xff]
        %2041 = vrot.lane.b32.xlu0 %v2025, 96
        %v2042 = vpop.permute.xlu0 %2041
        %2043 = vrot.lane.b32.xlu0 %v2026, 96
        %v2044 = vpop.permute.xlu0 %2043
        %2045 = vrot.lane.b32.xlu0 %v2027, 96
        %v2046 = vpop.permute.xlu0 %2045
        %2047 = vrot.lane.b32.xlu0 %v2028, 96
        %v2048 = vpop.permute.xlu0 %2047
        %vm2049 = vcmask 130048
        %v2051 = vsel %vm2049, %v2025, 0
        %v2054 = vsel %vm2049, %v2026, 0
        %v2057 = vsel %vm2049, %v2027, 0
        %v2060 = vsel %vm2049, %v2028, 0
        %v2063 = vsel %vm2049, %v2042, 0
        %v2066 = vsel %vm2049, %v2044, 0
        %v2069 = vsel %vm2049, %v2046, 0
        %v2072 = vsel %vm2049, %v2048, 0
        %2074 = vmatpush.bf16.xpose.msra.mxu0 0
        %2075 = vmatpush.bf16.xpose.msra.mxu0 0
        %2076 = vmatpush.bf16.xpose.msra.mxu0 0
        %2077 = vmatpush.bf16.xpose.msra.mxu0 0
        %2078 = vmatpush.bf16.xpose.msra.mxu0 %v2072
        %2079 = vmatpush.bf16.xpose.msra.mxu0 %v2069
        %2080 = vmatpush.bf16.xpose.msra.mxu0 %v2066
        %2081 = vmatpush.bf16.xpose.msra.mxu0 %v2063
        %2082 = vmatmul.bf16.gmra.mxu0 %v2051
        %v2083 = vpop.f32.mrf.mxu0
        %v2084 = vadd.f32 %v2029, %v2083
        %v2085 = vpop.f32.mrf.mxu0
        %v2086 = vadd.f32 %v2030, %v2085
        %2087 = vmatmul.bf16.gmra.mxu0 %v2054
        %v2088 = vpop.f32.mrf.mxu0
        %v2089 = vadd.f32 %v2031, %v2088
        %v2090 = vpop.f32.mrf.mxu0
        %v2091 = vadd.f32 %v2032, %v2090
        %2092 = vmatmul.bf16.gmra.mxu0 %v2057
        %v2093 = vpop.f32.mrf.mxu0
        %v2094 = vadd.f32 %v2033, %v2093
        %v2095 = vpop.f32.mrf.mxu0
        %v2096 = vadd.f32 %v2034, %v2095
        %2097 = vmatmul.bf16.gmra.mxu0 %v2060
        %v2098 = vpop.f32.mrf.mxu0
        %v2099 = vadd.f32 %v2035, %v2098
        %v2100 = vpop.f32.mrf.mxu0
        %v2101 = vadd.f32 %v2036, %v2100
        %2102 = vdwg.mxu0
        %vm2103 = vcmask 523264
        %v2104 = vsel %vm2103, %v2084, -inf
        %2105 = vmax.xlane.f32.xlu0 %v2104
        %v2106 = vpop.xlane.xlu0 %2105
        %v2107 = vsel %vm2103, %v2086, -inf
        %2108 = vmax.xlane.f32.xlu0 %v2107
        %v2109 = vpop.xlane.xlu0 %2108
        %v2110 = vsel %vm2103, %v2089, -inf
        %2111 = vmax.xlane.f32.xlu0 %v2110
        %v2112 = vpop.xlane.xlu0 %2111
        %v2113 = vsel %vm2103, %v2091, -inf
        %2114 = vmax.xlane.f32.xlu0 %v2113
        %v2115 = vpop.xlane.xlu0 %2114
        %v2116 = vsel %vm2103, %v2094, -inf
        %2117 = vmax.xlane.f32.xlu0 %v2116
        %v2118 = vpop.xlane.xlu0 %2117
        %v2119 = vsel %vm2103, %v2096, -inf
        %2120 = vmax.xlane.f32.xlu0 %v2119
        %v2121 = vpop.xlane.xlu0 %2120
        %v2122 = vsel %vm2103, %v2099, -inf
        %2123 = vmax.xlane.f32.xlu0 %v2122
        %v2124 = vpop.xlane.xlu0 %2123
        %v2125 = vsel %vm2103, %v2101, -inf
        %2126 = vmax.xlane.f32.xlu0 %v2125
        %v2127 = vpop.xlane.xlu0 %2126
        %v2128 = vsub.f32 %v2084, %v2106
        %v2129 = vsub.f32 %v2086, %v2109
        %v2130 = vsub.f32 %v2089, %v2112
        %v2131 = vsub.f32 %v2091, %v2115
        %v2132 = vsub.f32 %v2094, %v2118
        %v2133 = vsub.f32 %v2096, %v2121
        %v2134 = vsub.f32 %v2099, %v2124
        %v2135 = vsub.f32 %v2101, %v2127
        %v2136 = vmul.f32 %v2128, 1.442695
        %v2137 = vpow.pop %v2136
        %v2138 = vmul.f32 %v2129, 1.442695
        %v2139 = vpow.pop %v2138
        %v2140 = vmul.f32 %v2130, 1.442695
        %v2141 = vpow.pop %v2140
        %v2142 = vmul.f32 %v2131, 1.442695
        %v2143 = vpow.pop %v2142
        %v2144 = vmul.f32 %v2132, 1.442695
        %v2145 = vpow.pop %v2144
        %v2146 = vmul.f32 %v2133, 1.442695
        %v2147 = vpow.pop %v2146
        %v2148 = vmul.f32 %v2134, 1.442695
        %v2149 = vpow.pop %v2148
        %v2150 = vmul.f32 %v2135, 1.442695
        %v2151 = vpow.pop %v2150
        %v2152 = vsel %vm2103, %v2137, 0.0
        %2153 = vadd.xlane.f32.xlu0 %v2152
        %v2154 = vpop.xlane.xlu0 %2153
        %v2155 = vsel %vm2103, %v2139, 0.0
        %2156 = vadd.xlane.f32.xlu0 %v2155
        %v2157 = vpop.xlane.xlu0 %2156
        %v2158 = vsel %vm2103, %v2141, 0.0
        %2159 = vadd.xlane.f32.xlu0 %v2158
        %v2160 = vpop.xlane.xlu0 %2159
        %v2161 = vsel %vm2103, %v2143, 0.0
        %2162 = vadd.xlane.f32.xlu0 %v2161
        %v2163 = vpop.xlane.xlu0 %2162
        %v2164 = vsel %vm2103, %v2145, 0.0
        %2165 = vadd.xlane.f32.xlu0 %v2164
        %v2166 = vpop.xlane.xlu0 %2165
        %v2167 = vsel %vm2103, %v2147, 0.0
        %2168 = vadd.xlane.f32.xlu0 %v2167
        %v2169 = vpop.xlane.xlu0 %2168
        %v2170 = vsel %vm2103, %v2149, 0.0
        %2171 = vadd.xlane.f32.xlu0 %v2170
        %v2172 = vpop.xlane.xlu0 %2171
        %v2173 = vsel %vm2103, %v2151, 0.0
        %2174 = vadd.xlane.f32.xlu0 %v2173
        %v2175 = vpop.xlane.xlu0 %2174
        %v2176 = vrcp.pop %v2154
        %v2177 = vrcp.pop %v2157
        %v2178 = vrcp.pop %v2160
        %v2179 = vrcp.pop %v2163
        %v2180 = vrcp.pop %v2166
        %v2181 = vrcp.pop %v2169
        %v2182 = vrcp.pop %v2172
        %v2183 = vrcp.pop %v2175
        %v2184 = vmul.f32 %v2137, %v2176
        %v2185 = vmul.f32 %v2139, %v2177
        %v2186 = vmul.f32 %v2141, %v2178
        %v2187 = vmul.f32 %v2143, %v2179
        %v2188 = vmul.f32 %v2145, %v2180
        %v2189 = vmul.f32 %v2147, %v2181
        %v2190 = vmul.f32 %v2149, %v2182
        %v2191 = vmul.f32 %v2151, %v2183
        %v2192 = vpack.c.bf16 %v2185, %v2184
        %v2193 = vpack.c.bf16 %v2187, %v2186
        %v2194 = vpack.c.bf16 %v2189, %v2188
        %v2195 = vpack.c.bf16 %v2191, %v2190
        %2196 = vrot.lane.b32.xlu0 %v2025, 64
        %v2197 = vpop.permute.xlu0 %2196
        %2198 = vrot.lane.b32.xlu0 %v2026, 64
        %v2199 = vpop.permute.xlu0 %2198
        %2200 = vrot.lane.b32.xlu0 %v2027, 64
        %v2201 = vpop.permute.xlu0 %2200
        %2202 = vrot.lane.b32.xlu0 %v2028, 64
        %v2203 = vpop.permute.xlu0 %2202
        %v2209 = vsel %vm2103, %v2192, 0
        %v2212 = vsel %vm2103, %v2193, 0
        %v2215 = vsel %vm2103, %v2194, 0
        %v2218 = vsel %vm2103, %v2195, 0
        %2220 = vmatpush.bf16.msra.mxu0 0
        %2221 = vmatpush.bf16.msra.mxu0 0
        %2222 = vmatpush.bf16.msra.mxu0 0
        %2223 = vmatpush.bf16.msra.mxu0 0
        %2224 = vmatpush.bf16.msra.mxu0 %v2203
        %2225 = vmatpush.bf16.msra.mxu0 %v2201
        %2226 = vmatpush.bf16.msra.mxu0 %v2199
        %2227 = vmatpush.bf16.msra.mxu0 %v2197
        %2228 = vmatmul.bf16.gmra.mxu0 %v2209
        %v2229 = vpop.f32.mrf.mxu0
        %v2230 = vadd.f32 0.0, %v2229
        %v2231 = vpop.f32.mrf.mxu0
        %v2232 = vadd.f32 0.0, %v2231
        %2233 = vmatmul.bf16.gmra.mxu0 %v2212
        %v2234 = vpop.f32.mrf.mxu0
        %v2235 = vadd.f32 0.0, %v2234
        %v2236 = vpop.f32.mrf.mxu0
        %v2237 = vadd.f32 0.0, %v2236
        %2238 = vmatmul.bf16.gmra.mxu0 %v2215
        %v2239 = vpop.f32.mrf.mxu0
        %v2240 = vadd.f32 0.0, %v2239
        %v2241 = vpop.f32.mrf.mxu0
        %v2242 = vadd.f32 0.0, %v2241
        %2243 = vmatmul.bf16.gmra.mxu0 %v2218
        %v2244 = vpop.f32.mrf.mxu0
        %v2245 = vadd.f32 0.0, %v2244
        %v2246 = vpop.f32.mrf.mxu0
        %v2247 = vadd.f32 0.0, %v2246
        %2248 = vdwg.mxu0
        %v2249 = vld [vmem:[%s15] sm:$0xf]
        %v2250 = vld [vmem:[%s15 + $0x4] sm:$0xf]
        %v2251 = vpack.c.bf16 %v2232, %v2230
        %v2252 = vpack.c.bf16 %v2237, %v2235
        %v2253 = vpack.c.bf16 %v2242, %v2240
        %v2254 = vpack.c.bf16 %v2247, %v2245
        %s2255 = scalar_lea.vmem %s19, 64
        %v2256 = vld [vmem:[%s2255] sm:$0xff]
        %v2257 = vld [vmem:[%s2255 + $0x8] sm:$0xff]
        %v2258 = vld [vmem:[%s2255 + $0x10] sm:$0xff]
        %v2259 = vld [vmem:[%s2255 + $0x18] sm:$0xff]
        %v2260 = vld [vmem:[%s2255 + $0x20] sm:$0xff]
        %v2261 = vld [vmem:[%s2255 + $0x28] sm:$0xff]
        %v2262 = vld [vmem:[%s2255 + $0x30] sm:$0xff]
        %v2263 = vld [vmem:[%s2255 + $0x38] sm:$0xff]
        %2264 = vrot.lane.b32.xlu0 %v2025, 112
        %v2265 = vpop.permute.xlu0 %2264
        %2266 = vrot.lane.b32.xlu0 %v2026, 112
        %v2267 = vpop.permute.xlu0 %2266
        %2268 = vrot.lane.b32.xlu0 %v2027, 112
        %v2269 = vpop.permute.xlu0 %2268
        %2270 = vrot.lane.b32.xlu0 %v2028, 112
        %v2271 = vpop.permute.xlu0 %2270
        %2272 = vrot.lane.b32.xlu0 %v2025, 80
        %v2273 = vpop.permute.xlu0 %2272
        %2274 = vrot.lane.b32.xlu0 %v2026, 80
        %v2275 = vpop.permute.xlu0 %2274
        %2276 = vrot.lane.b32.xlu0 %v2027, 80
        %v2277 = vpop.permute.xlu0 %2276
        %2278 = vrot.lane.b32.xlu0 %v2028, 80
        %v2279 = vpop.permute.xlu0 %2278
        %v2281 = vsel %vm2049, %v2265, 0
        %v2284 = vsel %vm2049, %v2267, 0
        %v2287 = vsel %vm2049, %v2269, 0
        %v2290 = vsel %vm2049, %v2271, 0
        %v2293 = vsel %vm2049, %v2273, 0
        %v2296 = vsel %vm2049, %v2275, 0
        %v2299 = vsel %vm2049, %v2277, 0
        %v2302 = vsel %vm2049, %v2279, 0
        %2304 = vmatpush.bf16.xpose.msra.mxu0 0
        %2305 = vmatpush.bf16.xpose.msra.mxu0 0
        %2306 = vmatpush.bf16.xpose.msra.mxu0 0
        %2307 = vmatpush.bf16.xpose.msra.mxu0 0
        %2308 = vmatpush.bf16.xpose.msra.mxu0 %v2302
        %2309 = vmatpush.bf16.xpose.msra.mxu0 %v2299
        %2310 = vmatpush.bf16.xpose.msra.mxu0 %v2296
        %2311 = vmatpush.bf16.xpose.msra.mxu0 %v2293
        %2312 = vmatmul.bf16.gmra.mxu0 %v2281
        %v2313 = vpop.f32.mrf.mxu0
        %v2314 = vadd.f32 %v2256, %v2313
        %v2315 = vpop.f32.mrf.mxu0
        %v2316 = vadd.f32 %v2257, %v2315
        %2317 = vmatmul.bf16.gmra.mxu0 %v2284
        %v2318 = vpop.f32.mrf.mxu0
        %v2319 = vadd.f32 %v2258, %v2318
        %v2320 = vpop.f32.mrf.mxu0
        %v2321 = vadd.f32 %v2259, %v2320
        %2322 = vmatmul.bf16.gmra.mxu0 %v2287
        %v2323 = vpop.f32.mrf.mxu0
        %v2324 = vadd.f32 %v2260, %v2323
        %v2325 = vpop.f32.mrf.mxu0
        %v2326 = vadd.f32 %v2261, %v2325
        %2327 = vmatmul.bf16.gmra.mxu0 %v2290
        %v2328 = vpop.f32.mrf.mxu0
        %v2329 = vadd.f32 %v2262, %v2328
        %v2330 = vpop.f32.mrf.mxu0
        %v2331 = vadd.f32 %v2263, %v2330
        %2332 = vdwg.mxu0
        %v2333 = vsel %vm2103, %v2314, -inf
        %2334 = vmax.xlane.f32.xlu0 %v2333
        %v2335 = vpop.xlane.xlu0 %2334
        %v2336 = vsel %vm2103, %v2316, -inf
        %2337 = vmax.xlane.f32.xlu0 %v2336
        %v2338 = vpop.xlane.xlu0 %2337
        %v2339 = vsel %vm2103, %v2319, -inf
        %2340 = vmax.xlane.f32.xlu0 %v2339
        %v2341 = vpop.xlane.xlu0 %2340
        %v2342 = vsel %vm2103, %v2321, -inf
        %2343 = vmax.xlane.f32.xlu0 %v2342
        %v2344 = vpop.xlane.xlu0 %2343
        %v2345 = vsel %vm2103, %v2324, -inf
        %2346 = vmax.xlane.f32.xlu0 %v2345
        %v2347 = vpop.xlane.xlu0 %2346
        %v2348 = vsel %vm2103, %v2326, -inf
        %2349 = vmax.xlane.f32.xlu0 %v2348
        %v2350 = vpop.xlane.xlu0 %2349
        %v2351 = vsel %vm2103, %v2329, -inf
        %2352 = vmax.xlane.f32.xlu0 %v2351
        %v2353 = vpop.xlane.xlu0 %2352
        %v2354 = vsel %vm2103, %v2331, -inf
        %2355 = vmax.xlane.f32.xlu0 %v2354
        %v2356 = vpop.xlane.xlu0 %2355
        %v2357 = vsub.f32 %v2314, %v2335
        %v2358 = vsub.f32 %v2316, %v2338
        %v2359 = vsub.f32 %v2319, %v2341
        %v2360 = vsub.f32 %v2321, %v2344
        %v2361 = vsub.f32 %v2324, %v2347
        %v2362 = vsub.f32 %v2326, %v2350
        %v2363 = vsub.f32 %v2329, %v2353
        %v2364 = vsub.f32 %v2331, %v2356
        %v2365 = vmul.f32 %v2357, 1.442695
        %v2366 = vpow.pop %v2365
        %v2367 = vmul.f32 %v2358, 1.442695
        %v2368 = vpow.pop %v2367
        %v2369 = vmul.f32 %v2359, 1.442695
        %v2370 = vpow.pop %v2369
        %v2371 = vmul.f32 %v2360, 1.442695
        %v2372 = vpow.pop %v2371
        %v2373 = vmul.f32 %v2361, 1.442695
        %v2374 = vpow.pop %v2373
        %v2375 = vmul.f32 %v2362, 1.442695
        %v2376 = vpow.pop %v2375
        %v2377 = vmul.f32 %v2363, 1.442695
        %v2378 = vpow.pop %v2377
        %v2379 = vmul.f32 %v2364, 1.442695
        %v2380 = vpow.pop %v2379
        %v2381 = vsel %vm2103, %v2366, 0.0
        %2382 = vadd.xlane.f32.xlu0 %v2381
        %v2383 = vpop.xlane.xlu0 %2382
        %v2384 = vsel %vm2103, %v2368, 0.0
        %2385 = vadd.xlane.f32.xlu0 %v2384
        %v2386 = vpop.xlane.xlu0 %2385
        %v2387 = vsel %vm2103, %v2370, 0.0
        %2388 = vadd.xlane.f32.xlu0 %v2387
        %v2389 = vpop.xlane.xlu0 %2388
        %v2390 = vsel %vm2103, %v2372, 0.0
        %2391 = vadd.xlane.f32.xlu0 %v2390
        %v2392 = vpop.xlane.xlu0 %2391
        %v2393 = vsel %vm2103, %v2374, 0.0
        %2394 = vadd.xlane.f32.xlu0 %v2393
        %v2395 = vpop.xlane.xlu0 %2394
        %v2396 = vsel %vm2103, %v2376, 0.0
        %2397 = vadd.xlane.f32.xlu0 %v2396
        %v2398 = vpop.xlane.xlu0 %2397
        %v2399 = vsel %vm2103, %v2378, 0.0
        %2400 = vadd.xlane.f32.xlu0 %v2399
        %v2401 = vpop.xlane.xlu0 %2400
        %v2402 = vsel %vm2103, %v2380, 0.0
        %2403 = vadd.xlane.f32.xlu0 %v2402
        %v2404 = vpop.xlane.xlu0 %2403
        %v2405 = vrcp.pop %v2383
        %v2406 = vrcp.pop %v2386
        %v2407 = vrcp.pop %v2389
        %v2408 = vrcp.pop %v2392
        %v2409 = vrcp.pop %v2395
        %v2410 = vrcp.pop %v2398
        %v2411 = vrcp.pop %v2401
        %v2412 = vrcp.pop %v2404
        %v2413 = vmul.f32 %v2366, %v2405
        %v2414 = vmul.f32 %v2368, %v2406
        %v2415 = vmul.f32 %v2370, %v2407
        %v2416 = vmul.f32 %v2372, %v2408
        %v2417 = vmul.f32 %v2374, %v2409
        %v2418 = vmul.f32 %v2376, %v2410
        %v2419 = vmul.f32 %v2378, %v2411
        %v2420 = vmul.f32 %v2380, %v2412
        %v2421 = vpack.c.bf16 %v2414, %v2413
        %v2422 = vpack.c.bf16 %v2416, %v2415
        %v2423 = vpack.c.bf16 %v2418, %v2417
        %v2424 = vpack.c.bf16 %v2420, %v2419
        %2425 = vrot.lane.b32.xlu0 %v2025, 48
        %v2426 = vpop.permute.xlu0 %2425
        %2427 = vrot.lane.b32.xlu0 %v2026, 48
        %v2428 = vpop.permute.xlu0 %2427
        %2429 = vrot.lane.b32.xlu0 %v2027, 48
        %v2430 = vpop.permute.xlu0 %2429
        %2431 = vrot.lane.b32.xlu0 %v2028, 48
        %v2432 = vpop.permute.xlu0 %2431
        %v2438 = vsel %vm2103, %v2421, 0
        %v2441 = vsel %vm2103, %v2422, 0
        %v2444 = vsel %vm2103, %v2423, 0
        %v2447 = vsel %vm2103, %v2424, 0
        %2449 = vmatpush.bf16.msra.mxu0 0
        %2450 = vmatpush.bf16.msra.mxu0 0
        %2451 = vmatpush.bf16.msra.mxu0 0
        %2452 = vmatpush.bf16.msra.mxu0 0
        %2453 = vmatpush.bf16.msra.mxu0 %v2432
        %2454 = vmatpush.bf16.msra.mxu0 %v2430
        %2455 = vmatpush.bf16.msra.mxu0 %v2428
        %2456 = vmatpush.bf16.msra.mxu0 %v2426
        %2457 = vmatmul.bf16.gmra.mxu0 %v2438
        %v2458 = vpop.f32.mrf.mxu0
        %v2459 = vadd.f32 0.0, %v2458
        %v2460 = vpop.f32.mrf.mxu0
        %v2461 = vadd.f32 0.0, %v2460
        %2462 = vmatmul.bf16.gmra.mxu0 %v2441
        %v2463 = vpop.f32.mrf.mxu0
        %v2464 = vadd.f32 0.0, %v2463
        %v2465 = vpop.f32.mrf.mxu0
        %v2466 = vadd.f32 0.0, %v2465
        %2467 = vmatmul.bf16.gmra.mxu0 %v2444
        %v2468 = vpop.f32.mrf.mxu0
        %v2469 = vadd.f32 0.0, %v2468
        %v2470 = vpop.f32.mrf.mxu0
        %v2471 = vadd.f32 0.0, %v2470
        %2472 = vmatmul.bf16.gmra.mxu0 %v2447
        %v2473 = vpop.f32.mrf.mxu0
        %v2474 = vadd.f32 0.0, %v2473
        %v2475 = vpop.f32.mrf.mxu0
        %v2476 = vadd.f32 0.0, %v2475
        %2477 = vdwg.mxu0
        %v2478 = vld [vmem:[%s15 + $0x8] sm:$0xf]
        %v2479 = vld [vmem:[%s15 + $0xc] sm:$0xf]
        %v2480 = vpack.c.bf16 %v2461, %v2459
        %v2481 = vpack.c.bf16 %v2466, %v2464
        %v2482 = vpack.c.bf16 %v2471, %v2469
        %v2483 = vpack.c.bf16 %v2476, %v2474
        %v2486 = vunpack.c.l.b16 %v2478
        %v2487 = vunpack.c.l.b16 %v2479
        %v2488 = vpack.c.b16 %v2487, %v2486
        %v2491 = vsel %vm2049, %v2480, 0
        %v2494 = vsel %vm2049, %v2481, 0
        %v2497 = vsel %vm2049, %v2482, 0
        %v2500 = vsel %vm2049, %v2483, 0
        %2502 = vmatpush.bf16.msra.mxu0 0
        %2503 = vmatpush.bf16.msra.mxu0 0
        %2504 = vmatpush.bf16.msra.mxu0 0
        %2505 = vmatpush.bf16.msra.mxu0 0
        %2506 = vmatpush.bf16.msra.mxu0 0
        %2507 = vmatpush.bf16.msra.mxu0 0
        %2508 = vmatpush.bf16.msra.mxu0 0
        %2509 = vmatpush.bf16.msra.mxu0 %v2488
        %2510 = vmatmul.bf16.gmra.mxu0 %v2491
        %v2511 = vpop.f32.mrf.mxu0
        %v2512 = vadd.f32 0.0, %v2511
        %v2513 = vpop.f32.mrf.mxu0
        %v2514 = vadd.f32 0.0, %v2513
        %2515 = vmatmul.bf16.gmra.mxu0 %v2494
        %v2516 = vpop.f32.mrf.mxu0
        %v2517 = vadd.f32 0.0, %v2516
        %v2518 = vpop.f32.mrf.mxu0
        %v2519 = vadd.f32 0.0, %v2518
        %2520 = vmatmul.bf16.gmra.mxu0 %v2497
        %v2521 = vpop.f32.mrf.mxu0
        %v2522 = vadd.f32 0.0, %v2521
        %v2523 = vpop.f32.mrf.mxu0
        %v2524 = vadd.f32 0.0, %v2523
        %2525 = vmatmul.bf16.gmra.mxu0 %v2500
        %v2526 = vpop.f32.mrf.mxu0
        %v2527 = vadd.f32 0.0, %v2526
        %v2528 = vpop.f32.mrf.mxu0
        %v2529 = vadd.f32 0.0, %v2528
        %2530 = vdwg.mxu0
        %v2533 = vunpack.c.l.b16 %v2249
        %v2534 = vunpack.c.l.b16 %v2250
        %v2535 = vpack.c.b16 %v2534, %v2533
        %v2538 = vsel %vm2049, %v2251, 0
        %v2541 = vsel %vm2049, %v2252, 0
        %v2544 = vsel %vm2049, %v2253, 0
        %v2547 = vsel %vm2049, %v2254, 0
        %2549 = vmatpush.bf16.msra.mxu0 0
        %2550 = vmatpush.bf16.msra.mxu0 0
        %2551 = vmatpush.bf16.msra.mxu0 0
        %2552 = vmatpush.bf16.msra.mxu0 0
        %2553 = vmatpush.bf16.msra.mxu0 0
        %2554 = vmatpush.bf16.msra.mxu0 0
        %2555 = vmatpush.bf16.msra.mxu0 0
        %2556 = vmatpush.bf16.msra.mxu0 %v2535
        %2557 = vmatmul.bf16.gmra.mxu0 %v2538
        %v2558 = vpop.f32.mrf.mxu0
        %v2559 = vadd.f32 %v2512, %v2558
        %v2560 = vpop.f32.mrf.mxu0
        %v2561 = vadd.f32 %v2514, %v2560
        %2562 = vmatmul.bf16.gmra.mxu0 %v2541
        %v2563 = vpop.f32.mrf.mxu0
        %v2564 = vadd.f32 %v2517, %v2563
        %v2565 = vpop.f32.mrf.mxu0
        %v2566 = vadd.f32 %v2519, %v2565
        %2567 = vmatmul.bf16.gmra.mxu0 %v2544
        %v2568 = vpop.f32.mrf.mxu0
        %v2569 = vadd.f32 %v2522, %v2568
        %v2570 = vpop.f32.mrf.mxu0
        %v2571 = vadd.f32 %v2524, %v2570
        %2572 = vmatmul.bf16.gmra.mxu0 %v2547
        %v2573 = vpop.f32.mrf.mxu0
        %v2574 = vadd.f32 %v2527, %v2573
        %v2575 = vpop.f32.mrf.mxu0
        %v2576 = vadd.f32 %v2529, %v2575
        %2577 = vdwg.mxu0
        %v2578 = vadd.f32 %v1776, %v2559
        %v2579 = vadd.f32 %v1777, %v2561
        %v2580 = vadd.f32 %v1778, %v2564
        %v2581 = vadd.f32 %v1779, %v2566
        %v2582 = vadd.f32 %v1780, %v2569
        %v2583 = vadd.f32 %v1781, %v2571
        %v2584 = vadd.f32 %v1782, %v2574
        %v2585 = vadd.f32 %v1783, %v2576
        %v2586 = vld [vmem:[%s17] sm:$0x1]
        %v2588 = vperm.slane %v2586, 0
        %v2590 = vadd.f32 %v2578, %v2588
        %v2591 = vadd.f32 %v2579, %v2588
        %v2592 = vadd.f32 %v2580, %v2588
        %v2593 = vadd.f32 %v2581, %v2588
        %v2594 = vadd.f32 %v2582, %v2588
        %v2595 = vadd.f32 %v2583, %v2588
        %v2596 = vadd.f32 %v2584, %v2588
        %v2597 = vadd.f32 %v2585, %v2588
        %v2598 = vsel %vm1578, %v2590, 0.0
        %2599 = vadd.xlane.f32.xlu0 %v2598
        %v2600 = vpop.xlane.xlu0 %2599
        %v2601 = vsel %vm1578, %v2591, 0.0
        %2602 = vadd.xlane.f32.xlu0 %v2601
        %v2603 = vpop.xlane.xlu0 %2602
        %v2604 = vsel %vm1578, %v2592, 0.0
        %2605 = vadd.xlane.f32.xlu0 %v2604
        %v2606 = vpop.xlane.xlu0 %2605
        %v2607 = vsel %vm1578, %v2593, 0.0
        %2608 = vadd.xlane.f32.xlu0 %v2607
        %v2609 = vpop.xlane.xlu0 %2608
        %v2610 = vsel %vm1578, %v2594, 0.0
        %2611 = vadd.xlane.f32.xlu0 %v2610
        %v2612 = vpop.xlane.xlu0 %2611
        %v2613 = vsel %vm1578, %v2595, 0.0
        %2614 = vadd.xlane.f32.xlu0 %v2613
        %v2615 = vpop.xlane.xlu0 %2614
        %v2616 = vsel %vm1578, %v2596, 0.0
        %2617 = vadd.xlane.f32.xlu0 %v2616
        %v2618 = vpop.xlane.xlu0 %2617
        %v2619 = vsel %vm1578, %v2597, 0.0
        %2620 = vadd.xlane.f32.xlu0 %v2619
        %v2621 = vpop.xlane.xlu0 %2620
        %v2622 = vmul.f32 %v2600, %v1609
        %v2623 = vmul.f32 %v2603, %v1609
        %v2624 = vmul.f32 %v2606, %v1609
        %v2625 = vmul.f32 %v2609, %v1609
        %v2626 = vmul.f32 %v2612, %v1609
        %v2627 = vmul.f32 %v2615, %v1609
        %v2628 = vmul.f32 %v2618, %v1609
        %v2629 = vmul.f32 %v2621, %v1609
        %v2630 = vsub.f32 %v2590, %v2622
        %v2631 = vsub.f32 %v2591, %v2623
        %v2632 = vsub.f32 %v2592, %v2624
        %v2633 = vsub.f32 %v2593, %v2625
        %v2634 = vsub.f32 %v2594, %v2626
        %v2635 = vsub.f32 %v2595, %v2627
        %v2636 = vsub.f32 %v2596, %v2628
        %v2637 = vsub.f32 %v2597, %v2629
        %v2638 = vmul.f32 %v2630, %v2630
        %v2639 = vmul.f32 %v2631, %v2631
        %v2640 = vmul.f32 %v2632, %v2632
        %v2641 = vmul.f32 %v2633, %v2633
        %v2642 = vmul.f32 %v2634, %v2634
        %v2643 = vmul.f32 %v2635, %v2635
        %v2644 = vmul.f32 %v2636, %v2636
        %v2645 = vmul.f32 %v2637, %v2637
        %v2646 = vsel %vm1578, %v2638, 0.0
        %2647 = vadd.xlane.f32.xlu0 %v2646
        %v2648 = vpop.xlane.xlu0 %2647
        %v2649 = vsel %vm1578, %v2639, 0.0
        %2650 = vadd.xlane.f32.xlu0 %v2649
        %v2651 = vpop.xlane.xlu0 %2650
        %v2652 = vsel %vm1578, %v2640, 0.0
        %2653 = vadd.xlane.f32.xlu0 %v2652
        %v2654 = vpop.xlane.xlu0 %2653
        %v2655 = vsel %vm1578, %v2641, 0.0
        %2656 = vadd.xlane.f32.xlu0 %v2655
        %v2657 = vpop.xlane.xlu0 %2656
        %v2658 = vsel %vm1578, %v2642, 0.0
        %2659 = vadd.xlane.f32.xlu0 %v2658
        %v2660 = vpop.xlane.xlu0 %2659
        %v2661 = vsel %vm1578, %v2643, 0.0
        %2662 = vadd.xlane.f32.xlu0 %v2661
        %v2663 = vpop.xlane.xlu0 %2662
        %v2664 = vsel %vm1578, %v2644, 0.0
        %2665 = vadd.xlane.f32.xlu0 %v2664
        %v2666 = vpop.xlane.xlu0 %2665
        %v2667 = vsel %vm1578, %v2645, 0.0
        %2668 = vadd.xlane.f32.xlu0 %v2667
        %v2669 = vpop.xlane.xlu0 %2668
        %v2670 = vmul.f32 %v2648, %v1609
        %v2671 = vmul.f32 %v2651, %v1609
        %v2672 = vmul.f32 %v2654, %v1609
        %v2673 = vmul.f32 %v2657, %v1609
        %v2674 = vmul.f32 %v2660, %v1609
        %v2675 = vmul.f32 %v2663, %v1609
        %v2676 = vmul.f32 %v2666, %v1609
        %v2677 = vmul.f32 %v2669, %v1609
        %v2678 = vadd.f32 %v2670, 1e-05
        %v2679 = vadd.f32 %v2671, 1e-05
        %v2680 = vadd.f32 %v2672, 1e-05
        %v2681 = vadd.f32 %v2673, 1e-05
        %v2682 = vadd.f32 %v2674, 1e-05
        %v2683 = vadd.f32 %v2675, 1e-05
        %v2684 = vadd.f32 %v2676, 1e-05
        %v2685 = vadd.f32 %v2677, 1e-05
        %v2686 = vrsqrt.pop %v2678
        %v2687 = vmul.f32 %v2686, %v2678
        %v2688 = vmul.f32 %v2687, %v2686
        %v2689 = vmul.f32 0.5, %v2688
        %v2690 = vsub.f32 1.5, %v2689
        %v2691 = vmul.f32 %v2686, %v2690
        %vm2692 = vweird.f32 %v2678
        %vm2693 = vweird.f32 %v2686
        %vm2694 = vmor %vm2692, %vm2693
        %v2695 = vsel %vm2694, %v2686, %v2691
        %v2696 = vrsqrt.pop %v2679
        %v2697 = vmul.f32 %v2696, %v2679
        %v2698 = vmul.f32 %v2697, %v2696
        %v2699 = vmul.f32 0.5, %v2698
        %v2700 = vsub.f32 1.5, %v2699
        %v2701 = vmul.f32 %v2696, %v2700
        %vm2702 = vweird.f32 %v2679
        %vm2703 = vweird.f32 %v2696
        %vm2704 = vmor %vm2702, %vm2703
        %v2705 = vsel %vm2704, %v2696, %v2701
        %v2706 = vrsqrt.pop %v2680
        %v2707 = vmul.f32 %v2706, %v2680
        %v2708 = vmul.f32 %v2707, %v2706
        %v2709 = vmul.f32 0.5, %v2708
        %v2710 = vsub.f32 1.5, %v2709
        %v2711 = vmul.f32 %v2706, %v2710
        %vm2712 = vweird.f32 %v2680
        %vm2713 = vweird.f32 %v2706
        %vm2714 = vmor %vm2712, %vm2713
        %v2715 = vsel %vm2714, %v2706, %v2711
        %v2716 = vrsqrt.pop %v2681
        %v2717 = vmul.f32 %v2716, %v2681
        %v2718 = vmul.f32 %v2717, %v2716
        %v2719 = vmul.f32 0.5, %v2718
        %v2720 = vsub.f32 1.5, %v2719
        %v2721 = vmul.f32 %v2716, %v2720
        %vm2722 = vweird.f32 %v2681
        %vm2723 = vweird.f32 %v2716
        %vm2724 = vmor %vm2722, %vm2723
        %v2725 = vsel %vm2724, %v2716, %v2721
        %v2726 = vrsqrt.pop %v2682
        %v2727 = vmul.f32 %v2726, %v2682
        %v2728 = vmul.f32 %v2727, %v2726
        %v2729 = vmul.f32 0.5, %v2728
        %v2730 = vsub.f32 1.5, %v2729
        %v2731 = vmul.f32 %v2726, %v2730
        %vm2732 = vweird.f32 %v2682
        %vm2733 = vweird.f32 %v2726
        %vm2734 = vmor %vm2732, %vm2733
        %v2735 = vsel %vm2734, %v2726, %v2731
        %v2736 = vrsqrt.pop %v2683
        %v2737 = vmul.f32 %v2736, %v2683
        %v2738 = vmul.f32 %v2737, %v2736
        %v2739 = vmul.f32 0.5, %v2738
        %v2740 = vsub.f32 1.5, %v2739
        %v2741 = vmul.f32 %v2736, %v2740
        %vm2742 = vweird.f32 %v2683
        %vm2743 = vweird.f32 %v2736
        %vm2744 = vmor %vm2742, %vm2743
        %v2745 = vsel %vm2744, %v2736, %v2741
        %v2746 = vrsqrt.pop %v2684
        %v2747 = vmul.f32 %v2746, %v2684
        %v2748 = vmul.f32 %v2747, %v2746
        %v2749 = vmul.f32 0.5, %v2748
        %v2750 = vsub.f32 1.5, %v2749
        %v2751 = vmul.f32 %v2746, %v2750
        %vm2752 = vweird.f32 %v2684
        %vm2753 = vweird.f32 %v2746
        %vm2754 = vmor %vm2752, %vm2753
        %v2755 = vsel %vm2754, %v2746, %v2751
        %v2756 = vrsqrt.pop %v2685
        %v2757 = vmul.f32 %v2756, %v2685
        %v2758 = vmul.f32 %v2757, %v2756
        %v2759 = vmul.f32 0.5, %v2758
        %v2760 = vsub.f32 1.5, %v2759
        %v2761 = vmul.f32 %v2756, %v2760
        %vm2762 = vweird.f32 %v2685
        %vm2763 = vweird.f32 %v2756
        %vm2764 = vmor %vm2762, %vm2763
        %v2765 = vsel %vm2764, %v2756, %v2761
        %v2766 = vmul.f32 %v2630, %v2695
        %v2767 = vmul.f32 %v2631, %v2705
        %v2768 = vmul.f32 %v2632, %v2715
        %v2769 = vmul.f32 %v2633, %v2725
        %v2770 = vmul.f32 %v2634, %v2735
        %v2771 = vmul.f32 %v2635, %v2745
        %v2772 = vmul.f32 %v2636, %v2755
        %v2773 = vmul.f32 %v2637, %v2765
        %v2774 = vld [vmem:[%s21] sm:$0xf]
        %v2775 = vld [vmem:[%s21 + $0x4] sm:$0xf]
        %v2776 = vld [vmem:[%s21 + $0x8] sm:$0xf]
        %v2777 = vld [vmem:[%s21 + $0xc] sm:$0xf]
        %v2778 = vpack.c.bf16 %v2767, %v2766
        %v2779 = vpack.c.bf16 %v2769, %v2768
        %v2780 = vpack.c.bf16 %v2771, %v2770
        %v2781 = vpack.c.bf16 %v2773, %v2772
        %v2782 = vld [vmem:[%s23] sm:$0x1]
        %v2784 = vperm.slane %v2782, 0
        %v2790 = vunpack.c.l.b16 %v2774
        %v2791 = vunpack.c.l.b16 %v2775
        %v2792 = vunpack.c.l.b16 %v2776
        %v2793 = vunpack.c.l.b16 %v2777
        %v2794 = vpack.c.b16 %v2791, %v2790
        %v2795 = vpack.c.b16 %v2793, %v2792
        %v2799 = vsel %vm1578, %v2778, 0
        %v2802 = vsel %vm1578, %v2779, 0
        %v2805 = vsel %vm1578, %v2780, 0
        %v2808 = vsel %vm1578, %v2781, 0
        %2810 = vmatpush.bf16.msra.mxu0 0
        %2811 = vmatpush.bf16.msra.mxu0 0
        %2812 = vmatpush.bf16.msra.mxu0 0
        %2813 = vmatpush.bf16.msra.mxu0 0
        %2814 = vmatpush.bf16.msra.mxu0 0
        %2815 = vmatpush.bf16.msra.mxu0 0
        %2816 = vmatpush.bf16.msra.mxu0 %v2795
        %2817 = vmatpush.bf16.msra.mxu0 %v2794
        %2818 = vmatmul.bf16.gmra.mxu0 %v2799
        %v2819 = vpop.f32.mrf.mxu0
        %v2820 = vadd.f32 %v2784, %v2819
        %v2821 = vpop.f32.mrf.mxu0
        %v2822 = vadd.f32 %v2784, %v2821
        %2823 = vmatmul.bf16.gmra.mxu0 %v2802
        %v2824 = vpop.f32.mrf.mxu0
        %v2825 = vadd.f32 %v2784, %v2824
        %v2826 = vpop.f32.mrf.mxu0
        %v2827 = vadd.f32 %v2784, %v2826
        %2828 = vmatmul.bf16.gmra.mxu0 %v2805
        %v2829 = vpop.f32.mrf.mxu0
        %v2830 = vadd.f32 %v2784, %v2829
        %v2831 = vpop.f32.mrf.mxu0
        %v2832 = vadd.f32 %v2784, %v2831
        %2833 = vmatmul.bf16.gmra.mxu0 %v2808
        %v2834 = vpop.f32.mrf.mxu0
        %v2835 = vadd.f32 %v2784, %v2834
        %v2836 = vpop.f32.mrf.mxu0
        %v2837 = vadd.f32 %v2784, %v2836
        %2838 = vdwg.mxu0
        %v2839 = vmul.f32 %v2820, 0.5
        %v2840 = vmul.f32 %v2822, 0.5
        %v2841 = vmul.f32 %v2825, 0.5
        %v2842 = vmul.f32 %v2827, 0.5
        %v2843 = vmul.f32 %v2830, 0.5
        %v2844 = vmul.f32 %v2832, 0.5
        %v2845 = vmul.f32 %v2835, 0.5
        %v2846 = vmul.f32 %v2837, 0.5
        %v2847 = vmul.f32 %v2820, 0.044715
        %v2848 = vmul.f32 %v2822, 0.044715
        %v2849 = vmul.f32 %v2825, 0.044715
        %v2850 = vmul.f32 %v2827, 0.044715
        %v2851 = vmul.f32 %v2830, 0.044715
        %v2852 = vmul.f32 %v2832, 0.044715
        %v2853 = vmul.f32 %v2835, 0.044715
        %v2854 = vmul.f32 %v2837, 0.044715
        %v2855 = vmul.f32 %v2847, %v2820
        %v2856 = vmul.f32 %v2848, %v2822
        %v2857 = vmul.f32 %v2849, %v2825
        %v2858 = vmul.f32 %v2850, %v2827
        %v2859 = vmul.f32 %v2851, %v2830
        %v2860 = vmul.f32 %v2852, %v2832
        %v2861 = vmul.f32 %v2853, %v2835
        %v2862 = vmul.f32 %v2854, %v2837
        %v2863 = vmul.f32 %v2855, %v2820
        %v2864 = vmul.f32 %v2856, %v2822
        %v2865 = vmul.f32 %v2857, %v2825
        %v2866 = vmul.f32 %v2858, %v2827
        %v2867 = vmul.f32 %v2859, %v2830
        %v2868 = vmul.f32 %v2860, %v2832
        %v2869 = vmul.f32 %v2861, %v2835
        %v2870 = vmul.f32 %v2862, %v2837
        %v2871 = vadd.f32 %v2820, %v2863
        %v2872 = vadd.f32 %v2822, %v2864
        %v2873 = vadd.f32 %v2825, %v2865
        %v2874 = vadd.f32 %v2827, %v2866
        %v2875 = vadd.f32 %v2830, %v2867
        %v2876 = vadd.f32 %v2832, %v2868
        %v2877 = vadd.f32 %v2835, %v2869
        %v2878 = vadd.f32 %v2837, %v2870
        %v2879 = vmul.f32 %v2871, 0.7978846
        %v2880 = vmul.f32 %v2872, 0.7978846
        %v2881 = vmul.f32 %v2873, 0.7978846
        %v2882 = vmul.f32 %v2874, 0.7978846
        %v2883 = vmul.f32 %v2875, 0.7978846
        %v2884 = vmul.f32 %v2876, 0.7978846
        %v2885 = vmul.f32 %v2877, 0.7978846
        %v2886 = vmul.f32 %v2878, 0.7978846
        %v2887 = vtanh.pop %v2879
        %v2888 = vtanh.pop %v2880
        %v2889 = vtanh.pop %v2881
        %v2890 = vtanh.pop %v2882
        %v2891 = vtanh.pop %v2883
        %v2892 = vtanh.pop %v2884
        %v2893 = vtanh.pop %v2885
        %v2894 = vtanh.pop %v2886
        %v2895 = vadd.f32 %v2887, 1.0
        %v2896 = vadd.f32 %v2888, 1.0
        %v2897 = vadd.f32 %v2889, 1.0
        %v2898 = vadd.f32 %v2890, 1.0
        %v2899 = vadd.f32 %v2891, 1.0
        %v2900 = vadd.f32 %v2892, 1.0
        %v2901 = vadd.f32 %v2893, 1.0
        %v2902 = vadd.f32 %v2894, 1.0
        %v2903 = vmul.f32 %v2839, %v2895
        %v2904 = vmul.f32 %v2840, %v2896
        %v2905 = vmul.f32 %v2841, %v2897
        %v2906 = vmul.f32 %v2842, %v2898
        %v2907 = vmul.f32 %v2843, %v2899
        %v2908 = vmul.f32 %v2844, %v2900
        %v2909 = vmul.f32 %v2845, %v2901
        %v2910 = vmul.f32 %v2846, %v2902
        %v2911 = vld [vmem:[%s25] sm:$0xf]
        %v2912 = vld [vmem:[%s25 + $0x4] sm:$0xf]
        %v2913 = vld [vmem:[%s25 + $0x8] sm:$0xf]
        %v2914 = vld [vmem:[%s25 + $0xc] sm:$0xf]
        %v2915 = vld [vmem:[%s25 + $0x10] sm:$0xf]
        %v2916 = vld [vmem:[%s25 + $0x14] sm:$0xf]
        %v2917 = vld [vmem:[%s25 + $0x18] sm:$0xf]
        %v2918 = vld [vmem:[%s25 + $0x1c] sm:$0xf]
        %v2919 = vld [vmem:[%s25 + $0x20] sm:$0xf]
        %v2920 = vld [vmem:[%s25 + $0x24] sm:$0xf]
        %v2921 = vld [vmem:[%s25 + $0x28] sm:$0xf]
        %v2922 = vld [vmem:[%s25 + $0x2c] sm:$0xf]
        %v2923 = vld [vmem:[%s25 + $0x30] sm:$0xf]
        %v2924 = vld [vmem:[%s25 + $0x34] sm:$0xf]
        %v2925 = vld [vmem:[%s25 + $0x38] sm:$0xf]
        %v2926 = vld [vmem:[%s25 + $0x3c] sm:$0xf]
        %v2927 = vpack.c.bf16 %v2904, %v2903
        %v2928 = vpack.c.bf16 %v2906, %v2905
        %v2929 = vpack.c.bf16 %v2908, %v2907
        %v2930 = vpack.c.bf16 %v2910, %v2909
        %v2947 = vunpack.c.l.b16 %v2911
        %v2948 = vunpack.c.l.b16 %v2912
        %v2949 = vunpack.c.l.b16 %v2913
        %v2950 = vunpack.c.l.b16 %v2914
        %v2951 = vunpack.c.l.b16 %v2915
        %v2952 = vunpack.c.l.b16 %v2916
        %v2953 = vunpack.c.l.b16 %v2917
        %v2954 = vunpack.c.l.b16 %v2918
        %v2955 = vunpack.c.l.b16 %v2919
        %v2956 = vunpack.c.l.b16 %v2920
        %v2957 = vunpack.c.l.b16 %v2921
        %v2958 = vunpack.c.l.b16 %v2922
        %v2959 = vunpack.c.l.b16 %v2923
        %v2960 = vunpack.c.l.b16 %v2924
        %v2961 = vunpack.c.l.b16 %v2925
        %v2962 = vunpack.c.l.b16 %v2926
        %v2963 = vpack.c.b16 %v2948, %v2947
        %v2964 = vpack.c.b16 %v2950, %v2949
        %v2965 = vpack.c.b16 %v2952, %v2951
        %v2966 = vpack.c.b16 %v2954, %v2953
        %v2967 = vpack.c.b16 %v2956, %v2955
        %v2968 = vpack.c.b16 %v2958, %v2957
        %v2969 = vpack.c.b16 %v2960, %v2959
        %v2970 = vpack.c.b16 %v2962, %v2961
        %2979 = vmatpush.bf16.msra.mxu0 %v2970
        %2980 = vmatpush.bf16.msra.mxu0 %v2969
        %2981 = vmatpush.bf16.msra.mxu0 %v2968
        %2982 = vmatpush.bf16.msra.mxu0 %v2967
        %2983 = vmatpush.bf16.msra.mxu0 %v2966
        %2984 = vmatpush.bf16.msra.mxu0 %v2965
        %2985 = vmatpush.bf16.msra.mxu0 %v2964
        %2986 = vmatpush.bf16.msra.mxu0 %v2963
        %2987 = vmatmul.bf16.gmra.mxu0 %v2927
        %v2988 = vpop.f32.mrf.mxu0
        %v2989 = vadd.f32 0.0, %v2988
        %v2990 = vpop.f32.mrf.mxu0
        %v2991 = vadd.f32 0.0, %v2990
        %2992 = vmatmul.bf16.gmra.mxu0 %v2928
        %v2993 = vpop.f32.mrf.mxu0
        %v2994 = vadd.f32 0.0, %v2993
        %v2995 = vpop.f32.mrf.mxu0
        %v2996 = vadd.f32 0.0, %v2995
        %2997 = vmatmul.bf16.gmra.mxu0 %v2929
        %v2998 = vpop.f32.mrf.mxu0
        %v2999 = vadd.f32 0.0, %v2998
        %v3000 = vpop.f32.mrf.mxu0
        %v3001 = vadd.f32 0.0, %v3000
        %3002 = vmatmul.bf16.gmra.mxu0 %v2930
        %v3003 = vpop.f32.mrf.mxu0
        %v3004 = vadd.f32 0.0, %v3003
        %v3005 = vpop.f32.mrf.mxu0
        %v3006 = vadd.f32 0.0, %v3005
        %3007 = vdwg.mxu0
        %v3008 = vadd.f32 %v2590, %v2989
        %v3009 = vadd.f32 %v2591, %v2991
        %v3010 = vadd.f32 %v2592, %v2994
        %v3011 = vadd.f32 %v2593, %v2996
        %v3012 = vadd.f32 %v2594, %v2999
        %v3013 = vadd.f32 %v2595, %v3001
        %v3014 = vadd.f32 %v2596, %v3004
        %v3015 = vadd.f32 %v2597, %v3006
        %v3016 = vld [vmem:[%s27] sm:$0x1]
        %v3018 = vperm.slane %v3016, 0
        %v3020 = vadd.f32 %v3008, %v3018
        %v3021 = vadd.f32 %v3009, %v3018
        %v3022 = vadd.f32 %v3010, %v3018
        %v3023 = vadd.f32 %v3011, %v3018
        %v3024 = vadd.f32 %v3012, %v3018
        %v3025 = vadd.f32 %v3013, %v3018
        %v3026 = vadd.f32 %v3014, %v3018
        %v3027 = vadd.f32 %v3015, %v3018
        %v3028 = vsel %vm1578, %v3020, 0.0
        %3029 = vadd.xlane.f32.xlu0 %v3028
        %v3030 = vpop.xlane.xlu0 %3029
        %v3031 = vsel %vm1578, %v3021, 0.0
        %3032 = vadd.xlane.f32.xlu0 %v3031
        %v3033 = vpop.xlane.xlu0 %3032
        %v3034 = vsel %vm1578, %v3022, 0.0
        %3035 = vadd.xlane.f32.xlu0 %v3034
        %v3036 = vpop.xlane.xlu0 %3035
        %v3037 = vsel %vm1578, %v3023, 0.0
        %3038 = vadd.xlane.f32.xlu0 %v3037
        %v3039 = vpop.xlane.xlu0 %3038
        %v3040 = vsel %vm1578, %v3024, 0.0
        %3041 = vadd.xlane.f32.xlu0 %v3040
        %v3042 = vpop.xlane.xlu0 %3041
        %v3043 = vsel %vm1578, %v3025, 0.0
        %3044 = vadd.xlane.f32.xlu0 %v3043
        %v3045 = vpop.xlane.xlu0 %3044
        %v3046 = vsel %vm1578, %v3026, 0.0
        %3047 = vadd.xlane.f32.xlu0 %v3046
        %v3048 = vpop.xlane.xlu0 %3047
        %v3049 = vsel %vm1578, %v3027, 0.0
        %3050 = vadd.xlane.f32.xlu0 %v3049
        %v3051 = vpop.xlane.xlu0 %3050
        %v3052 = vmul.f32 %v3030, %v1609
        %v3053 = vmul.f32 %v3033, %v1609
        %v3054 = vmul.f32 %v3036, %v1609
        %v3055 = vmul.f32 %v3039, %v1609
        %v3056 = vmul.f32 %v3042, %v1609
        %v3057 = vmul.f32 %v3045, %v1609
        %v3058 = vmul.f32 %v3048, %v1609
        %v3059 = vmul.f32 %v3051, %v1609
        %v3060 = vsub.f32 %v3020, %v3052
        %v3061 = vsub.f32 %v3021, %v3053
        %v3062 = vsub.f32 %v3022, %v3054
        %v3063 = vsub.f32 %v3023, %v3055
        %v3064 = vsub.f32 %v3024, %v3056
        %v3065 = vsub.f32 %v3025, %v3057
        %v3066 = vsub.f32 %v3026, %v3058
        %v3067 = vsub.f32 %v3027, %v3059
        %v3068 = vmul.f32 %v3060, %v3060
        %v3069 = vmul.f32 %v3061, %v3061
        %v3070 = vmul.f32 %v3062, %v3062
        %v3071 = vmul.f32 %v3063, %v3063
        %v3072 = vmul.f32 %v3064, %v3064
        %v3073 = vmul.f32 %v3065, %v3065
        %v3074 = vmul.f32 %v3066, %v3066
        %v3075 = vmul.f32 %v3067, %v3067
        %v3076 = vsel %vm1578, %v3068, 0.0
        %3077 = vadd.xlane.f32.xlu0 %v3076
        %v3078 = vpop.xlane.xlu0 %3077
        %v3079 = vsel %vm1578, %v3069, 0.0
        %3080 = vadd.xlane.f32.xlu0 %v3079
        %v3081 = vpop.xlane.xlu0 %3080
        %v3082 = vsel %vm1578, %v3070, 0.0
        %3083 = vadd.xlane.f32.xlu0 %v3082
        %v3084 = vpop.xlane.xlu0 %3083
        %v3085 = vsel %vm1578, %v3071, 0.0
        %3086 = vadd.xlane.f32.xlu0 %v3085
        %v3087 = vpop.xlane.xlu0 %3086
        %v3088 = vsel %vm1578, %v3072, 0.0
        %3089 = vadd.xlane.f32.xlu0 %v3088
        %v3090 = vpop.xlane.xlu0 %3089
        %v3091 = vsel %vm1578, %v3073, 0.0
        %3092 = vadd.xlane.f32.xlu0 %v3091
        %v3093 = vpop.xlane.xlu0 %3092
        %v3094 = vsel %vm1578, %v3074, 0.0
        %3095 = vadd.xlane.f32.xlu0 %v3094
        %v3096 = vpop.xlane.xlu0 %3095
        %v3097 = vsel %vm1578, %v3075, 0.0
        %3098 = vadd.xlane.f32.xlu0 %v3097
        %v3099 = vpop.xlane.xlu0 %3098
        %v3100 = vmul.f32 %v3078, %v1609
        %v3101 = vmul.f32 %v3081, %v1609
        %v3102 = vmul.f32 %v3084, %v1609
        %v3103 = vmul.f32 %v3087, %v1609
        %v3104 = vmul.f32 %v3090, %v1609
        %v3105 = vmul.f32 %v3093, %v1609
        %v3106 = vmul.f32 %v3096, %v1609
        %v3107 = vmul.f32 %v3099, %v1609
        %v3108 = vadd.f32 %v3100, 1e-05
        %v3109 = vadd.f32 %v3101, 1e-05
        %v3110 = vadd.f32 %v3102, 1e-05
        %v3111 = vadd.f32 %v3103, 1e-05
        %v3112 = vadd.f32 %v3104, 1e-05
        %v3113 = vadd.f32 %v3105, 1e-05
        %v3114 = vadd.f32 %v3106, 1e-05
        %v3115 = vadd.f32 %v3107, 1e-05
        %v3116 = vrsqrt.pop %v3108
        %v3117 = vmul.f32 %v3116, %v3108
        %v3118 = vmul.f32 %v3117, %v3116
        %v3119 = vmul.f32 0.5, %v3118
        %v3120 = vsub.f32 1.5, %v3119
        %v3121 = vmul.f32 %v3116, %v3120
        %vm3122 = vweird.f32 %v3108
        %vm3123 = vweird.f32 %v3116
        %vm3124 = vmor %vm3122, %vm3123
        %v3125 = vsel %vm3124, %v3116, %v3121
        %v3126 = vrsqrt.pop %v3109
        %v3127 = vmul.f32 %v3126, %v3109
        %v3128 = vmul.f32 %v3127, %v3126
        %v3129 = vmul.f32 0.5, %v3128
        %v3130 = vsub.f32 1.5, %v3129
        %v3131 = vmul.f32 %v3126, %v3130
        %vm3132 = vweird.f32 %v3109
        %vm3133 = vweird.f32 %v3126
        %vm3134 = vmor %vm3132, %vm3133
        %v3135 = vsel %vm3134, %v3126, %v3131
        %v3136 = vrsqrt.pop %v3110
        %v3137 = vmul.f32 %v3136, %v3110
        %v3138 = vmul.f32 %v3137, %v3136
        %v3139 = vmul.f32 0.5, %v3138
        %v3140 = vsub.f32 1.5, %v3139
        %v3141 = vmul.f32 %v3136, %v3140
        %vm3142 = vweird.f32 %v3110
        %vm3143 = vweird.f32 %v3136
        %vm3144 = vmor %vm3142, %vm3143
        %v3145 = vsel %vm3144, %v3136, %v3141
        %v3146 = vrsqrt.pop %v3111
        %v3147 = vmul.f32 %v3146, %v3111
        %v3148 = vmul.f32 %v3147, %v3146
        %v3149 = vmul.f32 0.5, %v3148
        %v3150 = vsub.f32 1.5, %v3149
        %v3151 = vmul.f32 %v3146, %v3150
        %vm3152 = vweird.f32 %v3111
        %vm3153 = vweird.f32 %v3146
        %vm3154 = vmor %vm3152, %vm3153
        %v3155 = vsel %vm3154, %v3146, %v3151
        %v3156 = vrsqrt.pop %v3112
        %v3157 = vmul.f32 %v3156, %v3112
        %v3158 = vmul.f32 %v3157, %v3156
        %v3159 = vmul.f32 0.5, %v3158
        %v3160 = vsub.f32 1.5, %v3159
        %v3161 = vmul.f32 %v3156, %v3160
        %vm3162 = vweird.f32 %v3112
        %vm3163 = vweird.f32 %v3156
        %vm3164 = vmor %vm3162, %vm3163
        %v3165 = vsel %vm3164, %v3156, %v3161
        %v3166 = vrsqrt.pop %v3113
        %v3167 = vmul.f32 %v3166, %v3113
        %v3168 = vmul.f32 %v3167, %v3166
        %v3169 = vmul.f32 0.5, %v3168
        %v3170 = vsub.f32 1.5, %v3169
        %v3171 = vmul.f32 %v3166, %v3170
        %vm3172 = vweird.f32 %v3113
        %vm3173 = vweird.f32 %v3166
        %vm3174 = vmor %vm3172, %vm3173
        %v3175 = vsel %vm3174, %v3166, %v3171
        %v3176 = vrsqrt.pop %v3114
        %v3177 = vmul.f32 %v3176, %v3114
        %v3178 = vmul.f32 %v3177, %v3176
        %v3179 = vmul.f32 0.5, %v3178
        %v3180 = vsub.f32 1.5, %v3179
        %v3181 = vmul.f32 %v3176, %v3180
        %vm3182 = vweird.f32 %v3114
        %vm3183 = vweird.f32 %v3176
        %vm3184 = vmor %vm3182, %vm3183
        %v3185 = vsel %vm3184, %v3176, %v3181
        %v3186 = vrsqrt.pop %v3115
        %v3187 = vmul.f32 %v3186, %v3115
        %v3188 = vmul.f32 %v3187, %v3186
        %v3189 = vmul.f32 0.5, %v3188
        %v3190 = vsub.f32 1.5, %v3189
        %v3191 = vmul.f32 %v3186, %v3190
        %vm3192 = vweird.f32 %v3115
        %vm3193 = vweird.f32 %v3186
        %vm3194 = vmor %vm3192, %vm3193
        %v3195 = vsel %vm3194, %v3186, %v3191
        %v3196 = vmul.f32 %v3060, %v3125
        %v3197 = vmul.f32 %v3061, %v3135
        %v3198 = vmul.f32 %v3062, %v3145
        %v3199 = vmul.f32 %v3063, %v3155
        %v3200 = vmul.f32 %v3064, %v3165
        %v3201 = vmul.f32 %v3065, %v3175
        %v3202 = vmul.f32 %v3066, %v3185
        %v3203 = vmul.f32 %v3067, %v3195
        %v3204 = vld [vmem:[%s29] sm:$0xf]
        %v3205 = vld [vmem:[%s29 + $0x4] sm:$0xf]
        %v3206 = vld [vmem:[%s29 + $0x8] sm:$0xf]
        %v3207 = vld [vmem:[%s29 + $0xc] sm:$0xf]
        %v3208 = vpack.c.bf16 %v3197, %v3196
        %v3209 = vpack.c.bf16 %v3199, %v3198
        %v3210 = vpack.c.bf16 %v3201, %v3200
        %v3211 = vpack.c.bf16 %v3203, %v3202
        %v3212 = vld [vmem:[%s31] sm:$0x1]
        %v3214 = vperm.slane %v3212, 0
        %v3220 = vunpack.c.l.b16 %v3204
        %v3221 = vunpack.c.l.b16 %v3205
        %v3222 = vunpack.c.l.b16 %v3206
        %v3223 = vunpack.c.l.b16 %v3207
        %v3224 = vpack.c.b16 %v3221, %v3220
        %v3225 = vpack.c.b16 %v3223, %v3222
        %v3229 = vsel %vm1578, %v3208, 0
        %v3232 = vsel %vm1578, %v3209, 0
        %v3235 = vsel %vm1578, %v3210, 0
        %v3238 = vsel %vm1578, %v3211, 0
        %3240 = vmatpush.bf16.msra.mxu0 0
        %3241 = vmatpush.bf16.msra.mxu0 0
        %3242 = vmatpush.bf16.msra.mxu0 0
        %3243 = vmatpush.bf16.msra.mxu0 0
        %3244 = vmatpush.bf16.msra.mxu0 0
        %3245 = vmatpush.bf16.msra.mxu0 0
        %3246 = vmatpush.bf16.msra.mxu0 %v3225
        %3247 = vmatpush.bf16.msra.mxu0 %v3224
        %3248 = vmatmul.bf16.gmra.mxu0 %v3229
        %v3249 = vpop.f32.mrf.mxu0
        %v3250 = vadd.f32 %v3214, %v3249
        %v3251 = vpop.f32.mrf.mxu0
        %v3252 = vadd.f32 %v3214, %v3251
        %3253 = vmatmul.bf16.gmra.mxu0 %v3232
        %v3254 = vpop.f32.mrf.mxu0
        %v3255 = vadd.f32 %v3214, %v3254
        %v3256 = vpop.f32.mrf.mxu0
        %v3257 = vadd.f32 %v3214, %v3256
        %3258 = vmatmul.bf16.gmra.mxu0 %v3235
        %v3259 = vpop.f32.mrf.mxu0
        %v3260 = vadd.f32 %v3214, %v3259
        %v3261 = vpop.f32.mrf.mxu0
        %v3262 = vadd.f32 %v3214, %v3261
        %3263 = vmatmul.bf16.gmra.mxu0 %v3238
        %v3264 = vpop.f32.mrf.mxu0
        %v3265 = vadd.f32 %v3214, %v3264
        %v3266 = vpop.f32.mrf.mxu0
        %v3267 = vadd.f32 %v3214, %v3266
        %3268 = vdwg.mxu0
        %v3269 = vpack.c.bf16 %v3252, %v3250
        %v3270 = vpack.c.bf16 %v3257, %v3255
        %v3271 = vpack.c.bf16 %v3262, %v3260
        %v3272 = vpack.c.bf16 %v3267, %v3265
        %v3273 = vld [vmem:[%s37] sm:$0xff]
        %v3274 = vld [vmem:[%s37 + $0x8] sm:$0xff]
        %v3275 = vld [vmem:[%s37 + $0x10] sm:$0xff]
        %v3276 = vld [vmem:[%s37 + $0x18] sm:$0xff]
        %v3277 = vld [vmem:[%s37 + $0x20] sm:$0xff]
        %v3278 = vld [vmem:[%s37 + $0x28] sm:$0xff]
        %v3279 = vld [vmem:[%s37 + $0x30] sm:$0xff]
        %v3280 = vld [vmem:[%s37 + $0x38] sm:$0xff]
        %3285 = vrot.lane.b32.xlu0 %v3269, 96
        %v3286 = vpop.permute.xlu0 %3285
        %3287 = vrot.lane.b32.xlu0 %v3270, 96
        %v3288 = vpop.permute.xlu0 %3287
        %3289 = vrot.lane.b32.xlu0 %v3271, 96
        %v3290 = vpop.permute.xlu0 %3289
        %3291 = vrot.lane.b32.xlu0 %v3272, 96
        %v3292 = vpop.permute.xlu0 %3291
        %v3294 = vsel %vm2049, %v3269, 0
        %v3297 = vsel %vm2049, %v3270, 0
        %v3300 = vsel %vm2049, %v3271, 0
        %v3303 = vsel %vm2049, %v3272, 0
        %v3306 = vsel %vm2049, %v3286, 0
        %v3309 = vsel %vm2049, %v3288, 0
        %v3312 = vsel %vm2049, %v3290, 0
        %v3315 = vsel %vm2049, %v3292, 0
        %3317 = vmatpush.bf16.xpose.msra.mxu0 0
        %3318 = vmatpush.bf16.xpose.msra.mxu0 0
        %3319 = vmatpush.bf16.xpose.msra.mxu0 0
        %3320 = vmatpush.bf16.xpose.msra.mxu0 0
        %3321 = vmatpush.bf16.xpose.msra.mxu0 %v3315
        %3322 = vmatpush.bf16.xpose.msra.mxu0 %v3312
        %3323 = vmatpush.bf16.xpose.msra.mxu0 %v3309
        %3324 = vmatpush.bf16.xpose.msra.mxu0 %v3306
        %3325 = vmatmul.bf16.gmra.mxu0 %v3294
        %v3326 = vpop.f32.mrf.mxu0
        %v3327 = vadd.f32 %v3273, %v3326
        %v3328 = vpop.f32.mrf.mxu0
        %v3329 = vadd.f32 %v3274, %v3328
        %3330 = vmatmul.bf16.gmra.mxu0 %v3297
        %v3331 = vpop.f32.mrf.mxu0
        %v3332 = vadd.f32 %v3275, %v3331
        %v3333 = vpop.f32.mrf.mxu0
        %v3334 = vadd.f32 %v3276, %v3333
        %3335 = vmatmul.bf16.gmra.mxu0 %v3300
        %v3336 = vpop.f32.mrf.mxu0
        %v3337 = vadd.f32 %v3277, %v3336
        %v3338 = vpop.f32.mrf.mxu0
        %v3339 = vadd.f32 %v3278, %v3338
        %3340 = vmatmul.bf16.gmra.mxu0 %v3303
        %v3341 = vpop.f32.mrf.mxu0
        %v3342 = vadd.f32 %v3279, %v3341
        %v3343 = vpop.f32.mrf.mxu0
        %v3344 = vadd.f32 %v3280, %v3343
        %3345 = vdwg.mxu0
        %v3346 = vsel %vm2103, %v3327, -inf
        %3347 = vmax.xlane.f32.xlu0 %v3346
        %v3348 = vpop.xlane.xlu0 %3347
        %v3349 = vsel %vm2103, %v3329, -inf
        %3350 = vmax.xlane.f32.xlu0 %v3349
        %v3351 = vpop.xlane.xlu0 %3350
        %v3352 = vsel %vm2103, %v3332, -inf
        %3353 = vmax.xlane.f32.xlu0 %v3352
        %v3354 = vpop.xlane.xlu0 %3353
        %v3355 = vsel %vm2103, %v3334, -inf
        %3356 = vmax.xlane.f32.xlu0 %v3355
        %v3357 = vpop.xlane.xlu0 %3356
        %v3358 = vsel %vm2103, %v3337, -inf
        %3359 = vmax.xlane.f32.xlu0 %v3358
        %v3360 = vpop.xlane.xlu0 %3359
        %v3361 = vsel %vm2103, %v3339, -inf
        %3362 = vmax.xlane.f32.xlu0 %v3361
        %v3363 = vpop.xlane.xlu0 %3362
        %v3364 = vsel %vm2103, %v3342, -inf
        %3365 = vmax.xlane.f32.xlu0 %v3364
        %v3366 = vpop.xlane.xlu0 %3365
        %v3367 = vsel %vm2103, %v3344, -inf
        %3368 = vmax.xlane.f32.xlu0 %v3367
        %v3369 = vpop.xlane.xlu0 %3368
        %v3370 = vsub.f32 %v3327, %v3348
        %v3371 = vsub.f32 %v3329, %v3351
        %v3372 = vsub.f32 %v3332, %v3354
        %v3373 = vsub.f32 %v3334, %v3357
        %v3374 = vsub.f32 %v3337, %v3360
        %v3375 = vsub.f32 %v3339, %v3363
        %v3376 = vsub.f32 %v3342, %v3366
        %v3377 = vsub.f32 %v3344, %v3369
        %v3378 = vmul.f32 %v3370, 1.442695
        %v3379 = vpow.pop %v3378
        %v3380 = vmul.f32 %v3371, 1.442695
        %v3381 = vpow.pop %v3380
        %v3382 = vmul.f32 %v3372, 1.442695
        %v3383 = vpow.pop %v3382
        %v3384 = vmul.f32 %v3373, 1.442695
        %v3385 = vpow.pop %v3384
        %v3386 = vmul.f32 %v3374, 1.442695
        %v3387 = vpow.pop %v3386
        %v3388 = vmul.f32 %v3375, 1.442695
        %v3389 = vpow.pop %v3388
        %v3390 = vmul.f32 %v3376, 1.442695
        %v3391 = vpow.pop %v3390
        %v3392 = vmul.f32 %v3377, 1.442695
        %v3393 = vpow.pop %v3392
        %v3394 = vsel %vm2103, %v3379, 0.0
        %3395 = vadd.xlane.f32.xlu0 %v3394
        %v3396 = vpop.xlane.xlu0 %3395
        %v3397 = vsel %vm2103, %v3381, 0.0
        %3398 = vadd.xlane.f32.xlu0 %v3397
        %v3399 = vpop.xlane.xlu0 %3398
        %v3400 = vsel %vm2103, %v3383, 0.0
        %3401 = vadd.xlane.f32.xlu0 %v3400
        %v3402 = vpop.xlane.xlu0 %3401
        %v3403 = vsel %vm2103, %v3385, 0.0
        %3404 = vadd.xlane.f32.xlu0 %v3403
        %v3405 = vpop.xlane.xlu0 %3404
        %v3406 = vsel %vm2103, %v3387, 0.0
        %3407 = vadd.xlane.f32.xlu0 %v3406
        %v3408 = vpop.xlane.xlu0 %3407
        %v3409 = vsel %vm2103, %v3389, 0.0
        %3410 = vadd.xlane.f32.xlu0 %v3409
        %v3411 = vpop.xlane.xlu0 %3410
        %v3412 = vsel %vm2103, %v3391, 0.0
        %3413 = vadd.xlane.f32.xlu0 %v3412
        %v3414 = vpop.xlane.xlu0 %3413
        %v3415 = vsel %vm2103, %v3393, 0.0
        %3416 = vadd.xlane.f32.xlu0 %v3415
        %v3417 = vpop.xlane.xlu0 %3416
        %v3418 = vrcp.pop %v3396
        %v3419 = vrcp.pop %v3399
        %v3420 = vrcp.pop %v3402
        %v3421 = vrcp.pop %v3405
        %v3422 = vrcp.pop %v3408
        %v3423 = vrcp.pop %v3411
        %v3424 = vrcp.pop %v3414
        %v3425 = vrcp.pop %v3417
        %v3426 = vmul.f32 %v3379, %v3418
        %v3427 = vmul.f32 %v3381, %v3419
        %v3428 = vmul.f32 %v3383, %v3420
        %v3429 = vmul.f32 %v3385, %v3421
        %v3430 = vmul.f32 %v3387, %v3422
        %v3431 = vmul.f32 %v3389, %v3423
        %v3432 = vmul.f32 %v3391, %v3424
        %v3433 = vmul.f32 %v3393, %v3425
        %v3434 = vpack.c.bf16 %v3427, %v3426
        %v3435 = vpack.c.bf16 %v3429, %v3428
        %v3436 = vpack.c.bf16 %v3431, %v3430
        %v3437 = vpack.c.bf16 %v3433, %v3432
        %3438 = vrot.lane.b32.xlu0 %v3269, 64
        %v3439 = vpop.permute.xlu0 %3438
        %3440 = vrot.lane.b32.xlu0 %v3270, 64
        %v3441 = vpop.permute.xlu0 %3440
        %3442 = vrot.lane.b32.xlu0 %v3271, 64
        %v3443 = vpop.permute.xlu0 %3442
        %3444 = vrot.lane.b32.xlu0 %v3272, 64
        %v3445 = vpop.permute.xlu0 %3444
        %v3451 = vsel %vm2103, %v3434, 0
        %v3454 = vsel %vm2103, %v3435, 0
        %v3457 = vsel %vm2103, %v3436, 0
        %v3460 = vsel %vm2103, %v3437, 0
        %3462 = vmatpush.bf16.msra.mxu0 0
        %3463 = vmatpush.bf16.msra.mxu0 0
        %3464 = vmatpush.bf16.msra.mxu0 0
        %3465 = vmatpush.bf16.msra.mxu0 0
        %3466 = vmatpush.bf16.msra.mxu0 %v3445
        %3467 = vmatpush.bf16.msra.mxu0 %v3443
        %3468 = vmatpush.bf16.msra.mxu0 %v3441
        %3469 = vmatpush.bf16.msra.mxu0 %v3439
        %3470 = vmatmul.bf16.gmra.mxu0 %v3451
        %v3471 = vpop.f32.mrf.mxu0
        %v3472 = vadd.f32 0.0, %v3471
        %v3473 = vpop.f32.mrf.mxu0
        %v3474 = vadd.f32 0.0, %v3473
        %3475 = vmatmul.bf16.gmra.mxu0 %v3454
        %v3476 = vpop.f32.mrf.mxu0
        %v3477 = vadd.f32 0.0, %v3476
        %v3478 = vpop.f32.mrf.mxu0
        %v3479 = vadd.f32 0.0, %v3478
        %3480 = vmatmul.bf16.gmra.mxu0 %v3457
        %v3481 = vpop.f32.mrf.mxu0
        %v3482 = vadd.f32 0.0, %v3481
        %v3483 = vpop.f32.mrf.mxu0
        %v3484 = vadd.f32 0.0, %v3483
        %3485 = vmatmul.bf16.gmra.mxu0 %v3460
        %v3486 = vpop.f32.mrf.mxu0
        %v3487 = vadd.f32 0.0, %v3486
        %v3488 = vpop.f32.mrf.mxu0
        %v3489 = vadd.f32 0.0, %v3488
        %3490 = vdwg.mxu0
        %v3491 = vld [vmem:[%s33] sm:$0xf]
        %v3492 = vld [vmem:[%s33 + $0x4] sm:$0xf]
        %v3493 = vpack.c.bf16 %v3474, %v3472
        %v3494 = vpack.c.bf16 %v3479, %v3477
        %v3495 = vpack.c.bf16 %v3484, %v3482
        %v3496 = vpack.c.bf16 %v3489, %v3487
        %s3497 = scalar_lea.vmem %s37, 64
        %v3498 = vld [vmem:[%s3497] sm:$0xff]
        %v3499 = vld [vmem:[%s3497 + $0x8] sm:$0xff]
        %v3500 = vld [vmem:[%s3497 + $0x10] sm:$0xff]
        %v3501 = vld [vmem:[%s3497 + $0x18] sm:$0xff]
        %v3502 = vld [vmem:[%s3497 + $0x20] sm:$0xff]
        %v3503 = vld [vmem:[%s3497 + $0x28] sm:$0xff]
        %v3504 = vld [vmem:[%s3497 + $0x30] sm:$0xff]
        %v3505 = vld [vmem:[%s3497 + $0x38] sm:$0xff]
        %3506 = vrot.lane.b32.xlu0 %v3269, 112
        %v3507 = vpop.permute.xlu0 %3506
        %3508 = vrot.lane.b32.xlu0 %v3270, 112
        %v3509 = vpop.permute.xlu0 %3508
        %3510 = vrot.lane.b32.xlu0 %v3271, 112
        %v3511 = vpop.permute.xlu0 %3510
        %3512 = vrot.lane.b32.xlu0 %v3272, 112
        %v3513 = vpop.permute.xlu0 %3512
        %3514 = vrot.lane.b32.xlu0 %v3269, 80
        %v3515 = vpop.permute.xlu0 %3514
        %3516 = vrot.lane.b32.xlu0 %v3270, 80
        %v3517 = vpop.permute.xlu0 %3516
        %3518 = vrot.lane.b32.xlu0 %v3271, 80
        %v3519 = vpop.permute.xlu0 %3518
        %3520 = vrot.lane.b32.xlu0 %v3272, 80
        %v3521 = vpop.permute.xlu0 %3520
        %v3523 = vsel %vm2049, %v3507, 0
        %v3526 = vsel %vm2049, %v3509, 0
        %v3529 = vsel %vm2049, %v3511, 0
        %v3532 = vsel %vm2049, %v3513, 0
        %v3535 = vsel %vm2049, %v3515, 0
        %v3538 = vsel %vm2049, %v3517, 0
        %v3541 = vsel %vm2049, %v3519, 0
        %v3544 = vsel %vm2049, %v3521, 0
        %3546 = vmatpush.bf16.xpose.msra.mxu0 0
        %3547 = vmatpush.bf16.xpose.msra.mxu0 0
        %3548 = vmatpush.bf16.xpose.msra.mxu0 0
        %3549 = vmatpush.bf16.xpose.msra.mxu0 0
        %3550 = vmatpush.bf16.xpose.msra.mxu0 %v3544
        %3551 = vmatpush.bf16.xpose.msra.mxu0 %v3541
        %3552 = vmatpush.bf16.xpose.msra.mxu0 %v3538
        %3553 = vmatpush.bf16.xpose.msra.mxu0 %v3535
        %3554 = vmatmul.bf16.gmra.mxu0 %v3523
        %v3555 = vpop.f32.mrf.mxu0
        %v3556 = vadd.f32 %v3498, %v3555
        %v3557 = vpop.f32.mrf.mxu0
        %v3558 = vadd.f32 %v3499, %v3557
        %3559 = vmatmul.bf16.gmra.mxu0 %v3526
        %v3560 = vpop.f32.mrf.mxu0
        %v3561 = vadd.f32 %v3500, %v3560
        %v3562 = vpop.f32.mrf.mxu0
        %v3563 = vadd.f32 %v3501, %v3562
        %3564 = vmatmul.bf16.gmra.mxu0 %v3529
        %v3565 = vpop.f32.mrf.mxu0
        %v3566 = vadd.f32 %v3502, %v3565
        %v3567 = vpop.f32.mrf.mxu0
        %v3568 = vadd.f32 %v3503, %v3567
        %3569 = vmatmul.bf16.gmra.mxu0 %v3532
        %v3570 = vpop.f32.mrf.mxu0
        %v3571 = vadd.f32 %v3504, %v3570
        %v3572 = vpop.f32.mrf.mxu0
        %v3573 = vadd.f32 %v3505, %v3572
        %3574 = vdwg.mxu0
        %v3575 = vsel %vm2103, %v3556, -inf
        %3576 = vmax.xlane.f32.xlu0 %v3575
        %v3577 = vpop.xlane.xlu0 %3576
        %v3578 = vsel %vm2103, %v3558, -inf
        %3579 = vmax.xlane.f32.xlu0 %v3578
        %v3580 = vpop.xlane.xlu0 %3579
        %v3581 = vsel %vm2103, %v3561, -inf
        %3582 = vmax.xlane.f32.xlu0 %v3581
        %v3583 = vpop.xlane.xlu0 %3582
        %v3584 = vsel %vm2103, %v3563, -inf
        %3585 = vmax.xlane.f32.xlu0 %v3584
        %v3586 = vpop.xlane.xlu0 %3585
        %v3587 = vsel %vm2103, %v3566, -inf
        %3588 = vmax.xlane.f32.xlu0 %v3587
        %v3589 = vpop.xlane.xlu0 %3588
        %v3590 = vsel %vm2103, %v3568, -inf
        %3591 = vmax.xlane.f32.xlu0 %v3590
        %v3592 = vpop.xlane.xlu0 %3591
        %v3593 = vsel %vm2103, %v3571, -inf
        %3594 = vmax.xlane.f32.xlu0 %v3593
        %v3595 = vpop.xlane.xlu0 %3594
        %v3596 = vsel %vm2103, %v3573, -inf
        %3597 = vmax.xlane.f32.xlu0 %v3596
        %v3598 = vpop.xlane.xlu0 %3597
        %v3599 = vsub.f32 %v3556, %v3577
        %v3600 = vsub.f32 %v3558, %v3580
        %v3601 = vsub.f32 %v3561, %v3583
        %v3602 = vsub.f32 %v3563, %v3586
        %v3603 = vsub.f32 %v3566, %v3589
        %v3604 = vsub.f32 %v3568, %v3592
        %v3605 = vsub.f32 %v3571, %v3595
        %v3606 = vsub.f32 %v3573, %v3598
        %v3607 = vmul.f32 %v3599, 1.442695
        %v3608 = vpow.pop %v3607
        %v3609 = vmul.f32 %v3600, 1.442695
        %v3610 = vpow.pop %v3609
        %v3611 = vmul.f32 %v3601, 1.442695
        %v3612 = vpow.pop %v3611
        %v3613 = vmul.f32 %v3602, 1.442695
        %v3614 = vpow.pop %v3613
        %v3615 = vmul.f32 %v3603, 1.442695
        %v3616 = vpow.pop %v3615
        %v3617 = vmul.f32 %v3604, 1.442695
        %v3618 = vpow.pop %v3617
        %v3619 = vmul.f32 %v3605, 1.442695
        %v3620 = vpow.pop %v3619
        %v3621 = vmul.f32 %v3606, 1.442695
        %v3622 = vpow.pop %v3621
        %v3623 = vsel %vm2103, %v3608, 0.0
        %3624 = vadd.xlane.f32.xlu0 %v3623
        %v3625 = vpop.xlane.xlu0 %3624
        %v3626 = vsel %vm2103, %v3610, 0.0
        %3627 = vadd.xlane.f32.xlu0 %v3626
        %v3628 = vpop.xlane.xlu0 %3627
        %v3629 = vsel %vm2103, %v3612, 0.0
        %3630 = vadd.xlane.f32.xlu0 %v3629
        %v3631 = vpop.xlane.xlu0 %3630
        %v3632 = vsel %vm2103, %v3614, 0.0
        %3633 = vadd.xlane.f32.xlu0 %v3632
        %v3634 = vpop.xlane.xlu0 %3633
        %v3635 = vsel %vm2103, %v3616, 0.0
        %3636 = vadd.xlane.f32.xlu0 %v3635
        %v3637 = vpop.xlane.xlu0 %3636
        %v3638 = vsel %vm2103, %v3618, 0.0
        %3639 = vadd.xlane.f32.xlu0 %v3638
        %v3640 = vpop.xlane.xlu0 %3639
        %v3641 = vsel %vm2103, %v3620, 0.0
        %3642 = vadd.xlane.f32.xlu0 %v3641
        %v3643 = vpop.xlane.xlu0 %3642
        %v3644 = vsel %vm2103, %v3622, 0.0
        %3645 = vadd.xlane.f32.xlu0 %v3644
        %v3646 = vpop.xlane.xlu0 %3645
        %v3647 = vrcp.pop %v3625
        %v3648 = vrcp.pop %v3628
        %v3649 = vrcp.pop %v3631
        %v3650 = vrcp.pop %v3634
        %v3651 = vrcp.pop %v3637
        %v3652 = vrcp.pop %v3640
        %v3653 = vrcp.pop %v3643
        %v3654 = vrcp.pop %v3646
        %v3655 = vmul.f32 %v3608, %v3647
        %v3656 = vmul.f32 %v3610, %v3648
        %v3657 = vmul.f32 %v3612, %v3649
        %v3658 = vmul.f32 %v3614, %v3650
        %v3659 = vmul.f32 %v3616, %v3651
        %v3660 = vmul.f32 %v3618, %v3652
        %v3661 = vmul.f32 %v3620, %v3653
        %v3662 = vmul.f32 %v3622, %v3654
        %v3663 = vpack.c.bf16 %v3656, %v3655
        %v3664 = vpack.c.bf16 %v3658, %v3657
        %v3665 = vpack.c.bf16 %v3660, %v3659
        %v3666 = vpack.c.bf16 %v3662, %v3661
        %3667 = vrot.lane.b32.xlu0 %v3269, 48
        %v3668 = vpop.permute.xlu0 %3667
        %3669 = vrot.lane.b32.xlu0 %v3270, 48
        %v3670 = vpop.permute.xlu0 %3669
        %3671 = vrot.lane.b32.xlu0 %v3271, 48
        %v3672 = vpop.permute.xlu0 %3671
        %3673 = vrot.lane.b32.xlu0 %v3272, 48
        %v3674 = vpop.permute.xlu0 %3673
        %v3680 = vsel %vm2103, %v3663, 0
        %v3683 = vsel %vm2103, %v3664, 0
        %v3686 = vsel %vm2103, %v3665, 0
        %v3689 = vsel %vm2103, %v3666, 0
        %3691 = vmatpush.bf16.msra.mxu0 0
        %3692 = vmatpush.bf16.msra.mxu0 0
        %3693 = vmatpush.bf16.msra.mxu0 0
        %3694 = vmatpush.bf16.msra.mxu0 0
        %3695 = vmatpush.bf16.msra.mxu0 %v3674
        %3696 = vmatpush.bf16.msra.mxu0 %v3672
        %3697 = vmatpush.bf16.msra.mxu0 %v3670
        %3698 = vmatpush.bf16.msra.mxu0 %v3668
        %3699 = vmatmul.bf16.gmra.mxu0 %v3680
        %v3700 = vpop.f32.mrf.mxu0
        %v3701 = vadd.f32 0.0, %v3700
        %v3702 = vpop.f32.mrf.mxu0
        %v3703 = vadd.f32 0.0, %v3702
        %3704 = vmatmul.bf16.gmra.mxu0 %v3683
        %v3705 = vpop.f32.mrf.mxu0
        %v3706 = vadd.f32 0.0, %v3705
        %v3707 = vpop.f32.mrf.mxu0
        %v3708 = vadd.f32 0.0, %v3707
        %3709 = vmatmul.bf16.gmra.mxu0 %v3686
        %v3710 = vpop.f32.mrf.mxu0
        %v3711 = vadd.f32 0.0, %v3710
        %v3712 = vpop.f32.mrf.mxu0
        %v3713 = vadd.f32 0.0, %v3712
        %3714 = vmatmul.bf16.gmra.mxu0 %v3689
        %v3715 = vpop.f32.mrf.mxu0
        %v3716 = vadd.f32 0.0, %v3715
        %v3717 = vpop.f32.mrf.mxu0
        %v3718 = vadd.f32 0.0, %v3717
        %3719 = vdwg.mxu0
        %v3720 = vld [vmem:[%s33 + $0x8] sm:$0xf]
        %v3721 = vld [vmem:[%s33 + $0xc] sm:$0xf]
        %v3722 = vpack.c.bf16 %v3703, %v3701
        %v3723 = vpack.c.bf16 %v3708, %v3706
        %v3724 = vpack.c.bf16 %v3713, %v3711
        %v3725 = vpack.c.bf16 %v3718, %v3716
        %v3728 = vunpack.c.l.b16 %v3720
        %v3729 = vunpack.c.l.b16 %v3721
        %v3730 = vpack.c.b16 %v3729, %v3728
        %v3733 = vsel %vm2049, %v3722, 0
        %v3736 = vsel %vm2049, %v3723, 0
        %v3739 = vsel %vm2049, %v3724, 0
        %v3742 = vsel %vm2049, %v3725, 0
        %3744 = vmatpush.bf16.msra.mxu0 0
        %3745 = vmatpush.bf16.msra.mxu0 0
        %3746 = vmatpush.bf16.msra.mxu0 0
        %3747 = vmatpush.bf16.msra.mxu0 0
        %3748 = vmatpush.bf16.msra.mxu0 0
        %3749 = vmatpush.bf16.msra.mxu0 0
        %3750 = vmatpush.bf16.msra.mxu0 0
        %3751 = vmatpush.bf16.msra.mxu0 %v3730
        %3752 = vmatmul.bf16.gmra.mxu0 %v3733
        %v3753 = vpop.f32.mrf.mxu0
        %v3754 = vadd.f32 0.0, %v3753
        %v3755 = vpop.f32.mrf.mxu0
        %v3756 = vadd.f32 0.0, %v3755
        %3757 = vmatmul.bf16.gmra.mxu0 %v3736
        %v3758 = vpop.f32.mrf.mxu0
        %v3759 = vadd.f32 0.0, %v3758
        %v3760 = vpop.f32.mrf.mxu0
        %v3761 = vadd.f32 0.0, %v3760
        %3762 = vmatmul.bf16.gmra.mxu0 %v3739
        %v3763 = vpop.f32.mrf.mxu0
        %v3764 = vadd.f32 0.0, %v3763
        %v3765 = vpop.f32.mrf.mxu0
        %v3766 = vadd.f32 0.0, %v3765
        %3767 = vmatmul.bf16.gmra.mxu0 %v3742
        %v3768 = vpop.f32.mrf.mxu0
        %v3769 = vadd.f32 0.0, %v3768
        %v3770 = vpop.f32.mrf.mxu0
        %v3771 = vadd.f32 0.0, %v3770
        %3772 = vdwg.mxu0
        %v3775 = vunpack.c.l.b16 %v3491
        %v3776 = vunpack.c.l.b16 %v3492
        %v3777 = vpack.c.b16 %v3776, %v3775
        %v3780 = vsel %vm2049, %v3493, 0
        %v3783 = vsel %vm2049, %v3494, 0
        %v3786 = vsel %vm2049, %v3495, 0
        %v3789 = vsel %vm2049, %v3496, 0
        %3791 = vmatpush.bf16.msra.mxu0 0
        %3792 = vmatpush.bf16.msra.mxu0 0
        %3793 = vmatpush.bf16.msra.mxu0 0
        %3794 = vmatpush.bf16.msra.mxu0 0
        %3795 = vmatpush.bf16.msra.mxu0 0
        %3796 = vmatpush.bf16.msra.mxu0 0
        %3797 = vmatpush.bf16.msra.mxu0 0
        %3798 = vmatpush.bf16.msra.mxu0 %v3777
        %3799 = vmatmul.bf16.gmra.mxu0 %v3780
        %v3800 = vpop.f32.mrf.mxu0
        %v3801 = vadd.f32 %v3754, %v3800
        %v3802 = vpop.f32.mrf.mxu0
        %v3803 = vadd.f32 %v3756, %v3802
        %3804 = vmatmul.bf16.gmra.mxu0 %v3783
        %v3805 = vpop.f32.mrf.mxu0
        %v3806 = vadd.f32 %v3759, %v3805
        %v3807 = vpop.f32.mrf.mxu0
        %v3808 = vadd.f32 %v3761, %v3807
        %3809 = vmatmul.bf16.gmra.mxu0 %v3786
        %v3810 = vpop.f32.mrf.mxu0
        %v3811 = vadd.f32 %v3764, %v3810
        %v3812 = vpop.f32.mrf.mxu0
        %v3813 = vadd.f32 %v3766, %v3812
        %3814 = vmatmul.bf16.gmra.mxu0 %v3789
        %v3815 = vpop.f32.mrf.mxu0
        %v3816 = vadd.f32 %v3769, %v3815
        %v3817 = vpop.f32.mrf.mxu0
        %v3818 = vadd.f32 %v3771, %v3817
        %3819 = vdwg.mxu0
        %v3820 = vadd.f32 %v3020, %v3801
        %v3821 = vadd.f32 %v3021, %v3803
        %v3822 = vadd.f32 %v3022, %v3806
        %v3823 = vadd.f32 %v3023, %v3808
        %v3824 = vadd.f32 %v3024, %v3811
        %v3825 = vadd.f32 %v3025, %v3813
        %v3826 = vadd.f32 %v3026, %v3816
        %v3827 = vadd.f32 %v3027, %v3818
        %v3828 = vld [vmem:[%s35] sm:$0x1]
        %v3830 = vperm.slane %v3828, 0
        %v3832 = vadd.f32 %v3820, %v3830
        %v3833 = vadd.f32 %v3821, %v3830
        %v3834 = vadd.f32 %v3822, %v3830
        %v3835 = vadd.f32 %v3823, %v3830
        %v3836 = vadd.f32 %v3824, %v3830
        %v3837 = vadd.f32 %v3825, %v3830
        %v3838 = vadd.f32 %v3826, %v3830
        %v3839 = vadd.f32 %v3827, %v3830
        %v3840 = vsel %vm1578, %v3832, 0.0
        %3841 = vadd.xlane.f32.xlu0 %v3840
        %v3842 = vpop.xlane.xlu0 %3841
        %v3843 = vsel %vm1578, %v3833, 0.0
        %3844 = vadd.xlane.f32.xlu0 %v3843
        %v3845 = vpop.xlane.xlu0 %3844
        %v3846 = vsel %vm1578, %v3834, 0.0
        %3847 = vadd.xlane.f32.xlu0 %v3846
        %v3848 = vpop.xlane.xlu0 %3847
        %v3849 = vsel %vm1578, %v3835, 0.0
        %3850 = vadd.xlane.f32.xlu0 %v3849
        %v3851 = vpop.xlane.xlu0 %3850
        %v3852 = vsel %vm1578, %v3836, 0.0
        %3853 = vadd.xlane.f32.xlu0 %v3852
        %v3854 = vpop.xlane.xlu0 %3853
        %v3855 = vsel %vm1578, %v3837, 0.0
        %3856 = vadd.xlane.f32.xlu0 %v3855
        %v3857 = vpop.xlane.xlu0 %3856
        %v3858 = vsel %vm1578, %v3838, 0.0
        %3859 = vadd.xlane.f32.xlu0 %v3858
        %v3860 = vpop.xlane.xlu0 %3859
        %v3861 = vsel %vm1578, %v3839, 0.0
        %3862 = vadd.xlane.f32.xlu0 %v3861
        %v3863 = vpop.xlane.xlu0 %3862
        %v3864 = vmul.f32 %v3842, %v1609
        %v3865 = vmul.f32 %v3845, %v1609
        %v3866 = vmul.f32 %v3848, %v1609
        %v3867 = vmul.f32 %v3851, %v1609
        %v3868 = vmul.f32 %v3854, %v1609
        %v3869 = vmul.f32 %v3857, %v1609
        %v3870 = vmul.f32 %v3860, %v1609
        %v3871 = vmul.f32 %v3863, %v1609
        %v3872 = vsub.f32 %v3832, %v3864
        %v3873 = vsub.f32 %v3833, %v3865
        %v3874 = vsub.f32 %v3834, %v3866
        %v3875 = vsub.f32 %v3835, %v3867
        %v3876 = vsub.f32 %v3836, %v3868
        %v3877 = vsub.f32 %v3837, %v3869
        %v3878 = vsub.f32 %v3838, %v3870
        %v3879 = vsub.f32 %v3839, %v3871
        %v3880 = vmul.f32 %v3872, %v3872
        %v3881 = vmul.f32 %v3873, %v3873
        %v3882 = vmul.f32 %v3874, %v3874
        %v3883 = vmul.f32 %v3875, %v3875
        %v3884 = vmul.f32 %v3876, %v3876
        %v3885 = vmul.f32 %v3877, %v3877
        %v3886 = vmul.f32 %v3878, %v3878
        %v3887 = vmul.f32 %v3879, %v3879
        %v3888 = vsel %vm1578, %v3880, 0.0
        %3889 = vadd.xlane.f32.xlu0 %v3888
        %v3890 = vpop.xlane.xlu0 %3889
        %v3891 = vsel %vm1578, %v3881, 0.0
        %3892 = vadd.xlane.f32.xlu0 %v3891
        %v3893 = vpop.xlane.xlu0 %3892
        %v3894 = vsel %vm1578, %v3882, 0.0
        %3895 = vadd.xlane.f32.xlu0 %v3894
        %v3896 = vpop.xlane.xlu0 %3895
        %v3897 = vsel %vm1578, %v3883, 0.0
        %3898 = vadd.xlane.f32.xlu0 %v3897
        %v3899 = vpop.xlane.xlu0 %3898
        %v3900 = vsel %vm1578, %v3884, 0.0
        %3901 = vadd.xlane.f32.xlu0 %v3900
        %v3902 = vpop.xlane.xlu0 %3901
        %v3903 = vsel %vm1578, %v3885, 0.0
        %3904 = vadd.xlane.f32.xlu0 %v3903
        %v3905 = vpop.xlane.xlu0 %3904
        %v3906 = vsel %vm1578, %v3886, 0.0
        %3907 = vadd.xlane.f32.xlu0 %v3906
        %v3908 = vpop.xlane.xlu0 %3907
        %v3909 = vsel %vm1578, %v3887, 0.0
        %3910 = vadd.xlane.f32.xlu0 %v3909
        %v3911 = vpop.xlane.xlu0 %3910
        %v3912 = vmul.f32 %v3890, %v1609
        %v3913 = vmul.f32 %v3893, %v1609
        %v3914 = vmul.f32 %v3896, %v1609
        %v3915 = vmul.f32 %v3899, %v1609
        %v3916 = vmul.f32 %v3902, %v1609
        %v3917 = vmul.f32 %v3905, %v1609
        %v3918 = vmul.f32 %v3908, %v1609
        %v3919 = vmul.f32 %v3911, %v1609
        %v3920 = vadd.f32 %v3912, 1e-05
        %v3921 = vadd.f32 %v3913, 1e-05
        %v3922 = vadd.f32 %v3914, 1e-05
        %v3923 = vadd.f32 %v3915, 1e-05
        %v3924 = vadd.f32 %v3916, 1e-05
        %v3925 = vadd.f32 %v3917, 1e-05
        %v3926 = vadd.f32 %v3918, 1e-05
        %v3927 = vadd.f32 %v3919, 1e-05
        %v3928 = vrsqrt.pop %v3920
        %v3929 = vmul.f32 %v3928, %v3920
        %v3930 = vmul.f32 %v3929, %v3928
        %v3931 = vmul.f32 0.5, %v3930
        %v3932 = vsub.f32 1.5, %v3931
        %v3933 = vmul.f32 %v3928, %v3932
        %vm3934 = vweird.f32 %v3920
        %vm3935 = vweird.f32 %v3928
        %vm3936 = vmor %vm3934, %vm3935
        %v3937 = vsel %vm3936, %v3928, %v3933
        %v3938 = vrsqrt.pop %v3921
        %v3939 = vmul.f32 %v3938, %v3921
        %v3940 = vmul.f32 %v3939, %v3938
        %v3941 = vmul.f32 0.5, %v3940
        %v3942 = vsub.f32 1.5, %v3941
        %v3943 = vmul.f32 %v3938, %v3942
        %vm3944 = vweird.f32 %v3921
        %vm3945 = vweird.f32 %v3938
        %vm3946 = vmor %vm3944, %vm3945
        %v3947 = vsel %vm3946, %v3938, %v3943
        %v3948 = vrsqrt.pop %v3922
        %v3949 = vmul.f32 %v3948, %v3922
        %v3950 = vmul.f32 %v3949, %v3948
        %v3951 = vmul.f32 0.5, %v3950
        %v3952 = vsub.f32 1.5, %v3951
        %v3953 = vmul.f32 %v3948, %v3952
        %vm3954 = vweird.f32 %v3922
        %vm3955 = vweird.f32 %v3948
        %vm3956 = vmor %vm3954, %vm3955
        %v3957 = vsel %vm3956, %v3948, %v3953
        %v3958 = vrsqrt.pop %v3923
        %v3959 = vmul.f32 %v3958, %v3923
        %v3960 = vmul.f32 %v3959, %v3958
        %v3961 = vmul.f32 0.5, %v3960
        %v3962 = vsub.f32 1.5, %v3961
        %v3963 = vmul.f32 %v3958, %v3962
        %vm3964 = vweird.f32 %v3923
        %vm3965 = vweird.f32 %v3958
        %vm3966 = vmor %vm3964, %vm3965
        %v3967 = vsel %vm3966, %v3958, %v3963
        %v3968 = vrsqrt.pop %v3924
        %v3969 = vmul.f32 %v3968, %v3924
        %v3970 = vmul.f32 %v3969, %v3968
        %v3971 = vmul.f32 0.5, %v3970
        %v3972 = vsub.f32 1.5, %v3971
        %v3973 = vmul.f32 %v3968, %v3972
        %vm3974 = vweird.f32 %v3924
        %vm3975 = vweird.f32 %v3968
        %vm3976 = vmor %vm3974, %vm3975
        %v3977 = vsel %vm3976, %v3968, %v3973
        %v3978 = vrsqrt.pop %v3925
        %v3979 = vmul.f32 %v3978, %v3925
        %v3980 = vmul.f32 %v3979, %v3978
        %v3981 = vmul.f32 0.5, %v3980
        %v3982 = vsub.f32 1.5, %v3981
        %v3983 = vmul.f32 %v3978, %v3982
        %vm3984 = vweird.f32 %v3925
        %vm3985 = vweird.f32 %v3978
        %vm3986 = vmor %vm3984, %vm3985
        %v3987 = vsel %vm3986, %v3978, %v3983
        %v3988 = vrsqrt.pop %v3926
        %v3989 = vmul.f32 %v3988, %v3926
        %v3990 = vmul.f32 %v3989, %v3988
        %v3991 = vmul.f32 0.5, %v3990
        %v3992 = vsub.f32 1.5, %v3991
        %v3993 = vmul.f32 %v3988, %v3992
        %vm3994 = vweird.f32 %v3926
        %vm3995 = vweird.f32 %v3988
        %vm3996 = vmor %vm3994, %vm3995
        %v3997 = vsel %vm3996, %v3988, %v3993
        %v3998 = vrsqrt.pop %v3927
        %v3999 = vmul.f32 %v3998, %v3927
        %v4000 = vmul.f32 %v3999, %v3998
        %v4001 = vmul.f32 0.5, %v4000
        %v4002 = vsub.f32 1.5, %v4001
        %v4003 = vmul.f32 %v3998, %v4002
        %vm4004 = vweird.f32 %v3927
        %vm4005 = vweird.f32 %v3998
        %vm4006 = vmor %vm4004, %vm4005
        %v4007 = vsel %vm4006, %v3998, %v4003
        %v4008 = vmul.f32 %v3872, %v3937
        %v4009 = vmul.f32 %v3873, %v3947
        %v4010 = vmul.f32 %v3874, %v3957
        %v4011 = vmul.f32 %v3875, %v3967
        %v4012 = vmul.f32 %v3876, %v3977
        %v4013 = vmul.f32 %v3877, %v3987
        %v4014 = vmul.f32 %v3878, %v3997
        %v4015 = vmul.f32 %v3879, %v4007
        %v4016 = vld [vmem:[%s39] sm:$0xf]
        %v4017 = vld [vmem:[%s39 + $0x4] sm:$0xf]
        %v4018 = vld [vmem:[%s39 + $0x8] sm:$0xf]
        %v4019 = vld [vmem:[%s39 + $0xc] sm:$0xf]
        %v4020 = vpack.c.bf16 %v4009, %v4008
        %v4021 = vpack.c.bf16 %v4011, %v4010
        %v4022 = vpack.c.bf16 %v4013, %v4012
        %v4023 = vpack.c.bf16 %v4015, %v4014
        %v4024 = vld [vmem:[%s41] sm:$0x1]
        %v4026 = vperm.slane %v4024, 0
        %v4032 = vunpack.c.l.b16 %v4016
        %v4033 = vunpack.c.l.b16 %v4017
        %v4034 = vunpack.c.l.b16 %v4018
        %v4035 = vunpack.c.l.b16 %v4019
        %v4036 = vpack.c.b16 %v4033, %v4032
        %v4037 = vpack.c.b16 %v4035, %v4034
        %v4041 = vsel %vm1578, %v4020, 0
        %v4044 = vsel %vm1578, %v4021, 0
        %v4047 = vsel %vm1578, %v4022, 0
        %v4050 = vsel %vm1578, %v4023, 0
        %4052 = vmatpush.bf16.msra.mxu0 0
        %4053 = vmatpush.bf16.msra.mxu0 0
        %4054 = vmatpush.bf16.msra.mxu0 0
        %4055 = vmatpush.bf16.msra.mxu0 0
        %4056 = vmatpush.bf16.msra.mxu0 0
        %4057 = vmatpush.bf16.msra.mxu0 0
        %4058 = vmatpush.bf16.msra.mxu0 %v4037
        %4059 = vmatpush.bf16.msra.mxu0 %v4036
        %4060 = vmatmul.bf16.gmra.mxu0 %v4041
        %v4061 = vpop.f32.mrf.mxu0
        %v4062 = vadd.f32 %v4026, %v4061
        %v4063 = vpop.f32.mrf.mxu0
        %v4064 = vadd.f32 %v4026, %v4063
        %4065 = vmatmul.bf16.gmra.mxu0 %v4044
        %v4066 = vpop.f32.mrf.mxu0
        %v4067 = vadd.f32 %v4026, %v4066
        %v4068 = vpop.f32.mrf.mxu0
        %v4069 = vadd.f32 %v4026, %v4068
        %4070 = vmatmul.bf16.gmra.mxu0 %v4047
        %v4071 = vpop.f32.mrf.mxu0
        %v4072 = vadd.f32 %v4026, %v4071
        %v4073 = vpop.f32.mrf.mxu0
        %v4074 = vadd.f32 %v4026, %v4073
        %4075 = vmatmul.bf16.gmra.mxu0 %v4050
        %v4076 = vpop.f32.mrf.mxu0
        %v4077 = vadd.f32 %v4026, %v4076
        %v4078 = vpop.f32.mrf.mxu0
        %v4079 = vadd.f32 %v4026, %v4078
        %4080 = vdwg.mxu0
        %v4081 = vmul.f32 %v4062, 0.5
        %v4082 = vmul.f32 %v4064, 0.5
        %v4083 = vmul.f32 %v4067, 0.5
        %v4084 = vmul.f32 %v4069, 0.5
        %v4085 = vmul.f32 %v4072, 0.5
        %v4086 = vmul.f32 %v4074, 0.5
        %v4087 = vmul.f32 %v4077, 0.5
        %v4088 = vmul.f32 %v4079, 0.5
        %v4089 = vmul.f32 %v4062, 0.044715
        %v4090 = vmul.f32 %v4064, 0.044715
        %v4091 = vmul.f32 %v4067, 0.044715
        %v4092 = vmul.f32 %v4069, 0.044715
        %v4093 = vmul.f32 %v4072, 0.044715
        %v4094 = vmul.f32 %v4074, 0.044715
        %v4095 = vmul.f32 %v4077, 0.044715
        %v4096 = vmul.f32 %v4079, 0.044715
        %v4097 = vmul.f32 %v4089, %v4062
        %v4098 = vmul.f32 %v4090, %v4064
        %v4099 = vmul.f32 %v4091, %v4067
        %v4100 = vmul.f32 %v4092, %v4069
        %v4101 = vmul.f32 %v4093, %v4072
        %v4102 = vmul.f32 %v4094, %v4074
        %v4103 = vmul.f32 %v4095, %v4077
        %v4104 = vmul.f32 %v4096, %v4079
        %v4105 = vmul.f32 %v4097, %v4062
        %v4106 = vmul.f32 %v4098, %v4064
        %v4107 = vmul.f32 %v4099, %v4067
        %v4108 = vmul.f32 %v4100, %v4069
        %v4109 = vmul.f32 %v4101, %v4072
        %v4110 = vmul.f32 %v4102, %v4074
        %v4111 = vmul.f32 %v4103, %v4077
        %v4112 = vmul.f32 %v4104, %v4079
        %v4113 = vadd.f32 %v4062, %v4105
        %v4114 = vadd.f32 %v4064, %v4106
        %v4115 = vadd.f32 %v4067, %v4107
        %v4116 = vadd.f32 %v4069, %v4108
        %v4117 = vadd.f32 %v4072, %v4109
        %v4118 = vadd.f32 %v4074, %v4110
        %v4119 = vadd.f32 %v4077, %v4111
        %v4120 = vadd.f32 %v4079, %v4112
        %v4121 = vmul.f32 %v4113, 0.7978846
        %v4122 = vmul.f32 %v4114, 0.7978846
        %v4123 = vmul.f32 %v4115, 0.7978846
        %v4124 = vmul.f32 %v4116, 0.7978846
        %v4125 = vmul.f32 %v4117, 0.7978846
        %v4126 = vmul.f32 %v4118, 0.7978846
        %v4127 = vmul.f32 %v4119, 0.7978846
        %v4128 = vmul.f32 %v4120, 0.7978846
        %v4129 = vtanh.pop %v4121
        %v4130 = vtanh.pop %v4122
        %v4131 = vtanh.pop %v4123
        %v4132 = vtanh.pop %v4124
        %v4133 = vtanh.pop %v4125
        %v4134 = vtanh.pop %v4126
        %v4135 = vtanh.pop %v4127
        %v4136 = vtanh.pop %v4128
        %v4137 = vadd.f32 %v4129, 1.0
        %v4138 = vadd.f32 %v4130, 1.0
        %v4139 = vadd.f32 %v4131, 1.0
        %v4140 = vadd.f32 %v4132, 1.0
        %v4141 = vadd.f32 %v4133, 1.0
        %v4142 = vadd.f32 %v4134, 1.0
        %v4143 = vadd.f32 %v4135, 1.0
        %v4144 = vadd.f32 %v4136, 1.0
        %v4145 = vmul.f32 %v4081, %v4137
        %v4146 = vmul.f32 %v4082, %v4138
        %v4147 = vmul.f32 %v4083, %v4139
        %v4148 = vmul.f32 %v4084, %v4140
        %v4149 = vmul.f32 %v4085, %v4141
        %v4150 = vmul.f32 %v4086, %v4142
        %v4151 = vmul.f32 %v4087, %v4143
        %v4152 = vmul.f32 %v4088, %v4144
        %v4153 = vld [vmem:[%s43] sm:$0xf]
        %v4154 = vld [vmem:[%s43 + $0x4] sm:$0xf]
        %v4155 = vld [vmem:[%s43 + $0x8] sm:$0xf]
        %v4156 = vld [vmem:[%s43 + $0xc] sm:$0xf]
        %v4157 = vld [vmem:[%s43 + $0x10] sm:$0xf]
        %v4158 = vld [vmem:[%s43 + $0x14] sm:$0xf]
        %v4159 = vld [vmem:[%s43 + $0x18] sm:$0xf]
        %v4160 = vld [vmem:[%s43 + $0x1c] sm:$0xf]
        %v4161 = vld [vmem:[%s43 + $0x20] sm:$0xf]
        %v4162 = vld [vmem:[%s43 + $0x24] sm:$0xf]
        %v4163 = vld [vmem:[%s43 + $0x28] sm:$0xf]
        %v4164 = vld [vmem:[%s43 + $0x2c] sm:$0xf]
        %v4165 = vld [vmem:[%s43 + $0x30] sm:$0xf]
        %v4166 = vld [vmem:[%s43 + $0x34] sm:$0xf]
        %v4167 = vld [vmem:[%s43 + $0x38] sm:$0xf]
        %v4168 = vld [vmem:[%s43 + $0x3c] sm:$0xf]
        %v4169 = vpack.c.bf16 %v4146, %v4145
        %v4170 = vpack.c.bf16 %v4148, %v4147
        %v4171 = vpack.c.bf16 %v4150, %v4149
        %v4172 = vpack.c.bf16 %v4152, %v4151
        %v4189 = vunpack.c.l.b16 %v4153
        %v4190 = vunpack.c.l.b16 %v4154
        %v4191 = vunpack.c.l.b16 %v4155
        %v4192 = vunpack.c.l.b16 %v4156
        %v4193 = vunpack.c.l.b16 %v4157
        %v4194 = vunpack.c.l.b16 %v4158
        %v4195 = vunpack.c.l.b16 %v4159
        %v4196 = vunpack.c.l.b16 %v4160
        %v4197 = vunpack.c.l.b16 %v4161
        %v4198 = vunpack.c.l.b16 %v4162
        %v4199 = vunpack.c.l.b16 %v4163
        %v4200 = vunpack.c.l.b16 %v4164
        %v4201 = vunpack.c.l.b16 %v4165
        %v4202 = vunpack.c.l.b16 %v4166
        %v4203 = vunpack.c.l.b16 %v4167
        %v4204 = vunpack.c.l.b16 %v4168
        %v4205 = vpack.c.b16 %v4190, %v4189
        %v4206 = vpack.c.b16 %v4192, %v4191
        %v4207 = vpack.c.b16 %v4194, %v4193
        %v4208 = vpack.c.b16 %v4196, %v4195
        %v4209 = vpack.c.b16 %v4198, %v4197
        %v4210 = vpack.c.b16 %v4200, %v4199
        %v4211 = vpack.c.b16 %v4202, %v4201
        %v4212 = vpack.c.b16 %v4204, %v4203
        %4221 = vmatpush.bf16.msra.mxu0 %v4212
        %4222 = vmatpush.bf16.msra.mxu0 %v4211
        %4223 = vmatpush.bf16.msra.mxu0 %v4210
        %4224 = vmatpush.bf16.msra.mxu0 %v4209
        %4225 = vmatpush.bf16.msra.mxu0 %v4208
        %4226 = vmatpush.bf16.msra.mxu0 %v4207
        %4227 = vmatpush.bf16.msra.mxu0 %v4206
        %4228 = vmatpush.bf16.msra.mxu0 %v4205
        %4229 = vmatmul.bf16.gmra.mxu0 %v4169
        %v4230 = vpop.f32.mrf.mxu0
        %v4231 = vadd.f32 0.0, %v4230
        %v4232 = vpop.f32.mrf.mxu0
        %v4233 = vadd.f32 0.0, %v4232
        %4234 = vmatmul.bf16.gmra.mxu0 %v4170
        %v4235 = vpop.f32.mrf.mxu0
        %v4236 = vadd.f32 0.0, %v4235
        %v4237 = vpop.f32.mrf.mxu0
        %v4238 = vadd.f32 0.0, %v4237
        %4239 = vmatmul.bf16.gmra.mxu0 %v4171
        %v4240 = vpop.f32.mrf.mxu0
        %v4241 = vadd.f32 0.0, %v4240
        %v4242 = vpop.f32.mrf.mxu0
        %v4243 = vadd.f32 0.0, %v4242
        %4244 = vmatmul.bf16.gmra.mxu0 %v4172
        %v4245 = vpop.f32.mrf.mxu0
        %v4246 = vadd.f32 0.0, %v4245
        %v4247 = vpop.f32.mrf.mxu0
        %v4248 = vadd.f32 0.0, %v4247
        %4249 = vdwg.mxu0
        %v4250 = vadd.f32 %v3832, %v4231
        %v4251 = vadd.f32 %v3833, %v4233
        %v4252 = vadd.f32 %v3834, %v4236
        %v4253 = vadd.f32 %v3835, %v4238
        %v4254 = vadd.f32 %v3836, %v4241
        %v4255 = vadd.f32 %v3837, %v4243
        %v4256 = vadd.f32 %v3838, %v4246
        %v4257 = vadd.f32 %v3839, %v4248
        %v4258 = vld [vmem:[%s45] sm:$0x1]
        %v4260 = vperm.slane %v4258, 0
        %v4262 = vadd.f32 %v4250, %v4260
        %v4263 = vadd.f32 %v4251, %v4260
        %v4264 = vadd.f32 %v4252, %v4260
        %v4265 = vadd.f32 %v4253, %v4260
        %v4266 = vadd.f32 %v4254, %v4260
        %v4267 = vadd.f32 %v4255, %v4260
        %v4268 = vadd.f32 %v4256, %v4260
        %v4269 = vadd.f32 %v4257, %v4260
        %v4270 = vadd.f32 %v4262, %v4264
        %v4271 = vadd.f32 %v4263, %v4265
        %v4272 = vadd.f32 %v4270, %v4266
        %v4273 = vadd.f32 %v4271, %v4267
        %v4274 = vadd.f32 %v4272, %v4268
        %v4275 = vadd.f32 %v4273, %v4269
        %v4276 = vmul.f32 %v4262, %v4262
        %v4277 = vmul.f32 %v4263, %v4263
        %v4278 = vmul.f32 %v4264, %v4264
        %v4279 = vmul.f32 %v4265, %v4265
        %v4280 = vadd.f32 %v4276, %v4278
        %v4281 = vadd.f32 %v4277, %v4279
        %v4282 = vmul.f32 %v4266, %v4266
        %v4283 = vmul.f32 %v4267, %v4267
        %v4284 = vadd.f32 %v4280, %v4282
        %v4285 = vadd.f32 %v4281, %v4283
        %v4286 = vmul.f32 %v4268, %v4268
        %v4287 = vmul.f32 %v4269, %v4269
        %v4288 = vadd.f32 %v4284, %v4286
        %v4289 = vadd.f32 %v4285, %v4287
        %v4290 = vsel %vm1578, %v4274, 0.0
        %4291 = vadd.xlane.f32.xlu0 %v4290
        %v4292 = vpop.xlane.xlu0 %4291
        %v4293 = vsel %vm1578, %v4275, 0.0
        %4294 = vadd.xlane.f32.xlu0 %v4293
        %v4295 = vpop.xlane.xlu0 %4294
        %v4296 = vmul.f32 %v4292, 0.0078125
        %v4297 = vmul.f32 %v4295, 0.0078125
        %v4298 = vsel %vm1578, %v4288, 0.0
        %4299 = vadd.xlane.f32.xlu0 %v4298
        %v4300 = vpop.xlane.xlu0 %4299
        %v4301 = vsel %vm1578, %v4289, 0.0
        %4302 = vadd.xlane.f32.xlu0 %v4301
        %v4303 = vpop.xlane.xlu0 %4302
        %v4304 = vmul.f32 %v4300, 0.0078125
        %v4305 = vmul.f32 %v4303, 0.0078125
        %v4306 = vmul.f32 %v4296, %v4296
        %v4307 = vmul.f32 %v4297, %v4297
        %v4308 = vsub.f32 %v4304, %v4306
        %v4309 = vsub.f32 %v4305, %v4307
        %v4310 = vadd.f32 %v4308, 1e-05
        %v4311 = vadd.f32 %v4309, 1e-05
        %v4312 = vrsqrt.pop %v4310
        %v4313 = vmul.f32 %v4312, %v4310
        %v4314 = vmul.f32 %v4313, %v4312
        %v4315 = vmul.f32 0.5, %v4314
        %v4316 = vsub.f32 1.5, %v4315
        %v4317 = vmul.f32 %v4312, %v4316
        %vm4318 = vweird.f32 %v4310
        %vm4319 = vweird.f32 %v4312
        %vm4320 = vmor %vm4318, %vm4319
        %v4321 = vsel %vm4320, %v4312, %v4317
        %v4322 = vrsqrt.pop %v4311
        %v4323 = vmul.f32 %v4322, %v4311
        %v4324 = vmul.f32 %v4323, %v4322
        %v4325 = vmul.f32 0.5, %v4324
        %v4326 = vsub.f32 1.5, %v4325
        %v4327 = vmul.f32 %v4322, %v4326
        %vm4328 = vweird.f32 %v4311
        %vm4329 = vweird.f32 %v4322
        %vm4330 = vmor %vm4328, %vm4329
        %v4331 = vsel %vm4330, %v4322, %v4327
        %v4332 = vsub.f32 %v4262, %v4296
        %v4333 = vsub.f32 %v4263, %v4297
        %v4334 = vmul.f32 %v4332, %v4321
        %v4335 = vmul.f32 %v4333, %v4331
        %v4336 = vld [vmem:[%s47] sm:$0xf]
        %v4337 = vld [vmem:[%s47 + $0x4] sm:$0xf]
        %v4338 = vld [vmem:[%s47 + $0x8] sm:$0xf]
        %v4339 = vld [vmem:[%s47 + $0xc] sm:$0xf]
        %v4340 = vpack.c.bf16 %v4335, %v4334
        %v4341 = vsub.f32 %v4264, %v4296
        %v4342 = vsub.f32 %v4265, %v4297
        %v4343 = vmul.f32 %v4341, %v4321
        %v4344 = vmul.f32 %v4342, %v4331
        %v4345 = vld [vmem:[%s47 + $0x10] sm:$0xf]
        %v4346 = vld [vmem:[%s47 + $0x14] sm:$0xf]
        %v4347 = vld [vmem:[%s47 + $0x18] sm:$0xf]
        %v4348 = vld [vmem:[%s47 + $0x1c] sm:$0xf]
        %v4349 = vpack.c.bf16 %v4344, %v4343
        %v4354 = vunpack.c.l.b16 %v4345
        %v4355 = vunpack.c.l.b16 %v4346
        %v4356 = vunpack.c.l.b16 %v4347
        %v4357 = vunpack.c.l.b16 %v4348
        %v4358 = vpack.c.b16 %v4355, %v4354
        %v4359 = vpack.c.b16 %v4357, %v4356
        %v4363 = vsel %vm1578, %v4349, 0
        %4365 = vmatpush.bf16.msra.mxu0 0
        %4366 = vmatpush.bf16.msra.mxu0 0
        %4367 = vmatpush.bf16.msra.mxu0 0
        %4368 = vmatpush.bf16.msra.mxu0 0
        %4369 = vmatpush.bf16.msra.mxu0 0
        %4370 = vmatpush.bf16.msra.mxu0 0
        %4371 = vmatpush.bf16.msra.mxu0 %v4359
        %4372 = vmatpush.bf16.msra.mxu0 %v4358
        %4373 = vmatmul.bf16.gmra.mxu0 %v4363
        %v4374 = vpop.f32.mrf.mxu0
        %v4375 = vadd.f32 0.0, %v4374
        %v4376 = vpop.f32.mrf.mxu0
        %v4377 = vadd.f32 0.0, %v4376
        %4378 = vdwg.mxu0
        %v4383 = vunpack.c.l.b16 %v4336
        %v4384 = vunpack.c.l.b16 %v4337
        %v4385 = vunpack.c.l.b16 %v4338
        %v4386 = vunpack.c.l.b16 %v4339
        %v4387 = vpack.c.b16 %v4384, %v4383
        %v4388 = vpack.c.b16 %v4386, %v4385
        %v4392 = vsel %vm1578, %v4340, 0
        %4394 = vmatpush.bf16.msra.mxu0 0
        %4395 = vmatpush.bf16.msra.mxu0 0
        %4396 = vmatpush.bf16.msra.mxu0 0
        %4397 = vmatpush.bf16.msra.mxu0 0
        %4398 = vmatpush.bf16.msra.mxu0 0
        %4399 = vmatpush.bf16.msra.mxu0 0
        %4400 = vmatpush.bf16.msra.mxu0 %v4388
        %4401 = vmatpush.bf16.msra.mxu0 %v4387
        %4402 = vmatmul.bf16.gmra.mxu0 %v4392
        %v4403 = vpop.f32.mrf.mxu0
        %v4404 = vadd.f32 %v4375, %v4403
        %v4405 = vpop.f32.mrf.mxu0
        %v4406 = vadd.f32 %v4377, %v4405
        %4407 = vdwg.mxu0
        %v4408 = vsub.f32 %v4266, %v4296
        %v4409 = vsub.f32 %v4267, %v4297
        %v4410 = vmul.f32 %v4408, %v4321
        %v4411 = vmul.f32 %v4409, %v4331
        %v4412 = vld [vmem:[%s47 + $0x20] sm:$0xf]
        %v4413 = vld [vmem:[%s47 + $0x24] sm:$0xf]
        %v4414 = vld [vmem:[%s47 + $0x28] sm:$0xf]
        %v4415 = vld [vmem:[%s47 + $0x2c] sm:$0xf]
        %v4416 = vpack.c.bf16 %v4411, %v4410
        %v4421 = vunpack.c.l.b16 %v4412
        %v4422 = vunpack.c.l.b16 %v4413
        %v4423 = vunpack.c.l.b16 %v4414
        %v4424 = vunpack.c.l.b16 %v4415
        %v4425 = vpack.c.b16 %v4422, %v4421
        %v4426 = vpack.c.b16 %v4424, %v4423
        %v4430 = vsel %vm1578, %v4416, 0
        %4432 = vmatpush.bf16.msra.mxu0 0
        %4433 = vmatpush.bf16.msra.mxu0 0
        %4434 = vmatpush.bf16.msra.mxu0 0
        %4435 = vmatpush.bf16.msra.mxu0 0
        %4436 = vmatpush.bf16.msra.mxu0 0
        %4437 = vmatpush.bf16.msra.mxu0 0
        %4438 = vmatpush.bf16.msra.mxu0 %v4426
        %4439 = vmatpush.bf16.msra.mxu0 %v4425
        %4440 = vmatmul.bf16.gmra.mxu0 %v4430
        %v4441 = vpop.f32.mrf.mxu0
        %v4442 = vadd.f32 0.0, %v4441
        %v4443 = vpop.f32.mrf.mxu0
        %v4444 = vadd.f32 0.0, %v4443
        %4445 = vdwg.mxu0
        %v4446 = vadd.f32 %v4404, %v4442
        %v4447 = vadd.f32 %v4406, %v4444
        %v4448 = vsub.f32 %v4268, %v4296
        %v4449 = vsub.f32 %v4269, %v4297
        %v4450 = vmul.f32 %v4448, %v4321
        %v4451 = vmul.f32 %v4449, %v4331
        %v4452 = vld [vmem:[%s47 + $0x30] sm:$0xf]
        %v4453 = vld [vmem:[%s47 + $0x34] sm:$0xf]
        %v4454 = vld [vmem:[%s47 + $0x38] sm:$0xf]
        %v4455 = vld [vmem:[%s47 + $0x3c] sm:$0xf]
        %v4456 = vpack.c.bf16 %v4451, %v4450
        %v4461 = vunpack.c.l.b16 %v4452
        %v4462 = vunpack.c.l.b16 %v4453
        %v4463 = vunpack.c.l.b16 %v4454
        %v4464 = vunpack.c.l.b16 %v4455
        %v4465 = vpack.c.b16 %v4462, %v4461
        %v4466 = vpack.c.b16 %v4464, %v4463
        %v4470 = vsel %vm1578, %v4456, 0
        %4472 = vmatpush.bf16.msra.mxu0 0
        %4473 = vmatpush.bf16.msra.mxu0 0
        %4474 = vmatpush.bf16.msra.mxu0 0
        %4475 = vmatpush.bf16.msra.mxu0 0
        %4476 = vmatpush.bf16.msra.mxu0 0
        %4477 = vmatpush.bf16.msra.mxu0 0
        %4478 = vmatpush.bf16.msra.mxu0 %v4466
        %4479 = vmatpush.bf16.msra.mxu0 %v4465
        %4480 = vmatmul.bf16.gmra.mxu0 %v4470
        %v4481 = vpop.f32.mrf.mxu0
        %v4482 = vadd.f32 0.0, %v4481
        %v4483 = vpop.f32.mrf.mxu0
        %v4484 = vadd.f32 0.0, %v4483
        %4485 = vdwg.mxu0
        %v4486 = vadd.f32 %v4446, %v4482
        %v4487 = vadd.f32 %v4447, %v4484
        %v4488 = vld [vmem:[#allocation2] sm:$0x1]
        %v4490 = vperm.slane %v4488, 0
        %v4492 = vadd.f32 %v4486, %v4490
        %v4493 = vadd.f32 %v4487, %v4490
        %v4494 = vsel %vm2103, %v4492, 0.0
        %4495 = vadd.xlane.f32.xlu0 %v4494
        %v4496 = vpop.xlane.xlu0 %4495
        %v4497 = vsel %vm2103, %v4493, 0.0
        %4498 = vadd.xlane.f32.xlu0 %v4497
        %v4499 = vpop.xlane.xlu0 %4498
        %v4500 = vrcp.pop 64.0
        %v4501 = vmul.f32 64.0, %v4500
        %v4502 = vsub.f32 1.0, %v4501
        %v4503 = vmul.f32 %v4500, %v4502
        %v4504 = vadd.f32 %v4500, %v4503
        %vm4505 = vweird.f32 %v4500
        %v4506 = vsel %vm4505, %v4500, %v4504
        %v4507 = vmul.f32 %v4496, %v4506
        %v4508 = vmul.f32 %v4499, %v4506
        %v4509 = vsub.f32 %v4492, %v4507
        %v4510 = vsub.f32 %v4493, %v4508
        %v4511 = vmul.f32 %v4509, %v4509
        %v4512 = vmul.f32 %v4510, %v4510
        %v4513 = vsel %vm2103, %v4511, 0.0
        %4514 = vadd.xlane.f32.xlu0 %v4513
        %v4515 = vpop.xlane.xlu0 %4514
        %v4516 = vsel %vm2103, %v4512, 0.0
        %4517 = vadd.xlane.f32.xlu0 %v4516
        %v4518 = vpop.xlane.xlu0 %4517
        %v4519 = vmul.f32 %v4515, %v4506
        %v4520 = vmul.f32 %v4518, %v4506
        %v4521 = vadd.f32 %v4519, 1e-05
        %v4522 = vadd.f32 %v4520, 1e-05
        %v4523 = vrsqrt.pop %v4521
        %v4524 = vmul.f32 %v4523, %v4521
        %v4525 = vmul.f32 %v4524, %v4523
        %v4526 = vmul.f32 0.5, %v4525
        %v4527 = vsub.f32 1.5, %v4526
        %v4528 = vmul.f32 %v4523, %v4527
        %vm4529 = vweird.f32 %v4521
        %vm4530 = vweird.f32 %v4523
        %vm4531 = vmor %vm4529, %vm4530
        %v4532 = vsel %vm4531, %v4523, %v4528
        %v4533 = vrsqrt.pop %v4522
        %v4534 = vmul.f32 %v4533, %v4522
        %v4535 = vmul.f32 %v4534, %v4533
        %v4536 = vmul.f32 0.5, %v4535
        %v4537 = vsub.f32 1.5, %v4536
        %v4538 = vmul.f32 %v4533, %v4537
        %vm4539 = vweird.f32 %v4522
        %vm4540 = vweird.f32 %v4533
        %vm4541 = vmor %vm4539, %vm4540
        %v4542 = vsel %vm4541, %v4533, %v4538
        %v4543 = vmul.f32 %v4509, %v4532
        %v4544 = vmul.f32 %v4510, %v4542
        %v4545 = vld [vmem:[%s51] sm:$0xff]
        %v4546 = vld [vmem:[%s51 + $0x8] sm:$0xff]
        %v4547 = vld [vmem:[%s51 + $0x10] sm:$0xff]
        %v4548 = vld [vmem:[%s51 + $0x18] sm:$0xff]
        %v4549 = vld [vmem:[%s51 + $0x20] sm:$0xff]
        %v4550 = vld [vmem:[%s51 + $0x28] sm:$0xff]
        %v4551 = vld [vmem:[%s51 + $0x30] sm:$0xff]
        %v4552 = vld [vmem:[%s51 + $0x38] sm:$0xff]
        %v4553 = vpack.c.bf16 %v4544, %v4543
        %v4554 = vld [vmem:[%s53] sm:$0x3]
        %v4556 = vperm.slane %v4554, 0
        %v4557 = vperm.slane %v4554, 1
        %v4568 = vunpack.c.l.b16 %v4545
        %v4569 = vunpack.c.h.b16 %v4545
        %v4570 = vunpack.c.l.b16 %v4546
        %v4571 = vunpack.c.h.b16 %v4546
        %v4572 = vunpack.c.l.b16 %v4547
        %v4573 = vunpack.c.h.b16 %v4547
        %v4574 = vunpack.c.l.b16 %v4548
        %v4575 = vunpack.c.h.b16 %v4548
        %v4576 = vunpack.c.l.b16 %v4549
        %v4577 = vunpack.c.h.b16 %v4549
        %v4578 = vunpack.c.l.b16 %v4550
        %v4579 = vunpack.c.h.b16 %v4550
        %v4580 = vunpack.c.l.b16 %v4551
        %v4581 = vunpack.c.h.b16 %v4551
        %v4582 = vunpack.c.l.b16 %v4552
        %v4583 = vunpack.c.h.b16 %v4552
        %v4584 = vpack.c.b16 %v4570, %v4568
        %v4585 = vpack.c.b16 %v4571, %v4569
        %v4586 = vpack.c.b16 %v4574, %v4572
        %v4587 = vpack.c.b16 %v4575, %v4573
        %v4588 = vpack.c.b16 %v4578, %v4576
        %v4589 = vpack.c.b16 %v4579, %v4577
        %v4590 = vpack.c.b16 %v4582, %v4580
        %v4591 = vpack.c.b16 %v4583, %v4581
        %v4601 = vsel %vm2103, %v4553, 0
        %4603 = vmatpush.bf16.msra.mxu0 0
        %4604 = vmatpush.bf16.msra.mxu0 0
        %4605 = vmatpush.bf16.msra.mxu0 0
        %4606 = vmatpush.bf16.msra.mxu0 0
        %4607 = vmatpush.bf16.msra.mxu0 %v4590
        %4608 = vmatpush.bf16.msra.mxu0 %v4588
        %4609 = vmatpush.bf16.msra.mxu0 %v4586
        %4610 = vmatpush.bf16.msra.mxu0 %v4584
        %4611 = vmatmul.bf16.gmra.mxu0 %v4601
        %v4612 = vpop.f32.mrf.mxu0
        %v4613 = vadd.f32 %v4556, %v4612
        %v4614 = vpop.f32.mrf.mxu0
        %v4615 = vadd.f32 %v4556, %v4614
        %4616 = vdwg.mxu0
        %4617 = vmatpush.bf16.msra.mxu0 0
        %4618 = vmatpush.bf16.msra.mxu0 0
        %4619 = vmatpush.bf16.msra.mxu0 0
        %4620 = vmatpush.bf16.msra.mxu0 0
        %4621 = vmatpush.bf16.msra.mxu0 %v4591
        %4622 = vmatpush.bf16.msra.mxu0 %v4589
        %4623 = vmatpush.bf16.msra.mxu0 %v4587
        %4624 = vmatpush.bf16.msra.mxu0 %v4585
        %4625 = vmatmul.bf16.gmra.mxu0 %v4601
        %v4626 = vpop.f32.mrf.mxu0
        %v4627 = vadd.f32 %v4557, %v4626
        %v4628 = vpop.f32.mrf.mxu0
        %v4629 = vadd.f32 %v4557, %v4628
        %4630 = vdwg.mxu0
        %v4631 = vpack.c.bf16 %v4615, %v4613
        %v4632 = vld [vmem:[%s59] sm:$0xff]
        %v4633 = vld [vmem:[%s59 + $0x8] sm:$0xff]
        %4635 = vrot.lane.b32.xlu0 %v4631, 64
        %v4636 = vpop.permute.xlu0 %4635
        %v4638 = vsel %vm2049, %v4631, 0
        %v4641 = vsel %vm2049, %v4636, 0
        %4643 = vmatpush.bf16.xpose.msra.mxu0 0
        %4644 = vmatpush.bf16.xpose.msra.mxu0 0
        %4645 = vmatpush.bf16.xpose.msra.mxu0 0
        %4646 = vmatpush.bf16.xpose.msra.mxu0 0
        %4647 = vmatpush.bf16.xpose.msra.mxu0 0
        %4648 = vmatpush.bf16.xpose.msra.mxu0 0
        %4649 = vmatpush.bf16.xpose.msra.mxu0 0
        %4650 = vmatpush.bf16.xpose.msra.mxu0 %v4641
        %4651 = vmatmul.bf16.gmra.mxu0 %v4638
        %v4652 = vpop.f32.mrf.mxu0
        %v4653 = vadd.f32 %v4632, %v4652
        %v4654 = vpop.f32.mrf.mxu0
        %v4655 = vadd.f32 %v4633, %v4654
        %4656 = vdwg.mxu0
        %v4657 = vsel %vm2049, %v4653, -inf
        %4658 = vmax.xlane.f32.xlu0 %v4657
        %v4659 = vpop.xlane.xlu0 %4658
        %v4660 = vsel %vm2049, %v4655, -inf
        %4661 = vmax.xlane.f32.xlu0 %v4660
        %v4662 = vpop.xlane.xlu0 %4661
        %v4663 = vsub.f32 %v4653, %v4659
        %v4664 = vsub.f32 %v4655, %v4662
        %v4665 = vmul.f32 %v4663, 1.442695
        %v4666 = vpow.pop %v4665
        %v4667 = vmul.f32 %v4664, 1.442695
        %v4668 = vpow.pop %v4667
        %v4669 = vsel %vm2049, %v4666, 0.0
        %4670 = vadd.xlane.f32.xlu0 %v4669
        %v4671 = vpop.xlane.xlu0 %4670
        %v4672 = vsel %vm2049, %v4668, 0.0
        %4673 = vadd.xlane.f32.xlu0 %v4672
        %v4674 = vpop.xlane.xlu0 %4673
        %v4675 = vrcp.pop %v4671
        %v4676 = vrcp.pop %v4674
        %v4677 = vmul.f32 %v4666, %v4675
        %v4678 = vmul.f32 %v4668, %v4676
        %v4679 = vpack.c.bf16 %v4678, %v4677
        %v4680 = vpack.c.bf16 %v4629, %v4627
        %v4682 = vsel %vm2049, %v4679, 0
        %4684 = vmatpush.bf16.msra.mxu0 0
        %4685 = vmatpush.bf16.msra.mxu0 0
        %4686 = vmatpush.bf16.msra.mxu0 0
        %4687 = vmatpush.bf16.msra.mxu0 0
        %4688 = vmatpush.bf16.msra.mxu0 0
        %4689 = vmatpush.bf16.msra.mxu0 0
        %4690 = vmatpush.bf16.msra.mxu0 0
        %4691 = vmatpush.bf16.msra.mxu0 %v4680
        %4692 = vmatmul.bf16.gmra.mxu0 %v4682
        %v4693 = vpop.f32.mrf.mxu0
        %v4694 = vadd.f32 0.0, %v4693
        %v4695 = vpop.f32.mrf.mxu0
        %v4696 = vadd.f32 0.0, %v4695
        %4697 = vdwg.mxu0
        %v4698 = vld [vmem:[%s55] sm:$0xf]
        %v4699 = vld [vmem:[%s55 + $0x4] sm:$0xf]
        %v4700 = vpack.c.bf16 %v4696, %v4694
        %s4701 = scalar_lea.vmem %s59, 16
        %v4702 = vld [vmem:[%s4701] sm:$0xff]
        %v4703 = vld [vmem:[%s4701 + $0x8] sm:$0xff]
        %4704 = vrot.lane.b32.xlu0 %v4631, 112
        %v4705 = vpop.permute.xlu0 %4704
        %4706 = vrot.lane.b32.xlu0 %v4631, 48
        %v4707 = vpop.permute.xlu0 %4706
        %v4709 = vsel %vm2049, %v4705, 0
        %v4712 = vsel %vm2049, %v4707, 0
        %4714 = vmatpush.bf16.xpose.msra.mxu0 0
        %4715 = vmatpush.bf16.xpose.msra.mxu0 0
        %4716 = vmatpush.bf16.xpose.msra.mxu0 0
        %4717 = vmatpush.bf16.xpose.msra.mxu0 0
        %4718 = vmatpush.bf16.xpose.msra.mxu0 0
        %4719 = vmatpush.bf16.xpose.msra.mxu0 0
        %4720 = vmatpush.bf16.xpose.msra.mxu0 0
        %4721 = vmatpush.bf16.xpose.msra.mxu0 %v4712
        %4722 = vmatmul.bf16.gmra.mxu0 %v4709
        %v4723 = vpop.f32.mrf.mxu0
        %v4724 = vadd.f32 %v4702, %v4723
        %v4725 = vpop.f32.mrf.mxu0
        %v4726 = vadd.f32 %v4703, %v4725
        %4727 = vdwg.mxu0
        %v4728 = vsel %vm2049, %v4724, -inf
        %4729 = vmax.xlane.f32.xlu0 %v4728
        %v4730 = vpop.xlane.xlu0 %4729
        %v4731 = vsel %vm2049, %v4726, -inf
        %4732 = vmax.xlane.f32.xlu0 %v4731
        %v4733 = vpop.xlane.xlu0 %4732
        %v4734 = vsub.f32 %v4724, %v4730
        %v4735 = vsub.f32 %v4726, %v4733
        %v4736 = vmul.f32 %v4734, 1.442695
        %v4737 = vpow.pop %v4736
        %v4738 = vmul.f32 %v4735, 1.442695
        %v4739 = vpow.pop %v4738
        %v4740 = vsel %vm2049, %v4737, 0.0
        %4741 = vadd.xlane.f32.xlu0 %v4740
        %v4742 = vpop.xlane.xlu0 %4741
        %v4743 = vsel %vm2049, %v4739, 0.0
        %4744 = vadd.xlane.f32.xlu0 %v4743
        %v4745 = vpop.xlane.xlu0 %4744
        %v4746 = vrcp.pop %v4742
        %v4747 = vrcp.pop %v4745
        %v4748 = vmul.f32 %v4737, %v4746
        %v4749 = vmul.f32 %v4739, %v4747
        %v4750 = vpack.c.bf16 %v4749, %v4748
        %4752 = vrot.lane.b32.xlu0 %v4680, 112
        %v4753 = vpop.permute.xlu0 %4752
        %v4756 = vsel %vm2049, %v4750, 0
        %4758 = vmatpush.bf16.msra.mxu0 0
        %4759 = vmatpush.bf16.msra.mxu0 0
        %4760 = vmatpush.bf16.msra.mxu0 0
        %4761 = vmatpush.bf16.msra.mxu0 0
        %4762 = vmatpush.bf16.msra.mxu0 0
        %4763 = vmatpush.bf16.msra.mxu0 0
        %4764 = vmatpush.bf16.msra.mxu0 0
        %4765 = vmatpush.bf16.msra.mxu0 %v4753
        %4766 = vmatmul.bf16.gmra.mxu0 %v4756
        %v4767 = vpop.f32.mrf.mxu0
        %v4768 = vadd.f32 0.0, %v4767
        %v4769 = vpop.f32.mrf.mxu0
        %v4770 = vadd.f32 0.0, %v4769
        %4771 = vdwg.mxu0
        %v4772 = vld [vmem:[%s55 + $0x8] sm:$0xf]
        %v4773 = vld [vmem:[%s55 + $0xc] sm:$0xf]
        %v4774 = vpack.c.bf16 %v4770, %v4768
        %v4777 = vunpack.c.l.b16 %v4772
        %v4778 = vunpack.c.l.b16 %v4773
        %v4779 = vpack.c.b16 %v4778, %v4777
        %v4782 = vsel %vm2049, %v4774, 0
        %4784 = vmatpush.bf16.msra.mxu0 0
        %4785 = vmatpush.bf16.msra.mxu0 0
        %4786 = vmatpush.bf16.msra.mxu0 0
        %4787 = vmatpush.bf16.msra.mxu0 0
        %4788 = vmatpush.bf16.msra.mxu0 0
        %4789 = vmatpush.bf16.msra.mxu0 0
        %4790 = vmatpush.bf16.msra.mxu0 0
        %4791 = vmatpush.bf16.msra.mxu0 %v4779
        %4792 = vmatmul.bf16.gmra.mxu0 %v4782
        %v4793 = vpop.f32.mrf.mxu0
        %v4794 = vadd.f32 0.0, %v4793
        %v4795 = vpop.f32.mrf.mxu0
        %v4796 = vadd.f32 0.0, %v4795
        %4797 = vdwg.mxu0
        %v4800 = vunpack.c.l.b16 %v4698
        %v4801 = vunpack.c.l.b16 %v4699
        %v4802 = vpack.c.b16 %v4801, %v4800
        %v4805 = vsel %vm2049, %v4700, 0
        %4807 = vmatpush.bf16.msra.mxu0 0
        %4808 = vmatpush.bf16.msra.mxu0 0
        %4809 = vmatpush.bf16.msra.mxu0 0
        %4810 = vmatpush.bf16.msra.mxu0 0
        %4811 = vmatpush.bf16.msra.mxu0 0
        %4812 = vmatpush.bf16.msra.mxu0 0
        %4813 = vmatpush.bf16.msra.mxu0 0
        %4814 = vmatpush.bf16.msra.mxu0 %v4802
        %4815 = vmatmul.bf16.gmra.mxu0 %v4805
        %v4816 = vpop.f32.mrf.mxu0
        %v4817 = vadd.f32 %v4794, %v4816
        %v4818 = vpop.f32.mrf.mxu0
        %v4819 = vadd.f32 %v4796, %v4818
        %4820 = vdwg.mxu0
        %s4821 = scalar_lea.vmem %s59, 32
        %v4822 = vld [vmem:[%s4821] sm:$0xff]
        %v4823 = vld [vmem:[%s4821 + $0x8] sm:$0xff]
        %4824 = vrot.lane.b32.xlu0 %v4631, 96
        %v4825 = vpop.permute.xlu0 %4824
        %4826 = vrot.lane.b32.xlu0 %v4631, 32
        %v4827 = vpop.permute.xlu0 %4826
        %v4829 = vsel %vm2049, %v4825, 0
        %v4832 = vsel %vm2049, %v4827, 0
        %4834 = vmatpush.bf16.xpose.msra.mxu0 0
        %4835 = vmatpush.bf16.xpose.msra.mxu0 0
        %4836 = vmatpush.bf16.xpose.msra.mxu0 0
        %4837 = vmatpush.bf16.xpose.msra.mxu0 0
        %4838 = vmatpush.bf16.xpose.msra.mxu0 0
        %4839 = vmatpush.bf16.xpose.msra.mxu0 0
        %4840 = vmatpush.bf16.xpose.msra.mxu0 0
        %4841 = vmatpush.bf16.xpose.msra.mxu0 %v4832
        %4842 = vmatmul.bf16.gmra.mxu0 %v4829
        %v4843 = vpop.f32.mrf.mxu0
        %v4844 = vadd.f32 %v4822, %v4843
        %v4845 = vpop.f32.mrf.mxu0
        %v4846 = vadd.f32 %v4823, %v4845
        %4847 = vdwg.mxu0
        %v4848 = vsel %vm2049, %v4844, -inf
        %4849 = vmax.xlane.f32.xlu0 %v4848
        %v4850 = vpop.xlane.xlu0 %4849
        %v4851 = vsel %vm2049, %v4846, -inf
        %4852 = vmax.xlane.f32.xlu0 %v4851
        %v4853 = vpop.xlane.xlu0 %4852
        %v4854 = vsub.f32 %v4844, %v4850
        %v4855 = vsub.f32 %v4846, %v4853
        %v4856 = vmul.f32 %v4854, 1.442695
        %v4857 = vpow.pop %v4856
        %v4858 = vmul.f32 %v4855, 1.442695
        %v4859 = vpow.pop %v4858
        %v4860 = vsel %vm2049, %v4857, 0.0
        %4861 = vadd.xlane.f32.xlu0 %v4860
        %v4862 = vpop.xlane.xlu0 %4861
        %v4863 = vsel %vm2049, %v4859, 0.0
        %4864 = vadd.xlane.f32.xlu0 %v4863
        %v4865 = vpop.xlane.xlu0 %4864
        %v4866 = vrcp.pop %v4862
        %v4867 = vrcp.pop %v4865
        %v4868 = vmul.f32 %v4857, %v4866
        %v4869 = vmul.f32 %v4859, %v4867
        %v4870 = vpack.c.bf16 %v4869, %v4868
        %4871 = vrot.lane.b32.xlu0 %v4680, 96
        %v4872 = vpop.permute.xlu0 %4871
        %v4875 = vsel %vm2049, %v4870, 0
        %4877 = vmatpush.bf16.msra.mxu0 0
        %4878 = vmatpush.bf16.msra.mxu0 0
        %4879 = vmatpush.bf16.msra.mxu0 0
        %4880 = vmatpush.bf16.msra.mxu0 0
        %4881 = vmatpush.bf16.msra.mxu0 0
        %4882 = vmatpush.bf16.msra.mxu0 0
        %4883 = vmatpush.bf16.msra.mxu0 0
        %4884 = vmatpush.bf16.msra.mxu0 %v4872
        %4885 = vmatmul.bf16.gmra.mxu0 %v4875
        %v4886 = vpop.f32.mrf.mxu0
        %v4887 = vadd.f32 0.0, %v4886
        %v4888 = vpop.f32.mrf.mxu0
        %v4889 = vadd.f32 0.0, %v4888
        %4890 = vdwg.mxu0
        %v4891 = vld [vmem:[%s55 + $0x10] sm:$0xf]
        %v4892 = vld [vmem:[%s55 + $0x14] sm:$0xf]
        %v4893 = vpack.c.bf16 %v4889, %v4887
        %v4896 = vunpack.c.l.b16 %v4891
        %v4897 = vunpack.c.l.b16 %v4892
        %v4898 = vpack.c.b16 %v4897, %v4896
        %v4901 = vsel %vm2049, %v4893, 0
        %4903 = vmatpush.bf16.msra.mxu0 0
        %4904 = vmatpush.bf16.msra.mxu0 0
        %4905 = vmatpush.bf16.msra.mxu0 0
        %4906 = vmatpush.bf16.msra.mxu0 0
        %4907 = vmatpush.bf16.msra.mxu0 0
        %4908 = vmatpush.bf16.msra.mxu0 0
        %4909 = vmatpush.bf16.msra.mxu0 0
        %4910 = vmatpush.bf16.msra.mxu0 %v4898
        %4911 = vmatmul.bf16.gmra.mxu0 %v4901
        %v4912 = vpop.f32.mrf.mxu0
        %v4913 = vadd.f32 0.0, %v4912
        %v4914 = vpop.f32.mrf.mxu0
        %v4915 = vadd.f32 0.0, %v4914
        %4916 = vdwg.mxu0
        %v4917 = vadd.f32 %v4817, %v4913
        %v4918 = vadd.f32 %v4819, %v4915
        %s4919 = scalar_lea.vmem %s59, 48
        %v4920 = vld [vmem:[%s4919] sm:$0xff]
        %v4921 = vld [vmem:[%s4919 + $0x8] sm:$0xff]
        %4922 = vrot.lane.b32.xlu0 %v4631, 80
        %v4923 = vpop.permute.xlu0 %4922
        %4924 = vrot.lane.b32.xlu0 %v4631, 16
        %v4925 = vpop.permute.xlu0 %4924
        %v4927 = vsel %vm2049, %v4923, 0
        %v4930 = vsel %vm2049, %v4925, 0
        %4932 = vmatpush.bf16.xpose.msra.mxu0 0
        %4933 = vmatpush.bf16.xpose.msra.mxu0 0
        %4934 = vmatpush.bf16.xpose.msra.mxu0 0
        %4935 = vmatpush.bf16.xpose.msra.mxu0 0
        %4936 = vmatpush.bf16.xpose.msra.mxu0 0
        %4937 = vmatpush.bf16.xpose.msra.mxu0 0
        %4938 = vmatpush.bf16.xpose.msra.mxu0 0
        %4939 = vmatpush.bf16.xpose.msra.mxu0 %v4930
        %4940 = vmatmul.bf16.gmra.mxu0 %v4927
        %v4941 = vpop.f32.mrf.mxu0
        %v4942 = vadd.f32 %v4920, %v4941
        %v4943 = vpop.f32.mrf.mxu0
        %v4944 = vadd.f32 %v4921, %v4943
        %4945 = vdwg.mxu0
        %v4946 = vsel %vm2049, %v4942, -inf
        %4947 = vmax.xlane.f32.xlu0 %v4946
        %v4948 = vpop.xlane.xlu0 %4947
        %v4949 = vsel %vm2049, %v4944, -inf
        %4950 = vmax.xlane.f32.xlu0 %v4949
        %v4951 = vpop.xlane.xlu0 %4950
        %v4952 = vsub.f32 %v4942, %v4948
        %v4953 = vsub.f32 %v4944, %v4951
        %v4954 = vmul.f32 %v4952, 1.442695
        %v4955 = vpow.pop %v4954
        %v4956 = vmul.f32 %v4953, 1.442695
        %v4957 = vpow.pop %v4956
        %v4958 = vsel %vm2049, %v4955, 0.0
        %4959 = vadd.xlane.f32.xlu0 %v4958
        %v4960 = vpop.xlane.xlu0 %4959
        %v4961 = vsel %vm2049, %v4957, 0.0
        %4962 = vadd.xlane.f32.xlu0 %v4961
        %v4963 = vpop.xlane.xlu0 %4962
        %v4964 = vrcp.pop %v4960
        %v4965 = vrcp.pop %v4963
        %v4966 = vmul.f32 %v4955, %v4964
        %v4967 = vmul.f32 %v4957, %v4965
        %v4968 = vpack.c.bf16 %v4967, %v4966
        %4969 = vrot.lane.b32.xlu0 %v4680, 80
        %v4970 = vpop.permute.xlu0 %4969
        %v4973 = vsel %vm2049, %v4968, 0
        %4975 = vmatpush.bf16.msra.mxu0 0
        %4976 = vmatpush.bf16.msra.mxu0 0
        %4977 = vmatpush.bf16.msra.mxu0 0
        %4978 = vmatpush.bf16.msra.mxu0 0
        %4979 = vmatpush.bf16.msra.mxu0 0
        %4980 = vmatpush.bf16.msra.mxu0 0
        %4981 = vmatpush.bf16.msra.mxu0 0
        %4982 = vmatpush.bf16.msra.mxu0 %v4970
        %4983 = vmatmul.bf16.gmra.mxu0 %v4973
        %v4984 = vpop.f32.mrf.mxu0
        %v4985 = vadd.f32 0.0, %v4984
        %v4986 = vpop.f32.mrf.mxu0
        %v4987 = vadd.f32 0.0, %v4986
        %4988 = vdwg.mxu0
        %v4989 = vld [vmem:[%s55 + $0x18] sm:$0xf]
        %v4990 = vld [vmem:[%s55 + $0x1c] sm:$0xf]
        %v4991 = vpack.c.bf16 %v4987, %v4985
        %v4994 = vunpack.c.l.b16 %v4989
        %v4995 = vunpack.c.l.b16 %v4990
        %v4996 = vpack.c.b16 %v4995, %v4994
        %v4999 = vsel %vm2049, %v4991, 0
        %5001 = vmatpush.bf16.msra.mxu0 0
        %5002 = vmatpush.bf16.msra.mxu0 0
        %5003 = vmatpush.bf16.msra.mxu0 0
        %5004 = vmatpush.bf16.msra.mxu0 0
        %5005 = vmatpush.bf16.msra.mxu0 0
        %5006 = vmatpush.bf16.msra.mxu0 0
        %5007 = vmatpush.bf16.msra.mxu0 0
        %5008 = vmatpush.bf16.msra.mxu0 %v4996
        %5009 = vmatmul.bf16.gmra.mxu0 %v4999
        %v5010 = vpop.f32.mrf.mxu0
        %v5011 = vadd.f32 0.0, %v5010
        %v5012 = vpop.f32.mrf.mxu0
        %v5013 = vadd.f32 0.0, %v5012
        %5014 = vdwg.mxu0
        %v5015 = vadd.f32 %v4917, %v5011
        %v5016 = vadd.f32 %v4918, %v5013
        %v5017 = vadd.f32 %v4492, %v5015
        %v5018 = vadd.f32 %v4493, %v5016
        %v5019 = vld [vmem:[#allocation4] sm:$0x1]
        %v5021 = vperm.slane %v5019, 0
        %v5023 = vadd.f32 %v5017, %v5021
        %v5024 = vadd.f32 %v5018, %v5021
        %v5025 = vsel %vm2103, %v5023, 0.0
        %5026 = vadd.xlane.f32.xlu0 %v5025
        %v5027 = vpop.xlane.xlu0 %5026
        %v5028 = vsel %vm2103, %v5024, 0.0
        %5029 = vadd.xlane.f32.xlu0 %v5028
        %v5030 = vpop.xlane.xlu0 %5029
        %v5031 = vmul.f32 %v5027, %v4506
        %v5032 = vmul.f32 %v5030, %v4506
        %v5033 = vsub.f32 %v5023, %v5031
        %v5034 = vsub.f32 %v5024, %v5032
        %v5035 = vmul.f32 %v5033, %v5033
        %v5036 = vmul.f32 %v5034, %v5034
        %v5037 = vsel %vm2103, %v5035, 0.0
        %5038 = vadd.xlane.f32.xlu0 %v5037
        %v5039 = vpop.xlane.xlu0 %5038
        %v5040 = vsel %vm2103, %v5036, 0.0
        %5041 = vadd.xlane.f32.xlu0 %v5040
        %v5042 = vpop.xlane.xlu0 %5041
        %v5043 = vmul.f32 %v5039, %v4506
        %v5044 = vmul.f32 %v5042, %v4506
        %v5045 = vadd.f32 %v5043, 1e-05
        %v5046 = vadd.f32 %v5044, 1e-05
        %v5047 = vrsqrt.pop %v5045
        %v5048 = vmul.f32 %v5047, %v5045
        %v5049 = vmul.f32 %v5048, %v5047
        %v5050 = vmul.f32 0.5, %v5049
        %v5051 = vsub.f32 1.5, %v5050
        %v5052 = vmul.f32 %v5047, %v5051
        %vm5053 = vweird.f32 %v5045
        %vm5054 = vweird.f32 %v5047
        %vm5055 = vmor %vm5053, %vm5054
        %v5056 = vsel %vm5055, %v5047, %v5052
        %v5057 = vrsqrt.pop %v5046
        %v5058 = vmul.f32 %v5057, %v5046
        %v5059 = vmul.f32 %v5058, %v5057
        %v5060 = vmul.f32 0.5, %v5059
        %v5061 = vsub.f32 1.5, %v5060
        %v5062 = vmul.f32 %v5057, %v5061
        %vm5063 = vweird.f32 %v5046
        %vm5064 = vweird.f32 %v5057
        %vm5065 = vmor %vm5063, %vm5064
        %v5066 = vsel %vm5065, %v5057, %v5062
        %v5067 = vmul.f32 %v5033, %v5056
        %v5068 = vmul.f32 %v5034, %v5066
        %v5069 = vld [vmem:[%s61] sm:$0xff]
        %v5070 = vld [vmem:[%s61 + $0x8] sm:$0xff]
        %v5071 = vld [vmem:[%s61 + $0x10] sm:$0xff]
        %v5072 = vld [vmem:[%s61 + $0x18] sm:$0xff]
        %v5073 = vld [vmem:[%s61 + $0x20] sm:$0xff]
        %v5074 = vld [vmem:[%s61 + $0x28] sm:$0xff]
        %v5075 = vld [vmem:[%s61 + $0x30] sm:$0xff]
        %v5076 = vld [vmem:[%s61 + $0x38] sm:$0xff]
        %v5077 = vpack.c.bf16 %v5068, %v5067
        %v5078 = vld [vmem:[%s63] sm:$0x3]
        %v5080 = vperm.slane %v5078, 0
        %v5081 = vperm.slane %v5078, 1
        %v5092 = vunpack.c.l.b16 %v5069
        %v5093 = vunpack.c.h.b16 %v5069
        %v5094 = vunpack.c.l.b16 %v5070
        %v5095 = vunpack.c.h.b16 %v5070
        %v5096 = vunpack.c.l.b16 %v5071
        %v5097 = vunpack.c.h.b16 %v5071
        %v5098 = vunpack.c.l.b16 %v5072
        %v5099 = vunpack.c.h.b16 %v5072
        %v5100 = vunpack.c.l.b16 %v5073
        %v5101 = vunpack.c.h.b16 %v5073
        %v5102 = vunpack.c.l.b16 %v5074
        %v5103 = vunpack.c.h.b16 %v5074
        %v5104 = vunpack.c.l.b16 %v5075
        %v5105 = vunpack.c.h.b16 %v5075
        %v5106 = vunpack.c.l.b16 %v5076
        %v5107 = vunpack.c.h.b16 %v5076
        %v5108 = vpack.c.b16 %v5094, %v5092
        %v5109 = vpack.c.b16 %v5095, %v5093
        %v5110 = vpack.c.b16 %v5098, %v5096
        %v5111 = vpack.c.b16 %v5099, %v5097
        %v5112 = vpack.c.b16 %v5102, %v5100
        %v5113 = vpack.c.b16 %v5103, %v5101
        %v5114 = vpack.c.b16 %v5106, %v5104
        %v5115 = vpack.c.b16 %v5107, %v5105
        %v5125 = vsel %vm2103, %v5077, 0
        %5127 = vmatpush.bf16.msra.mxu0 0
        %5128 = vmatpush.bf16.msra.mxu0 0
        %5129 = vmatpush.bf16.msra.mxu0 0
        %5130 = vmatpush.bf16.msra.mxu0 0
        %5131 = vmatpush.bf16.msra.mxu0 %v5114
        %5132 = vmatpush.bf16.msra.mxu0 %v5112
        %5133 = vmatpush.bf16.msra.mxu0 %v5110
        %5134 = vmatpush.bf16.msra.mxu0 %v5108
        %5135 = vmatmul.bf16.gmra.mxu0 %v5125
        %v5136 = vpop.f32.mrf.mxu0
        %v5137 = vadd.f32 %v5080, %v5136
        %v5138 = vpop.f32.mrf.mxu0
        %v5139 = vadd.f32 %v5080, %v5138
        %5140 = vdwg.mxu0
        %5141 = vmatpush.bf16.msra.mxu0 0
        %5142 = vmatpush.bf16.msra.mxu0 0
        %5143 = vmatpush.bf16.msra.mxu0 0
        %5144 = vmatpush.bf16.msra.mxu0 0
        %5145 = vmatpush.bf16.msra.mxu0 %v5115
        %5146 = vmatpush.bf16.msra.mxu0 %v5113
        %5147 = vmatpush.bf16.msra.mxu0 %v5111
        %5148 = vmatpush.bf16.msra.mxu0 %v5109
        %5149 = vmatmul.bf16.gmra.mxu0 %v5125
        %v5150 = vpop.f32.mrf.mxu0
        %v5151 = vadd.f32 %v5081, %v5150
        %v5152 = vpop.f32.mrf.mxu0
        %v5153 = vadd.f32 %v5081, %v5152
        %5154 = vdwg.mxu0
        %v5155 = vmul.f32 %v5137, 0.5
        %v5156 = vmul.f32 %v5151, 0.5
        %v5157 = vmul.f32 %v5139, 0.5
        %v5158 = vmul.f32 %v5153, 0.5
        %v5159 = vmul.f32 %v5137, 0.044715
        %v5160 = vmul.f32 %v5151, 0.044715
        %v5161 = vmul.f32 %v5139, 0.044715
        %v5162 = vmul.f32 %v5153, 0.044715
        %v5163 = vmul.f32 %v5159, %v5137
        %v5164 = vmul.f32 %v5160, %v5151
        %v5165 = vmul.f32 %v5161, %v5139
        %v5166 = vmul.f32 %v5162, %v5153
        %v5167 = vmul.f32 %v5163, %v5137
        %v5168 = vmul.f32 %v5164, %v5151
        %v5169 = vmul.f32 %v5165, %v5139
        %v5170 = vmul.f32 %v5166, %v5153
        %v5171 = vadd.f32 %v5137, %v5167
        %v5172 = vadd.f32 %v5151, %v5168
        %v5173 = vadd.f32 %v5139, %v5169
        %v5174 = vadd.f32 %v5153, %v5170
        %v5175 = vmul.f32 %v5171, 0.7978846
        %v5176 = vmul.f32 %v5172, 0.7978846
        %v5177 = vmul.f32 %v5173, 0.7978846
        %v5178 = vmul.f32 %v5174, 0.7978846
        %v5179 = vtanh.pop %v5175
        %v5180 = vtanh.pop %v5176
        %v5181 = vtanh.pop %v5177
        %v5182 = vtanh.pop %v5178
        %v5183 = vadd.f32 %v5179, 1.0
        %v5184 = vadd.f32 %v5180, 1.0
        %v5185 = vadd.f32 %v5181, 1.0
        %v5186 = vadd.f32 %v5182, 1.0
        %v5187 = vmul.f32 %v5155, %v5183
        %v5188 = vmul.f32 %v5156, %v5184
        %v5189 = vmul.f32 %v5157, %v5185
        %v5190 = vmul.f32 %v5158, %v5186
        %v5191 = vld [vmem:[%s65] sm:$0xf]
        %v5192 = vld [vmem:[%s65 + $0x4] sm:$0xf]
        %v5193 = vld [vmem:[%s65 + $0x8] sm:$0xf]
        %v5194 = vld [vmem:[%s65 + $0xc] sm:$0xf]
        %v5195 = vld [vmem:[%s65 + $0x10] sm:$0xf]
        %v5196 = vld [vmem:[%s65 + $0x14] sm:$0xf]
        %v5197 = vld [vmem:[%s65 + $0x18] sm:$0xf]
        %v5198 = vld [vmem:[%s65 + $0x1c] sm:$0xf]
        %v5199 = vld [vmem:[%s65 + $0x20] sm:$0xf]
        %v5200 = vld [vmem:[%s65 + $0x24] sm:$0xf]
        %v5201 = vld [vmem:[%s65 + $0x28] sm:$0xf]
        %v5202 = vld [vmem:[%s65 + $0x2c] sm:$0xf]
        %v5203 = vld [vmem:[%s65 + $0x30] sm:$0xf]
        %v5204 = vld [vmem:[%s65 + $0x34] sm:$0xf]
        %v5205 = vld [vmem:[%s65 + $0x38] sm:$0xf]
        %v5206 = vld [vmem:[%s65 + $0x3c] sm:$0xf]
        %v5207 = vld [vmem:[%s65 + $0x40] sm:$0xf]
        %v5208 = vld [vmem:[%s65 + $0x44] sm:$0xf]
        %v5209 = vld [vmem:[%s65 + $0x48] sm:$0xf]
        %v5210 = vld [vmem:[%s65 + $0x4c] sm:$0xf]
        %v5211 = vld [vmem:[%s65 + $0x50] sm:$0xf]
        %v5212 = vld [vmem:[%s65 + $0x54] sm:$0xf]
        %v5213 = vld [vmem:[%s65 + $0x58] sm:$0xf]
        %v5214 = vld [vmem:[%s65 + $0x5c] sm:$0xf]
        %v5215 = vld [vmem:[%s65 + $0x60] sm:$0xf]
        %v5216 = vld [vmem:[%s65 + $0x64] sm:$0xf]
        %v5217 = vld [vmem:[%s65 + $0x68] sm:$0xf]
        %v5218 = vld [vmem:[%s65 + $0x6c] sm:$0xf]
        %v5219 = vld [vmem:[%s65 + $0x70] sm:$0xf]
        %v5220 = vld [vmem:[%s65 + $0x74] sm:$0xf]
        %v5221 = vld [vmem:[%s65 + $0x78] sm:$0xf]
        %v5222 = vld [vmem:[%s65 + $0x7c] sm:$0xf]
        %v5223 = vpack.c.bf16 %v5189, %v5187
        %v5224 = vpack.c.bf16 %v5190, %v5188
        %v5257 = vunpack.c.l.b16 %v5191
        %v5258 = vunpack.c.l.b16 %v5192
        %v5259 = vunpack.c.l.b16 %v5193
        %v5260 = vunpack.c.l.b16 %v5194
        %v5261 = vunpack.c.l.b16 %v5195
        %v5262 = vunpack.c.l.b16 %v5196
        %v5263 = vunpack.c.l.b16 %v5197
        %v5264 = vunpack.c.l.b16 %v5198
        %v5265 = vunpack.c.l.b16 %v5199
        %v5266 = vunpack.c.l.b16 %v5200
        %v5267 = vunpack.c.l.b16 %v5201
        %v5268 = vunpack.c.l.b16 %v5202
        %v5269 = vunpack.c.l.b16 %v5203
        %v5270 = vunpack.c.l.b16 %v5204
        %v5271 = vunpack.c.l.b16 %v5205
        %v5272 = vunpack.c.l.b16 %v5206
        %v5273 = vunpack.c.l.b16 %v5207
        %v5274 = vunpack.c.l.b16 %v5208
        %v5275 = vunpack.c.l.b16 %v5209
        %v5276 = vunpack.c.l.b16 %v5210
        %v5277 = vunpack.c.l.b16 %v5211
        %v5278 = vunpack.c.l.b16 %v5212
        %v5279 = vunpack.c.l.b16 %v5213
        %v5280 = vunpack.c.l.b16 %v5214
        %v5281 = vunpack.c.l.b16 %v5215
        %v5282 = vunpack.c.l.b16 %v5216
        %v5283 = vunpack.c.l.b16 %v5217
        %v5284 = vunpack.c.l.b16 %v5218
        %v5285 = vunpack.c.l.b16 %v5219
        %v5286 = vunpack.c.l.b16 %v5220
        %v5287 = vunpack.c.l.b16 %v5221
        %v5288 = vunpack.c.l.b16 %v5222
        %v5289 = vpack.c.b16 %v5258, %v5257
        %v5290 = vpack.c.b16 %v5260, %v5259
        %v5291 = vpack.c.b16 %v5262, %v5261
        %v5292 = vpack.c.b16 %v5264, %v5263
        %v5293 = vpack.c.b16 %v5266, %v5265
        %v5294 = vpack.c.b16 %v5268, %v5267
        %v5295 = vpack.c.b16 %v5270, %v5269
        %v5296 = vpack.c.b16 %v5272, %v5271
        %v5297 = vpack.c.b16 %v5274, %v5273
        %v5298 = vpack.c.b16 %v5276, %v5275
        %v5299 = vpack.c.b16 %v5278, %v5277
        %v5300 = vpack.c.b16 %v5280, %v5279
        %v5301 = vpack.c.b16 %v5282, %v5281
        %v5302 = vpack.c.b16 %v5284, %v5283
        %v5303 = vpack.c.b16 %v5286, %v5285
        %v5304 = vpack.c.b16 %v5288, %v5287
        %5321 = vmatpush.bf16.msra.mxu0 %v5296
        %5322 = vmatpush.bf16.msra.mxu0 %v5295
        %5323 = vmatpush.bf16.msra.mxu0 %v5294
        %5324 = vmatpush.bf16.msra.mxu0 %v5293
        %5325 = vmatpush.bf16.msra.mxu0 %v5292
        %5326 = vmatpush.bf16.msra.mxu0 %v5291
        %5327 = vmatpush.bf16.msra.mxu0 %v5290
        %5328 = vmatpush.bf16.msra.mxu0 %v5289
        %5329 = vmatmul.bf16.gmra.mxu0 %v5223
        %v5330 = vpop.f32.mrf.mxu0
        %v5331 = vadd.f32 0.0, %v5330
        %v5332 = vpop.f32.mrf.mxu0
        %v5333 = vadd.f32 0.0, %v5332
        %5334 = vdwg.mxu0
        %5335 = vmatpush.bf16.msra.mxu0 %v5304
        %5336 = vmatpush.bf16.msra.mxu0 %v5303
        %5337 = vmatpush.bf16.msra.mxu0 %v5302
        %5338 = vmatpush.bf16.msra.mxu0 %v5301
        %5339 = vmatpush.bf16.msra.mxu0 %v5300
        %5340 = vmatpush.bf16.msra.mxu0 %v5299
        %5341 = vmatpush.bf16.msra.mxu0 %v5298
        %5342 = vmatpush.bf16.msra.mxu0 %v5297
        %5343 = vmatmul.bf16.gmra.mxu0 %v5224
        %v5344 = vpop.f32.mrf.mxu0
        %v5345 = vadd.f32 %v5331, %v5344
        %v5346 = vpop.f32.mrf.mxu0
        %v5347 = vadd.f32 %v5333, %v5346
        %5348 = vdwg.mxu0
        %v5349 = vadd.f32 %v5023, %v5345
        %v5350 = vadd.f32 %v5024, %v5347
        %v5351 = vld [vmem:[#allocation6] sm:$0x1]
        %v5353 = vperm.slane %v5351, 0
        %v5355 = vadd.f32 %v5349, %v5353
        %v5356 = vadd.f32 %v5350, %v5353
        %v5357 = vsel %vm2103, %v5355, 0.0
        %5358 = vadd.xlane.f32.xlu0 %v5357
        %v5359 = vpop.xlane.xlu0 %5358
        %v5360 = vsel %vm2103, %v5356, 0.0
        %5361 = vadd.xlane.f32.xlu0 %v5360
        %v5362 = vpop.xlane.xlu0 %5361
        %v5363 = vmul.f32 %v5359, %v4506
        %v5364 = vmul.f32 %v5362, %v4506
        %v5365 = vsub.f32 %v5355, %v5363
        %v5366 = vsub.f32 %v5356, %v5364
        %v5367 = vmul.f32 %v5365, %v5365
        %v5368 = vmul.f32 %v5366, %v5366
        %v5369 = vsel %vm2103, %v5367, 0.0
        %5370 = vadd.xlane.f32.xlu0 %v5369
        %v5371 = vpop.xlane.xlu0 %5370
        %v5372 = vsel %vm2103, %v5368, 0.0
        %5373 = vadd.xlane.f32.xlu0 %v5372
        %v5374 = vpop.xlane.xlu0 %5373
        %v5375 = vmul.f32 %v5371, %v4506
        %v5376 = vmul.f32 %v5374, %v4506
        %v5377 = vadd.f32 %v5375, 1e-05
        %v5378 = vadd.f32 %v5376, 1e-05
        %v5379 = vrsqrt.pop %v5377
        %v5380 = vmul.f32 %v5379, %v5377
        %v5381 = vmul.f32 %v5380, %v5379
        %v5382 = vmul.f32 0.5, %v5381
        %v5383 = vsub.f32 1.5, %v5382
        %v5384 = vmul.f32 %v5379, %v5383
        %vm5385 = vweird.f32 %v5377
        %vm5386 = vweird.f32 %v5379
        %vm5387 = vmor %vm5385, %vm5386
        %v5388 = vsel %vm5387, %v5379, %v5384
        %v5389 = vrsqrt.pop %v5378
        %v5390 = vmul.f32 %v5389, %v5378
        %v5391 = vmul.f32 %v5390, %v5389
        %v5392 = vmul.f32 0.5, %v5391
        %v5393 = vsub.f32 1.5, %v5392
        %v5394 = vmul.f32 %v5389, %v5393
        %vm5395 = vweird.f32 %v5378
        %vm5396 = vweird.f32 %v5389
        %vm5397 = vmor %vm5395, %vm5396
        %v5398 = vsel %vm5397, %v5389, %v5394
        %v5399 = vmul.f32 %v5365, %v5388
        %v5400 = vmul.f32 %v5366, %v5398
        %v5401 = vld [vmem:[%s69] sm:$0xff]
        %v5402 = vld [vmem:[%s69 + $0x8] sm:$0xff]
        %v5403 = vld [vmem:[%s69 + $0x10] sm:$0xff]
        %v5404 = vld [vmem:[%s69 + $0x18] sm:$0xff]
        %v5405 = vld [vmem:[%s69 + $0x20] sm:$0xff]
        %v5406 = vld [vmem:[%s69 + $0x28] sm:$0xff]
        %v5407 = vld [vmem:[%s69 + $0x30] sm:$0xff]
        %v5408 = vld [vmem:[%s69 + $0x38] sm:$0xff]
        %v5409 = vpack.c.bf16 %v5400, %v5399
        %v5410 = vld [vmem:[%s71] sm:$0x3]
        %v5412 = vperm.slane %v5410, 0
        %v5413 = vperm.slane %v5410, 1
        %v5424 = vunpack.c.l.b16 %v5401
        %v5425 = vunpack.c.h.b16 %v5401
        %v5426 = vunpack.c.l.b16 %v5402
        %v5427 = vunpack.c.h.b16 %v5402
        %v5428 = vunpack.c.l.b16 %v5403
        %v5429 = vunpack.c.h.b16 %v5403
        %v5430 = vunpack.c.l.b16 %v5404
        %v5431 = vunpack.c.h.b16 %v5404
        %v5432 = vunpack.c.l.b16 %v5405
        %v5433 = vunpack.c.h.b16 %v5405
        %v5434 = vunpack.c.l.b16 %v5406
        %v5435 = vunpack.c.h.b16 %v5406
        %v5436 = vunpack.c.l.b16 %v5407
        %v5437 = vunpack.c.h.b16 %v5407
        %v5438 = vunpack.c.l.b16 %v5408
        %v5439 = vunpack.c.h.b16 %v5408
        %v5440 = vpack.c.b16 %v5426, %v5424
        %v5441 = vpack.c.b16 %v5427, %v5425
        %v5442 = vpack.c.b16 %v5430, %v5428
        %v5443 = vpack.c.b16 %v5431, %v5429
        %v5444 = vpack.c.b16 %v5434, %v5432
        %v5445 = vpack.c.b16 %v5435, %v5433
        %v5446 = vpack.c.b16 %v5438, %v5436
        %v5447 = vpack.c.b16 %v5439, %v5437
        %v5457 = vsel %vm2103, %v5409, 0
        %5459 = vmatpush.bf16.msra.mxu0 0
        %5460 = vmatpush.bf16.msra.mxu0 0
        %5461 = vmatpush.bf16.msra.mxu0 0
        %5462 = vmatpush.bf16.msra.mxu0 0
        %5463 = vmatpush.bf16.msra.mxu0 %v5446
        %5464 = vmatpush.bf16.msra.mxu0 %v5444
        %5465 = vmatpush.bf16.msra.mxu0 %v5442
        %5466 = vmatpush.bf16.msra.mxu0 %v5440
        %5467 = vmatmul.bf16.gmra.mxu0 %v5457
        %v5468 = vpop.f32.mrf.mxu0
        %v5469 = vadd.f32 %v5412, %v5468
        %v5470 = vpop.f32.mrf.mxu0
        %v5471 = vadd.f32 %v5412, %v5470
        %5472 = vdwg.mxu0
        %5473 = vmatpush.bf16.msra.mxu0 0
        %5474 = vmatpush.bf16.msra.mxu0 0
        %5475 = vmatpush.bf16.msra.mxu0 0
        %5476 = vmatpush.bf16.msra.mxu0 0
        %5477 = vmatpush.bf16.msra.mxu0 %v5447
        %5478 = vmatpush.bf16.msra.mxu0 %v5445
        %5479 = vmatpush.bf16.msra.mxu0 %v5443
        %5480 = vmatpush.bf16.msra.mxu0 %v5441
        %5481 = vmatmul.bf16.gmra.mxu0 %v5457
        %v5482 = vpop.f32.mrf.mxu0
        %v5483 = vadd.f32 %v5413, %v5482
        %v5484 = vpop.f32.mrf.mxu0
        %v5485 = vadd.f32 %v5413, %v5484
        %5486 = vdwg.mxu0
        %v5487 = vpack.c.bf16 %v5471, %v5469
        %v5488 = vld [vmem:[%s77] sm:$0xff]
        %v5489 = vld [vmem:[%s77 + $0x8] sm:$0xff]
        %5491 = vrot.lane.b32.xlu0 %v5487, 64
        %v5492 = vpop.permute.xlu0 %5491
        %v5494 = vsel %vm2049, %v5487, 0
        %v5497 = vsel %vm2049, %v5492, 0
        %5499 = vmatpush.bf16.xpose.msra.mxu0 0
        %5500 = vmatpush.bf16.xpose.msra.mxu0 0
        %5501 = vmatpush.bf16.xpose.msra.mxu0 0
        %5502 = vmatpush.bf16.xpose.msra.mxu0 0
        %5503 = vmatpush.bf16.xpose.msra.mxu0 0
        %5504 = vmatpush.bf16.xpose.msra.mxu0 0
        %5505 = vmatpush.bf16.xpose.msra.mxu0 0
        %5506 = vmatpush.bf16.xpose.msra.mxu0 %v5497
        %5507 = vmatmul.bf16.gmra.mxu0 %v5494
        %v5508 = vpop.f32.mrf.mxu0
        %v5509 = vadd.f32 %v5488, %v5508
        %v5510 = vpop.f32.mrf.mxu0
        %v5511 = vadd.f32 %v5489, %v5510
        %5512 = vdwg.mxu0
        %v5513 = vsel %vm2049, %v5509, -inf
        %5514 = vmax.xlane.f32.xlu0 %v5513
        %v5515 = vpop.xlane.xlu0 %5514
        %v5516 = vsel %vm2049, %v5511, -inf
        %5517 = vmax.xlane.f32.xlu0 %v5516
        %v5518 = vpop.xlane.xlu0 %5517
        %v5519 = vsub.f32 %v5509, %v5515
        %v5520 = vsub.f32 %v5511, %v5518
        %v5521 = vmul.f32 %v5519, 1.442695
        %v5522 = vpow.pop %v5521
        %v5523 = vmul.f32 %v5520, 1.442695
        %v5524 = vpow.pop %v5523
        %v5525 = vsel %vm2049, %v5522, 0.0
        %5526 = vadd.xlane.f32.xlu0 %v5525
        %v5527 = vpop.xlane.xlu0 %5526
        %v5528 = vsel %vm2049, %v5524, 0.0
        %5529 = vadd.xlane.f32.xlu0 %v5528
        %v5530 = vpop.xlane.xlu0 %5529
        %v5531 = vrcp.pop %v5527
        %v5532 = vrcp.pop %v5530
        %v5533 = vmul.f32 %v5522, %v5531
        %v5534 = vmul.f32 %v5524, %v5532
        %v5535 = vpack.c.bf16 %v5534, %v5533
        %v5536 = vpack.c.bf16 %v5485, %v5483
        %v5538 = vsel %vm2049, %v5535, 0
        %5540 = vmatpush.bf16.msra.mxu0 0
        %5541 = vmatpush.bf16.msra.mxu0 0
        %5542 = vmatpush.bf16.msra.mxu0 0
        %5543 = vmatpush.bf16.msra.mxu0 0
        %5544 = vmatpush.bf16.msra.mxu0 0
        %5545 = vmatpush.bf16.msra.mxu0 0
        %5546 = vmatpush.bf16.msra.mxu0 0
        %5547 = vmatpush.bf16.msra.mxu0 %v5536
        %5548 = vmatmul.bf16.gmra.mxu0 %v5538
        %v5549 = vpop.f32.mrf.mxu0
        %v5550 = vadd.f32 0.0, %v5549
        %v5551 = vpop.f32.mrf.mxu0
        %v5552 = vadd.f32 0.0, %v5551
        %5553 = vdwg.mxu0
        %v5554 = vld [vmem:[%s73] sm:$0xf]
        %v5555 = vld [vmem:[%s73 + $0x4] sm:$0xf]
        %v5556 = vpack.c.bf16 %v5552, %v5550
        %s5557 = scalar_lea.vmem %s77, 16
        %v5558 = vld [vmem:[%s5557] sm:$0xff]
        %v5559 = vld [vmem:[%s5557 + $0x8] sm:$0xff]
        %5560 = vrot.lane.b32.xlu0 %v5487, 112
        %v5561 = vpop.permute.xlu0 %5560
        %5562 = vrot.lane.b32.xlu0 %v5487, 48
        %v5563 = vpop.permute.xlu0 %5562
        %v5565 = vsel %vm2049, %v5561, 0
        %v5568 = vsel %vm2049, %v5563, 0
        %5570 = vmatpush.bf16.xpose.msra.mxu0 0
        %5571 = vmatpush.bf16.xpose.msra.mxu0 0
        %5572 = vmatpush.bf16.xpose.msra.mxu0 0
        %5573 = vmatpush.bf16.xpose.msra.mxu0 0
        %5574 = vmatpush.bf16.xpose.msra.mxu0 0
        %5575 = vmatpush.bf16.xpose.msra.mxu0 0
        %5576 = vmatpush.bf16.xpose.msra.mxu0 0
        %5577 = vmatpush.bf16.xpose.msra.mxu0 %v5568
        %5578 = vmatmul.bf16.gmra.mxu0 %v5565
        %v5579 = vpop.f32.mrf.mxu0
        %v5580 = vadd.f32 %v5558, %v5579
        %v5581 = vpop.f32.mrf.mxu0
        %v5582 = vadd.f32 %v5559, %v5581
        %5583 = vdwg.mxu0
        %v5584 = vsel %vm2049, %v5580, -inf
        %5585 = vmax.xlane.f32.xlu0 %v5584
        %v5586 = vpop.xlane.xlu0 %5585
        %v5587 = vsel %vm2049, %v5582, -inf
        %5588 = vmax.xlane.f32.xlu0 %v5587
        %v5589 = vpop.xlane.xlu0 %5588
        %v5590 = vsub.f32 %v5580, %v5586
        %v5591 = vsub.f32 %v5582, %v5589
        %v5592 = vmul.f32 %v5590, 1.442695
        %v5593 = vpow.pop %v5592
        %v5594 = vmul.f32 %v5591, 1.442695
        %v5595 = vpow.pop %v5594
        %v5596 = vsel %vm2049, %v5593, 0.0
        %5597 = vadd.xlane.f32.xlu0 %v5596
        %v5598 = vpop.xlane.xlu0 %5597
        %v5599 = vsel %vm2049, %v5595, 0.0
        %5600 = vadd.xlane.f32.xlu0 %v5599
        %v5601 = vpop.xlane.xlu0 %5600
        %v5602 = vrcp.pop %v5598
        %v5603 = vrcp.pop %v5601
        %v5604 = vmul.f32 %v5593, %v5602
        %v5605 = vmul.f32 %v5595, %v5603
        %v5606 = vpack.c.bf16 %v5605, %v5604
        %5608 = vrot.lane.b32.xlu0 %v5536, 112
        %v5609 = vpop.permute.xlu0 %5608
        %v5612 = vsel %vm2049, %v5606, 0
        %5614 = vmatpush.bf16.msra.mxu0 0
        %5615 = vmatpush.bf16.msra.mxu0 0
        %5616 = vmatpush.bf16.msra.mxu0 0
        %5617 = vmatpush.bf16.msra.mxu0 0
        %5618 = vmatpush.bf16.msra.mxu0 0
        %5619 = vmatpush.bf16.msra.mxu0 0
        %5620 = vmatpush.bf16.msra.mxu0 0
        %5621 = vmatpush.bf16.msra.mxu0 %v5609
        %5622 = vmatmul.bf16.gmra.mxu0 %v5612
        %v5623 = vpop.f32.mrf.mxu0
        %v5624 = vadd.f32 0.0, %v5623
        %v5625 = vpop.f32.mrf.mxu0
        %v5626 = vadd.f32 0.0, %v5625
        %5627 = vdwg.mxu0
        %v5628 = vld [vmem:[%s73 + $0x8] sm:$0xf]
        %v5629 = vld [vmem:[%s73 + $0xc] sm:$0xf]
        %v5630 = vpack.c.bf16 %v5626, %v5624
        %v5633 = vunpack.c.l.b16 %v5628
        %v5634 = vunpack.c.l.b16 %v5629
        %v5635 = vpack.c.b16 %v5634, %v5633
        %v5638 = vsel %vm2049, %v5630, 0
        %5640 = vmatpush.bf16.msra.mxu0 0
        %5641 = vmatpush.bf16.msra.mxu0 0
        %5642 = vmatpush.bf16.msra.mxu0 0
        %5643 = vmatpush.bf16.msra.mxu0 0
        %5644 = vmatpush.bf16.msra.mxu0 0
        %5645 = vmatpush.bf16.msra.mxu0 0
        %5646 = vmatpush.bf16.msra.mxu0 0
        %5647 = vmatpush.bf16.msra.mxu0 %v5635
        %5648 = vmatmul.bf16.gmra.mxu0 %v5638
        %v5649 = vpop.f32.mrf.mxu0
        %v5650 = vadd.f32 0.0, %v5649
        %v5651 = vpop.f32.mrf.mxu0
        %v5652 = vadd.f32 0.0, %v5651
        %5653 = vdwg.mxu0
        %v5656 = vunpack.c.l.b16 %v5554
        %v5657 = vunpack.c.l.b16 %v5555
        %v5658 = vpack.c.b16 %v5657, %v5656
        %v5661 = vsel %vm2049, %v5556, 0
        %5663 = vmatpush.bf16.msra.mxu0 0
        %5664 = vmatpush.bf16.msra.mxu0 0
        %5665 = vmatpush.bf16.msra.mxu0 0
        %5666 = vmatpush.bf16.msra.mxu0 0
        %5667 = vmatpush.bf16.msra.mxu0 0
        %5668 = vmatpush.bf16.msra.mxu0 0
        %5669 = vmatpush.bf16.msra.mxu0 0
        %5670 = vmatpush.bf16.msra.mxu0 %v5658
        %5671 = vmatmul.bf16.gmra.mxu0 %v5661
        %v5672 = vpop.f32.mrf.mxu0
        %v5673 = vadd.f32 %v5650, %v5672
        %v5674 = vpop.f32.mrf.mxu0
        %v5675 = vadd.f32 %v5652, %v5674
        %5676 = vdwg.mxu0
        %s5677 = scalar_lea.vmem %s77, 32
        %v5678 = vld [vmem:[%s5677] sm:$0xff]
        %v5679 = vld [vmem:[%s5677 + $0x8] sm:$0xff]
        %5680 = vrot.lane.b32.xlu0 %v5487, 96
        %v5681 = vpop.permute.xlu0 %5680
        %5682 = vrot.lane.b32.xlu0 %v5487, 32
        %v5683 = vpop.permute.xlu0 %5682
        %v5685 = vsel %vm2049, %v5681, 0
        %v5688 = vsel %vm2049, %v5683, 0
        %5690 = vmatpush.bf16.xpose.msra.mxu0 0
        %5691 = vmatpush.bf16.xpose.msra.mxu0 0
        %5692 = vmatpush.bf16.xpose.msra.mxu0 0
        %5693 = vmatpush.bf16.xpose.msra.mxu0 0
        %5694 = vmatpush.bf16.xpose.msra.mxu0 0
        %5695 = vmatpush.bf16.xpose.msra.mxu0 0
        %5696 = vmatpush.bf16.xpose.msra.mxu0 0
        %5697 = vmatpush.bf16.xpose.msra.mxu0 %v5688
        %5698 = vmatmul.bf16.gmra.mxu0 %v5685
        %v5699 = vpop.f32.mrf.mxu0
        %v5700 = vadd.f32 %v5678, %v5699
        %v5701 = vpop.f32.mrf.mxu0
        %v5702 = vadd.f32 %v5679, %v5701
        %5703 = vdwg.mxu0
        %v5704 = vsel %vm2049, %v5700, -inf
        %5705 = vmax.xlane.f32.xlu0 %v5704
        %v5706 = vpop.xlane.xlu0 %5705
        %v5707 = vsel %vm2049, %v5702, -inf
        %5708 = vmax.xlane.f32.xlu0 %v5707
        %v5709 = vpop.xlane.xlu0 %5708
        %v5710 = vsub.f32 %v5700, %v5706
        %v5711 = vsub.f32 %v5702, %v5709
        %v5712 = vmul.f32 %v5710, 1.442695
        %v5713 = vpow.pop %v5712
        %v5714 = vmul.f32 %v5711, 1.442695
        %v5715 = vpow.pop %v5714
        %v5716 = vsel %vm2049, %v5713, 0.0
        %5717 = vadd.xlane.f32.xlu0 %v5716
        %v5718 = vpop.xlane.xlu0 %5717
        %v5719 = vsel %vm2049, %v5715, 0.0
        %5720 = vadd.xlane.f32.xlu0 %v5719
        %v5721 = vpop.xlane.xlu0 %5720
        %v5722 = vrcp.pop %v5718
        %v5723 = vrcp.pop %v5721
        %v5724 = vmul.f32 %v5713, %v5722
        %v5725 = vmul.f32 %v5715, %v5723
        %v5726 = vpack.c.bf16 %v5725, %v5724
        %5727 = vrot.lane.b32.xlu0 %v5536, 96
        %v5728 = vpop.permute.xlu0 %5727
        %v5731 = vsel %vm2049, %v5726, 0
        %5733 = vmatpush.bf16.msra.mxu0 0
        %5734 = vmatpush.bf16.msra.mxu0 0
        %5735 = vmatpush.bf16.msra.mxu0 0
        %5736 = vmatpush.bf16.msra.mxu0 0
        %5737 = vmatpush.bf16.msra.mxu0 0
        %5738 = vmatpush.bf16.msra.mxu0 0
        %5739 = vmatpush.bf16.msra.mxu0 0
        %5740 = vmatpush.bf16.msra.mxu0 %v5728
        %5741 = vmatmul.bf16.gmra.mxu0 %v5731
        %v5742 = vpop.f32.mrf.mxu0
        %v5743 = vadd.f32 0.0, %v5742
        %v5744 = vpop.f32.mrf.mxu0
        %v5745 = vadd.f32 0.0, %v5744
        %5746 = vdwg.mxu0
        %v5747 = vld [vmem:[%s73 + $0x10] sm:$0xf]
        %v5748 = vld [vmem:[%s73 + $0x14] sm:$0xf]
        %v5749 = vpack.c.bf16 %v5745, %v5743
        %v5752 = vunpack.c.l.b16 %v5747
        %v5753 = vunpack.c.l.b16 %v5748
        %v5754 = vpack.c.b16 %v5753, %v5752
        %v5757 = vsel %vm2049, %v5749, 0
        %5759 = vmatpush.bf16.msra.mxu0 0
        %5760 = vmatpush.bf16.msra.mxu0 0
        %5761 = vmatpush.bf16.msra.mxu0 0
        %5762 = vmatpush.bf16.msra.mxu0 0
        %5763 = vmatpush.bf16.msra.mxu0 0
        %5764 = vmatpush.bf16.msra.mxu0 0
        %5765 = vmatpush.bf16.msra.mxu0 0
        %5766 = vmatpush.bf16.msra.mxu0 %v5754
        %5767 = vmatmul.bf16.gmra.mxu0 %v5757
        %v5768 = vpop.f32.mrf.mxu0
        %v5769 = vadd.f32 0.0, %v5768
        %v5770 = vpop.f32.mrf.mxu0
        %v5771 = vadd.f32 0.0, %v5770
        %5772 = vdwg.mxu0
        %v5773 = vadd.f32 %v5673, %v5769
        %v5774 = vadd.f32 %v5675, %v5771
        %s5775 = scalar_lea.vmem %s77, 48
        %v5776 = vld [vmem:[%s5775] sm:$0xff]
        %v5777 = vld [vmem:[%s5775 + $0x8] sm:$0xff]
        %5778 = vrot.lane.b32.xlu0 %v5487, 80
        %v5779 = vpop.permute.xlu0 %5778
        %5780 = vrot.lane.b32.xlu0 %v5487, 16
        %v5781 = vpop.permute.xlu0 %5780
        %v5783 = vsel %vm2049, %v5779, 0
        %v5786 = vsel %vm2049, %v5781, 0
        %5788 = vmatpush.bf16.xpose.msra.mxu0 0
        %5789 = vmatpush.bf16.xpose.msra.mxu0 0
        %5790 = vmatpush.bf16.xpose.msra.mxu0 0
        %5791 = vmatpush.bf16.xpose.msra.mxu0 0
        %5792 = vmatpush.bf16.xpose.msra.mxu0 0
        %5793 = vmatpush.bf16.xpose.msra.mxu0 0
        %5794 = vmatpush.bf16.xpose.msra.mxu0 0
        %5795 = vmatpush.bf16.xpose.msra.mxu0 %v5786
        %5796 = vmatmul.bf16.gmra.mxu0 %v5783
        %v5797 = vpop.f32.mrf.mxu0
        %v5798 = vadd.f32 %v5776, %v5797
        %v5799 = vpop.f32.mrf.mxu0
        %v5800 = vadd.f32 %v5777, %v5799
        %5801 = vdwg.mxu0
        %v5802 = vsel %vm2049, %v5798, -inf
        %5803 = vmax.xlane.f32.xlu0 %v5802
        %v5804 = vpop.xlane.xlu0 %5803
        %v5805 = vsel %vm2049, %v5800, -inf
        %5806 = vmax.xlane.f32.xlu0 %v5805
        %v5807 = vpop.xlane.xlu0 %5806
        %v5808 = vsub.f32 %v5798, %v5804
        %v5809 = vsub.f32 %v5800, %v5807
        %v5810 = vmul.f32 %v5808, 1.442695
        %v5811 = vpow.pop %v5810
        %v5812 = vmul.f32 %v5809, 1.442695
        %v5813 = vpow.pop %v5812
        %v5814 = vsel %vm2049, %v5811, 0.0
        %5815 = vadd.xlane.f32.xlu0 %v5814
        %v5816 = vpop.xlane.xlu0 %5815
        %v5817 = vsel %vm2049, %v5813, 0.0
        %5818 = vadd.xlane.f32.xlu0 %v5817
        %v5819 = vpop.xlane.xlu0 %5818
        %v5820 = vrcp.pop %v5816
        %v5821 = vrcp.pop %v5819
        %v5822 = vmul.f32 %v5811, %v5820
        %v5823 = vmul.f32 %v5813, %v5821
        %v5824 = vpack.c.bf16 %v5823, %v5822
        %5825 = vrot.lane.b32.xlu0 %v5536, 80
        %v5826 = vpop.permute.xlu0 %5825
        %v5829 = vsel %vm2049, %v5824, 0
        %5831 = vmatpush.bf16.msra.mxu0 0
        %5832 = vmatpush.bf16.msra.mxu0 0
        %5833 = vmatpush.bf16.msra.mxu0 0
        %5834 = vmatpush.bf16.msra.mxu0 0
        %5835 = vmatpush.bf16.msra.mxu0 0
        %5836 = vmatpush.bf16.msra.mxu0 0
        %5837 = vmatpush.bf16.msra.mxu0 0
        %5838 = vmatpush.bf16.msra.mxu0 %v5826
        %5839 = vmatmul.bf16.gmra.mxu0 %v5829
        %v5840 = vpop.f32.mrf.mxu0
        %v5841 = vadd.f32 0.0, %v5840
        %v5842 = vpop.f32.mrf.mxu0
        %v5843 = vadd.f32 0.0, %v5842
        %5844 = vdwg.mxu0
        %v5845 = vld [vmem:[%s73 + $0x18] sm:$0xf]
        %v5846 = vld [vmem:[%s73 + $0x1c] sm:$0xf]
        %v5847 = vpack.c.bf16 %v5843, %v5841
        %v5850 = vunpack.c.l.b16 %v5845
        %v5851 = vunpack.c.l.b16 %v5846
        %v5852 = vpack.c.b16 %v5851, %v5850
        %v5855 = vsel %vm2049, %v5847, 0
        %5857 = vmatpush.bf16.msra.mxu0 0
        %5858 = vmatpush.bf16.msra.mxu0 0
        %5859 = vmatpush.bf16.msra.mxu0 0
        %5860 = vmatpush.bf16.msra.mxu0 0
        %5861 = vmatpush.bf16.msra.mxu0 0
        %5862 = vmatpush.bf16.msra.mxu0 0
        %5863 = vmatpush.bf16.msra.mxu0 0
        %5864 = vmatpush.bf16.msra.mxu0 %v5852
        %5865 = vmatmul.bf16.gmra.mxu0 %v5855
        %v5866 = vpop.f32.mrf.mxu0
        %v5867 = vadd.f32 0.0, %v5866
        %v5868 = vpop.f32.mrf.mxu0
        %v5869 = vadd.f32 0.0, %v5868
        %5870 = vdwg.mxu0
        %v5871 = vadd.f32 %v5773, %v5867
        %v5872 = vadd.f32 %v5774, %v5869
        %v5873 = vadd.f32 %v5355, %v5871
        %v5874 = vadd.f32 %v5356, %v5872
        %v5875 = vld [vmem:[#allocation7] sm:$0x1]
        %v5877 = vperm.slane %v5875, 0
        %v5879 = vadd.f32 %v5873, %v5877
        %v5880 = vadd.f32 %v5874, %v5877
        %v5881 = vsel %vm2103, %v5879, 0.0
        %5882 = vadd.xlane.f32.xlu0 %v5881
        %v5883 = vpop.xlane.xlu0 %5882
        %v5884 = vsel %vm2103, %v5880, 0.0
        %5885 = vadd.xlane.f32.xlu0 %v5884
        %v5886 = vpop.xlane.xlu0 %5885
        %v5887 = vmul.f32 %v5883, %v4506
        %v5888 = vmul.f32 %v5886, %v4506
        %v5889 = vsub.f32 %v5879, %v5887
        %v5890 = vsub.f32 %v5880, %v5888
        %v5891 = vmul.f32 %v5889, %v5889
        %v5892 = vmul.f32 %v5890, %v5890
        %v5893 = vsel %vm2103, %v5891, 0.0
        %5894 = vadd.xlane.f32.xlu0 %v5893
        %v5895 = vpop.xlane.xlu0 %5894
        %v5896 = vsel %vm2103, %v5892, 0.0
        %5897 = vadd.xlane.f32.xlu0 %v5896
        %v5898 = vpop.xlane.xlu0 %5897
        %v5899 = vmul.f32 %v5895, %v4506
        %v5900 = vmul.f32 %v5898, %v4506
        %v5901 = vadd.f32 %v5899, 1e-05
        %v5902 = vadd.f32 %v5900, 1e-05
        %v5903 = vrsqrt.pop %v5901
        %v5904 = vmul.f32 %v5903, %v5901
        %v5905 = vmul.f32 %v5904, %v5903
        %v5906 = vmul.f32 0.5, %v5905
        %v5907 = vsub.f32 1.5, %v5906
        %v5908 = vmul.f32 %v5903, %v5907
        %vm5909 = vweird.f32 %v5901
        %vm5910 = vweird.f32 %v5903
        %vm5911 = vmor %vm5909, %vm5910
        %v5912 = vsel %vm5911, %v5903, %v5908
        %v5913 = vrsqrt.pop %v5902
        %v5914 = vmul.f32 %v5913, %v5902
        %v5915 = vmul.f32 %v5914, %v5913
        %v5916 = vmul.f32 0.5, %v5915
        %v5917 = vsub.f32 1.5, %v5916
        %v5918 = vmul.f32 %v5913, %v5917
        %vm5919 = vweird.f32 %v5902
        %vm5920 = vweird.f32 %v5913
        %vm5921 = vmor %vm5919, %vm5920
        %v5922 = vsel %vm5921, %v5913, %v5918
        %v5923 = vmul.f32 %v5889, %v5912
        %v5924 = vmul.f32 %v5890, %v5922
        %v5925 = vld [vmem:[%s79] sm:$0xff]
        %v5926 = vld [vmem:[%s79 + $0x8] sm:$0xff]
        %v5927 = vld [vmem:[%s79 + $0x10] sm:$0xff]
        %v5928 = vld [vmem:[%s79 + $0x18] sm:$0xff]
        %v5929 = vld [vmem:[%s79 + $0x20] sm:$0xff]
        %v5930 = vld [vmem:[%s79 + $0x28] sm:$0xff]
        %v5931 = vld [vmem:[%s79 + $0x30] sm:$0xff]
        %v5932 = vld [vmem:[%s79 + $0x38] sm:$0xff]
        %v5933 = vpack.c.bf16 %v5924, %v5923
        %v5934 = vld [vmem:[%s81] sm:$0x3]
        %v5936 = vperm.slane %v5934, 0
        %v5937 = vperm.slane %v5934, 1
        %v5948 = vunpack.c.l.b16 %v5925
        %v5949 = vunpack.c.h.b16 %v5925
        %v5950 = vunpack.c.l.b16 %v5926
        %v5951 = vunpack.c.h.b16 %v5926
        %v5952 = vunpack.c.l.b16 %v5927
        %v5953 = vunpack.c.h.b16 %v5927
        %v5954 = vunpack.c.l.b16 %v5928
        %v5955 = vunpack.c.h.b16 %v5928
        %v5956 = vunpack.c.l.b16 %v5929
        %v5957 = vunpack.c.h.b16 %v5929
        %v5958 = vunpack.c.l.b16 %v5930
        %v5959 = vunpack.c.h.b16 %v5930
        %v5960 = vunpack.c.l.b16 %v5931
        %v5961 = vunpack.c.h.b16 %v5931
        %v5962 = vunpack.c.l.b16 %v5932
        %v5963 = vunpack.c.h.b16 %v5932
        %v5964 = vpack.c.b16 %v5950, %v5948
        %v5965 = vpack.c.b16 %v5951, %v5949
        %v5966 = vpack.c.b16 %v5954, %v5952
        %v5967 = vpack.c.b16 %v5955, %v5953
        %v5968 = vpack.c.b16 %v5958, %v5956
        %v5969 = vpack.c.b16 %v5959, %v5957
        %v5970 = vpack.c.b16 %v5962, %v5960
        %v5971 = vpack.c.b16 %v5963, %v5961
        %v5981 = vsel %vm2103, %v5933, 0
        %5983 = vmatpush.bf16.msra.mxu0 0
        %5984 = vmatpush.bf16.msra.mxu0 0
        %5985 = vmatpush.bf16.msra.mxu0 0
        %5986 = vmatpush.bf16.msra.mxu0 0
        %5987 = vmatpush.bf16.msra.mxu0 %v5970
        %5988 = vmatpush.bf16.msra.mxu0 %v5968
        %5989 = vmatpush.bf16.msra.mxu0 %v5966
        %5990 = vmatpush.bf16.msra.mxu0 %v5964
        %5991 = vmatmul.bf16.gmra.mxu0 %v5981
        %v5992 = vpop.f32.mrf.mxu0
        %v5993 = vadd.f32 %v5936, %v5992
        %v5994 = vpop.f32.mrf.mxu0
        %v5995 = vadd.f32 %v5936, %v5994
        %5996 = vdwg.mxu0
        %5997 = vmatpush.bf16.msra.mxu0 0
        %5998 = vmatpush.bf16.msra.mxu0 0
        %5999 = vmatpush.bf16.msra.mxu0 0
        %6000 = vmatpush.bf16.msra.mxu0 0
        %6001 = vmatpush.bf16.msra.mxu0 %v5971
        %6002 = vmatpush.bf16.msra.mxu0 %v5969
        %6003 = vmatpush.bf16.msra.mxu0 %v5967
        %6004 = vmatpush.bf16.msra.mxu0 %v5965
        %6005 = vmatmul.bf16.gmra.mxu0 %v5981
        %v6006 = vpop.f32.mrf.mxu0
        %v6007 = vadd.f32 %v5937, %v6006
        %v6008 = vpop.f32.mrf.mxu0
        %v6009 = vadd.f32 %v5937, %v6008
        %6010 = vdwg.mxu0
        %v6011 = vmul.f32 %v5993, 0.5
        %v6012 = vmul.f32 %v6007, 0.5
        %v6013 = vmul.f32 %v5995, 0.5
        %v6014 = vmul.f32 %v6009, 0.5
        %v6015 = vmul.f32 %v5993, 0.044715
        %v6016 = vmul.f32 %v6007, 0.044715
        %v6017 = vmul.f32 %v5995, 0.044715
        %v6018 = vmul.f32 %v6009, 0.044715
        %v6019 = vmul.f32 %v6015, %v5993
        %v6020 = vmul.f32 %v6016, %v6007
        %v6021 = vmul.f32 %v6017, %v5995
        %v6022 = vmul.f32 %v6018, %v6009
        %v6023 = vmul.f32 %v6019, %v5993
        %v6024 = vmul.f32 %v6020, %v6007
        %v6025 = vmul.f32 %v6021, %v5995
        %v6026 = vmul.f32 %v6022, %v6009
        %v6027 = vadd.f32 %v5993, %v6023
        %v6028 = vadd.f32 %v6007, %v6024
        %v6029 = vadd.f32 %v5995, %v6025
        %v6030 = vadd.f32 %v6009, %v6026
        %v6031 = vmul.f32 %v6027, 0.7978846
        %v6032 = vmul.f32 %v6028, 0.7978846
        %v6033 = vmul.f32 %v6029, 0.7978846
        %v6034 = vmul.f32 %v6030, 0.7978846
        %v6035 = vtanh.pop %v6031
        %v6036 = vtanh.pop %v6032
        %v6037 = vtanh.pop %v6033
        %v6038 = vtanh.pop %v6034
        %v6039 = vadd.f32 %v6035, 1.0
        %v6040 = vadd.f32 %v6036, 1.0
        %v6041 = vadd.f32 %v6037, 1.0
        %v6042 = vadd.f32 %v6038, 1.0
        %v6043 = vmul.f32 %v6011, %v6039
        %v6044 = vmul.f32 %v6012, %v6040
        %v6045 = vmul.f32 %v6013, %v6041
        %v6046 = vmul.f32 %v6014, %v6042
        %v6047 = vld [vmem:[%s83] sm:$0xf]
        %v6048 = vld [vmem:[%s83 + $0x4] sm:$0xf]
        %v6049 = vld [vmem:[%s83 + $0x8] sm:$0xf]
        %v6050 = vld [vmem:[%s83 + $0xc] sm:$0xf]
        %v6051 = vld [vmem:[%s83 + $0x10] sm:$0xf]
        %v6052 = vld [vmem:[%s83 + $0x14] sm:$0xf]
        %v6053 = vld [vmem:[%s83 + $0x18] sm:$0xf]
        %v6054 = vld [vmem:[%s83 + $0x1c] sm:$0xf]
        %v6055 = vld [vmem:[%s83 + $0x20] sm:$0xf]
        %v6056 = vld [vmem:[%s83 + $0x24] sm:$0xf]
        %v6057 = vld [vmem:[%s83 + $0x28] sm:$0xf]
        %v6058 = vld [vmem:[%s83 + $0x2c] sm:$0xf]
        %v6059 = vld [vmem:[%s83 + $0x30] sm:$0xf]
        %v6060 = vld [vmem:[%s83 + $0x34] sm:$0xf]
        %v6061 = vld [vmem:[%s83 + $0x38] sm:$0xf]
        %v6062 = vld [vmem:[%s83 + $0x3c] sm:$0xf]
        %v6063 = vld [vmem:[%s83 + $0x40] sm:$0xf]
        %v6064 = vld [vmem:[%s83 + $0x44] sm:$0xf]
        %v6065 = vld [vmem:[%s83 + $0x48] sm:$0xf]
        %v6066 = vld [vmem:[%s83 + $0x4c] sm:$0xf]
        %v6067 = vld [vmem:[%s83 + $0x50] sm:$0xf]
        %v6068 = vld [vmem:[%s83 + $0x54] sm:$0xf]
        %v6069 = vld [vmem:[%s83 + $0x58] sm:$0xf]
        %v6070 = vld [vmem:[%s83 + $0x5c] sm:$0xf]
        %v6071 = vld [vmem:[%s83 + $0x60] sm:$0xf]
        %v6072 = vld [vmem:[%s83 + $0x64] sm:$0xf]
        %v6073 = vld [vmem:[%s83 + $0x68] sm:$0xf]
        %v6074 = vld [vmem:[%s83 + $0x6c] sm:$0xf]
        %v6075 = vld [vmem:[%s83 + $0x70] sm:$0xf]
        %v6076 = vld [vmem:[%s83 + $0x74] sm:$0xf]
        %v6077 = vld [vmem:[%s83 + $0x78] sm:$0xf]
        %v6078 = vld [vmem:[%s83 + $0x7c] sm:$0xf]
        %v6079 = vpack.c.bf16 %v6045, %v6043
        %v6080 = vpack.c.bf16 %v6046, %v6044
        %v6113 = vunpack.c.l.b16 %v6047
        %v6114 = vunpack.c.l.b16 %v6048
        %v6115 = vunpack.c.l.b16 %v6049
        %v6116 = vunpack.c.l.b16 %v6050
        %v6117 = vunpack.c.l.b16 %v6051
        %v6118 = vunpack.c.l.b16 %v6052
        %v6119 = vunpack.c.l.b16 %v6053
        %v6120 = vunpack.c.l.b16 %v6054
        %v6121 = vunpack.c.l.b16 %v6055
        %v6122 = vunpack.c.l.b16 %v6056
        %v6123 = vunpack.c.l.b16 %v6057
        %v6124 = vunpack.c.l.b16 %v6058
        %v6125 = vunpack.c.l.b16 %v6059
        %v6126 = vunpack.c.l.b16 %v6060
        %v6127 = vunpack.c.l.b16 %v6061
        %v6128 = vunpack.c.l.b16 %v6062
        %v6129 = vunpack.c.l.b16 %v6063
        %v6130 = vunpack.c.l.b16 %v6064
        %v6131 = vunpack.c.l.b16 %v6065
        %v6132 = vunpack.c.l.b16 %v6066
        %v6133 = vunpack.c.l.b16 %v6067
        %v6134 = vunpack.c.l.b16 %v6068
        %v6135 = vunpack.c.l.b16 %v6069
        %v6136 = vunpack.c.l.b16 %v6070
        %v6137 = vunpack.c.l.b16 %v6071
        %v6138 = vunpack.c.l.b16 %v6072
        %v6139 = vunpack.c.l.b16 %v6073
        %v6140 = vunpack.c.l.b16 %v6074
        %v6141 = vunpack.c.l.b16 %v6075
        %v6142 = vunpack.c.l.b16 %v6076
        %v6143 = vunpack.c.l.b16 %v6077
        %v6144 = vunpack.c.l.b16 %v6078
        %v6145 = vpack.c.b16 %v6114, %v6113
        %v6146 = vpack.c.b16 %v6116, %v6115
        %v6147 = vpack.c.b16 %v6118, %v6117
        %v6148 = vpack.c.b16 %v6120, %v6119
        %v6149 = vpack.c.b16 %v6122, %v6121
        %v6150 = vpack.c.b16 %v6124, %v6123
        %v6151 = vpack.c.b16 %v6126, %v6125
        %v6152 = vpack.c.b16 %v6128, %v6127
        %v6153 = vpack.c.b16 %v6130, %v6129
        %v6154 = vpack.c.b16 %v6132, %v6131
        %v6155 = vpack.c.b16 %v6134, %v6133
        %v6156 = vpack.c.b16 %v6136, %v6135
        %v6157 = vpack.c.b16 %v6138, %v6137
        %v6158 = vpack.c.b16 %v6140, %v6139
        %v6159 = vpack.c.b16 %v6142, %v6141
        %v6160 = vpack.c.b16 %v6144, %v6143
        %6177 = vmatpush.bf16.msra.mxu0 %v6152
        %6178 = vmatpush.bf16.msra.mxu0 %v6151
        %6179 = vmatpush.bf16.msra.mxu0 %v6150
        %6180 = vmatpush.bf16.msra.mxu0 %v6149
        %6181 = vmatpush.bf16.msra.mxu0 %v6148
        %6182 = vmatpush.bf16.msra.mxu0 %v6147
        %6183 = vmatpush.bf16.msra.mxu0 %v6146
        %6184 = vmatpush.bf16.msra.mxu0 %v6145
        %6185 = vmatmul.bf16.gmra.mxu0 %v6079
        %v6186 = vpop.f32.mrf.mxu0
        %v6187 = vadd.f32 0.0, %v6186
        %v6188 = vpop.f32.mrf.mxu0
        %v6189 = vadd.f32 0.0, %v6188
        %6190 = vdwg.mxu0
        %6191 = vmatpush.bf16.msra.mxu0 %v6160
        %6192 = vmatpush.bf16.msra.mxu0 %v6159
        %6193 = vmatpush.bf16.msra.mxu0 %v6158
        %6194 = vmatpush.bf16.msra.mxu0 %v6157
        %6195 = vmatpush.bf16.msra.mxu0 %v6156
        %6196 = vmatpush.bf16.msra.mxu0 %v6155
        %6197 = vmatpush.bf16.msra.mxu0 %v6154
        %6198 = vmatpush.bf16.msra.mxu0 %v6153
        %6199 = vmatmul.bf16.gmra.mxu0 %v6080
        %v6200 = vpop.f32.mrf.mxu0
        %v6201 = vadd.f32 %v6187, %v6200
        %v6202 = vpop.f32.mrf.mxu0
        %v6203 = vadd.f32 %v6189, %v6202
        %6204 = vdwg.mxu0
        %v6205 = vadd.f32 %v5879, %v6201
        %v6206 = vadd.f32 %v5880, %v6203
        %v6207 = vld [vmem:[#allocation9] sm:$0x1]
        %v6209 = vperm.slane %v6207, 0
        %v6211 = vadd.f32 %v6205, %v6209
        %v6212 = vadd.f32 %v6206, %v6209
        %v6213 = vsel %vm2103, %v6211, 0.0
        %6214 = vadd.xlane.f32.xlu0 %v6213
        %v6215 = vpop.xlane.xlu0 %6214
        %v6216 = vsel %vm2103, %v6212, 0.0
        %6217 = vadd.xlane.f32.xlu0 %v6216
        %v6218 = vpop.xlane.xlu0 %6217
        %v6219 = vmul.f32 %v6215, %v4506
        %v6220 = vmul.f32 %v6218, %v4506
        %v6221 = vsub.f32 %v6211, %v6219
        %v6222 = vsub.f32 %v6212, %v6220
        %v6223 = vmul.f32 %v6221, %v6221
        %v6224 = vmul.f32 %v6222, %v6222
        %v6225 = vsel %vm2103, %v6223, 0.0
        %6226 = vadd.xlane.f32.xlu0 %v6225
        %v6227 = vpop.xlane.xlu0 %6226
        %v6228 = vsel %vm2103, %v6224, 0.0
        %6229 = vadd.xlane.f32.xlu0 %v6228
        %v6230 = vpop.xlane.xlu0 %6229
        %v6231 = vmul.f32 %v6227, %v4506
        %v6232 = vmul.f32 %v6230, %v4506
        %v6233 = vadd.f32 %v6231, 1e-05
        %v6234 = vadd.f32 %v6232, 1e-05
        %v6235 = vrsqrt.pop %v6233
        %v6236 = vmul.f32 %v6235, %v6233
        %v6237 = vmul.f32 %v6236, %v6235
        %v6238 = vmul.f32 0.5, %v6237
        %v6239 = vsub.f32 1.5, %v6238
        %v6240 = vmul.f32 %v6235, %v6239
        %vm6241 = vweird.f32 %v6233
        %vm6242 = vweird.f32 %v6235
        %vm6243 = vmor %vm6241, %vm6242
        %v6244 = vsel %vm6243, %v6235, %v6240
        %v6245 = vrsqrt.pop %v6234
        %v6246 = vmul.f32 %v6245, %v6234
        %v6247 = vmul.f32 %v6246, %v6245
        %v6248 = vmul.f32 0.5, %v6247
        %v6249 = vsub.f32 1.5, %v6248
        %v6250 = vmul.f32 %v6245, %v6249
        %vm6251 = vweird.f32 %v6234
        %vm6252 = vweird.f32 %v6245
        %vm6253 = vmor %vm6251, %vm6252
        %v6254 = vsel %vm6253, %v6245, %v6250
        %v6255 = vmul.f32 %v6221, %v6244
        %v6256 = vmul.f32 %v6222, %v6254
        %v6257 = vsel %vm2103, %v6255, 0.0
        %v6258 = vsel %vm2103, %v6256, 0.0
        %v6259 = vadd.f32 %v6257, %v6258
        %v6260 = vrot.slane %v6259, 4
        %v6261 = vadd.f32 %v6259, %v6260
        %v6262 = vrot.slane %v6261, 2
        %v6263 = vadd.f32 %v6261, %v6262
        %v6264 = vrot.slane %v6263, 1
        %v6265 = vadd.f32 %v6263, %v6264
        %v6266 = vrcp.pop 16.0
        %v6267 = vmul.f32 16.0, %v6266
        %v6268 = vsub.f32 1.0, %v6267
        %v6269 = vmul.f32 %v6266, %v6268
        %v6270 = vadd.f32 %v6266, %v6269
        %vm6271 = vweird.f32 %v6266
        %v6272 = vsel %vm6271, %v6266, %v6270
        %v6273 = vmul.f32 %v6265, %v6272
        %v6274 = vld [vmem:[%s87] sm:$0xff]
        %v6275 = vld [vmem:[%s87 + $0x8] sm:$0xff]
        %v6276 = vld [vmem:[%s87 + $0x10] sm:$0xff]
        %v6277 = vld [vmem:[%s87 + $0x18] sm:$0xff]
        %v6278 = vld [vmem:[%s87 + $0x20] sm:$0xff]
        %v6279 = vld [vmem:[%s87 + $0x28] sm:$0xff]
        %v6280 = vld [vmem:[%s87 + $0x30] sm:$0xff]
        %v6281 = vld [vmem:[%s87 + $0x38] sm:$0xff]
        %v6282 = vpack.c.bf16 %v6273, %v6273
        %v6283 = vld [vmem:[%s89] sm:$0x3]
        %v6285 = vperm.slane %v6283, 0
        %v6286 = vperm.slane %v6283, 1
        %v6297 = vunpack.c.l.b16 %v6274
        %v6298 = vunpack.c.h.b16 %v6274
        %v6299 = vunpack.c.l.b16 %v6275
        %v6300 = vunpack.c.h.b16 %v6275
        %v6301 = vunpack.c.l.b16 %v6276
        %v6302 = vunpack.c.h.b16 %v6276
        %v6303 = vunpack.c.l.b16 %v6277
        %v6304 = vunpack.c.h.b16 %v6277
        %v6305 = vunpack.c.l.b16 %v6278
        %v6306 = vunpack.c.h.b16 %v6278
        %v6307 = vunpack.c.l.b16 %v6279
        %v6308 = vunpack.c.h.b16 %v6279
        %v6309 = vunpack.c.l.b16 %v6280
        %v6310 = vunpack.c.h.b16 %v6280
        %v6311 = vunpack.c.l.b16 %v6281
        %v6312 = vunpack.c.h.b16 %v6281
        %v6313 = vpack.c.b16 %v6299, %v6297
        %v6314 = vpack.c.b16 %v6300, %v6298
        %v6315 = vpack.c.b16 %v6303, %v6301
        %v6316 = vpack.c.b16 %v6304, %v6302
        %v6317 = vpack.c.b16 %v6307, %v6305
        %v6318 = vpack.c.b16 %v6308, %v6306
        %v6319 = vpack.c.b16 %v6311, %v6309
        %v6320 = vpack.c.b16 %v6312, %v6310
        %v6330 = vsel %vm2103, %v6282, 0
        %6332 = vmatpush.bf16.msra.mxu0 0
        %6333 = vmatpush.bf16.msra.mxu0 0
        %6334 = vmatpush.bf16.msra.mxu0 0
        %6335 = vmatpush.bf16.msra.mxu0 0
        %6336 = vmatpush.bf16.msra.mxu0 %v6319
        %6337 = vmatpush.bf16.msra.mxu0 %v6317
        %6338 = vmatpush.bf16.msra.mxu0 %v6315
        %6339 = vmatpush.bf16.msra.mxu0 %v6313
        %6340 = vmatmul.bf16.gmra.mxu0 %v6330
        %v6341 = vpop.f32.mrf.mxu0
        %v6342 = vadd.f32 %v6285, %v6341
        %v6343 = vpop.f32.mrf.mxu0
        %6344 = vdwg.mxu0
        %6345 = vmatpush.bf16.msra.mxu0 0
        %6346 = vmatpush.bf16.msra.mxu0 0
        %6347 = vmatpush.bf16.msra.mxu0 0
        %6348 = vmatpush.bf16.msra.mxu0 0
        %6349 = vmatpush.bf16.msra.mxu0 %v6320
        %6350 = vmatpush.bf16.msra.mxu0 %v6318
        %6351 = vmatpush.bf16.msra.mxu0 %v6316
        %6352 = vmatpush.bf16.msra.mxu0 %v6314
        %6353 = vmatmul.bf16.gmra.mxu0 %v6330
        %v6354 = vpop.f32.mrf.mxu0
        %v6355 = vadd.f32 %v6286, %v6354
        %v6356 = vpop.f32.mrf.mxu0
        %6357 = vdwg.mxu0
        %v6358 = vmax.f32 %v6342, 0.0
        %v6359 = vmax.f32 %v6355, 0.0
        %v6360 = vld [vmem:[%s91] sm:$0xf]
        %v6361 = vld [vmem:[%s91 + $0x4] sm:$0xf]
        %v6362 = vld [vmem:[%s91 + $0x8] sm:$0xf]
        %v6363 = vld [vmem:[%s91 + $0xc] sm:$0xf]
        %v6364 = vld [vmem:[%s91 + $0x10] sm:$0xf]
        %v6365 = vld [vmem:[%s91 + $0x14] sm:$0xf]
        %v6366 = vld [vmem:[%s91 + $0x18] sm:$0xf]
        %v6367 = vld [vmem:[%s91 + $0x1c] sm:$0xf]
        %v6368 = vld [vmem:[%s91 + $0x20] sm:$0xf]
        %v6369 = vld [vmem:[%s91 + $0x24] sm:$0xf]
        %v6370 = vld [vmem:[%s91 + $0x28] sm:$0xf]
        %v6371 = vld [vmem:[%s91 + $0x2c] sm:$0xf]
        %v6372 = vld [vmem:[%s91 + $0x30] sm:$0xf]
        %v6373 = vld [vmem:[%s91 + $0x34] sm:$0xf]
        %v6374 = vld [vmem:[%s91 + $0x38] sm:$0xf]
        %v6375 = vld [vmem:[%s91 + $0x3c] sm:$0xf]
        %v6376 = vld [vmem:[%s91 + $0x40] sm:$0xf]
        %v6377 = vld [vmem:[%s91 + $0x44] sm:$0xf]
        %v6378 = vld [vmem:[%s91 + $0x48] sm:$0xf]
        %v6379 = vld [vmem:[%s91 + $0x4c] sm:$0xf]
        %v6380 = vld [vmem:[%s91 + $0x50] sm:$0xf]
        %v6381 = vld [vmem:[%s91 + $0x54] sm:$0xf]
        %v6382 = vld [vmem:[%s91 + $0x58] sm:$0xf]
        %v6383 = vld [vmem:[%s91 + $0x5c] sm:$0xf]
        %v6384 = vld [vmem:[%s91 + $0x60] sm:$0xf]
        %v6385 = vld [vmem:[%s91 + $0x64] sm:$0xf]
        %v6386 = vld [vmem:[%s91 + $0x68] sm:$0xf]
        %v6387 = vld [vmem:[%s91 + $0x6c] sm:$0xf]
        %v6388 = vld [vmem:[%s91 + $0x70] sm:$0xf]
        %v6389 = vld [vmem:[%s91 + $0x74] sm:$0xf]
        %v6390 = vld [vmem:[%s91 + $0x78] sm:$0xf]
        %v6391 = vld [vmem:[%s91 + $0x7c] sm:$0xf]
        %v6392 = vpack.c.bf16 %v6358, %v6358
        %v6393 = vpack.c.bf16 %v6359, %v6359
        %v6394 = vld [vmem:[#allocation10] sm:$0x1]
        %v6396 = vperm.slane %v6394, 0
        %v6430 = vunpack.c.l.b16 %v6360
        %v6431 = vunpack.c.l.b16 %v6361
        %v6432 = vunpack.c.l.b16 %v6362
        %v6433 = vunpack.c.l.b16 %v6363
        %v6434 = vunpack.c.l.b16 %v6364
        %v6435 = vunpack.c.l.b16 %v6365
        %v6436 = vunpack.c.l.b16 %v6366
        %v6437 = vunpack.c.l.b16 %v6367
        %v6438 = vunpack.c.l.b16 %v6368
        %v6439 = vunpack.c.l.b16 %v6369
        %v6440 = vunpack.c.l.b16 %v6370
        %v6441 = vunpack.c.l.b16 %v6371
        %v6442 = vunpack.c.l.b16 %v6372
        %v6443 = vunpack.c.l.b16 %v6373
        %v6444 = vunpack.c.l.b16 %v6374
        %v6445 = vunpack.c.l.b16 %v6375
        %v6446 = vunpack.c.l.b16 %v6376
        %v6447 = vunpack.c.l.b16 %v6377
        %v6448 = vunpack.c.l.b16 %v6378
        %v6449 = vunpack.c.l.b16 %v6379
        %v6450 = vunpack.c.l.b16 %v6380
        %v6451 = vunpack.c.l.b16 %v6381
        %v6452 = vunpack.c.l.b16 %v6382
        %v6453 = vunpack.c.l.b16 %v6383
        %v6454 = vunpack.c.l.b16 %v6384
        %v6455 = vunpack.c.l.b16 %v6385
        %v6456 = vunpack.c.l.b16 %v6386
        %v6457 = vunpack.c.l.b16 %v6387
        %v6458 = vunpack.c.l.b16 %v6388
        %v6459 = vunpack.c.l.b16 %v6389
        %v6460 = vunpack.c.l.b16 %v6390
        %v6461 = vunpack.c.l.b16 %v6391
        %v6462 = vpack.c.b16 %v6431, %v6430
        %v6463 = vpack.c.b16 %v6433, %v6432
        %v6464 = vpack.c.b16 %v6435, %v6434
        %v6465 = vpack.c.b16 %v6437, %v6436
        %v6466 = vpack.c.b16 %v6439, %v6438
        %v6467 = vpack.c.b16 %v6441, %v6440
        %v6468 = vpack.c.b16 %v6443, %v6442
        %v6469 = vpack.c.b16 %v6445, %v6444
        %v6470 = vpack.c.b16 %v6447, %v6446
        %v6471 = vpack.c.b16 %v6449, %v6448
        %v6472 = vpack.c.b16 %v6451, %v6450
        %v6473 = vpack.c.b16 %v6453, %v6452
        %v6474 = vpack.c.b16 %v6455, %v6454
        %v6475 = vpack.c.b16 %v6457, %v6456
        %v6476 = vpack.c.b16 %v6459, %v6458
        %v6477 = vpack.c.b16 %v6461, %v6460
        %6494 = vmatpush.bf16.msra.mxu0 %v6469
        %6495 = vmatpush.bf16.msra.mxu0 %v6468
        %6496 = vmatpush.bf16.msra.mxu0 %v6467
        %6497 = vmatpush.bf16.msra.mxu0 %v6466
        %6498 = vmatpush.bf16.msra.mxu0 %v6465
        %6499 = vmatpush.bf16.msra.mxu0 %v6464
        %6500 = vmatpush.bf16.msra.mxu0 %v6463
        %6501 = vmatpush.bf16.msra.mxu0 %v6462
        %6502 = vmatmul.bf16.gmra.mxu0 %v6392
        %v6503 = vpop.f32.mrf.mxu0
        %v6504 = vadd.f32 %v6396, %v6503
        %v6505 = vpop.f32.mrf.mxu0
        %6506 = vdwg.mxu0
        %6507 = vmatpush.bf16.msra.mxu0 %v6477
        %6508 = vmatpush.bf16.msra.mxu0 %v6476
        %6509 = vmatpush.bf16.msra.mxu0 %v6475
        %6510 = vmatpush.bf16.msra.mxu0 %v6474
        %6511 = vmatpush.bf16.msra.mxu0 %v6473
        %6512 = vmatpush.bf16.msra.mxu0 %v6472
        %6513 = vmatpush.bf16.msra.mxu0 %v6471
        %6514 = vmatpush.bf16.msra.mxu0 %v6470
        %6515 = vmatmul.bf16.gmra.mxu0 %v6393
        %v6516 = vpop.f32.mrf.mxu0
        %v6517 = vadd.f32 %v6504, %v6516
        %v6518 = vpop.f32.mrf.mxu0
        %6519 = vdwg.mxu0
        %6520 = vst [vmem:[%s1492] sm:$0xff] %v6517
        %p6521 = scmp.lt.s32.totalorder %s110, 1
        %s6522 = scalar_select %p6521, %s110, 1
        %s6523 = smul.addr %s6522, 8
        %s6524 = scalar_lea.vmem %s95, %s6523
        // Predicated region
        $region233: #{swin_classifier_forward.1} parent=207 // pred_check
          %p6525 = pneg %p1120
        $region234: #{swin_classifier_forward.1} parent=207 // pred_check_branch
          %6527 = sbr.rel (%p6525) target = $region236
        $region235: #{swin_classifier_forward.1} parent=207 // pred_region
          _
        $region236: #{swin_classifier_forward.1} parent=207 // pred_fallthru
          _
      $region208: #{swin_classifier_forward.1} parent=5 // pred_fallthru
        _
      %p6528 = scmp.le.s32.totalorder 2, %s105
      // Predicated region
      $region237: #{swin_classifier_forward.1} parent=5 // pred_check
        %p6529 = pneg %p6528
      $region238: #{swin_classifier_forward.1} parent=5 // pred_check_branch
        %6531 = sbr.rel (%p6529) target = $region240
      $region239: #{swin_classifier_forward.1} parent=5 // pred_region
        %s6532 = ssub.s32 %s105, 2
        // Predicated region
        $region241: #{swin_classifier_forward.1} parent=239 // pred_check
          %p6533 = pneg %p1126
        $region242: #{swin_classifier_forward.1} parent=239 // pred_check_branch
          %6535 = sbr.rel (%p6533) target = $region244
        $region243: #{swin_classifier_forward.1} parent=239 // pred_region
          %p6536 = scmp.lt.s32.totalorder %s111, 1
          %s6537 = scalar_select %p6536, %s111, 1
          %s6538 = smul.addr %s6537, 8
          %s6539 = scalar_lea.vmem %s95, %s6538
        $region244: #{swin_classifier_forward.1} parent=239 // pred_fallthru
          _
      $region240: #{swin_classifier_forward.1} parent=5 // pred_fallthru
        _
    $region6: #{swin_classifier_forward.1} parent=1 // loop_footer
      %s109 = sadd.s32 1, %s105
    $region7: #{swin_classifier_forward.1} parent=1 // loop_footer_branch
      %104 = sbr.rel target = $region3
    $region8: #{swin_classifier_forward.1} parent=1 // loop_exit
      _
    %6540 = vsyncpa [#allocation3], 1
    %s6541 = scalar_lea.sflag [#allocation3], 1
    %6542 = vsyncpa %s6541, 1
    %6543 = vsyncpa [#allocation5], 1
    %6544 = vsyncpa [#allocation8], 1
    %6545 = vsyncpa [#allocation11], 1

</llo_original>
